<compile_context>
chip_gen: v6e
topology: v6e:2x2x1
jax: 0.10.0
libtpu: 0.0.40
codegen_flags: <defaults>
</compile_context>

<pallas_src>
import functools

import jax
import jax.numpy as jnp
from jax.experimental import pallas as pl
from jax.experimental.pallas import tpu as pltpu

NUM_INPUTS = 4
NUM_OUTPUTS = 4
NUM_HIDDEN_LAYERS = 4
NUM_NEURONS = 50

_HIDDEN_PAD = 128  # lane-native padded hidden width (50 -> 128, zeros, exact)
_OUT_PAD = 8       # padded output width (4 -> 8): contiguous full-row writeback


def _round_up(v, m):
    return ((v + m - 1) // m) * m


def resnet4d_kernel(inp_ref, w_in_ref, b_in_ref, w_h_ref, b_h_ref,
                    w_out_ref, b_out_ref, out_ref, *,
                    num_hidden_layers, use_bf16):
    def swish(v):
        # sigmoid(v) = 0.5 * tanh(0.5 * v) + 0.5 : one EUP op per element
        # (exp + reciprocal would be two); muls/adds go to the VPU.
        return v * (0.5 * jnp.tanh(0.5 * v) + 0.5)

    mxu_dtype = jnp.bfloat16 if use_bf16 else jnp.float32

    # Input layer (K=4) kept in f32: negligible MXU time, preserves coordinate
    # precision. Normalization is already folded into w_in / b_in.
    x = inp_ref[...]
    h = jnp.dot(x, w_in_ref[...], preferred_element_type=jnp.float32)
    h = swish(h + b_in_ref[...])

    # Residual hidden layers (static unroll; L is a compile-time constant).
    # Hidden/output weights arrive pre-cast from the wrapper (bf16 on the MXU
    # path), so the only per-step cast is the activation itself.
    for i in range(num_hidden_layers):
        residual = h
        z = jnp.dot(h.astype(mxu_dtype), w_h_ref[i],
                    preferred_element_type=jnp.float32) + b_h_ref[i]
        h = swish(z) + residual
        # TODO(synk): on v6e/v7x the bias/swish/residual chain could run in
        # bf16 (VPU/EUP are bf16-capable there) for ~2x fewer vreg ops.

    # Output layer (no activation); only _OUT_PAD (=8) columns are written, so
    # HBM writeback is 32 B/row instead of 512 B/row.
    out_ref[...] = (jnp.dot(h.astype(mxu_dtype), w_out_ref[...],
                            preferred_element_type=jnp.float32)
                    + b_out_ref[...])


def resnet4d_forward(x, y, z, t, params, *, batch_tile=2048, use_bf16=True):
    # Glue: concatenate the four [N, 1] coordinates into [N, 4].
    # TODO(synk): this concat (+ optional batch pad) is one extra HBM pass over
    # the (small) inputs; could be removed via allow_input_fusion or by passing
    # the four columns as separate kernel operands.
    inputs = jnp.concatenate([x, y, z, t], axis=1).astype(jnp.float32)
    n = inputs.shape[0]

    w_in, b_in, w_h, b_h, w_out, b_out = params
    num_hidden_layers = w_h.shape[0]
    hidden = w_in.shape[1]
    num_outputs = w_out.shape[1]

    # Fold (c - 0.5) / 0.2887 into the input layer:
    #   ((c - 0.5)/s) @ W + b = c @ (W/s) + (b - (0.5/s) * sum_rows(W))
    inv_s = jnp.float32(1.0 / 0.2887)
    w_in_eff = w_in * inv_s
    b_in_eff = b_in - (0.5 * inv_s) * jnp.sum(w_in, axis=0, keepdims=True)

    hp = max(_HIDDEN_PAD, _round_up(hidden, 128))   # lane-native hidden width
    op = max(_OUT_PAD, _round_up(num_outputs, 8))   # padded output width
    mxu_dtype = jnp.bfloat16 if use_bf16 else jnp.float32

    # Zero-padding is mathematically exact (swish(0) = 0 through the residuals).
    w_in_p = jnp.zeros((NUM_INPUTS, hp), jnp.float32).at[:, :hidden].set(w_in_eff)
    b_in_p = jnp.zeros((1, hp), jnp.float32).at[:, :hidden].set(b_in_eff)
    w_h_p = (jnp.zeros((num_hidden_layers, hp, hp), jnp.float32)
             .at[:, :hidden, :hidden].set(w_h)).astype(mxu_dtype)
    b_h_p = jnp.zeros((num_hidden_layers, 1, hp),
                      jnp.float32).at[:, :, :hidden].set(b_h)
    w_out_p = (jnp.zeros((hp, op), jnp.float32)
               .at[:hidden, :num_outputs].set(w_out)).astype(mxu_dtype)
    b_out_p = jnp.zeros((1, op), jnp.float32).at[:, :num_outputs].set(b_out)

    # Tile selection: as large as VMEM comfortably allows; for big batches cap
    # at ceil(n/2) so megacore / v7x dual-TC always have >=2 parallel steps.
    tile = max(8, min(batch_tile, _round_up(n, 8)))
    if n >= 2048:
        tile = min(tile, _round_up((n + 1) // 2, 8))
    tile = _round_up(tile, 8)
    n_pad = _round_up(n, tile)
    if n_pad != n:
        inputs = jnp.concatenate(
            [inputs, jnp.zeros((n_pad - n, NUM_INPUTS), jnp.float32)], axis=0)

    kernel = functools.partial(resnet4d_kernel,
                               num_hidden_layers=num_hidden_layers,
                               use_bf16=use_bf16)

    grid = (n_pad // tile,)

    weight_bytes = int(
        w_in_p.size * 4 + b_in_p.size * 4
        + w_h_p.size * w_h_p.dtype.itemsize + b_h_p.size * 4
        + w_out_p.size * w_out_p.dtype.itemsize + b_out_p.size * 4)
    cost = pl.CostEstimate(
        flops=2 * n_pad * (NUM_INPUTS * hp + num_hidden_layers * hp * hp + hp * op),
        transcendentals=n_pad * hp * (num_hidden_layers + 1),
        bytes_accessed=n_pad * NUM_INPUTS * 4 + n_pad * op * 4 + weight_bytes,
    )

    out_padded = pl.pallas_call(
        kernel,
        out_shape=jax.ShapeDtypeStruct((n_pad, op), jnp.float32),
        grid_spec=pltpu.PrefetchScalarGridSpec(
            num_scalar_prefetch=0,
            grid=grid,
            in_specs=[
                pl.BlockSpec((tile, NUM_INPUTS), lambda i: (i, 0)),
                pl.BlockSpec((NUM_INPUTS, hp), lambda i: (0, 0)),
                pl.BlockSpec((1, hp), lambda i: (0, 0)),
                pl.BlockSpec((num_hidden_layers, hp, hp),
                             lambda i: (0, 0, 0)),
                pl.BlockSpec((num_hidden_layers, 1, hp),
                             lambda i: (0, 0, 0)),
                pl.BlockSpec((hp, op), lambda i: (0, 0)),
                pl.BlockSpec((1, op), lambda i: (0, 0)),
            ],
            out_specs=pl.BlockSpec((tile, op), lambda i: (i, 0)),
        ),
        compiler_params=pltpu.CompilerParams(
            dimension_semantics=("parallel",),
            vmem_limit_bytes=32 * 1024 * 1024),
        cost_estimate=cost,
    )(inputs, w_in_p, b_in_p, w_h_p, b_h_p, w_out_p, b_out_p)

    return out_padded[:n, :num_outputs]


def init_params(key, num_inputs=NUM_INPUTS, num_outputs=NUM_OUTPUTS,
                num_hidden_layers=NUM_HIDDEN_LAYERS, num_neurons=NUM_NEURONS):
    """Deterministic init mimicking nn.Linear's uniform(-1/sqrt(fan_in), ...)."""
    ks = jax.random.split(key, 6)

    def uniform(k, shape, fan_in):
        bound = 1.0 / jnp.sqrt(jnp.float32(fan_in))
        return jax.random.uniform(k, shape, jnp.float32, -bound, bound)

    w_in = uniform(ks[0], (num_inputs, num_neurons), num_inputs)
    b_in = uniform(ks[1], (1, num_neurons), num_inputs)
    w_h = uniform(ks[2], (num_hidden_layers, num_neurons, num_neurons),
                  num_neurons)
    b_h = uniform(ks[3], (num_hidden_layers, 1, num_neurons), num_neurons)
    w_out = uniform(ks[4], (num_neurons, num_outputs), num_neurons)
    b_out = uniform(ks[5], (1, num_outputs), num_neurons)
    return (w_in, b_in, w_h, b_h, w_out, b_out)


def reference_forward(x, y, z, t, params):
    """Pure-JAX reference matching the PyTorch module exactly."""
    w_in, b_in, w_h, b_h, w_out, b_out = params
    inp = jnp.concatenate([(x - 0.5) / 0.2887, (y - 0.5) / 0.2887,
                           (z - 0.5) / 0.2887, (t - 0.5) / 0.2887], axis=1)
    h = inp @ w_in + b_in
    h = h * jax.nn.sigmoid(h)
    for i in range(w_h.shape[0]):
        res = h
        zt = h @ w_h[i] + b_h[i]
        h = zt * jax.nn.sigmoid(zt) + res
    return h @ w_out + b_out


if __name__ == "__main__":
    key = jax.random.PRNGKey(0)
    kp, kx, ky, kz, kt = jax.random.split(key, 5)

    params = init_params(kp)

    # Small test batch (single grid step at this size; batch padding and the
    # multi-step parallel grid engage automatically for larger N).
    N = 1000
    x = jax.random.uniform(kx, (N, 1), jnp.float32)
    y = jax.random.uniform(ky, (N, 1), jnp.float32)
    z = jax.random.uniform(kz, (N, 1), jnp.float32)
    t = jax.random.uniform(kt, (N, 1), jnp.float32)

    ref = reference_forward(x, y, z, t, params)

    # f32-MXU path: tight check against the pure-JAX reference.
    out_f32 = jax.block_until_ready(
        resnet4d_forward(x, y, z, t, params, use_bf16=False))
    assert out_f32.shape == (N, NUM_OUTPUTS)
    err_f32 = float(jnp.max(jnp.abs(out_f32 - ref)))
    assert err_f32 < 1e-2, f"f32 path mismatch vs reference, max abs err={err_f32}"

    # bf16-MXU path (default fast path on v5e/v6e/v7x): relaxed tolerance.
    out_bf16 = jax.block_until_ready(resnet4d_forward(x, y, z, t, params))
    assert out_bf16.shape == (N, NUM_OUTPUTS)
    err_bf16 = float(jnp.max(jnp.abs(out_bf16 - ref)))
    assert err_bf16 < 5e-2, f"bf16 path mismatch vs reference, max abs err={err_bf16}"

    print("KERNEL_OK")
</pallas_src>

<mosaic_0001>
module attributes {stable_mosaic.version = 11 : i64} {
  func.func @resnet4d_kernel(%arg0: i32, %arg1: memref<1000x4xf32, #tpu.memory_space<vmem>>, %arg2: memref<4x128xf32, #tpu.memory_space<vmem>>, %arg3: memref<1x128xf32, #tpu.memory_space<vmem>>, %arg4: memref<4x128x128xf32, #tpu.memory_space<vmem>>, %arg5: memref<4x1x128xf32, #tpu.memory_space<vmem>>, %arg6: memref<128x8xf32, #tpu.memory_space<vmem>>, %arg7: memref<1x8xf32, #tpu.memory_space<vmem>>, %arg8: memref<1000x8xf32, #tpu.memory_space<vmem>>) attributes {dimension_semantics = [#tpu.dimension_semantics<parallel>], iteration_bounds = array<i64: 1>, scalar_prefetch = 0 : i64, scratch_operands = 0 : i64, tpu.core_type = #tpu.core_type<tc>, window_params = [{transform_indices = @transform_0, window_bounds = array<i64: 1000, 4>}, {pipeline_mode = #tpu.pipeline_mode<synchronous>, transform_indices = @transform_1, window_bounds = array<i64: 4, 128>}, {pipeline_mode = #tpu.pipeline_mode<synchronous>, transform_indices = @transform_2, window_bounds = array<i64: 1, 128>}, {pipeline_mode = #tpu.pipeline_mode<synchronous>, transform_indices = @transform_3, window_bounds = array<i64: 4, 128, 128>}, {pipeline_mode = #tpu.pipeline_mode<synchronous>, transform_indices = @transform_4, window_bounds = array<i64: 4, 1, 128>}, {pipeline_mode = #tpu.pipeline_mode<synchronous>, transform_indices = @transform_5, window_bounds = array<i64: 128, 8>}, {pipeline_mode = #tpu.pipeline_mode<synchronous>, transform_indices = @transform_6, window_bounds = array<i64: 1, 8>}, {transform_indices = @transform_7, window_bounds = array<i64: 1000, 8>}]} {
    %c0 = arith.constant 0 : index
    %c0_0 = arith.constant 0 : index
    %0 = vector.load %arg1[%c0, %c0_0] : memref<1000x4xf32, #tpu.memory_space<vmem>>, vector<1000x4xf32>
    %c0_1 = arith.constant 0 : index
    %c0_2 = arith.constant 0 : index
    %1 = vector.load %arg2[%c0_1, %c0_2] : memref<4x128xf32, #tpu.memory_space<vmem>>, vector<4x128xf32>
    %cst = arith.constant dense<0.000000e+00> : vector<1000x128xf32>
    %2 = tpu.matmul %0, %1, %cst {dimension_numbers = #tpu.dot_dimension_numbers<[1], [0], [0], [1], [0, 0, 1, 1], [], []>} : vector<1000x4xf32>, vector<4x128xf32>, vector<1000x128xf32> -> vector<1000x128xf32>
    %c0_3 = arith.constant 0 : index
    %c0_4 = arith.constant 0 : index
    %3 = vector.load %arg3[%c0_3, %c0_4] : memref<1x128xf32, #tpu.memory_space<vmem>>, vector<1x128xf32>
    %4 = vector.broadcast %3 : vector<1x128xf32> to vector<1000x128xf32>
    %5 = arith.addf %2, %4 : vector<1000x128xf32>
    %cst_5 = arith.constant 5.000000e-01 : f32
    %6 = vector.broadcast %cst_5 : f32 to vector<1000x128xf32>
    %7 = arith.mulf %6, %5 : vector<1000x128xf32>
    %8 = math.tanh %7 : vector<1000x128xf32>
    %cst_6 = arith.constant 5.000000e-01 : f32
    %9 = vector.broadcast %cst_6 : f32 to vector<1000x128xf32>
    %10 = arith.mulf %9, %8 : vector<1000x128xf32>
    %cst_7 = arith.constant 5.000000e-01 : f32
    %11 = vector.broadcast %cst_7 : f32 to vector<1000x128xf32>
    %12 = arith.addf %10, %11 : vector<1000x128xf32>
    %13 = arith.mulf %5, %12 : vector<1000x128xf32>
    %c0_8 = arith.constant 0 : index
    %c0_9 = arith.constant 0 : index
    %c0_10 = arith.constant 0 : index
    %14 = vector.load %arg4[%c0_8, %c0_9, %c0_10] : memref<4x128x128xf32, #tpu.memory_space<vmem>>, vector<1x128x128xf32>
    %15 = vector.shape_cast %14 : vector<1x128x128xf32> to vector<128x128xf32>
    %cst_11 = arith.constant dense<0.000000e+00> : vector<1000x128xf32>
    %16 = tpu.matmul %13, %15, %cst_11 {dimension_numbers = #tpu.dot_dimension_numbers<[1], [0], [0], [1], [0, 0, 1, 1], [], []>} : vector<1000x128xf32>, vector<128x128xf32>, vector<1000x128xf32> -> vector<1000x128xf32>
    %c0_12 = arith.constant 0 : index
    %c0_13 = arith.constant 0 : index
    %c0_14 = arith.constant 0 : index
    %17 = vector.load %arg5[%c0_12, %c0_13, %c0_14] : memref<4x1x128xf32, #tpu.memory_space<vmem>>, vector<1x1x128xf32>
    %18 = vector.shape_cast %17 : vector<1x1x128xf32> to vector<1x128xf32>
    %19 = vector.broadcast %18 : vector<1x128xf32> to vector<1000x128xf32>
    %20 = arith.addf %16, %19 : vector<1000x128xf32>
    %cst_15 = arith.constant 5.000000e-01 : f32
    %21 = vector.broadcast %cst_15 : f32 to vector<1000x128xf32>
    %22 = arith.mulf %21, %20 : vector<1000x128xf32>
    %23 = math.tanh %22 : vector<1000x128xf32>
    %cst_16 = arith.constant 5.000000e-01 : f32
    %24 = vector.broadcast %cst_16 : f32 to vector<1000x128xf32>
    %25 = arith.mulf %24, %23 : vector<1000x128xf32>
    %cst_17 = arith.constant 5.000000e-01 : f32
    %26 = vector.broadcast %cst_17 : f32 to vector<1000x128xf32>
    %27 = arith.addf %25, %26 : vector<1000x128xf32>
    %28 = arith.mulf %20, %27 : vector<1000x128xf32>
    %29 = arith.addf %28, %13 : vector<1000x128xf32>
    %c1 = arith.constant 1 : index
    %c0_18 = arith.constant 0 : index
    %c0_19 = arith.constant 0 : index
    %30 = vector.load %arg4[%c1, %c0_18, %c0_19] : memref<4x128x128xf32, #tpu.memory_space<vmem>>, vector<1x128x128xf32>
    %31 = vector.shape_cast %30 : vector<1x128x128xf32> to vector<128x128xf32>
    %cst_20 = arith.constant dense<0.000000e+00> : vector<1000x128xf32>
    %32 = tpu.matmul %29, %31, %cst_20 {dimension_numbers = #tpu.dot_dimension_numbers<[1], [0], [0], [1], [0, 0, 1, 1], [], []>} : vector<1000x128xf32>, vector<128x128xf32>, vector<1000x128xf32> -> vector<1000x128xf32>
    %c1_21 = arith.constant 1 : index
    %c0_22 = arith.constant 0 : index
    %c0_23 = arith.constant 0 : index
    %33 = vector.load %arg5[%c1_21, %c0_22, %c0_23] : memref<4x1x128xf32, #tpu.memory_space<vmem>>, vector<1x1x128xf32>
    %34 = vector.shape_cast %33 : vector<1x1x128xf32> to vector<1x128xf32>
    %35 = vector.broadcast %34 : vector<1x128xf32> to vector<1000x128xf32>
    %36 = arith.addf %32, %35 : vector<1000x128xf32>
    %cst_24 = arith.constant 5.000000e-01 : f32
    %37 = vector.broadcast %cst_24 : f32 to vector<1000x128xf32>
    %38 = arith.mulf %37, %36 : vector<1000x128xf32>
    %39 = math.tanh %38 : vector<1000x128xf32>
    %cst_25 = arith.constant 5.000000e-01 : f32
    %40 = vector.broadcast %cst_25 : f32 to vector<1000x128xf32>
    %41 = arith.mulf %40, %39 : vector<1000x128xf32>
    %cst_26 = arith.constant 5.000000e-01 : f32
    %42 = vector.broadcast %cst_26 : f32 to vector<1000x128xf32>
    %43 = arith.addf %41, %42 : vector<1000x128xf32>
    %44 = arith.mulf %36, %43 : vector<1000x128xf32>
    %45 = arith.addf %44, %29 : vector<1000x128xf32>
    %c2 = arith.constant 2 : index
    %c0_27 = arith.constant 0 : index
    %c0_28 = arith.constant 0 : index
    %46 = vector.load %arg4[%c2, %c0_27, %c0_28] : memref<4x128x128xf32, #tpu.memory_space<vmem>>, vector<1x128x128xf32>
    %47 = vector.shape_cast %46 : vector<1x128x128xf32> to vector<128x128xf32>
    %cst_29 = arith.constant dense<0.000000e+00> : vector<1000x128xf32>
    %48 = tpu.matmul %45, %47, %cst_29 {dimension_numbers = #tpu.dot_dimension_numbers<[1], [0], [0], [1], [0, 0, 1, 1], [], []>} : vector<1000x128xf32>, vector<128x128xf32>, vector<1000x128xf32> -> vector<1000x128xf32>
    %c2_30 = arith.constant 2 : index
    %c0_31 = arith.constant 0 : index
    %c0_32 = arith.constant 0 : index
    %49 = vector.load %arg5[%c2_30, %c0_31, %c0_32] : memref<4x1x128xf32, #tpu.memory_space<vmem>>, vector<1x1x128xf32>
    %50 = vector.shape_cast %49 : vector<1x1x128xf32> to vector<1x128xf32>
    %51 = vector.broadcast %50 : vector<1x128xf32> to vector<1000x128xf32>
    %52 = arith.addf %48, %51 : vector<1000x128xf32>
    %cst_33 = arith.constant 5.000000e-01 : f32
    %53 = vector.broadcast %cst_33 : f32 to vector<1000x128xf32>
    %54 = arith.mulf %53, %52 : vector<1000x128xf32>
    %55 = math.tanh %54 : vector<1000x128xf32>
    %cst_34 = arith.constant 5.000000e-01 : f32
    %56 = vector.broadcast %cst_34 : f32 to vector<1000x128xf32>
    %57 = arith.mulf %56, %55 : vector<1000x128xf32>
    %cst_35 = arith.constant 5.000000e-01 : f32
    %58 = vector.broadcast %cst_35 : f32 to vector<1000x128xf32>
    %59 = arith.addf %57, %58 : vector<1000x128xf32>
    %60 = arith.mulf %52, %59 : vector<1000x128xf32>
    %61 = arith.addf %60, %45 : vector<1000x128xf32>
    %c3 = arith.constant 3 : index
    %c0_36 = arith.constant 0 : index
    %c0_37 = arith.constant 0 : index
    %62 = vector.load %arg4[%c3, %c0_36, %c0_37] : memref<4x128x128xf32, #tpu.memory_space<vmem>>, vector<1x128x128xf32>
    %63 = vector.shape_cast %62 : vector<1x128x128xf32> to vector<128x128xf32>
    %cst_38 = arith.constant dense<0.000000e+00> : vector<1000x128xf32>
    %64 = tpu.matmul %61, %63, %cst_38 {dimension_numbers = #tpu.dot_dimension_numbers<[1], [0], [0], [1], [0, 0, 1, 1], [], []>} : vector<1000x128xf32>, vector<128x128xf32>, vector<1000x128xf32> -> vector<1000x128xf32>
    %c3_39 = arith.constant 3 : index
    %c0_40 = arith.constant 0 : index
    %c0_41 = arith.constant 0 : index
    %65 = vector.load %arg5[%c3_39, %c0_40, %c0_41] : memref<4x1x128xf32, #tpu.memory_space<vmem>>, vector<1x1x128xf32>
    %66 = vector.shape_cast %65 : vector<1x1x128xf32> to vector<1x128xf32>
    %67 = vector.broadcast %66 : vector<1x128xf32> to vector<1000x128xf32>
    %68 = arith.addf %64, %67 : vector<1000x128xf32>
    %cst_42 = arith.constant 5.000000e-01 : f32
    %69 = vector.broadcast %cst_42 : f32 to vector<1000x128xf32>
    %70 = arith.mulf %69, %68 : vector<1000x128xf32>
    %71 = math.tanh %70 : vector<1000x128xf32>
    %cst_43 = arith.constant 5.000000e-01 : f32
    %72 = vector.broadcast %cst_43 : f32 to vector<1000x128xf32>
    %73 = arith.mulf %72, %71 : vector<1000x128xf32>
    %cst_44 = arith.constant 5.000000e-01 : f32
    %74 = vector.broadcast %cst_44 : f32 to vector<1000x128xf32>
    %75 = arith.addf %73, %74 : vector<1000x128xf32>
    %76 = arith.mulf %68, %75 : vector<1000x128xf32>
    %77 = arith.addf %76, %61 : vector<1000x128xf32>
    %c0_45 = arith.constant 0 : index
    %c0_46 = arith.constant 0 : index
    %78 = vector.load %arg6[%c0_45, %c0_46] : memref<128x8xf32, #tpu.memory_space<vmem>>, vector<128x8xf32>
    %cst_47 = arith.constant dense<0.000000e+00> : vector<1000x8xf32>
    %79 = tpu.matmul %77, %78, %cst_47 {dimension_numbers = #tpu.dot_dimension_numbers<[1], [0], [0], [1], [0, 0, 1, 1], [], []>} : vector<1000x128xf32>, vector<128x8xf32>, vector<1000x8xf32> -> vector<1000x8xf32>
    %c0_48 = arith.constant 0 : index
    %c0_49 = arith.constant 0 : index
    %80 = vector.load %arg7[%c0_48, %c0_49] : memref<1x8xf32, #tpu.memory_space<vmem>>, vector<1x8xf32>
    %81 = vector.broadcast %80 : vector<1x8xf32> to vector<1000x8xf32>
    %82 = arith.addf %79, %81 : vector<1000x8xf32>
    %c0_50 = arith.constant 0 : index
    %c0_51 = arith.constant 0 : index
    %83 = vector.load %arg8[%c0_50, %c0_51] : memref<1000x8xf32, #tpu.memory_space<vmem>>, vector<1000x8xf32>
    tpu.vector_store %arg8[%c0_50, %c0_51], %82 {strides = array<i32>} : memref<1000x8xf32, #tpu.memory_space<vmem>>, vector<1000x8xf32>,
    return
  }
  func.func @transform_0(%arg0: i32) -> (i32, i32) {
    %c0_i32 = arith.constant 0 : i32
    %c0_i32_0 = arith.constant 0 : i32
    return %arg0, %c0_i32 : i32, i32
  }
  func.func @transform_1(%arg0: i32) -> (i32, i32) {
    %c0_i32 = arith.constant 0 : i32
    %c0_i32_0 = arith.constant 0 : i32
    %c0_i32_1 = arith.constant 0 : i32
    return %c0_i32, %c0_i32_0 : i32, i32
  }
  func.func @transform_2(%arg0: i32) -> (i32, i32) {
    %c0_i32 = arith.constant 0 : i32
    %c0_i32_0 = arith.constant 0 : i32
    %c0_i32_1 = arith.constant 0 : i32
    return %c0_i32, %c0_i32_0 : i32, i32
  }
  func.func @transform_3(%arg0: i32) -> (i32, i32, i32) {
    %c0_i32 = arith.constant 0 : i32
    %c0_i32_0 = arith.constant 0 : i32
    %c0_i32_1 = arith.constant 0 : i32
    %c0_i32_2 = arith.constant 0 : i32
    return %c0_i32, %c0_i32_0, %c0_i32_1 : i32, i32, i32
  }
  func.func @transform_4(%arg0: i32) -> (i32, i32, i32) {
    %c0_i32 = arith.constant 0 : i32
    %c0_i32_0 = arith.constant 0 : i32
    %c0_i32_1 = arith.constant 0 : i32
    %c0_i32_2 = arith.constant 0 : i32
    return %c0_i32, %c0_i32_0, %c0_i32_1 : i32, i32, i32
  }
  func.func @transform_5(%arg0: i32) -> (i32, i32) {
    %c0_i32 = arith.constant 0 : i32
    %c0_i32_0 = arith.constant 0 : i32
    %c0_i32_1 = arith.constant 0 : i32
    return %c0_i32, %c0_i32_0 : i32, i32
  }
  func.func @transform_6(%arg0: i32) -> (i32, i32) {
    %c0_i32 = arith.constant 0 : i32
    %c0_i32_0 = arith.constant 0 : i32
    %c0_i32_1 = arith.constant 0 : i32
    return %c0_i32, %c0_i32_0 : i32, i32
  }
  func.func @transform_7(%arg0: i32) -> (i32, i32) {
    %c0_i32 = arith.constant 0 : i32
    %c0_i32_0 = arith.constant 0 : i32
    return %arg0, %c0_i32 : i32, i32
  }
}

</mosaic_0001>

<llo_original>
// kernel: tpu_custom_call.1
$region0: #{tpu_custom_call.1}
  #allocation0 [shape = 'u32[]', space=smem, size = 0x4, offset = 0x4, fixed_abs, tag = 'smem constant byte address 0x4 - core index']
  #allocation1 [shape = 'u32[144,128]{1,0:T(1,128)}', space=vmem, size = 0x12000, scoped, tag = 'internal scratch']
  %s0 = inlined_call_operand.vmem [shape: f32[1000,4], index: 0, kind: input, shape index: {}]
  %s1 = inlined_call_operand.vmem [shape: f32[4,128], index: 1, kind: input, shape index: {}]
  %s2 = inlined_call_operand.vmem [shape: f32[1,128], index: 2, kind: input, shape index: {}]
  %s3 = inlined_call_operand.vmem [shape: f32[4,128,128], index: 3, kind: input, shape index: {}]
  %s4 = inlined_call_operand.vmem [shape: f32[4,1,128], index: 4, kind: input, shape index: {}]
  %s5 = inlined_call_operand.vmem [shape: f32[128,8], index: 5, kind: input, shape index: {}]
  %s6 = inlined_call_operand.vmem [shape: f32[1,8], index: 6, kind: input, shape index: {}]
  %s7 = inlined_call_operand.vmem [shape: f32[1000,8], index: 7, kind: output, shape index: {}]
  %s8 = sld [smem:[#allocation0]]
  $region38: #{tpu_custom_call.1} parent=0
    _
  %s10 = ssub.s32 1, %s8
  %s11 = scalar_select 0, %s10, %s8
  // Predicated region
  $region2: #{tpu_custom_call.1} parent=0 // pred_check
    _
  $region3: #{tpu_custom_call.1} parent=0 // pred_check_branch
    %13 = sbr.rel (0) target = $region5
  $region4: #{tpu_custom_call.1} parent=0 // pred_region
    _
  $region5: #{tpu_custom_call.1} parent=0 // pred_fallthru
    _
  // Predicated region
  $region6: #{tpu_custom_call.1} parent=0 // pred_check
    _
  $region7: #{tpu_custom_call.1} parent=0 // pred_check_branch
    %15 = sbr.rel (0) target = $region9
  $region8: #{tpu_custom_call.1} parent=0 // pred_region
    _
  $region9: #{tpu_custom_call.1} parent=0 // pred_fallthru
    _
  // Predicated region
  $region10: #{tpu_custom_call.1} parent=0 // pred_check
    _
  $region11: #{tpu_custom_call.1} parent=0 // pred_check_branch
    %17 = sbr.rel (0) target = $region13
  $region12: #{tpu_custom_call.1} parent=0 // pred_region
    _
  $region13: #{tpu_custom_call.1} parent=0 // pred_fallthru
    _
  // Predicated region
  $region14: #{tpu_custom_call.1} parent=0 // pred_check
    _
  $region15: #{tpu_custom_call.1} parent=0 // pred_check_branch
    %19 = sbr.rel (0) target = $region17
  $region16: #{tpu_custom_call.1} parent=0 // pred_region
    _
  $region17: #{tpu_custom_call.1} parent=0 // pred_fallthru
    _
  // Predicated region
  $region18: #{tpu_custom_call.1} parent=0 // pred_check
    _
  $region19: #{tpu_custom_call.1} parent=0 // pred_check_branch
    %21 = sbr.rel (0) target = $region21
  $region20: #{tpu_custom_call.1} parent=0 // pred_region
    _
  $region21: #{tpu_custom_call.1} parent=0 // pred_fallthru
    _
  // Predicated region
  $region22: #{tpu_custom_call.1} parent=0 // pred_check
    _
  $region23: #{tpu_custom_call.1} parent=0 // pred_check_branch
    %23 = sbr.rel (0) target = $region25
  $region24: #{tpu_custom_call.1} parent=0 // pred_region
    _
  $region25: #{tpu_custom_call.1} parent=0 // pred_fallthru
    _
  // Predicated region
  $region26: #{tpu_custom_call.1} parent=0 // pred_check
    _
  $region27: #{tpu_custom_call.1} parent=0 // pred_check_branch
    %25 = sbr.rel (0) target = $region29
  $region28: #{tpu_custom_call.1} parent=0 // pred_region
    _
  $region29: #{tpu_custom_call.1} parent=0 // pred_fallthru
    _
  %v26 = vld [vmem:[%s0] sm:$0xff]
  %v27 = vld [vmem:[%s0 + $0x8] sm:$0xff]
  %v28 = vld [vmem:[%s0 + $0x10] sm:$0xff]
  %v29 = vld [vmem:[%s0 + $0x18] sm:$0xff]
  %v30 = vld [vmem:[%s0 + $0x20] sm:$0xff]
  %v31 = vld [vmem:[%s0 + $0x28] sm:$0xff]
  %v32 = vld [vmem:[%s0 + $0x30] sm:$0xff]
  %v33 = vld [vmem:[%s0 + $0x38] sm:$0xff]
  %v34 = vld [vmem:[%s0 + $0x40] sm:$0xff]
  %v35 = vld [vmem:[%s0 + $0x48] sm:$0xff]
  %v36 = vld [vmem:[%s0 + $0x50] sm:$0xff]
  %v37 = vld [vmem:[%s0 + $0x58] sm:$0xff]
  %v38 = vld [vmem:[%s0 + $0x60] sm:$0xff]
  %v39 = vld [vmem:[%s0 + $0x68] sm:$0xff]
  %v40 = vld [vmem:[%s0 + $0x70] sm:$0xff]
  %v41 = vld [vmem:[%s0 + $0x78] sm:$0xff]
  %v42 = vld [vmem:[%s0 + $0x80] sm:$0xff]
  %v43 = vld [vmem:[%s0 + $0x88] sm:$0xff]
  %v44 = vld [vmem:[%s0 + $0x90] sm:$0xff]
  %v45 = vld [vmem:[%s0 + $0x98] sm:$0xff]
  %v46 = vld [vmem:[%s0 + $0xa0] sm:$0xff]
  %v47 = vld [vmem:[%s0 + $0xa8] sm:$0xff]
  %v48 = vld [vmem:[%s0 + $0xb0] sm:$0xff]
  %v49 = vld [vmem:[%s0 + $0xb8] sm:$0xff]
  %v50 = vld [vmem:[%s0 + $0xc0] sm:$0xff]
  %v51 = vld [vmem:[%s0 + $0xc8] sm:$0xff]
  %v52 = vld [vmem:[%s0 + $0xd0] sm:$0xff]
  %v53 = vld [vmem:[%s0 + $0xd8] sm:$0xff]
  %v54 = vld [vmem:[%s0 + $0xe0] sm:$0xff]
  %v55 = vld [vmem:[%s0 + $0xe8] sm:$0xff]
  %v56 = vld [vmem:[%s0 + $0xf0] sm:$0xff]
  %v57 = vld [vmem:[%s0 + $0xf8] sm:$0xff]
  %v58 = vld [vmem:[%s0 + $0x100] sm:$0xff]
  %v59 = vld [vmem:[%s0 + $0x108] sm:$0xff]
  %v60 = vld [vmem:[%s0 + $0x110] sm:$0xff]
  %v61 = vld [vmem:[%s0 + $0x118] sm:$0xff]
  %v62 = vld [vmem:[%s0 + $0x120] sm:$0xff]
  %v63 = vld [vmem:[%s0 + $0x128] sm:$0xff]
  %v64 = vld [vmem:[%s0 + $0x130] sm:$0xff]
  %v65 = vld [vmem:[%s0 + $0x138] sm:$0xff]
  %v66 = vld [vmem:[%s0 + $0x140] sm:$0xff]
  %v67 = vld [vmem:[%s0 + $0x148] sm:$0xff]
  %v68 = vld [vmem:[%s0 + $0x150] sm:$0xff]
  %v69 = vld [vmem:[%s0 + $0x158] sm:$0xff]
  %v70 = vld [vmem:[%s0 + $0x160] sm:$0xff]
  %v71 = vld [vmem:[%s0 + $0x168] sm:$0xff]
  %v72 = vld [vmem:[%s0 + $0x170] sm:$0xff]
  %v73 = vld [vmem:[%s0 + $0x178] sm:$0xff]
  %v74 = vld [vmem:[%s0 + $0x180] sm:$0xff]
  %v75 = vld [vmem:[%s0 + $0x188] sm:$0xff]
  %v76 = vld [vmem:[%s0 + $0x190] sm:$0xff]
  %v77 = vld [vmem:[%s0 + $0x198] sm:$0xff]
  %v78 = vld [vmem:[%s0 + $0x1a0] sm:$0xff]
  %v79 = vld [vmem:[%s0 + $0x1a8] sm:$0xff]
  %v80 = vld [vmem:[%s0 + $0x1b0] sm:$0xff]
  %v81 = vld [vmem:[%s0 + $0x1b8] sm:$0xff]
  %v82 = vld [vmem:[%s0 + $0x1c0] sm:$0xff]
  %v83 = vld [vmem:[%s0 + $0x1c8] sm:$0xff]
  %v84 = vld [vmem:[%s0 + $0x1d0] sm:$0xff]
  %v85 = vld [vmem:[%s0 + $0x1d8] sm:$0xff]
  %v86 = vld [vmem:[%s0 + $0x1e0] sm:$0xff]
  %v87 = vld [vmem:[%s0 + $0x1e8] sm:$0xff]
  %v88 = vld [vmem:[%s0 + $0x1f0] sm:$0xff]
  %v89 = vld [vmem:[%s0 + $0x1f8] sm:$0xff]
  %v90 = vld [vmem:[%s0 + $0x200] sm:$0xff]
  %v91 = vld [vmem:[%s0 + $0x208] sm:$0xff]
  %v92 = vld [vmem:[%s0 + $0x210] sm:$0xff]
  %v93 = vld [vmem:[%s0 + $0x218] sm:$0xff]
  %v94 = vld [vmem:[%s0 + $0x220] sm:$0xff]
  %v95 = vld [vmem:[%s0 + $0x228] sm:$0xff]
  %v96 = vld [vmem:[%s0 + $0x230] sm:$0xff]
  %v97 = vld [vmem:[%s0 + $0x238] sm:$0xff]
  %v98 = vld [vmem:[%s0 + $0x240] sm:$0xff]
  %v99 = vld [vmem:[%s0 + $0x248] sm:$0xff]
  %v100 = vld [vmem:[%s0 + $0x250] sm:$0xff]
  %v101 = vld [vmem:[%s0 + $0x258] sm:$0xff]
  %v102 = vld [vmem:[%s0 + $0x260] sm:$0xff]
  %v103 = vld [vmem:[%s0 + $0x268] sm:$0xff]
  %v104 = vld [vmem:[%s0 + $0x270] sm:$0xff]
  %v105 = vld [vmem:[%s0 + $0x278] sm:$0xff]
  %v106 = vld [vmem:[%s0 + $0x280] sm:$0xff]
  %v107 = vld [vmem:[%s0 + $0x288] sm:$0xff]
  %v108 = vld [vmem:[%s0 + $0x290] sm:$0xff]
  %v109 = vld [vmem:[%s0 + $0x298] sm:$0xff]
  %v110 = vld [vmem:[%s0 + $0x2a0] sm:$0xff]
  %v111 = vld [vmem:[%s0 + $0x2a8] sm:$0xff]
  %v112 = vld [vmem:[%s0 + $0x2b0] sm:$0xff]
  %v113 = vld [vmem:[%s0 + $0x2b8] sm:$0xff]
  %v114 = vld [vmem:[%s0 + $0x2c0] sm:$0xff]
  %v115 = vld [vmem:[%s0 + $0x2c8] sm:$0xff]
  %v116 = vld [vmem:[%s0 + $0x2d0] sm:$0xff]
  %v117 = vld [vmem:[%s0 + $0x2d8] sm:$0xff]
  %v118 = vld [vmem:[%s0 + $0x2e0] sm:$0xff]
  %v119 = vld [vmem:[%s0 + $0x2e8] sm:$0xff]
  %v120 = vld [vmem:[%s0 + $0x2f0] sm:$0xff]
  %v121 = vld [vmem:[%s0 + $0x2f8] sm:$0xff]
  %v122 = vld [vmem:[%s0 + $0x300] sm:$0xff]
  %v123 = vld [vmem:[%s0 + $0x308] sm:$0xff]
  %v124 = vld [vmem:[%s0 + $0x310] sm:$0xff]
  %v125 = vld [vmem:[%s0 + $0x318] sm:$0xff]
  %v126 = vld [vmem:[%s0 + $0x320] sm:$0xff]
  %v127 = vld [vmem:[%s0 + $0x328] sm:$0xff]
  %v128 = vld [vmem:[%s0 + $0x330] sm:$0xff]
  %v129 = vld [vmem:[%s0 + $0x338] sm:$0xff]
  %v130 = vld [vmem:[%s0 + $0x340] sm:$0xff]
  %v131 = vld [vmem:[%s0 + $0x348] sm:$0xff]
  %v132 = vld [vmem:[%s0 + $0x350] sm:$0xff]
  %v133 = vld [vmem:[%s0 + $0x358] sm:$0xff]
  %v134 = vld [vmem:[%s0 + $0x360] sm:$0xff]
  %v135 = vld [vmem:[%s0 + $0x368] sm:$0xff]
  %v136 = vld [vmem:[%s0 + $0x370] sm:$0xff]
  %v137 = vld [vmem:[%s0 + $0x378] sm:$0xff]
  %v138 = vld [vmem:[%s0 + $0x380] sm:$0xff]
  %v139 = vld [vmem:[%s0 + $0x388] sm:$0xff]
  %v140 = vld [vmem:[%s0 + $0x390] sm:$0xff]
  %v141 = vld [vmem:[%s0 + $0x398] sm:$0xff]
  %v142 = vld [vmem:[%s0 + $0x3a0] sm:$0xff]
  %v143 = vld [vmem:[%s0 + $0x3a8] sm:$0xff]
  %v144 = vld [vmem:[%s0 + $0x3b0] sm:$0xff]
  %v145 = vld [vmem:[%s0 + $0x3b8] sm:$0xff]
  %v146 = vld [vmem:[%s0 + $0x3c0] sm:$0xff]
  %v147 = vld [vmem:[%s0 + $0x3c8] sm:$0xff]
  %v148 = vld [vmem:[%s0 + $0x3d0] sm:$0xff]
  %v149 = vld [vmem:[%s0 + $0x3d8] sm:$0xff]
  %v150 = vld [vmem:[%s0 + $0x3e0] sm:$0xff]
  %v151 = vld [vmem:[%s1] sm:$0xf]
  %v152 = vld [vmem:[%s2] sm:$0x1]
  %v154 = vlaneseq
  %v155 = vshrl.u32 %v154, 7
  %v156 = vsub.s32 0, %v155
  %v157 = vrot.slane %v152, %v156
  %vm159 = vcmask 31744
  %v161 = vsel %vm159, %v26, 0
  %v164 = vsel %vm159, %v27, 0
  %v167 = vsel %vm159, %v28, 0
  %v170 = vsel %vm159, %v29, 0
  %v173 = vsel %vm159, %v30, 0
  %v176 = vsel %vm159, %v31, 0
  %v179 = vsel %vm159, %v32, 0
  %v182 = vsel %vm159, %v33, 0
  %v185 = vsel %vm159, %v34, 0
  %v188 = vsel %vm159, %v35, 0
  %v191 = vsel %vm159, %v36, 0
  %v194 = vsel %vm159, %v37, 0
  %v197 = vsel %vm159, %v38, 0
  %v200 = vsel %vm159, %v39, 0
  %v203 = vsel %vm159, %v40, 0
  %v206 = vsel %vm159, %v41, 0
  %v209 = vsel %vm159, %v42, 0
  %v212 = vsel %vm159, %v43, 0
  %v215 = vsel %vm159, %v44, 0
  %v218 = vsel %vm159, %v45, 0
  %v221 = vsel %vm159, %v46, 0
  %v224 = vsel %vm159, %v47, 0
  %v227 = vsel %vm159, %v48, 0
  %v230 = vsel %vm159, %v49, 0
  %v233 = vsel %vm159, %v50, 0
  %v236 = vsel %vm159, %v51, 0
  %v239 = vsel %vm159, %v52, 0
  %v242 = vsel %vm159, %v53, 0
  %v245 = vsel %vm159, %v54, 0
  %v248 = vsel %vm159, %v55, 0
  %v251 = vsel %vm159, %v56, 0
  %v254 = vsel %vm159, %v57, 0
  %v257 = vsel %vm159, %v58, 0
  %v260 = vsel %vm159, %v59, 0
  %v263 = vsel %vm159, %v60, 0
  %v266 = vsel %vm159, %v61, 0
  %v269 = vsel %vm159, %v62, 0
  %v272 = vsel %vm159, %v63, 0
  %v275 = vsel %vm159, %v64, 0
  %v278 = vsel %vm159, %v65, 0
  %v281 = vsel %vm159, %v66, 0
  %v284 = vsel %vm159, %v67, 0
  %v287 = vsel %vm159, %v68, 0
  %v290 = vsel %vm159, %v69, 0
  %v293 = vsel %vm159, %v70, 0
  %v296 = vsel %vm159, %v71, 0
  %v299 = vsel %vm159, %v72, 0
  %v302 = vsel %vm159, %v73, 0
  %v305 = vsel %vm159, %v74, 0
  %v308 = vsel %vm159, %v75, 0
  %v311 = vsel %vm159, %v76, 0
  %v314 = vsel %vm159, %v77, 0
  %v317 = vsel %vm159, %v78, 0
  %v320 = vsel %vm159, %v79, 0
  %v323 = vsel %vm159, %v80, 0
  %v326 = vsel %vm159, %v81, 0
  %v329 = vsel %vm159, %v82, 0
  %v332 = vsel %vm159, %v83, 0
  %v335 = vsel %vm159, %v84, 0
  %v338 = vsel %vm159, %v85, 0
  %v341 = vsel %vm159, %v86, 0
  %v344 = vsel %vm159, %v87, 0
  %v347 = vsel %vm159, %v88, 0
  %v350 = vsel %vm159, %v89, 0
  %v353 = vsel %vm159, %v90, 0
  %v356 = vsel %vm159, %v91, 0
  %v359 = vsel %vm159, %v92, 0
  %v362 = vsel %vm159, %v93, 0
  %v365 = vsel %vm159, %v94, 0
  %v368 = vsel %vm159, %v95, 0
  %v371 = vsel %vm159, %v96, 0
  %v374 = vsel %vm159, %v97, 0
  %v377 = vsel %vm159, %v98, 0
  %v380 = vsel %vm159, %v99, 0
  %v383 = vsel %vm159, %v100, 0
  %v386 = vsel %vm159, %v101, 0
  %v389 = vsel %vm159, %v102, 0
  %v392 = vsel %vm159, %v103, 0
  %v395 = vsel %vm159, %v104, 0
  %v398 = vsel %vm159, %v105, 0
  %v401 = vsel %vm159, %v106, 0
  %v404 = vsel %vm159, %v107, 0
  %v407 = vsel %vm159, %v108, 0
  %v410 = vsel %vm159, %v109, 0
  %v413 = vsel %vm159, %v110, 0
  %v416 = vsel %vm159, %v111, 0
  %v419 = vsel %vm159, %v112, 0
  %v422 = vsel %vm159, %v113, 0
  %v425 = vsel %vm159, %v114, 0
  %v428 = vsel %vm159, %v115, 0
  %v431 = vsel %vm159, %v116, 0
  %v434 = vsel %vm159, %v117, 0
  %v437 = vsel %vm159, %v118, 0
  %v440 = vsel %vm159, %v119, 0
  %v443 = vsel %vm159, %v120, 0
  %v446 = vsel %vm159, %v121, 0
  %v449 = vsel %vm159, %v122, 0
  %v452 = vsel %vm159, %v123, 0
  %v455 = vsel %vm159, %v124, 0
  %v458 = vsel %vm159, %v125, 0
  %v461 = vsel %vm159, %v126, 0
  %v464 = vsel %vm159, %v127, 0
  %v467 = vsel %vm159, %v128, 0
  %v470 = vsel %vm159, %v129, 0
  %v473 = vsel %vm159, %v130, 0
  %v476 = vsel %vm159, %v131, 0
  %v479 = vsel %vm159, %v132, 0
  %v482 = vsel %vm159, %v133, 0
  %v485 = vsel %vm159, %v134, 0
  %v488 = vsel %vm159, %v135, 0
  %v491 = vsel %vm159, %v136, 0
  %v494 = vsel %vm159, %v137, 0
  %v497 = vsel %vm159, %v138, 0
  %v500 = vsel %vm159, %v139, 0
  %v503 = vsel %vm159, %v140, 0
  %v506 = vsel %vm159, %v141, 0
  %v509 = vsel %vm159, %v142, 0
  %v512 = vsel %vm159, %v143, 0
  %v515 = vsel %vm159, %v144, 0
  %v518 = vsel %vm159, %v145, 0
  %v521 = vsel %vm159, %v146, 0
  %v524 = vsel %vm159, %v147, 0
  %v527 = vsel %vm159, %v148, 0
  %v530 = vsel %vm159, %v149, 0
  %v533 = vsel %vm159, %v150, 0
  %vm535 = vcmask 1043456
  %v537 = vsel %vm535, %v151, 0
  %539 = vmatprep.subr.mxu0 0.0
  %540 = vmatpush1.msra.mxu0 0.0
  %541 = vmatprep.subr.mxu0 0.0
  %542 = vmatpush1.msra.mxu0 0.0
  %543 = vmatprep.subr.mxu0 0.0
  %544 = vmatpush1.msra.mxu0 0.0
  %545 = vmatprep.subr.mxu0 0.0
  %546 = vmatpush1.msra.mxu0 0.0
  %547 = vmatprep.subr.mxu0 0.0
  %548 = vmatpush1.msra.mxu0 0.0
  %549 = vmatprep.subr.mxu0 0.0
  %550 = vmatpush1.msra.mxu0 0.0
  %551 = vmatprep.subr.mxu0 0.0
  %552 = vmatpush1.msra.mxu0 0.0
  %553 = vmatprep.subr.mxu0 0.0
  %554 = vmatpush1.msra.mxu0 0.0
  %555 = vmatprep.subr.mxu0 0.0
  %556 = vmatpush1.msra.mxu0 0.0
  %557 = vmatprep.subr.mxu0 0.0
  %558 = vmatpush1.msra.mxu0 0.0
  %559 = vmatprep.subr.mxu0 0.0
  %560 = vmatpush1.msra.mxu0 0.0
  %561 = vmatprep.subr.mxu0 0.0
  %562 = vmatpush1.msra.mxu0 0.0
  %563 = vmatprep.subr.mxu0 0.0
  %564 = vmatpush1.msra.mxu0 0.0
  %565 = vmatprep.subr.mxu0 0.0
  %566 = vmatpush1.msra.mxu0 0.0
  %567 = vmatprep.subr.mxu0 0.0
  %568 = vmatpush1.msra.mxu0 0.0
  %569 = vmatprep.subr.mxu0 0.0
  %570 = vmatpush1.msra.mxu0 %v537
  %571 = vmatprep.subr.mxu0 0.0
  %572 = vmatpush2.msra.mxu0 0.0
  %573 = vmatprep.subr.mxu0 0.0
  %574 = vmatpush2.msra.mxu0 0.0
  %575 = vmatprep.subr.mxu0 0.0
  %576 = vmatpush2.msra.mxu0 0.0
  %577 = vmatprep.subr.mxu0 0.0
  %578 = vmatpush2.msra.mxu0 0.0
  %579 = vmatprep.subr.mxu0 0.0
  %580 = vmatpush2.msra.mxu0 0.0
  %581 = vmatprep.subr.mxu0 0.0
  %582 = vmatpush2.msra.mxu0 0.0
  %583 = vmatprep.subr.mxu0 0.0
  %584 = vmatpush2.msra.mxu0 0.0
  %585 = vmatprep.subr.mxu0 0.0
  %586 = vmatpush2.msra.mxu0 0.0
  %587 = vmatprep.subr.mxu0 0.0
  %588 = vmatpush2.msra.mxu0 0.0
  %589 = vmatprep.subr.mxu0 0.0
  %590 = vmatpush2.msra.mxu0 0.0
  %591 = vmatprep.subr.mxu0 0.0
  %592 = vmatpush2.msra.mxu0 0.0
  %593 = vmatprep.subr.mxu0 0.0
  %594 = vmatpush2.msra.mxu0 0.0
  %595 = vmatprep.subr.mxu0 0.0
  %596 = vmatpush2.msra.mxu0 0.0
  %597 = vmatprep.subr.mxu0 0.0
  %598 = vmatpush2.msra.mxu0 0.0
  %599 = vmatprep.subr.mxu0 0.0
  %600 = vmatpush2.msra.mxu0 0.0
  %601 = vmatprep.subr.mxu0 0.0
  %602 = vmatpush2.msra.mxu0 0.0
  %603 = vmatprep.mubr.f32.mxu0 0.0
  %604 = vmatmul.mubr.f32.gmra.mxu0 %v161
  %v605 = vpop.f32.mrf.mxu0
  %v606 = vadd.f32 %v157, %v605
  %v607 = vpop.f32.mrf.mxu0
  %608 = vmatprep.mubr.f32.mxu0 0.0
  %609 = vmatmul.mubr.f32.gmra.mxu0 %v164
  %v610 = vpop.f32.mrf.mxu0
  %v611 = vadd.f32 %v157, %v610
  %v612 = vpop.f32.mrf.mxu0
  %613 = vmatprep.mubr.f32.mxu0 0.0
  %614 = vmatmul.mubr.f32.gmra.mxu0 %v167
  %v615 = vpop.f32.mrf.mxu0
  %v616 = vadd.f32 %v157, %v615
  %v617 = vpop.f32.mrf.mxu0
  %618 = vmatprep.mubr.f32.mxu0 0.0
  %619 = vmatmul.mubr.f32.gmra.mxu0 %v170
  %v620 = vpop.f32.mrf.mxu0
  %v621 = vadd.f32 %v157, %v620
  %v622 = vpop.f32.mrf.mxu0
  %623 = vmatprep.mubr.f32.mxu0 0.0
  %624 = vmatmul.mubr.f32.gmra.mxu0 %v173
  %v625 = vpop.f32.mrf.mxu0
  %v626 = vadd.f32 %v157, %v625
  %v627 = vpop.f32.mrf.mxu0
  %628 = vmatprep.mubr.f32.mxu0 0.0
  %629 = vmatmul.mubr.f32.gmra.mxu0 %v176
  %v630 = vpop.f32.mrf.mxu0
  %v631 = vadd.f32 %v157, %v630
  %v632 = vpop.f32.mrf.mxu0
  %633 = vmatprep.mubr.f32.mxu0 0.0
  %634 = vmatmul.mubr.f32.gmra.mxu0 %v179
  %v635 = vpop.f32.mrf.mxu0
  %v636 = vadd.f32 %v157, %v635
  %v637 = vpop.f32.mrf.mxu0
  %638 = vmatprep.mubr.f32.mxu0 0.0
  %639 = vmatmul.mubr.f32.gmra.mxu0 %v182
  %v640 = vpop.f32.mrf.mxu0
  %v641 = vadd.f32 %v157, %v640
  %v642 = vpop.f32.mrf.mxu0
  %643 = vmatprep.mubr.f32.mxu0 0.0
  %644 = vmatmul.mubr.f32.gmra.mxu0 %v185
  %v645 = vpop.f32.mrf.mxu0
  %v646 = vadd.f32 %v157, %v645
  %v647 = vpop.f32.mrf.mxu0
  %648 = vmatprep.mubr.f32.mxu0 0.0
  %649 = vmatmul.mubr.f32.gmra.mxu0 %v188
  %v650 = vpop.f32.mrf.mxu0
  %v651 = vadd.f32 %v157, %v650
  %v652 = vpop.f32.mrf.mxu0
  %653 = vmatprep.mubr.f32.mxu0 0.0
  %654 = vmatmul.mubr.f32.gmra.mxu0 %v191
  %v655 = vpop.f32.mrf.mxu0
  %v656 = vadd.f32 %v157, %v655
  %v657 = vpop.f32.mrf.mxu0
  %658 = vmatprep.mubr.f32.mxu0 0.0
  %659 = vmatmul.mubr.f32.gmra.mxu0 %v194
  %v660 = vpop.f32.mrf.mxu0
  %v661 = vadd.f32 %v157, %v660
  %v662 = vpop.f32.mrf.mxu0
  %663 = vmatprep.mubr.f32.mxu0 0.0
  %664 = vmatmul.mubr.f32.gmra.mxu0 %v197
  %v665 = vpop.f32.mrf.mxu0
  %v666 = vadd.f32 %v157, %v665
  %v667 = vpop.f32.mrf.mxu0
  %668 = vmatprep.mubr.f32.mxu0 0.0
  %669 = vmatmul.mubr.f32.gmra.mxu0 %v200
  %v670 = vpop.f32.mrf.mxu0
  %v671 = vadd.f32 %v157, %v670
  %v672 = vpop.f32.mrf.mxu0
  %673 = vmatprep.mubr.f32.mxu0 0.0
  %674 = vmatmul.mubr.f32.gmra.mxu0 %v203
  %v675 = vpop.f32.mrf.mxu0
  %v676 = vadd.f32 %v157, %v675
  %v677 = vpop.f32.mrf.mxu0
  %678 = vmatprep.mubr.f32.mxu0 0.0
  %679 = vmatmul.mubr.f32.gmra.mxu0 %v206
  %v680 = vpop.f32.mrf.mxu0
  %v681 = vadd.f32 %v157, %v680
  %v682 = vpop.f32.mrf.mxu0
  %683 = vmatprep.mubr.f32.mxu0 0.0
  %684 = vmatmul.mubr.f32.gmra.mxu0 %v209
  %v685 = vpop.f32.mrf.mxu0
  %v686 = vadd.f32 %v157, %v685
  %v687 = vpop.f32.mrf.mxu0
  %688 = vmatprep.mubr.f32.mxu0 0.0
  %689 = vmatmul.mubr.f32.gmra.mxu0 %v212
  %v690 = vpop.f32.mrf.mxu0
  %v691 = vadd.f32 %v157, %v690
  %v692 = vpop.f32.mrf.mxu0
  %693 = vmatprep.mubr.f32.mxu0 0.0
  %694 = vmatmul.mubr.f32.gmra.mxu0 %v215
  %v695 = vpop.f32.mrf.mxu0
  %v696 = vadd.f32 %v157, %v695
  %v697 = vpop.f32.mrf.mxu0
  %698 = vmatprep.mubr.f32.mxu0 0.0
  %699 = vmatmul.mubr.f32.gmra.mxu0 %v218
  %v700 = vpop.f32.mrf.mxu0
  %v701 = vadd.f32 %v157, %v700
  %v702 = vpop.f32.mrf.mxu0
  %703 = vmatprep.mubr.f32.mxu0 0.0
  %704 = vmatmul.mubr.f32.gmra.mxu0 %v221
  %v705 = vpop.f32.mrf.mxu0
  %v706 = vadd.f32 %v157, %v705
  %v707 = vpop.f32.mrf.mxu0
  %708 = vmatprep.mubr.f32.mxu0 0.0
  %709 = vmatmul.mubr.f32.gmra.mxu0 %v224
  %v710 = vpop.f32.mrf.mxu0
  %v711 = vadd.f32 %v157, %v710
  %v712 = vpop.f32.mrf.mxu0
  %713 = vmatprep.mubr.f32.mxu0 0.0
  %714 = vmatmul.mubr.f32.gmra.mxu0 %v227
  %v715 = vpop.f32.mrf.mxu0
  %v716 = vadd.f32 %v157, %v715
  %v717 = vpop.f32.mrf.mxu0
  %718 = vmatprep.mubr.f32.mxu0 0.0
  %719 = vmatmul.mubr.f32.gmra.mxu0 %v230
  %v720 = vpop.f32.mrf.mxu0
  %v721 = vadd.f32 %v157, %v720
  %v722 = vpop.f32.mrf.mxu0
  %723 = vmatprep.mubr.f32.mxu0 0.0
  %724 = vmatmul.mubr.f32.gmra.mxu0 %v233
  %v725 = vpop.f32.mrf.mxu0
  %v726 = vadd.f32 %v157, %v725
  %v727 = vpop.f32.mrf.mxu0
  %728 = vmatprep.mubr.f32.mxu0 0.0
  %729 = vmatmul.mubr.f32.gmra.mxu0 %v236
  %v730 = vpop.f32.mrf.mxu0
  %v731 = vadd.f32 %v157, %v730
  %v732 = vpop.f32.mrf.mxu0
  %733 = vmatprep.mubr.f32.mxu0 0.0
  %734 = vmatmul.mubr.f32.gmra.mxu0 %v239
  %v735 = vpop.f32.mrf.mxu0
  %v736 = vadd.f32 %v157, %v735
  %v737 = vpop.f32.mrf.mxu0
  %738 = vmatprep.mubr.f32.mxu0 0.0
  %739 = vmatmul.mubr.f32.gmra.mxu0 %v242
  %v740 = vpop.f32.mrf.mxu0
  %v741 = vadd.f32 %v157, %v740
  %v742 = vpop.f32.mrf.mxu0
  %743 = vmatprep.mubr.f32.mxu0 0.0
  %744 = vmatmul.mubr.f32.gmra.mxu0 %v245
  %v745 = vpop.f32.mrf.mxu0
  %v746 = vadd.f32 %v157, %v745
  %v747 = vpop.f32.mrf.mxu0
  %748 = vmatprep.mubr.f32.mxu0 0.0
  %749 = vmatmul.mubr.f32.gmra.mxu0 %v248
  %v750 = vpop.f32.mrf.mxu0
  %v751 = vadd.f32 %v157, %v750
  %v752 = vpop.f32.mrf.mxu0
  %753 = vmatprep.mubr.f32.mxu0 0.0
  %754 = vmatmul.mubr.f32.gmra.mxu0 %v251
  %v755 = vpop.f32.mrf.mxu0
  %v756 = vadd.f32 %v157, %v755
  %v757 = vpop.f32.mrf.mxu0
  %758 = vmatprep.mubr.f32.mxu0 0.0
  %759 = vmatmul.mubr.f32.gmra.mxu0 %v254
  %v760 = vpop.f32.mrf.mxu0
  %v761 = vadd.f32 %v157, %v760
  %v762 = vpop.f32.mrf.mxu0
  %763 = vmatprep.mubr.f32.mxu0 0.0
  %764 = vmatmul.mubr.f32.gmra.mxu0 %v257
  %v765 = vpop.f32.mrf.mxu0
  %v766 = vadd.f32 %v157, %v765
  %v767 = vpop.f32.mrf.mxu0
  %768 = vmatprep.mubr.f32.mxu0 0.0
  %769 = vmatmul.mubr.f32.gmra.mxu0 %v260
  %v770 = vpop.f32.mrf.mxu0
  %v771 = vadd.f32 %v157, %v770
  %v772 = vpop.f32.mrf.mxu0
  %773 = vmatprep.mubr.f32.mxu0 0.0
  %774 = vmatmul.mubr.f32.gmra.mxu0 %v263
  %v775 = vpop.f32.mrf.mxu0
  %v776 = vadd.f32 %v157, %v775
  %v777 = vpop.f32.mrf.mxu0
  %778 = vmatprep.mubr.f32.mxu0 0.0
  %779 = vmatmul.mubr.f32.gmra.mxu0 %v266
  %v780 = vpop.f32.mrf.mxu0
  %v781 = vadd.f32 %v157, %v780
  %v782 = vpop.f32.mrf.mxu0
  %783 = vmatprep.mubr.f32.mxu0 0.0
  %784 = vmatmul.mubr.f32.gmra.mxu0 %v269
  %v785 = vpop.f32.mrf.mxu0
  %v786 = vadd.f32 %v157, %v785
  %v787 = vpop.f32.mrf.mxu0
  %788 = vmatprep.mubr.f32.mxu0 0.0
  %789 = vmatmul.mubr.f32.gmra.mxu0 %v272
  %v790 = vpop.f32.mrf.mxu0
  %v791 = vadd.f32 %v157, %v790
  %v792 = vpop.f32.mrf.mxu0
  %793 = vmatprep.mubr.f32.mxu0 0.0
  %794 = vmatmul.mubr.f32.gmra.mxu0 %v275
  %v795 = vpop.f32.mrf.mxu0
  %v796 = vadd.f32 %v157, %v795
  %v797 = vpop.f32.mrf.mxu0
  %798 = vmatprep.mubr.f32.mxu0 0.0
  %799 = vmatmul.mubr.f32.gmra.mxu0 %v278
  %v800 = vpop.f32.mrf.mxu0
  %v801 = vadd.f32 %v157, %v800
  %v802 = vpop.f32.mrf.mxu0
  %803 = vmatprep.mubr.f32.mxu0 0.0
  %804 = vmatmul.mubr.f32.gmra.mxu0 %v281
  %v805 = vpop.f32.mrf.mxu0
  %v806 = vadd.f32 %v157, %v805
  %v807 = vpop.f32.mrf.mxu0
  %808 = vmatprep.mubr.f32.mxu0 0.0
  %809 = vmatmul.mubr.f32.gmra.mxu0 %v284
  %v810 = vpop.f32.mrf.mxu0
  %v811 = vadd.f32 %v157, %v810
  %v812 = vpop.f32.mrf.mxu0
  %813 = vmatprep.mubr.f32.mxu0 0.0
  %814 = vmatmul.mubr.f32.gmra.mxu0 %v287
  %v815 = vpop.f32.mrf.mxu0
  %v816 = vadd.f32 %v157, %v815
  %v817 = vpop.f32.mrf.mxu0
  %818 = vmatprep.mubr.f32.mxu0 0.0
  %819 = vmatmul.mubr.f32.gmra.mxu0 %v290
  %v820 = vpop.f32.mrf.mxu0
  %v821 = vadd.f32 %v157, %v820
  %v822 = vpop.f32.mrf.mxu0
  %823 = vmatprep.mubr.f32.mxu0 0.0
  %824 = vmatmul.mubr.f32.gmra.mxu0 %v293
  %v825 = vpop.f32.mrf.mxu0
  %v826 = vadd.f32 %v157, %v825
  %v827 = vpop.f32.mrf.mxu0
  %828 = vmatprep.mubr.f32.mxu0 0.0
  %829 = vmatmul.mubr.f32.gmra.mxu0 %v296
  %v830 = vpop.f32.mrf.mxu0
  %v831 = vadd.f32 %v157, %v830
  %v832 = vpop.f32.mrf.mxu0
  %833 = vmatprep.mubr.f32.mxu0 0.0
  %834 = vmatmul.mubr.f32.gmra.mxu0 %v299
  %v835 = vpop.f32.mrf.mxu0
  %v836 = vadd.f32 %v157, %v835
  %v837 = vpop.f32.mrf.mxu0
  %838 = vmatprep.mubr.f32.mxu0 0.0
  %839 = vmatmul.mubr.f32.gmra.mxu0 %v302
  %v840 = vpop.f32.mrf.mxu0
  %v841 = vadd.f32 %v157, %v840
  %v842 = vpop.f32.mrf.mxu0
  %843 = vmatprep.mubr.f32.mxu0 0.0
  %844 = vmatmul.mubr.f32.gmra.mxu0 %v305
  %v845 = vpop.f32.mrf.mxu0
  %v846 = vadd.f32 %v157, %v845
  %v847 = vpop.f32.mrf.mxu0
  %848 = vmatprep.mubr.f32.mxu0 0.0
  %849 = vmatmul.mubr.f32.gmra.mxu0 %v308
  %v850 = vpop.f32.mrf.mxu0
  %v851 = vadd.f32 %v157, %v850
  %v852 = vpop.f32.mrf.mxu0
  %853 = vmatprep.mubr.f32.mxu0 0.0
  %854 = vmatmul.mubr.f32.gmra.mxu0 %v311
  %v855 = vpop.f32.mrf.mxu0
  %v856 = vadd.f32 %v157, %v855
  %v857 = vpop.f32.mrf.mxu0
  %858 = vmatprep.mubr.f32.mxu0 0.0
  %859 = vmatmul.mubr.f32.gmra.mxu0 %v314
  %v860 = vpop.f32.mrf.mxu0
  %v861 = vadd.f32 %v157, %v860
  %v862 = vpop.f32.mrf.mxu0
  %863 = vmatprep.mubr.f32.mxu0 0.0
  %864 = vmatmul.mubr.f32.gmra.mxu0 %v317
  %v865 = vpop.f32.mrf.mxu0
  %v866 = vadd.f32 %v157, %v865
  %v867 = vpop.f32.mrf.mxu0
  %868 = vmatprep.mubr.f32.mxu0 0.0
  %869 = vmatmul.mubr.f32.gmra.mxu0 %v320
  %v870 = vpop.f32.mrf.mxu0
  %v871 = vadd.f32 %v157, %v870
  %v872 = vpop.f32.mrf.mxu0
  %873 = vmatprep.mubr.f32.mxu0 0.0
  %874 = vmatmul.mubr.f32.gmra.mxu0 %v323
  %v875 = vpop.f32.mrf.mxu0
  %v876 = vadd.f32 %v157, %v875
  %v877 = vpop.f32.mrf.mxu0
  %878 = vmatprep.mubr.f32.mxu0 0.0
  %879 = vmatmul.mubr.f32.gmra.mxu0 %v326
  %v880 = vpop.f32.mrf.mxu0
  %v881 = vadd.f32 %v157, %v880
  %v882 = vpop.f32.mrf.mxu0
  %883 = vmatprep.mubr.f32.mxu0 0.0
  %884 = vmatmul.mubr.f32.gmra.mxu0 %v329
  %v885 = vpop.f32.mrf.mxu0
  %v886 = vadd.f32 %v157, %v885
  %v887 = vpop.f32.mrf.mxu0
  %888 = vmatprep.mubr.f32.mxu0 0.0
  %889 = vmatmul.mubr.f32.gmra.mxu0 %v332
  %v890 = vpop.f32.mrf.mxu0
  %v891 = vadd.f32 %v157, %v890
  %v892 = vpop.f32.mrf.mxu0
  %893 = vmatprep.mubr.f32.mxu0 0.0
  %894 = vmatmul.mubr.f32.gmra.mxu0 %v335
  %v895 = vpop.f32.mrf.mxu0
  %v896 = vadd.f32 %v157, %v895
  %v897 = vpop.f32.mrf.mxu0
  %898 = vmatprep.mubr.f32.mxu0 0.0
  %899 = vmatmul.mubr.f32.gmra.mxu0 %v338
  %v900 = vpop.f32.mrf.mxu0
  %v901 = vadd.f32 %v157, %v900
  %v902 = vpop.f32.mrf.mxu0
  %903 = vmatprep.mubr.f32.mxu0 0.0
  %904 = vmatmul.mubr.f32.gmra.mxu0 %v341
  %v905 = vpop.f32.mrf.mxu0
  %v906 = vadd.f32 %v157, %v905
  %v907 = vpop.f32.mrf.mxu0
  %908 = vmatprep.mubr.f32.mxu0 0.0
  %909 = vmatmul.mubr.f32.gmra.mxu0 %v344
  %v910 = vpop.f32.mrf.mxu0
  %v911 = vadd.f32 %v157, %v910
  %v912 = vpop.f32.mrf.mxu0
  %913 = vmatprep.mubr.f32.mxu0 0.0
  %914 = vmatmul.mubr.f32.gmra.mxu0 %v347
  %v915 = vpop.f32.mrf.mxu0
  %v916 = vadd.f32 %v157, %v915
  %v917 = vpop.f32.mrf.mxu0
  %918 = vmatprep.mubr.f32.mxu0 0.0
  %919 = vmatmul.mubr.f32.gmra.mxu0 %v350
  %v920 = vpop.f32.mrf.mxu0
  %v921 = vadd.f32 %v157, %v920
  %v922 = vpop.f32.mrf.mxu0
  %923 = vmatprep.mubr.f32.mxu0 0.0
  %924 = vmatmul.mubr.f32.gmra.mxu0 %v353
  %v925 = vpop.f32.mrf.mxu0
  %v926 = vadd.f32 %v157, %v925
  %v927 = vpop.f32.mrf.mxu0
  %928 = vmatprep.mubr.f32.mxu0 0.0
  %929 = vmatmul.mubr.f32.gmra.mxu0 %v356
  %v930 = vpop.f32.mrf.mxu0
  %v931 = vadd.f32 %v157, %v930
  %v932 = vpop.f32.mrf.mxu0
  %933 = vmatprep.mubr.f32.mxu0 0.0
  %934 = vmatmul.mubr.f32.gmra.mxu0 %v359
  %v935 = vpop.f32.mrf.mxu0
  %v936 = vadd.f32 %v157, %v935
  %v937 = vpop.f32.mrf.mxu0
  %938 = vmatprep.mubr.f32.mxu0 0.0
  %939 = vmatmul.mubr.f32.gmra.mxu0 %v362
  %v940 = vpop.f32.mrf.mxu0
  %v941 = vadd.f32 %v157, %v940
  %v942 = vpop.f32.mrf.mxu0
  %943 = vmatprep.mubr.f32.mxu0 0.0
  %944 = vmatmul.mubr.f32.gmra.mxu0 %v365
  %v945 = vpop.f32.mrf.mxu0
  %v946 = vadd.f32 %v157, %v945
  %v947 = vpop.f32.mrf.mxu0
  %948 = vmatprep.mubr.f32.mxu0 0.0
  %949 = vmatmul.mubr.f32.gmra.mxu0 %v368
  %v950 = vpop.f32.mrf.mxu0
  %v951 = vadd.f32 %v157, %v950
  %v952 = vpop.f32.mrf.mxu0
  %953 = vmatprep.mubr.f32.mxu0 0.0
  %954 = vmatmul.mubr.f32.gmra.mxu0 %v371
  %v955 = vpop.f32.mrf.mxu0
  %v956 = vadd.f32 %v157, %v955
  %v957 = vpop.f32.mrf.mxu0
  %958 = vmatprep.mubr.f32.mxu0 0.0
  %959 = vmatmul.mubr.f32.gmra.mxu0 %v374
  %v960 = vpop.f32.mrf.mxu0
  %v961 = vadd.f32 %v157, %v960
  %v962 = vpop.f32.mrf.mxu0
  %963 = vmatprep.mubr.f32.mxu0 0.0
  %964 = vmatmul.mubr.f32.gmra.mxu0 %v377
  %v965 = vpop.f32.mrf.mxu0
  %v966 = vadd.f32 %v157, %v965
  %v967 = vpop.f32.mrf.mxu0
  %968 = vmatprep.mubr.f32.mxu0 0.0
  %969 = vmatmul.mubr.f32.gmra.mxu0 %v380
  %v970 = vpop.f32.mrf.mxu0
  %v971 = vadd.f32 %v157, %v970
  %v972 = vpop.f32.mrf.mxu0
  %973 = vmatprep.mubr.f32.mxu0 0.0
  %974 = vmatmul.mubr.f32.gmra.mxu0 %v383
  %v975 = vpop.f32.mrf.mxu0
  %v976 = vadd.f32 %v157, %v975
  %v977 = vpop.f32.mrf.mxu0
  %978 = vmatprep.mubr.f32.mxu0 0.0
  %979 = vmatmul.mubr.f32.gmra.mxu0 %v386
  %v980 = vpop.f32.mrf.mxu0
  %v981 = vadd.f32 %v157, %v980
  %v982 = vpop.f32.mrf.mxu0
  %983 = vmatprep.mubr.f32.mxu0 0.0
  %984 = vmatmul.mubr.f32.gmra.mxu0 %v389
  %v985 = vpop.f32.mrf.mxu0
  %v986 = vadd.f32 %v157, %v985
  %v987 = vpop.f32.mrf.mxu0
  %988 = vmatprep.mubr.f32.mxu0 0.0
  %989 = vmatmul.mubr.f32.gmra.mxu0 %v392
  %v990 = vpop.f32.mrf.mxu0
  %v991 = vadd.f32 %v157, %v990
  %v992 = vpop.f32.mrf.mxu0
  %993 = vmatprep.mubr.f32.mxu0 0.0
  %994 = vmatmul.mubr.f32.gmra.mxu0 %v395
  %v995 = vpop.f32.mrf.mxu0
  %v996 = vadd.f32 %v157, %v995
  %v997 = vpop.f32.mrf.mxu0
  %998 = vmatprep.mubr.f32.mxu0 0.0
  %999 = vmatmul.mubr.f32.gmra.mxu0 %v398
  %v1000 = vpop.f32.mrf.mxu0
  %v1001 = vadd.f32 %v157, %v1000
  %v1002 = vpop.f32.mrf.mxu0
  %1003 = vmatprep.mubr.f32.mxu0 0.0
  %1004 = vmatmul.mubr.f32.gmra.mxu0 %v401
  %v1005 = vpop.f32.mrf.mxu0
  %v1006 = vadd.f32 %v157, %v1005
  %v1007 = vpop.f32.mrf.mxu0
  %1008 = vmatprep.mubr.f32.mxu0 0.0
  %1009 = vmatmul.mubr.f32.gmra.mxu0 %v404
  %v1010 = vpop.f32.mrf.mxu0
  %v1011 = vadd.f32 %v157, %v1010
  %v1012 = vpop.f32.mrf.mxu0
  %1013 = vmatprep.mubr.f32.mxu0 0.0
  %1014 = vmatmul.mubr.f32.gmra.mxu0 %v407
  %v1015 = vpop.f32.mrf.mxu0
  %v1016 = vadd.f32 %v157, %v1015
  %v1017 = vpop.f32.mrf.mxu0
  %1018 = vmatprep.mubr.f32.mxu0 0.0
  %1019 = vmatmul.mubr.f32.gmra.mxu0 %v410
  %v1020 = vpop.f32.mrf.mxu0
  %v1021 = vadd.f32 %v157, %v1020
  %v1022 = vpop.f32.mrf.mxu0
  %1023 = vmatprep.mubr.f32.mxu0 0.0
  %1024 = vmatmul.mubr.f32.gmra.mxu0 %v413
  %v1025 = vpop.f32.mrf.mxu0
  %v1026 = vadd.f32 %v157, %v1025
  %v1027 = vpop.f32.mrf.mxu0
  %1028 = vmatprep.mubr.f32.mxu0 0.0
  %1029 = vmatmul.mubr.f32.gmra.mxu0 %v416
  %v1030 = vpop.f32.mrf.mxu0
  %v1031 = vadd.f32 %v157, %v1030
  %v1032 = vpop.f32.mrf.mxu0
  %1033 = vmatprep.mubr.f32.mxu0 0.0
  %1034 = vmatmul.mubr.f32.gmra.mxu0 %v419
  %v1035 = vpop.f32.mrf.mxu0
  %v1036 = vadd.f32 %v157, %v1035
  %v1037 = vpop.f32.mrf.mxu0
  %1038 = vmatprep.mubr.f32.mxu0 0.0
  %1039 = vmatmul.mubr.f32.gmra.mxu0 %v422
  %v1040 = vpop.f32.mrf.mxu0
  %v1041 = vadd.f32 %v157, %v1040
  %v1042 = vpop.f32.mrf.mxu0
  %1043 = vmatprep.mubr.f32.mxu0 0.0
  %1044 = vmatmul.mubr.f32.gmra.mxu0 %v425
  %v1045 = vpop.f32.mrf.mxu0
  %v1046 = vadd.f32 %v157, %v1045
  %v1047 = vpop.f32.mrf.mxu0
  %1048 = vmatprep.mubr.f32.mxu0 0.0
  %1049 = vmatmul.mubr.f32.gmra.mxu0 %v428
  %v1050 = vpop.f32.mrf.mxu0
  %v1051 = vadd.f32 %v157, %v1050
  %v1052 = vpop.f32.mrf.mxu0
  %1053 = vmatprep.mubr.f32.mxu0 0.0
  %1054 = vmatmul.mubr.f32.gmra.mxu0 %v431
  %v1055 = vpop.f32.mrf.mxu0
  %v1056 = vadd.f32 %v157, %v1055
  %v1057 = vpop.f32.mrf.mxu0
  %1058 = vmatprep.mubr.f32.mxu0 0.0
  %1059 = vmatmul.mubr.f32.gmra.mxu0 %v434
  %v1060 = vpop.f32.mrf.mxu0
  %v1061 = vadd.f32 %v157, %v1060
  %v1062 = vpop.f32.mrf.mxu0
  %1063 = vmatprep.mubr.f32.mxu0 0.0
  %1064 = vmatmul.mubr.f32.gmra.mxu0 %v437
  %v1065 = vpop.f32.mrf.mxu0
  %v1066 = vadd.f32 %v157, %v1065
  %v1067 = vpop.f32.mrf.mxu0
  %1068 = vmatprep.mubr.f32.mxu0 0.0
  %1069 = vmatmul.mubr.f32.gmra.mxu0 %v440
  %v1070 = vpop.f32.mrf.mxu0
  %v1071 = vadd.f32 %v157, %v1070
  %v1072 = vpop.f32.mrf.mxu0
  %1073 = vmatprep.mubr.f32.mxu0 0.0
  %1074 = vmatmul.mubr.f32.gmra.mxu0 %v443
  %v1075 = vpop.f32.mrf.mxu0
  %v1076 = vadd.f32 %v157, %v1075
  %v1077 = vpop.f32.mrf.mxu0
  %1078 = vmatprep.mubr.f32.mxu0 0.0
  %1079 = vmatmul.mubr.f32.gmra.mxu0 %v446
  %v1080 = vpop.f32.mrf.mxu0
  %v1081 = vadd.f32 %v157, %v1080
  %v1082 = vpop.f32.mrf.mxu0
  %1083 = vmatprep.mubr.f32.mxu0 0.0
  %1084 = vmatmul.mubr.f32.gmra.mxu0 %v449
  %v1085 = vpop.f32.mrf.mxu0
  %v1086 = vadd.f32 %v157, %v1085
  %v1087 = vpop.f32.mrf.mxu0
  %1088 = vmatprep.mubr.f32.mxu0 0.0
  %1089 = vmatmul.mubr.f32.gmra.mxu0 %v452
  %v1090 = vpop.f32.mrf.mxu0
  %v1091 = vadd.f32 %v157, %v1090
  %v1092 = vpop.f32.mrf.mxu0
  %1093 = vmatprep.mubr.f32.mxu0 0.0
  %1094 = vmatmul.mubr.f32.gmra.mxu0 %v455
  %v1095 = vpop.f32.mrf.mxu0
  %v1096 = vadd.f32 %v157, %v1095
  %v1097 = vpop.f32.mrf.mxu0
  %1098 = vmatprep.mubr.f32.mxu0 0.0
  %1099 = vmatmul.mubr.f32.gmra.mxu0 %v458
  %v1100 = vpop.f32.mrf.mxu0
  %v1101 = vadd.f32 %v157, %v1100
  %v1102 = vpop.f32.mrf.mxu0
  %1103 = vmatprep.mubr.f32.mxu0 0.0
  %1104 = vmatmul.mubr.f32.gmra.mxu0 %v461
  %v1105 = vpop.f32.mrf.mxu0
  %v1106 = vadd.f32 %v157, %v1105
  %v1107 = vpop.f32.mrf.mxu0
  %1108 = vmatprep.mubr.f32.mxu0 0.0
  %1109 = vmatmul.mubr.f32.gmra.mxu0 %v464
  %v1110 = vpop.f32.mrf.mxu0
  %v1111 = vadd.f32 %v157, %v1110
  %v1112 = vpop.f32.mrf.mxu0
  %1113 = vmatprep.mubr.f32.mxu0 0.0
  %1114 = vmatmul.mubr.f32.gmra.mxu0 %v467
  %v1115 = vpop.f32.mrf.mxu0
  %v1116 = vadd.f32 %v157, %v1115
  %v1117 = vpop.f32.mrf.mxu0
  %1118 = vmatprep.mubr.f32.mxu0 0.0
  %1119 = vmatmul.mubr.f32.gmra.mxu0 %v470
  %v1120 = vpop.f32.mrf.mxu0
  %v1121 = vadd.f32 %v157, %v1120
  %v1122 = vpop.f32.mrf.mxu0
  %1123 = vmatprep.mubr.f32.mxu0 0.0
  %1124 = vmatmul.mubr.f32.gmra.mxu0 %v473
  %v1125 = vpop.f32.mrf.mxu0
  %v1126 = vadd.f32 %v157, %v1125
  %v1127 = vpop.f32.mrf.mxu0
  %1128 = vmatprep.mubr.f32.mxu0 0.0
  %1129 = vmatmul.mubr.f32.gmra.mxu0 %v476
  %v1130 = vpop.f32.mrf.mxu0
  %v1131 = vadd.f32 %v157, %v1130
  %v1132 = vpop.f32.mrf.mxu0
  %1133 = vmatprep.mubr.f32.mxu0 0.0
  %1134 = vmatmul.mubr.f32.gmra.mxu0 %v479
  %v1135 = vpop.f32.mrf.mxu0
  %v1136 = vadd.f32 %v157, %v1135
  %v1137 = vpop.f32.mrf.mxu0
  %1138 = vmatprep.mubr.f32.mxu0 0.0
  %1139 = vmatmul.mubr.f32.gmra.mxu0 %v482
  %v1140 = vpop.f32.mrf.mxu0
  %v1141 = vadd.f32 %v157, %v1140
  %v1142 = vpop.f32.mrf.mxu0
  %1143 = vmatprep.mubr.f32.mxu0 0.0
  %1144 = vmatmul.mubr.f32.gmra.mxu0 %v485
  %v1145 = vpop.f32.mrf.mxu0
  %v1146 = vadd.f32 %v157, %v1145
  %v1147 = vpop.f32.mrf.mxu0
  %1148 = vmatprep.mubr.f32.mxu0 0.0
  %1149 = vmatmul.mubr.f32.gmra.mxu0 %v488
  %v1150 = vpop.f32.mrf.mxu0
  %v1151 = vadd.f32 %v157, %v1150
  %v1152 = vpop.f32.mrf.mxu0
  %1153 = vmatprep.mubr.f32.mxu0 0.0
  %1154 = vmatmul.mubr.f32.gmra.mxu0 %v491
  %v1155 = vpop.f32.mrf.mxu0
  %v1156 = vadd.f32 %v157, %v1155
  %v1157 = vpop.f32.mrf.mxu0
  %1158 = vmatprep.mubr.f32.mxu0 0.0
  %1159 = vmatmul.mubr.f32.gmra.mxu0 %v494
  %v1160 = vpop.f32.mrf.mxu0
  %v1161 = vadd.f32 %v157, %v1160
  %v1162 = vpop.f32.mrf.mxu0
  %1163 = vmatprep.mubr.f32.mxu0 0.0
  %1164 = vmatmul.mubr.f32.gmra.mxu0 %v497
  %v1165 = vpop.f32.mrf.mxu0
  %v1166 = vadd.f32 %v157, %v1165
  %v1167 = vpop.f32.mrf.mxu0
  %1168 = vmatprep.mubr.f32.mxu0 0.0
  %1169 = vmatmul.mubr.f32.gmra.mxu0 %v500
  %v1170 = vpop.f32.mrf.mxu0
  %v1171 = vadd.f32 %v157, %v1170
  %v1172 = vpop.f32.mrf.mxu0
  %1173 = vmatprep.mubr.f32.mxu0 0.0
  %1174 = vmatmul.mubr.f32.gmra.mxu0 %v503
  %v1175 = vpop.f32.mrf.mxu0
  %v1176 = vadd.f32 %v157, %v1175
  %v1177 = vpop.f32.mrf.mxu0
  %1178 = vmatprep.mubr.f32.mxu0 0.0
  %1179 = vmatmul.mubr.f32.gmra.mxu0 %v506
  %v1180 = vpop.f32.mrf.mxu0
  %v1181 = vadd.f32 %v157, %v1180
  %v1182 = vpop.f32.mrf.mxu0
  %1183 = vmatprep.mubr.f32.mxu0 0.0
  %1184 = vmatmul.mubr.f32.gmra.mxu0 %v509
  %v1185 = vpop.f32.mrf.mxu0
  %v1186 = vadd.f32 %v157, %v1185
  %v1187 = vpop.f32.mrf.mxu0
  %1188 = vmatprep.mubr.f32.mxu0 0.0
  %1189 = vmatmul.mubr.f32.gmra.mxu0 %v512
  %v1190 = vpop.f32.mrf.mxu0
  %v1191 = vadd.f32 %v157, %v1190
  %v1192 = vpop.f32.mrf.mxu0
  %1193 = vmatprep.mubr.f32.mxu0 0.0
  %1194 = vmatmul.mubr.f32.gmra.mxu0 %v515
  %v1195 = vpop.f32.mrf.mxu0
  %v1196 = vadd.f32 %v157, %v1195
  %v1197 = vpop.f32.mrf.mxu0
  %1198 = vmatprep.mubr.f32.mxu0 0.0
  %1199 = vmatmul.mubr.f32.gmra.mxu0 %v518
  %v1200 = vpop.f32.mrf.mxu0
  %v1201 = vadd.f32 %v157, %v1200
  %v1202 = vpop.f32.mrf.mxu0
  %1203 = vmatprep.mubr.f32.mxu0 0.0
  %1204 = vmatmul.mubr.f32.gmra.mxu0 %v521
  %v1205 = vpop.f32.mrf.mxu0
  %v1206 = vadd.f32 %v157, %v1205
  %v1207 = vpop.f32.mrf.mxu0
  %1208 = vmatprep.mubr.f32.mxu0 0.0
  %1209 = vmatmul.mubr.f32.gmra.mxu0 %v524
  %v1210 = vpop.f32.mrf.mxu0
  %v1211 = vadd.f32 %v157, %v1210
  %v1212 = vpop.f32.mrf.mxu0
  %1213 = vmatprep.mubr.f32.mxu0 0.0
  %1214 = vmatmul.mubr.f32.gmra.mxu0 %v527
  %v1215 = vpop.f32.mrf.mxu0
  %v1216 = vadd.f32 %v157, %v1215
  %v1217 = vpop.f32.mrf.mxu0
  %1218 = vmatprep.mubr.f32.mxu0 0.0
  %1219 = vmatmul.mubr.f32.gmra.mxu0 %v530
  %v1220 = vpop.f32.mrf.mxu0
  %v1221 = vadd.f32 %v157, %v1220
  %v1222 = vpop.f32.mrf.mxu0
  %1223 = vmatprep.mubr.f32.mxu0 0.0
  %1224 = vmatmul.mubr.f32.gmra.mxu0 %v533
  %v1225 = vpop.f32.mrf.mxu0
  %v1226 = vadd.f32 %v157, %v1225
  %v1227 = vpop.f32.mrf.mxu0
  %1228 = vdwg.mxu0
  %v1229 = vmul.f32 %v606, 0.5
  %v1230 = vmul.f32 %v611, 0.5
  %v1231 = vmul.f32 %v616, 0.5
  %v1232 = vmul.f32 %v621, 0.5
  %v1233 = vmul.f32 %v626, 0.5
  %v1234 = vmul.f32 %v631, 0.5
  %v1235 = vmul.f32 %v636, 0.5
  %v1236 = vmul.f32 %v641, 0.5
  %v1237 = vmul.f32 %v646, 0.5
  %v1238 = vmul.f32 %v651, 0.5
  %v1239 = vmul.f32 %v656, 0.5
  %v1240 = vmul.f32 %v661, 0.5
  %v1241 = vmul.f32 %v666, 0.5
  %v1242 = vmul.f32 %v671, 0.5
  %v1243 = vmul.f32 %v676, 0.5
  %v1244 = vmul.f32 %v681, 0.5
  %v1245 = vmul.f32 %v686, 0.5
  %v1246 = vmul.f32 %v691, 0.5
  %v1247 = vmul.f32 %v696, 0.5
  %v1248 = vmul.f32 %v701, 0.5
  %v1249 = vmul.f32 %v706, 0.5
  %v1250 = vmul.f32 %v711, 0.5
  %v1251 = vmul.f32 %v716, 0.5
  %v1252 = vmul.f32 %v721, 0.5
  %v1253 = vmul.f32 %v726, 0.5
  %v1254 = vmul.f32 %v731, 0.5
  %v1255 = vmul.f32 %v736, 0.5
  %v1256 = vmul.f32 %v741, 0.5
  %v1257 = vmul.f32 %v746, 0.5
  %v1258 = vmul.f32 %v751, 0.5
  %v1259 = vmul.f32 %v756, 0.5
  %v1260 = vmul.f32 %v761, 0.5
  %v1261 = vmul.f32 %v766, 0.5
  %v1262 = vmul.f32 %v771, 0.5
  %v1263 = vmul.f32 %v776, 0.5
  %v1264 = vmul.f32 %v781, 0.5
  %v1265 = vmul.f32 %v786, 0.5
  %v1266 = vmul.f32 %v791, 0.5
  %v1267 = vmul.f32 %v796, 0.5
  %v1268 = vmul.f32 %v801, 0.5
  %v1269 = vmul.f32 %v806, 0.5
  %v1270 = vmul.f32 %v811, 0.5
  %v1271 = vmul.f32 %v816, 0.5
  %v1272 = vmul.f32 %v821, 0.5
  %v1273 = vmul.f32 %v826, 0.5
  %v1274 = vmul.f32 %v831, 0.5
  %v1275 = vmul.f32 %v836, 0.5
  %v1276 = vmul.f32 %v841, 0.5
  %v1277 = vmul.f32 %v846, 0.5
  %v1278 = vmul.f32 %v851, 0.5
  %v1279 = vmul.f32 %v856, 0.5
  %v1280 = vmul.f32 %v861, 0.5
  %v1281 = vmul.f32 %v866, 0.5
  %v1282 = vmul.f32 %v871, 0.5
  %v1283 = vmul.f32 %v876, 0.5
  %v1284 = vmul.f32 %v881, 0.5
  %v1285 = vmul.f32 %v886, 0.5
  %v1286 = vmul.f32 %v891, 0.5
  %v1287 = vmul.f32 %v896, 0.5
  %v1288 = vmul.f32 %v901, 0.5
  %v1289 = vmul.f32 %v906, 0.5
  %v1290 = vmul.f32 %v911, 0.5
  %v1291 = vmul.f32 %v916, 0.5
  %v1292 = vmul.f32 %v921, 0.5
  %v1293 = vmul.f32 %v926, 0.5
  %v1294 = vmul.f32 %v931, 0.5
  %v1295 = vmul.f32 %v936, 0.5
  %v1296 = vmul.f32 %v941, 0.5
  %v1297 = vmul.f32 %v946, 0.5
  %v1298 = vmul.f32 %v951, 0.5
  %v1299 = vmul.f32 %v956, 0.5
  %v1300 = vmul.f32 %v961, 0.5
  %v1301 = vmul.f32 %v966, 0.5
  %v1302 = vmul.f32 %v971, 0.5
  %v1303 = vmul.f32 %v976, 0.5
  %v1304 = vmul.f32 %v981, 0.5
  %v1305 = vmul.f32 %v986, 0.5
  %v1306 = vmul.f32 %v991, 0.5
  %v1307 = vmul.f32 %v996, 0.5
  %v1308 = vmul.f32 %v1001, 0.5
  %v1309 = vmul.f32 %v1006, 0.5
  %v1310 = vmul.f32 %v1011, 0.5
  %v1311 = vmul.f32 %v1016, 0.5
  %v1312 = vmul.f32 %v1021, 0.5
  %v1313 = vmul.f32 %v1026, 0.5
  %v1314 = vmul.f32 %v1031, 0.5
  %v1315 = vmul.f32 %v1036, 0.5
  %v1316 = vmul.f32 %v1041, 0.5
  %v1317 = vmul.f32 %v1046, 0.5
  %v1318 = vmul.f32 %v1051, 0.5
  %v1319 = vmul.f32 %v1056, 0.5
  %v1320 = vmul.f32 %v1061, 0.5
  %v1321 = vmul.f32 %v1066, 0.5
  %v1322 = vmul.f32 %v1071, 0.5
  %v1323 = vmul.f32 %v1076, 0.5
  %v1324 = vmul.f32 %v1081, 0.5
  %v1325 = vmul.f32 %v1086, 0.5
  %v1326 = vmul.f32 %v1091, 0.5
  %v1327 = vmul.f32 %v1096, 0.5
  %v1328 = vmul.f32 %v1101, 0.5
  %v1329 = vmul.f32 %v1106, 0.5
  %v1330 = vmul.f32 %v1111, 0.5
  %v1331 = vmul.f32 %v1116, 0.5
  %v1332 = vmul.f32 %v1121, 0.5
  %v1333 = vmul.f32 %v1126, 0.5
  %v1334 = vmul.f32 %v1131, 0.5
  %v1335 = vmul.f32 %v1136, 0.5
  %v1336 = vmul.f32 %v1141, 0.5
  %v1337 = vmul.f32 %v1146, 0.5
  %v1338 = vmul.f32 %v1151, 0.5
  %v1339 = vmul.f32 %v1156, 0.5
  %v1340 = vmul.f32 %v1161, 0.5
  %v1341 = vmul.f32 %v1166, 0.5
  %v1342 = vmul.f32 %v1171, 0.5
  %v1343 = vmul.f32 %v1176, 0.5
  %v1344 = vmul.f32 %v1181, 0.5
  %v1345 = vmul.f32 %v1186, 0.5
  %v1346 = vmul.f32 %v1191, 0.5
  %v1347 = vmul.f32 %v1196, 0.5
  %v1348 = vmul.f32 %v1201, 0.5
  %v1349 = vmul.f32 %v1206, 0.5
  %v1350 = vmul.f32 %v1211, 0.5
  %v1351 = vmul.f32 %v1216, 0.5
  %v1352 = vmul.f32 %v1221, 0.5
  %v1353 = vmul.f32 %v1226, 0.5
  %v1354 = vtanh.pop %v1229
  %v1355 = vtanh.pop %v1230
  %v1356 = vtanh.pop %v1231
  %v1357 = vtanh.pop %v1232
  %v1358 = vtanh.pop %v1233
  %v1359 = vtanh.pop %v1234
  %v1360 = vtanh.pop %v1235
  %v1361 = vtanh.pop %v1236
  %v1362 = vtanh.pop %v1237
  %v1363 = vtanh.pop %v1238
  %v1364 = vtanh.pop %v1239
  %v1365 = vtanh.pop %v1240
  %v1366 = vtanh.pop %v1241
  %v1367 = vtanh.pop %v1242
  %v1368 = vtanh.pop %v1243
  %v1369 = vtanh.pop %v1244
  %v1370 = vtanh.pop %v1245
  %v1371 = vtanh.pop %v1246
  %v1372 = vtanh.pop %v1247
  %v1373 = vtanh.pop %v1248
  %v1374 = vtanh.pop %v1249
  %v1375 = vtanh.pop %v1250
  %v1376 = vtanh.pop %v1251
  %v1377 = vtanh.pop %v1252
  %v1378 = vtanh.pop %v1253
  %v1379 = vtanh.pop %v1254
  %v1380 = vtanh.pop %v1255
  %v1381 = vtanh.pop %v1256
  %v1382 = vtanh.pop %v1257
  %v1383 = vtanh.pop %v1258
  %v1384 = vtanh.pop %v1259
  %v1385 = vtanh.pop %v1260
  %v1386 = vtanh.pop %v1261
  %v1387 = vtanh.pop %v1262
  %v1388 = vtanh.pop %v1263
  %v1389 = vtanh.pop %v1264
  %v1390 = vtanh.pop %v1265
  %v1391 = vtanh.pop %v1266
  %v1392 = vtanh.pop %v1267
  %v1393 = vtanh.pop %v1268
  %v1394 = vtanh.pop %v1269
  %v1395 = vtanh.pop %v1270
  %v1396 = vtanh.pop %v1271
  %v1397 = vtanh.pop %v1272
  %v1398 = vtanh.pop %v1273
  %v1399 = vtanh.pop %v1274
  %v1400 = vtanh.pop %v1275
  %v1401 = vtanh.pop %v1276
  %v1402 = vtanh.pop %v1277
  %v1403 = vtanh.pop %v1278
  %v1404 = vtanh.pop %v1279
  %v1405 = vtanh.pop %v1280
  %v1406 = vtanh.pop %v1281
  %v1407 = vtanh.pop %v1282
  %v1408 = vtanh.pop %v1283
  %v1409 = vtanh.pop %v1284
  %v1410 = vtanh.pop %v1285
  %v1411 = vtanh.pop %v1286
  %v1412 = vtanh.pop %v1287
  %v1413 = vtanh.pop %v1288
  %v1414 = vtanh.pop %v1289
  %v1415 = vtanh.pop %v1290
  %v1416 = vtanh.pop %v1291
  %v1417 = vtanh.pop %v1292
  %v1418 = vtanh.pop %v1293
  %v1419 = vtanh.pop %v1294
  %v1420 = vtanh.pop %v1295
  %v1421 = vtanh.pop %v1296
  %v1422 = vtanh.pop %v1297
  %v1423 = vtanh.pop %v1298
  %v1424 = vtanh.pop %v1299
  %v1425 = vtanh.pop %v1300
  %v1426 = vtanh.pop %v1301
  %v1427 = vtanh.pop %v1302
  %v1428 = vtanh.pop %v1303
  %v1429 = vtanh.pop %v1304
  %v1430 = vtanh.pop %v1305
  %v1431 = vtanh.pop %v1306
  %v1432 = vtanh.pop %v1307
  %v1433 = vtanh.pop %v1308
  %v1434 = vtanh.pop %v1309
  %v1435 = vtanh.pop %v1310
  %v1436 = vtanh.pop %v1311
  %v1437 = vtanh.pop %v1312
  %v1438 = vtanh.pop %v1313
  %v1439 = vtanh.pop %v1314
  %v1440 = vtanh.pop %v1315
  %v1441 = vtanh.pop %v1316
  %v1442 = vtanh.pop %v1317
  %v1443 = vtanh.pop %v1318
  %v1444 = vtanh.pop %v1319
  %v1445 = vtanh.pop %v1320
  %v1446 = vtanh.pop %v1321
  %v1447 = vtanh.pop %v1322
  %v1448 = vtanh.pop %v1323
  %v1449 = vtanh.pop %v1324
  %v1450 = vtanh.pop %v1325
  %v1451 = vtanh.pop %v1326
  %v1452 = vtanh.pop %v1327
  %v1453 = vtanh.pop %v1328
  %v1454 = vtanh.pop %v1329
  %v1455 = vtanh.pop %v1330
  %v1456 = vtanh.pop %v1331
  %v1457 = vtanh.pop %v1332
  %v1458 = vtanh.pop %v1333
  %v1459 = vtanh.pop %v1334
  %v1460 = vtanh.pop %v1335
  %v1461 = vtanh.pop %v1336
  %v1462 = vtanh.pop %v1337
  %v1463 = vtanh.pop %v1338
  %v1464 = vtanh.pop %v1339
  %v1465 = vtanh.pop %v1340
  %v1466 = vtanh.pop %v1341
  %v1467 = vtanh.pop %v1342
  %v1468 = vtanh.pop %v1343
  %v1469 = vtanh.pop %v1344
  %v1470 = vtanh.pop %v1345
  %v1471 = vtanh.pop %v1346
  %v1472 = vtanh.pop %v1347
  %v1473 = vtanh.pop %v1348
  %v1474 = vtanh.pop %v1349
  %v1475 = vtanh.pop %v1350
  %v1476 = vtanh.pop %v1351
  %v1477 = vtanh.pop %v1352
  %v1478 = vtanh.pop %v1353
  %v1479 = vmul.f32 %v1354, 0.5
  %v1480 = vmul.f32 %v1355, 0.5
  %v1481 = vmul.f32 %v1356, 0.5
  %v1482 = vmul.f32 %v1357, 0.5
  %v1483 = vmul.f32 %v1358, 0.5
  %v1484 = vmul.f32 %v1359, 0.5
  %v1485 = vmul.f32 %v1360, 0.5
  %v1486 = vmul.f32 %v1361, 0.5
  %v1487 = vmul.f32 %v1362, 0.5
  %v1488 = vmul.f32 %v1363, 0.5
  %v1489 = vmul.f32 %v1364, 0.5
  %v1490 = vmul.f32 %v1365, 0.5
  %v1491 = vmul.f32 %v1366, 0.5
  %v1492 = vmul.f32 %v1367, 0.5
  %v1493 = vmul.f32 %v1368, 0.5
  %v1494 = vmul.f32 %v1369, 0.5
  %v1495 = vmul.f32 %v1370, 0.5
  %v1496 = vmul.f32 %v1371, 0.5
  %v1497 = vmul.f32 %v1372, 0.5
  %v1498 = vmul.f32 %v1373, 0.5
  %v1499 = vmul.f32 %v1374, 0.5
  %v1500 = vmul.f32 %v1375, 0.5
  %v1501 = vmul.f32 %v1376, 0.5
  %v1502 = vmul.f32 %v1377, 0.5
  %v1503 = vmul.f32 %v1378, 0.5
  %v1504 = vmul.f32 %v1379, 0.5
  %v1505 = vmul.f32 %v1380, 0.5
  %v1506 = vmul.f32 %v1381, 0.5
  %v1507 = vmul.f32 %v1382, 0.5
  %v1508 = vmul.f32 %v1383, 0.5
  %v1509 = vmul.f32 %v1384, 0.5
  %v1510 = vmul.f32 %v1385, 0.5
  %v1511 = vmul.f32 %v1386, 0.5
  %v1512 = vmul.f32 %v1387, 0.5
  %v1513 = vmul.f32 %v1388, 0.5
  %v1514 = vmul.f32 %v1389, 0.5
  %v1515 = vmul.f32 %v1390, 0.5
  %v1516 = vmul.f32 %v1391, 0.5
  %v1517 = vmul.f32 %v1392, 0.5
  %v1518 = vmul.f32 %v1393, 0.5
  %v1519 = vmul.f32 %v1394, 0.5
  %v1520 = vmul.f32 %v1395, 0.5
  %v1521 = vmul.f32 %v1396, 0.5
  %v1522 = vmul.f32 %v1397, 0.5
  %v1523 = vmul.f32 %v1398, 0.5
  %v1524 = vmul.f32 %v1399, 0.5
  %v1525 = vmul.f32 %v1400, 0.5
  %v1526 = vmul.f32 %v1401, 0.5
  %v1527 = vmul.f32 %v1402, 0.5
  %v1528 = vmul.f32 %v1403, 0.5
  %v1529 = vmul.f32 %v1404, 0.5
  %v1530 = vmul.f32 %v1405, 0.5
  %v1531 = vmul.f32 %v1406, 0.5
  %v1532 = vmul.f32 %v1407, 0.5
  %v1533 = vmul.f32 %v1408, 0.5
  %v1534 = vmul.f32 %v1409, 0.5
  %v1535 = vmul.f32 %v1410, 0.5
  %v1536 = vmul.f32 %v1411, 0.5
  %v1537 = vmul.f32 %v1412, 0.5
  %v1538 = vmul.f32 %v1413, 0.5
  %v1539 = vmul.f32 %v1414, 0.5
  %v1540 = vmul.f32 %v1415, 0.5
  %v1541 = vmul.f32 %v1416, 0.5
  %v1542 = vmul.f32 %v1417, 0.5
  %v1543 = vmul.f32 %v1418, 0.5
  %v1544 = vmul.f32 %v1419, 0.5
  %v1545 = vmul.f32 %v1420, 0.5
  %v1546 = vmul.f32 %v1421, 0.5
  %v1547 = vmul.f32 %v1422, 0.5
  %v1548 = vmul.f32 %v1423, 0.5
  %v1549 = vmul.f32 %v1424, 0.5
  %v1550 = vmul.f32 %v1425, 0.5
  %v1551 = vmul.f32 %v1426, 0.5
  %v1552 = vmul.f32 %v1427, 0.5
  %v1553 = vmul.f32 %v1428, 0.5
  %v1554 = vmul.f32 %v1429, 0.5
  %v1555 = vmul.f32 %v1430, 0.5
  %v1556 = vmul.f32 %v1431, 0.5
  %v1557 = vmul.f32 %v1432, 0.5
  %v1558 = vmul.f32 %v1433, 0.5
  %v1559 = vmul.f32 %v1434, 0.5
  %v1560 = vmul.f32 %v1435, 0.5
  %v1561 = vmul.f32 %v1436, 0.5
  %v1562 = vmul.f32 %v1437, 0.5
  %v1563 = vmul.f32 %v1438, 0.5
  %v1564 = vmul.f32 %v1439, 0.5
  %v1565 = vmul.f32 %v1440, 0.5
  %v1566 = vmul.f32 %v1441, 0.5
  %v1567 = vmul.f32 %v1442, 0.5
  %v1568 = vmul.f32 %v1443, 0.5
  %v1569 = vmul.f32 %v1444, 0.5
  %v1570 = vmul.f32 %v1445, 0.5
  %v1571 = vmul.f32 %v1446, 0.5
  %v1572 = vmul.f32 %v1447, 0.5
  %v1573 = vmul.f32 %v1448, 0.5
  %v1574 = vmul.f32 %v1449, 0.5
  %v1575 = vmul.f32 %v1450, 0.5
  %v1576 = vmul.f32 %v1451, 0.5
  %v1577 = vmul.f32 %v1452, 0.5
  %v1578 = vmul.f32 %v1453, 0.5
  %v1579 = vmul.f32 %v1454, 0.5
  %v1580 = vmul.f32 %v1455, 0.5
  %v1581 = vmul.f32 %v1456, 0.5
  %v1582 = vmul.f32 %v1457, 0.5
  %v1583 = vmul.f32 %v1458, 0.5
  %v1584 = vmul.f32 %v1459, 0.5
  %v1585 = vmul.f32 %v1460, 0.5
  %v1586 = vmul.f32 %v1461, 0.5
  %v1587 = vmul.f32 %v1462, 0.5
  %v1588 = vmul.f32 %v1463, 0.5
  %v1589 = vmul.f32 %v1464, 0.5
  %v1590 = vmul.f32 %v1465, 0.5
  %v1591 = vmul.f32 %v1466, 0.5
  %v1592 = vmul.f32 %v1467, 0.5
  %v1593 = vmul.f32 %v1468, 0.5
  %v1594 = vmul.f32 %v1469, 0.5
  %v1595 = vmul.f32 %v1470, 0.5
  %v1596 = vmul.f32 %v1471, 0.5
  %v1597 = vmul.f32 %v1472, 0.5
  %v1598 = vmul.f32 %v1473, 0.5
  %v1599 = vmul.f32 %v1474, 0.5
  %v1600 = vmul.f32 %v1475, 0.5
  %v1601 = vmul.f32 %v1476, 0.5
  %v1602 = vmul.f32 %v1477, 0.5
  %v1603 = vmul.f32 %v1478, 0.5
  %v1604 = vadd.f32 %v1479, 0.5
  %v1605 = vadd.f32 %v1480, 0.5
  %v1606 = vadd.f32 %v1481, 0.5
  %v1607 = vadd.f32 %v1482, 0.5
  %v1608 = vadd.f32 %v1483, 0.5
  %v1609 = vadd.f32 %v1484, 0.5
  %v1610 = vadd.f32 %v1485, 0.5
  %v1611 = vadd.f32 %v1486, 0.5
  %v1612 = vadd.f32 %v1487, 0.5
  %v1613 = vadd.f32 %v1488, 0.5
  %v1614 = vadd.f32 %v1489, 0.5
  %v1615 = vadd.f32 %v1490, 0.5
  %v1616 = vadd.f32 %v1491, 0.5
  %v1617 = vadd.f32 %v1492, 0.5
  %v1618 = vadd.f32 %v1493, 0.5
  %v1619 = vadd.f32 %v1494, 0.5
  %v1620 = vadd.f32 %v1495, 0.5
  %v1621 = vadd.f32 %v1496, 0.5
  %v1622 = vadd.f32 %v1497, 0.5
  %v1623 = vadd.f32 %v1498, 0.5
  %v1624 = vadd.f32 %v1499, 0.5
  %v1625 = vadd.f32 %v1500, 0.5
  %v1626 = vadd.f32 %v1501, 0.5
  %v1627 = vadd.f32 %v1502, 0.5
  %v1628 = vadd.f32 %v1503, 0.5
  %v1629 = vadd.f32 %v1504, 0.5
  %v1630 = vadd.f32 %v1505, 0.5
  %v1631 = vadd.f32 %v1506, 0.5
  %v1632 = vadd.f32 %v1507, 0.5
  %v1633 = vadd.f32 %v1508, 0.5
  %v1634 = vadd.f32 %v1509, 0.5
  %v1635 = vadd.f32 %v1510, 0.5
  %v1636 = vadd.f32 %v1511, 0.5
  %v1637 = vadd.f32 %v1512, 0.5
  %v1638 = vadd.f32 %v1513, 0.5
  %v1639 = vadd.f32 %v1514, 0.5
  %v1640 = vadd.f32 %v1515, 0.5
  %v1641 = vadd.f32 %v1516, 0.5
  %v1642 = vadd.f32 %v1517, 0.5
  %v1643 = vadd.f32 %v1518, 0.5
  %v1644 = vadd.f32 %v1519, 0.5
  %v1645 = vadd.f32 %v1520, 0.5
  %v1646 = vadd.f32 %v1521, 0.5
  %v1647 = vadd.f32 %v1522, 0.5
  %v1648 = vadd.f32 %v1523, 0.5
  %v1649 = vadd.f32 %v1524, 0.5
  %v1650 = vadd.f32 %v1525, 0.5
  %v1651 = vadd.f32 %v1526, 0.5
  %v1652 = vadd.f32 %v1527, 0.5
  %v1653 = vadd.f32 %v1528, 0.5
  %v1654 = vadd.f32 %v1529, 0.5
  %v1655 = vadd.f32 %v1530, 0.5
  %v1656 = vadd.f32 %v1531, 0.5
  %v1657 = vadd.f32 %v1532, 0.5
  %v1658 = vadd.f32 %v1533, 0.5
  %v1659 = vadd.f32 %v1534, 0.5
  %v1660 = vadd.f32 %v1535, 0.5
  %v1661 = vadd.f32 %v1536, 0.5
  %v1662 = vadd.f32 %v1537, 0.5
  %v1663 = vadd.f32 %v1538, 0.5
  %v1664 = vadd.f32 %v1539, 0.5
  %v1665 = vadd.f32 %v1540, 0.5
  %v1666 = vadd.f32 %v1541, 0.5
  %v1667 = vadd.f32 %v1542, 0.5
  %v1668 = vadd.f32 %v1543, 0.5
  %v1669 = vadd.f32 %v1544, 0.5
  %v1670 = vadd.f32 %v1545, 0.5
  %v1671 = vadd.f32 %v1546, 0.5
  %v1672 = vadd.f32 %v1547, 0.5
  %v1673 = vadd.f32 %v1548, 0.5
  %v1674 = vadd.f32 %v1549, 0.5
  %v1675 = vadd.f32 %v1550, 0.5
  %v1676 = vadd.f32 %v1551, 0.5
  %v1677 = vadd.f32 %v1552, 0.5
  %v1678 = vadd.f32 %v1553, 0.5
  %v1679 = vadd.f32 %v1554, 0.5
  %v1680 = vadd.f32 %v1555, 0.5
  %v1681 = vadd.f32 %v1556, 0.5
  %v1682 = vadd.f32 %v1557, 0.5
  %v1683 = vadd.f32 %v1558, 0.5
  %v1684 = vadd.f32 %v1559, 0.5
  %v1685 = vadd.f32 %v1560, 0.5
  %v1686 = vadd.f32 %v1561, 0.5
  %v1687 = vadd.f32 %v1562, 0.5
  %v1688 = vadd.f32 %v1563, 0.5
  %v1689 = vadd.f32 %v1564, 0.5
  %v1690 = vadd.f32 %v1565, 0.5
  %v1691 = vadd.f32 %v1566, 0.5
  %v1692 = vadd.f32 %v1567, 0.5
  %v1693 = vadd.f32 %v1568, 0.5
  %v1694 = vadd.f32 %v1569, 0.5
  %v1695 = vadd.f32 %v1570, 0.5
  %v1696 = vadd.f32 %v1571, 0.5
  %v1697 = vadd.f32 %v1572, 0.5
  %v1698 = vadd.f32 %v1573, 0.5
  %v1699 = vadd.f32 %v1574, 0.5
  %v1700 = vadd.f32 %v1575, 0.5
  %v1701 = vadd.f32 %v1576, 0.5
  %v1702 = vadd.f32 %v1577, 0.5
  %v1703 = vadd.f32 %v1578, 0.5
  %v1704 = vadd.f32 %v1579, 0.5
  %v1705 = vadd.f32 %v1580, 0.5
  %v1706 = vadd.f32 %v1581, 0.5
  %v1707 = vadd.f32 %v1582, 0.5
  %v1708 = vadd.f32 %v1583, 0.5
  %v1709 = vadd.f32 %v1584, 0.5
  %v1710 = vadd.f32 %v1585, 0.5
  %v1711 = vadd.f32 %v1586, 0.5
  %v1712 = vadd.f32 %v1587, 0.5
  %v1713 = vadd.f32 %v1588, 0.5
  %v1714 = vadd.f32 %v1589, 0.5
  %v1715 = vadd.f32 %v1590, 0.5
  %v1716 = vadd.f32 %v1591, 0.5
  %v1717 = vadd.f32 %v1592, 0.5
  %v1718 = vadd.f32 %v1593, 0.5
  %v1719 = vadd.f32 %v1594, 0.5
  %v1720 = vadd.f32 %v1595, 0.5
  %v1721 = vadd.f32 %v1596, 0.5
  %v1722 = vadd.f32 %v1597, 0.5
  %v1723 = vadd.f32 %v1598, 0.5
  %v1724 = vadd.f32 %v1599, 0.5
  %v1725 = vadd.f32 %v1600, 0.5
  %v1726 = vadd.f32 %v1601, 0.5
  %v1727 = vadd.f32 %v1602, 0.5
  %v1728 = vadd.f32 %v1603, 0.5
  %v1729 = vmul.f32 %v606, %v1604
  %v1730 = vmul.f32 %v611, %v1605
  %v1731 = vmul.f32 %v616, %v1606
  %v1732 = vmul.f32 %v621, %v1607
  %v1733 = vmul.f32 %v626, %v1608
  %v1734 = vmul.f32 %v631, %v1609
  %v1735 = vmul.f32 %v636, %v1610
  %v1736 = vmul.f32 %v641, %v1611
  %v1737 = vmul.f32 %v646, %v1612
  %v1738 = vmul.f32 %v651, %v1613
  %v1739 = vmul.f32 %v656, %v1614
  %v1740 = vmul.f32 %v661, %v1615
  %v1741 = vmul.f32 %v666, %v1616
  %v1742 = vmul.f32 %v671, %v1617
  %v1743 = vmul.f32 %v676, %v1618
  %v1744 = vmul.f32 %v681, %v1619
  %v1745 = vmul.f32 %v686, %v1620
  %v1746 = vmul.f32 %v691, %v1621
  %v1747 = vmul.f32 %v696, %v1622
  %v1748 = vmul.f32 %v701, %v1623
  %v1749 = vmul.f32 %v706, %v1624
  %v1750 = vmul.f32 %v711, %v1625
  %v1751 = vmul.f32 %v716, %v1626
  %v1752 = vmul.f32 %v721, %v1627
  %v1753 = vmul.f32 %v726, %v1628
  %v1754 = vmul.f32 %v731, %v1629
  %v1755 = vmul.f32 %v736, %v1630
  %v1756 = vmul.f32 %v741, %v1631
  %v1757 = vmul.f32 %v746, %v1632
  %v1758 = vmul.f32 %v751, %v1633
  %v1759 = vmul.f32 %v756, %v1634
  %v1760 = vmul.f32 %v761, %v1635
  %v1761 = vmul.f32 %v766, %v1636
  %v1762 = vmul.f32 %v771, %v1637
  %v1763 = vmul.f32 %v776, %v1638
  %v1764 = vmul.f32 %v781, %v1639
  %v1765 = vmul.f32 %v786, %v1640
  %v1766 = vmul.f32 %v791, %v1641
  %v1767 = vmul.f32 %v796, %v1642
  %v1768 = vmul.f32 %v801, %v1643
  %v1769 = vmul.f32 %v806, %v1644
  %v1770 = vmul.f32 %v811, %v1645
  %v1771 = vmul.f32 %v816, %v1646
  %v1772 = vmul.f32 %v821, %v1647
  %v1773 = vmul.f32 %v826, %v1648
  %v1774 = vmul.f32 %v831, %v1649
  %v1775 = vmul.f32 %v836, %v1650
  %v1776 = vmul.f32 %v841, %v1651
  %v1777 = vmul.f32 %v846, %v1652
  %v1778 = vmul.f32 %v851, %v1653
  %v1779 = vmul.f32 %v856, %v1654
  %v1780 = vmul.f32 %v861, %v1655
  %v1781 = vmul.f32 %v866, %v1656
  %v1782 = vmul.f32 %v871, %v1657
  %v1783 = vmul.f32 %v876, %v1658
  %v1784 = vmul.f32 %v881, %v1659
  %v1785 = vmul.f32 %v886, %v1660
  %v1786 = vmul.f32 %v891, %v1661
  %v1787 = vmul.f32 %v896, %v1662
  %v1788 = vmul.f32 %v901, %v1663
  %v1789 = vmul.f32 %v906, %v1664
  %v1790 = vmul.f32 %v911, %v1665
  %v1791 = vmul.f32 %v916, %v1666
  %v1792 = vmul.f32 %v921, %v1667
  %v1793 = vmul.f32 %v926, %v1668
  %v1794 = vmul.f32 %v931, %v1669
  %v1795 = vmul.f32 %v936, %v1670
  %v1796 = vmul.f32 %v941, %v1671
  %v1797 = vmul.f32 %v946, %v1672
  %v1798 = vmul.f32 %v951, %v1673
  %v1799 = vmul.f32 %v956, %v1674
  %v1800 = vmul.f32 %v961, %v1675
  %v1801 = vmul.f32 %v966, %v1676
  %v1802 = vmul.f32 %v971, %v1677
  %v1803 = vmul.f32 %v976, %v1678
  %v1804 = vmul.f32 %v981, %v1679
  %v1805 = vmul.f32 %v986, %v1680
  %v1806 = vmul.f32 %v991, %v1681
  %v1807 = vmul.f32 %v996, %v1682
  %v1808 = vmul.f32 %v1001, %v1683
  %v1809 = vmul.f32 %v1006, %v1684
  %v1810 = vmul.f32 %v1011, %v1685
  %v1811 = vmul.f32 %v1016, %v1686
  %v1812 = vmul.f32 %v1021, %v1687
  %v1813 = vmul.f32 %v1026, %v1688
  %v1814 = vmul.f32 %v1031, %v1689
  %v1815 = vmul.f32 %v1036, %v1690
  %v1816 = vmul.f32 %v1041, %v1691
  %v1817 = vmul.f32 %v1046, %v1692
  %v1818 = vmul.f32 %v1051, %v1693
  %v1819 = vmul.f32 %v1056, %v1694
  %v1820 = vmul.f32 %v1061, %v1695
  %v1821 = vmul.f32 %v1066, %v1696
  %v1822 = vmul.f32 %v1071, %v1697
  %v1823 = vmul.f32 %v1076, %v1698
  %v1824 = vmul.f32 %v1081, %v1699
  %v1825 = vmul.f32 %v1086, %v1700
  %v1826 = vmul.f32 %v1091, %v1701
  %v1827 = vmul.f32 %v1096, %v1702
  %v1828 = vmul.f32 %v1101, %v1703
  %v1829 = vmul.f32 %v1106, %v1704
  %v1830 = vmul.f32 %v1111, %v1705
  %v1831 = vmul.f32 %v1116, %v1706
  %v1832 = vmul.f32 %v1121, %v1707
  %v1833 = vmul.f32 %v1126, %v1708
  %v1834 = vmul.f32 %v1131, %v1709
  %v1835 = vmul.f32 %v1136, %v1710
  %v1836 = vmul.f32 %v1141, %v1711
  %v1837 = vmul.f32 %v1146, %v1712
  %v1838 = vmul.f32 %v1151, %v1713
  %v1839 = vmul.f32 %v1156, %v1714
  %v1840 = vmul.f32 %v1161, %v1715
  %v1841 = vmul.f32 %v1166, %v1716
  %v1842 = vmul.f32 %v1171, %v1717
  %v1843 = vmul.f32 %v1176, %v1718
  %v1844 = vmul.f32 %v1181, %v1719
  %v1845 = vmul.f32 %v1186, %v1720
  %v1846 = vmul.f32 %v1191, %v1721
  %v1847 = vmul.f32 %v1196, %v1722
  %v1848 = vmul.f32 %v1201, %v1723
  %v1849 = vmul.f32 %v1206, %v1724
  %v1850 = vmul.f32 %v1211, %v1725
  %v1851 = vmul.f32 %v1216, %v1726
  %v1852 = vmul.f32 %v1221, %v1727
  %v1853 = vmul.f32 %v1226, %v1728
  %v1854 = vld [vmem:[%s3] sm:$0xff]
  %v1855 = vld [vmem:[%s3 + $0x8] sm:$0xff]
  %v1856 = vld [vmem:[%s3 + $0x10] sm:$0xff]
  %v1857 = vld [vmem:[%s3 + $0x18] sm:$0xff]
  %v1858 = vld [vmem:[%s3 + $0x20] sm:$0xff]
  %v1859 = vld [vmem:[%s3 + $0x28] sm:$0xff]
  %v1860 = vld [vmem:[%s3 + $0x30] sm:$0xff]
  %v1861 = vld [vmem:[%s3 + $0x38] sm:$0xff]
  %v1862 = vld [vmem:[%s3 + $0x40] sm:$0xff]
  %v1863 = vld [vmem:[%s3 + $0x48] sm:$0xff]
  %v1864 = vld [vmem:[%s3 + $0x50] sm:$0xff]
  %v1865 = vld [vmem:[%s3 + $0x58] sm:$0xff]
  %v1866 = vld [vmem:[%s3 + $0x60] sm:$0xff]
  %v1867 = vld [vmem:[%s3 + $0x68] sm:$0xff]
  %v1868 = vld [vmem:[%s3 + $0x70] sm:$0xff]
  %v1869 = vld [vmem:[%s3 + $0x78] sm:$0xff]
  %v1870 = vld [vmem:[%s4] sm:$0x1]
  %v1872 = vlaneseq
  %v1873 = vshrl.u32 %v1872, 7
  %v1874 = vsub.s32 0, %v1873
  %v1875 = vrot.slane %v1870, %v1874
  %1877 = vmatprep.subr.mxu0 0.0
  %1878 = vmatpush1.msra.mxu0 %v1869
  %1879 = vmatprep.subr.mxu0 0.0
  %1880 = vmatpush1.msra.mxu0 %v1868
  %1881 = vmatprep.subr.mxu0 0.0
  %1882 = vmatpush1.msra.mxu0 %v1867
  %1883 = vmatprep.subr.mxu0 0.0
  %1884 = vmatpush1.msra.mxu0 %v1866
  %1885 = vmatprep.subr.mxu0 0.0
  %1886 = vmatpush1.msra.mxu0 %v1865
  %1887 = vmatprep.subr.mxu0 0.0
  %1888 = vmatpush1.msra.mxu0 %v1864
  %1889 = vmatprep.subr.mxu0 0.0
  %1890 = vmatpush1.msra.mxu0 %v1863
  %1891 = vmatprep.subr.mxu0 0.0
  %1892 = vmatpush1.msra.mxu0 %v1862
  %1893 = vmatprep.subr.mxu0 0.0
  %1894 = vmatpush1.msra.mxu0 %v1861
  %1895 = vmatprep.subr.mxu0 0.0
  %1896 = vmatpush1.msra.mxu0 %v1860
  %1897 = vmatprep.subr.mxu0 0.0
  %1898 = vmatpush1.msra.mxu0 %v1859
  %1899 = vmatprep.subr.mxu0 0.0
  %1900 = vmatpush1.msra.mxu0 %v1858
  %1901 = vmatprep.subr.mxu0 0.0
  %1902 = vmatpush1.msra.mxu0 %v1857
  %1903 = vmatprep.subr.mxu0 0.0
  %1904 = vmatpush1.msra.mxu0 %v1856
  %1905 = vmatprep.subr.mxu0 0.0
  %1906 = vmatpush1.msra.mxu0 %v1855
  %1907 = vmatprep.subr.mxu0 0.0
  %1908 = vmatpush1.msra.mxu0 %v1854
  %1909 = vmatprep.subr.mxu0 0.0
  %1910 = vmatpush2.msra.mxu0 0.0
  %1911 = vmatprep.subr.mxu0 0.0
  %1912 = vmatpush2.msra.mxu0 0.0
  %1913 = vmatprep.subr.mxu0 0.0
  %1914 = vmatpush2.msra.mxu0 0.0
  %1915 = vmatprep.subr.mxu0 0.0
  %1916 = vmatpush2.msra.mxu0 0.0
  %1917 = vmatprep.subr.mxu0 0.0
  %1918 = vmatpush2.msra.mxu0 0.0
  %1919 = vmatprep.subr.mxu0 0.0
  %1920 = vmatpush2.msra.mxu0 0.0
  %1921 = vmatprep.subr.mxu0 0.0
  %1922 = vmatpush2.msra.mxu0 0.0
  %1923 = vmatprep.subr.mxu0 0.0
  %1924 = vmatpush2.msra.mxu0 0.0
  %1925 = vmatprep.subr.mxu0 0.0
  %1926 = vmatpush2.msra.mxu0 0.0
  %1927 = vmatprep.subr.mxu0 0.0
  %1928 = vmatpush2.msra.mxu0 0.0
  %1929 = vmatprep.subr.mxu0 0.0
  %1930 = vmatpush2.msra.mxu0 0.0
  %1931 = vmatprep.subr.mxu0 0.0
  %1932 = vmatpush2.msra.mxu0 0.0
  %1933 = vmatprep.subr.mxu0 0.0
  %1934 = vmatpush2.msra.mxu0 0.0
  %1935 = vmatprep.subr.mxu0 0.0
  %1936 = vmatpush2.msra.mxu0 0.0
  %1937 = vmatprep.subr.mxu0 0.0
  %1938 = vmatpush2.msra.mxu0 0.0
  %1939 = vmatprep.subr.mxu0 0.0
  %1940 = vmatpush2.msra.mxu0 0.0
  %1941 = vmatprep.mubr.f32.mxu0 0.0
  %1942 = vmatmul.mubr.f32.gmra.mxu0 %v1729
  %v1943 = vpop.f32.mrf.mxu0
  %v1944 = vadd.f32 %v1875, %v1943
  %v1945 = vpop.f32.mrf.mxu0
  %1946 = vmatprep.mubr.f32.mxu0 0.0
  %1947 = vmatmul.mubr.f32.gmra.mxu0 %v1730
  %v1948 = vpop.f32.mrf.mxu0
  %v1949 = vadd.f32 %v1875, %v1948
  %v1950 = vpop.f32.mrf.mxu0
  %1951 = vmatprep.mubr.f32.mxu0 0.0
  %1952 = vmatmul.mubr.f32.gmra.mxu0 %v1731
  %v1953 = vpop.f32.mrf.mxu0
  %v1954 = vadd.f32 %v1875, %v1953
  %v1955 = vpop.f32.mrf.mxu0
  %1956 = vmatprep.mubr.f32.mxu0 0.0
  %1957 = vmatmul.mubr.f32.gmra.mxu0 %v1732
  %v1958 = vpop.f32.mrf.mxu0
  %v1959 = vadd.f32 %v1875, %v1958
  %v1960 = vpop.f32.mrf.mxu0
  %1961 = vmatprep.mubr.f32.mxu0 0.0
  %1962 = vmatmul.mubr.f32.gmra.mxu0 %v1733
  %v1963 = vpop.f32.mrf.mxu0
  %v1964 = vadd.f32 %v1875, %v1963
  %v1965 = vpop.f32.mrf.mxu0
  %1966 = vmatprep.mubr.f32.mxu0 0.0
  %1967 = vmatmul.mubr.f32.gmra.mxu0 %v1734
  %v1968 = vpop.f32.mrf.mxu0
  %v1969 = vadd.f32 %v1875, %v1968
  %v1970 = vpop.f32.mrf.mxu0
  %1971 = vmatprep.mubr.f32.mxu0 0.0
  %1972 = vmatmul.mubr.f32.gmra.mxu0 %v1735
  %v1973 = vpop.f32.mrf.mxu0
  %v1974 = vadd.f32 %v1875, %v1973
  %v1975 = vpop.f32.mrf.mxu0
  %1976 = vmatprep.mubr.f32.mxu0 0.0
  %1977 = vmatmul.mubr.f32.gmra.mxu0 %v1736
  %v1978 = vpop.f32.mrf.mxu0
  %v1979 = vadd.f32 %v1875, %v1978
  %v1980 = vpop.f32.mrf.mxu0
  %1981 = vmatprep.mubr.f32.mxu0 0.0
  %1982 = vmatmul.mubr.f32.gmra.mxu0 %v1737
  %v1983 = vpop.f32.mrf.mxu0
  %v1984 = vadd.f32 %v1875, %v1983
  %v1985 = vpop.f32.mrf.mxu0
  %1986 = vmatprep.mubr.f32.mxu0 0.0
  %1987 = vmatmul.mubr.f32.gmra.mxu0 %v1738
  %v1988 = vpop.f32.mrf.mxu0
  %v1989 = vadd.f32 %v1875, %v1988
  %v1990 = vpop.f32.mrf.mxu0
  %1991 = vmatprep.mubr.f32.mxu0 0.0
  %1992 = vmatmul.mubr.f32.gmra.mxu0 %v1739
  %v1993 = vpop.f32.mrf.mxu0
  %v1994 = vadd.f32 %v1875, %v1993
  %v1995 = vpop.f32.mrf.mxu0
  %1996 = vmatprep.mubr.f32.mxu0 0.0
  %1997 = vmatmul.mubr.f32.gmra.mxu0 %v1740
  %v1998 = vpop.f32.mrf.mxu0
  %v1999 = vadd.f32 %v1875, %v1998
  %v2000 = vpop.f32.mrf.mxu0
  %2001 = vmatprep.mubr.f32.mxu0 0.0
  %2002 = vmatmul.mubr.f32.gmra.mxu0 %v1741
  %v2003 = vpop.f32.mrf.mxu0
  %v2004 = vadd.f32 %v1875, %v2003
  %v2005 = vpop.f32.mrf.mxu0
  %2006 = vmatprep.mubr.f32.mxu0 0.0
  %2007 = vmatmul.mubr.f32.gmra.mxu0 %v1742
  %v2008 = vpop.f32.mrf.mxu0
  %v2009 = vadd.f32 %v1875, %v2008
  %v2010 = vpop.f32.mrf.mxu0
  %2011 = vmatprep.mubr.f32.mxu0 0.0
  %2012 = vmatmul.mubr.f32.gmra.mxu0 %v1743
  %v2013 = vpop.f32.mrf.mxu0
  %v2014 = vadd.f32 %v1875, %v2013
  %v2015 = vpop.f32.mrf.mxu0
  %2016 = vmatprep.mubr.f32.mxu0 0.0
  %2017 = vmatmul.mubr.f32.gmra.mxu0 %v1744
  %v2018 = vpop.f32.mrf.mxu0
  %v2019 = vadd.f32 %v1875, %v2018
  %v2020 = vpop.f32.mrf.mxu0
  %2021 = vmatprep.mubr.f32.mxu0 0.0
  %2022 = vmatmul.mubr.f32.gmra.mxu0 %v1745
  %v2023 = vpop.f32.mrf.mxu0
  %v2024 = vadd.f32 %v1875, %v2023
  %v2025 = vpop.f32.mrf.mxu0
  %2026 = vmatprep.mubr.f32.mxu0 0.0
  %2027 = vmatmul.mubr.f32.gmra.mxu0 %v1746
  %v2028 = vpop.f32.mrf.mxu0
  %v2029 = vadd.f32 %v1875, %v2028
  %v2030 = vpop.f32.mrf.mxu0
  %2031 = vmatprep.mubr.f32.mxu0 0.0
  %2032 = vmatmul.mubr.f32.gmra.mxu0 %v1747
  %v2033 = vpop.f32.mrf.mxu0
  %v2034 = vadd.f32 %v1875, %v2033
  %v2035 = vpop.f32.mrf.mxu0
  %2036 = vmatprep.mubr.f32.mxu0 0.0
  %2037 = vmatmul.mubr.f32.gmra.mxu0 %v1748
  %v2038 = vpop.f32.mrf.mxu0
  %v2039 = vadd.f32 %v1875, %v2038
  %v2040 = vpop.f32.mrf.mxu0
  %2041 = vmatprep.mubr.f32.mxu0 0.0
  %2042 = vmatmul.mubr.f32.gmra.mxu0 %v1749
  %v2043 = vpop.f32.mrf.mxu0
  %v2044 = vadd.f32 %v1875, %v2043
  %v2045 = vpop.f32.mrf.mxu0
  %2046 = vmatprep.mubr.f32.mxu0 0.0
  %2047 = vmatmul.mubr.f32.gmra.mxu0 %v1750
  %v2048 = vpop.f32.mrf.mxu0
  %v2049 = vadd.f32 %v1875, %v2048
  %v2050 = vpop.f32.mrf.mxu0
  %2051 = vmatprep.mubr.f32.mxu0 0.0
  %2052 = vmatmul.mubr.f32.gmra.mxu0 %v1751
  %v2053 = vpop.f32.mrf.mxu0
  %v2054 = vadd.f32 %v1875, %v2053
  %v2055 = vpop.f32.mrf.mxu0
  %2056 = vmatprep.mubr.f32.mxu0 0.0
  %2057 = vmatmul.mubr.f32.gmra.mxu0 %v1752
  %v2058 = vpop.f32.mrf.mxu0
  %v2059 = vadd.f32 %v1875, %v2058
  %v2060 = vpop.f32.mrf.mxu0
  %2061 = vmatprep.mubr.f32.mxu0 0.0
  %2062 = vmatmul.mubr.f32.gmra.mxu0 %v1753
  %v2063 = vpop.f32.mrf.mxu0
  %v2064 = vadd.f32 %v1875, %v2063
  %v2065 = vpop.f32.mrf.mxu0
  %2066 = vmatprep.mubr.f32.mxu0 0.0
  %2067 = vmatmul.mubr.f32.gmra.mxu0 %v1754
  %v2068 = vpop.f32.mrf.mxu0
  %v2069 = vadd.f32 %v1875, %v2068
  %v2070 = vpop.f32.mrf.mxu0
  %2071 = vmatprep.mubr.f32.mxu0 0.0
  %2072 = vmatmul.mubr.f32.gmra.mxu0 %v1755
  %v2073 = vpop.f32.mrf.mxu0
  %v2074 = vadd.f32 %v1875, %v2073
  %v2075 = vpop.f32.mrf.mxu0
  %2076 = vmatprep.mubr.f32.mxu0 0.0
  %2077 = vmatmul.mubr.f32.gmra.mxu0 %v1756
  %v2078 = vpop.f32.mrf.mxu0
  %v2079 = vadd.f32 %v1875, %v2078
  %v2080 = vpop.f32.mrf.mxu0
  %2081 = vmatprep.mubr.f32.mxu0 0.0
  %2082 = vmatmul.mubr.f32.gmra.mxu0 %v1757
  %v2083 = vpop.f32.mrf.mxu0
  %v2084 = vadd.f32 %v1875, %v2083
  %v2085 = vpop.f32.mrf.mxu0
  %2086 = vmatprep.mubr.f32.mxu0 0.0
  %2087 = vmatmul.mubr.f32.gmra.mxu0 %v1758
  %v2088 = vpop.f32.mrf.mxu0
  %v2089 = vadd.f32 %v1875, %v2088
  %v2090 = vpop.f32.mrf.mxu0
  %2091 = vmatprep.mubr.f32.mxu0 0.0
  %2092 = vmatmul.mubr.f32.gmra.mxu0 %v1759
  %v2093 = vpop.f32.mrf.mxu0
  %v2094 = vadd.f32 %v1875, %v2093
  %v2095 = vpop.f32.mrf.mxu0
  %2096 = vmatprep.mubr.f32.mxu0 0.0
  %2097 = vmatmul.mubr.f32.gmra.mxu0 %v1760
  %v2098 = vpop.f32.mrf.mxu0
  %v2099 = vadd.f32 %v1875, %v2098
  %v2100 = vpop.f32.mrf.mxu0
  %2101 = vmatprep.mubr.f32.mxu0 0.0
  %2102 = vmatmul.mubr.f32.gmra.mxu0 %v1761
  %v2103 = vpop.f32.mrf.mxu0
  %v2104 = vadd.f32 %v1875, %v2103
  %v2105 = vpop.f32.mrf.mxu0
  %2106 = vmatprep.mubr.f32.mxu0 0.0
  %2107 = vmatmul.mubr.f32.gmra.mxu0 %v1762
  %v2108 = vpop.f32.mrf.mxu0
  %v2109 = vadd.f32 %v1875, %v2108
  %v2110 = vpop.f32.mrf.mxu0
  %2111 = vmatprep.mubr.f32.mxu0 0.0
  %2112 = vmatmul.mubr.f32.gmra.mxu0 %v1763
  %v2113 = vpop.f32.mrf.mxu0
  %v2114 = vadd.f32 %v1875, %v2113
  %v2115 = vpop.f32.mrf.mxu0
  %2116 = vmatprep.mubr.f32.mxu0 0.0
  %2117 = vmatmul.mubr.f32.gmra.mxu0 %v1764
  %v2118 = vpop.f32.mrf.mxu0
  %v2119 = vadd.f32 %v1875, %v2118
  %v2120 = vpop.f32.mrf.mxu0
  %2121 = vmatprep.mubr.f32.mxu0 0.0
  %2122 = vmatmul.mubr.f32.gmra.mxu0 %v1765
  %v2123 = vpop.f32.mrf.mxu0
  %v2124 = vadd.f32 %v1875, %v2123
  %v2125 = vpop.f32.mrf.mxu0
  %2126 = vmatprep.mubr.f32.mxu0 0.0
  %2127 = vmatmul.mubr.f32.gmra.mxu0 %v1766
  %v2128 = vpop.f32.mrf.mxu0
  %v2129 = vadd.f32 %v1875, %v2128
  %v2130 = vpop.f32.mrf.mxu0
  %2131 = vmatprep.mubr.f32.mxu0 0.0
  %2132 = vmatmul.mubr.f32.gmra.mxu0 %v1767
  %v2133 = vpop.f32.mrf.mxu0
  %v2134 = vadd.f32 %v1875, %v2133
  %v2135 = vpop.f32.mrf.mxu0
  %2136 = vmatprep.mubr.f32.mxu0 0.0
  %2137 = vmatmul.mubr.f32.gmra.mxu0 %v1768
  %v2138 = vpop.f32.mrf.mxu0
  %v2139 = vadd.f32 %v1875, %v2138
  %v2140 = vpop.f32.mrf.mxu0
  %2141 = vmatprep.mubr.f32.mxu0 0.0
  %2142 = vmatmul.mubr.f32.gmra.mxu0 %v1769
  %v2143 = vpop.f32.mrf.mxu0
  %v2144 = vadd.f32 %v1875, %v2143
  %v2145 = vpop.f32.mrf.mxu0
  %2146 = vmatprep.mubr.f32.mxu0 0.0
  %2147 = vmatmul.mubr.f32.gmra.mxu0 %v1770
  %v2148 = vpop.f32.mrf.mxu0
  %v2149 = vadd.f32 %v1875, %v2148
  %v2150 = vpop.f32.mrf.mxu0
  %2151 = vmatprep.mubr.f32.mxu0 0.0
  %2152 = vmatmul.mubr.f32.gmra.mxu0 %v1771
  %v2153 = vpop.f32.mrf.mxu0
  %v2154 = vadd.f32 %v1875, %v2153
  %v2155 = vpop.f32.mrf.mxu0
  %2156 = vmatprep.mubr.f32.mxu0 0.0
  %2157 = vmatmul.mubr.f32.gmra.mxu0 %v1772
  %v2158 = vpop.f32.mrf.mxu0
  %v2159 = vadd.f32 %v1875, %v2158
  %v2160 = vpop.f32.mrf.mxu0
  %2161 = vmatprep.mubr.f32.mxu0 0.0
  %2162 = vmatmul.mubr.f32.gmra.mxu0 %v1773
  %v2163 = vpop.f32.mrf.mxu0
  %v2164 = vadd.f32 %v1875, %v2163
  %v2165 = vpop.f32.mrf.mxu0
  %2166 = vmatprep.mubr.f32.mxu0 0.0
  %2167 = vmatmul.mubr.f32.gmra.mxu0 %v1774
  %v2168 = vpop.f32.mrf.mxu0
  %v2169 = vadd.f32 %v1875, %v2168
  %v2170 = vpop.f32.mrf.mxu0
  %2171 = vmatprep.mubr.f32.mxu0 0.0
  %2172 = vmatmul.mubr.f32.gmra.mxu0 %v1775
  %v2173 = vpop.f32.mrf.mxu0
  %v2174 = vadd.f32 %v1875, %v2173
  %v2175 = vpop.f32.mrf.mxu0
  %2176 = vmatprep.mubr.f32.mxu0 0.0
  %2177 = vmatmul.mubr.f32.gmra.mxu0 %v1776
  %v2178 = vpop.f32.mrf.mxu0
  %v2179 = vadd.f32 %v1875, %v2178
  %v2180 = vpop.f32.mrf.mxu0
  %2181 = vmatprep.mubr.f32.mxu0 0.0
  %2182 = vmatmul.mubr.f32.gmra.mxu0 %v1777
  %v2183 = vpop.f32.mrf.mxu0
  %v2184 = vadd.f32 %v1875, %v2183
  %v2185 = vpop.f32.mrf.mxu0
  %2186 = vmatprep.mubr.f32.mxu0 0.0
  %2187 = vmatmul.mubr.f32.gmra.mxu0 %v1778
  %v2188 = vpop.f32.mrf.mxu0
  %v2189 = vadd.f32 %v1875, %v2188
  %v2190 = vpop.f32.mrf.mxu0
  %2191 = vmatprep.mubr.f32.mxu0 0.0
  %2192 = vmatmul.mubr.f32.gmra.mxu0 %v1779
  %v2193 = vpop.f32.mrf.mxu0
  %v2194 = vadd.f32 %v1875, %v2193
  %v2195 = vpop.f32.mrf.mxu0
  %2196 = vmatprep.mubr.f32.mxu0 0.0
  %2197 = vmatmul.mubr.f32.gmra.mxu0 %v1780
  %v2198 = vpop.f32.mrf.mxu0
  %v2199 = vadd.f32 %v1875, %v2198
  %v2200 = vpop.f32.mrf.mxu0
  %2201 = vmatprep.mubr.f32.mxu0 0.0
  %2202 = vmatmul.mubr.f32.gmra.mxu0 %v1781
  %v2203 = vpop.f32.mrf.mxu0
  %v2204 = vadd.f32 %v1875, %v2203
  %v2205 = vpop.f32.mrf.mxu0
  %2206 = vmatprep.mubr.f32.mxu0 0.0
  %2207 = vmatmul.mubr.f32.gmra.mxu0 %v1782
  %v2208 = vpop.f32.mrf.mxu0
  %v2209 = vadd.f32 %v1875, %v2208
  %v2210 = vpop.f32.mrf.mxu0
  %2211 = vmatprep.mubr.f32.mxu0 0.0
  %2212 = vmatmul.mubr.f32.gmra.mxu0 %v1783
  %v2213 = vpop.f32.mrf.mxu0
  %v2214 = vadd.f32 %v1875, %v2213
  %v2215 = vpop.f32.mrf.mxu0
  %2216 = vmatprep.mubr.f32.mxu0 0.0
  %2217 = vmatmul.mubr.f32.gmra.mxu0 %v1784
  %v2218 = vpop.f32.mrf.mxu0
  %v2219 = vadd.f32 %v1875, %v2218
  %v2220 = vpop.f32.mrf.mxu0
  %2221 = vmatprep.mubr.f32.mxu0 0.0
  %2222 = vmatmul.mubr.f32.gmra.mxu0 %v1785
  %v2223 = vpop.f32.mrf.mxu0
  %v2224 = vadd.f32 %v1875, %v2223
  %v2225 = vpop.f32.mrf.mxu0
  %2226 = vmatprep.mubr.f32.mxu0 0.0
  %2227 = vmatmul.mubr.f32.gmra.mxu0 %v1786
  %v2228 = vpop.f32.mrf.mxu0
  %v2229 = vadd.f32 %v1875, %v2228
  %v2230 = vpop.f32.mrf.mxu0
  %2231 = vmatprep.mubr.f32.mxu0 0.0
  %2232 = vmatmul.mubr.f32.gmra.mxu0 %v1787
  %v2233 = vpop.f32.mrf.mxu0
  %v2234 = vadd.f32 %v1875, %v2233
  %v2235 = vpop.f32.mrf.mxu0
  %2236 = vmatprep.mubr.f32.mxu0 0.0
  %2237 = vmatmul.mubr.f32.gmra.mxu0 %v1788
  %v2238 = vpop.f32.mrf.mxu0
  %v2239 = vadd.f32 %v1875, %v2238
  %v2240 = vpop.f32.mrf.mxu0
  %2241 = vmatprep.mubr.f32.mxu0 0.0
  %2242 = vmatmul.mubr.f32.gmra.mxu0 %v1789
  %v2243 = vpop.f32.mrf.mxu0
  %v2244 = vadd.f32 %v1875, %v2243
  %v2245 = vpop.f32.mrf.mxu0
  %2246 = vmatprep.mubr.f32.mxu0 0.0
  %2247 = vmatmul.mubr.f32.gmra.mxu0 %v1790
  %v2248 = vpop.f32.mrf.mxu0
  %v2249 = vadd.f32 %v1875, %v2248
  %v2250 = vpop.f32.mrf.mxu0
  %2251 = vmatprep.mubr.f32.mxu0 0.0
  %2252 = vmatmul.mubr.f32.gmra.mxu0 %v1791
  %v2253 = vpop.f32.mrf.mxu0
  %v2254 = vadd.f32 %v1875, %v2253
  %v2255 = vpop.f32.mrf.mxu0
  %2256 = vmatprep.mubr.f32.mxu0 0.0
  %2257 = vmatmul.mubr.f32.gmra.mxu0 %v1792
  %v2258 = vpop.f32.mrf.mxu0
  %v2259 = vadd.f32 %v1875, %v2258
  %v2260 = vpop.f32.mrf.mxu0
  %2261 = vmatprep.mubr.f32.mxu0 0.0
  %2262 = vmatmul.mubr.f32.gmra.mxu0 %v1793
  %v2263 = vpop.f32.mrf.mxu0
  %v2264 = vadd.f32 %v1875, %v2263
  %v2265 = vpop.f32.mrf.mxu0
  %2266 = vmatprep.mubr.f32.mxu0 0.0
  %2267 = vmatmul.mubr.f32.gmra.mxu0 %v1794
  %v2268 = vpop.f32.mrf.mxu0
  %v2269 = vadd.f32 %v1875, %v2268
  %v2270 = vpop.f32.mrf.mxu0
  %2271 = vmatprep.mubr.f32.mxu0 0.0
  %2272 = vmatmul.mubr.f32.gmra.mxu0 %v1795
  %v2273 = vpop.f32.mrf.mxu0
  %v2274 = vadd.f32 %v1875, %v2273
  %v2275 = vpop.f32.mrf.mxu0
  %2276 = vmatprep.mubr.f32.mxu0 0.0
  %2277 = vmatmul.mubr.f32.gmra.mxu0 %v1796
  %v2278 = vpop.f32.mrf.mxu0
  %v2279 = vadd.f32 %v1875, %v2278
  %v2280 = vpop.f32.mrf.mxu0
  %2281 = vmatprep.mubr.f32.mxu0 0.0
  %2282 = vmatmul.mubr.f32.gmra.mxu0 %v1797
  %v2283 = vpop.f32.mrf.mxu0
  %v2284 = vadd.f32 %v1875, %v2283
  %v2285 = vpop.f32.mrf.mxu0
  %2286 = vmatprep.mubr.f32.mxu0 0.0
  %2287 = vmatmul.mubr.f32.gmra.mxu0 %v1798
  %v2288 = vpop.f32.mrf.mxu0
  %v2289 = vadd.f32 %v1875, %v2288
  %v2290 = vpop.f32.mrf.mxu0
  %2291 = vmatprep.mubr.f32.mxu0 0.0
  %2292 = vmatmul.mubr.f32.gmra.mxu0 %v1799
  %v2293 = vpop.f32.mrf.mxu0
  %v2294 = vadd.f32 %v1875, %v2293
  %v2295 = vpop.f32.mrf.mxu0
  %2296 = vmatprep.mubr.f32.mxu0 0.0
  %2297 = vmatmul.mubr.f32.gmra.mxu0 %v1800
  %v2298 = vpop.f32.mrf.mxu0
  %v2299 = vadd.f32 %v1875, %v2298
  %v2300 = vpop.f32.mrf.mxu0
  %2301 = vmatprep.mubr.f32.mxu0 0.0
  %2302 = vmatmul.mubr.f32.gmra.mxu0 %v1801
  %v2303 = vpop.f32.mrf.mxu0
  %v2304 = vadd.f32 %v1875, %v2303
  %v2305 = vpop.f32.mrf.mxu0
  %2306 = vmatprep.mubr.f32.mxu0 0.0
  %2307 = vmatmul.mubr.f32.gmra.mxu0 %v1802
  %v2308 = vpop.f32.mrf.mxu0
  %v2309 = vadd.f32 %v1875, %v2308
  %v2310 = vpop.f32.mrf.mxu0
  %2311 = vmatprep.mubr.f32.mxu0 0.0
  %2312 = vmatmul.mubr.f32.gmra.mxu0 %v1803
  %v2313 = vpop.f32.mrf.mxu0
  %v2314 = vadd.f32 %v1875, %v2313
  %v2315 = vpop.f32.mrf.mxu0
  %2316 = vmatprep.mubr.f32.mxu0 0.0
  %2317 = vmatmul.mubr.f32.gmra.mxu0 %v1804
  %v2318 = vpop.f32.mrf.mxu0
  %v2319 = vadd.f32 %v1875, %v2318
  %v2320 = vpop.f32.mrf.mxu0
  %2321 = vmatprep.mubr.f32.mxu0 0.0
  %2322 = vmatmul.mubr.f32.gmra.mxu0 %v1805
  %v2323 = vpop.f32.mrf.mxu0
  %v2324 = vadd.f32 %v1875, %v2323
  %v2325 = vpop.f32.mrf.mxu0
  %2326 = vmatprep.mubr.f32.mxu0 0.0
  %2327 = vmatmul.mubr.f32.gmra.mxu0 %v1806
  %v2328 = vpop.f32.mrf.mxu0
  %v2329 = vadd.f32 %v1875, %v2328
  %v2330 = vpop.f32.mrf.mxu0
  %2331 = vmatprep.mubr.f32.mxu0 0.0
  %2332 = vmatmul.mubr.f32.gmra.mxu0 %v1807
  %v2333 = vpop.f32.mrf.mxu0
  %v2334 = vadd.f32 %v1875, %v2333
  %v2335 = vpop.f32.mrf.mxu0
  %2336 = vmatprep.mubr.f32.mxu0 0.0
  %2337 = vmatmul.mubr.f32.gmra.mxu0 %v1808
  %v2338 = vpop.f32.mrf.mxu0
  %v2339 = vadd.f32 %v1875, %v2338
  %v2340 = vpop.f32.mrf.mxu0
  %2341 = vmatprep.mubr.f32.mxu0 0.0
  %2342 = vmatmul.mubr.f32.gmra.mxu0 %v1809
  %v2343 = vpop.f32.mrf.mxu0
  %v2344 = vadd.f32 %v1875, %v2343
  %v2345 = vpop.f32.mrf.mxu0
  %2346 = vmatprep.mubr.f32.mxu0 0.0
  %2347 = vmatmul.mubr.f32.gmra.mxu0 %v1810
  %v2348 = vpop.f32.mrf.mxu0
  %v2349 = vadd.f32 %v1875, %v2348
  %v2350 = vpop.f32.mrf.mxu0
  %2351 = vmatprep.mubr.f32.mxu0 0.0
  %2352 = vmatmul.mubr.f32.gmra.mxu0 %v1811
  %v2353 = vpop.f32.mrf.mxu0
  %v2354 = vadd.f32 %v1875, %v2353
  %v2355 = vpop.f32.mrf.mxu0
  %2356 = vmatprep.mubr.f32.mxu0 0.0
  %2357 = vmatmul.mubr.f32.gmra.mxu0 %v1812
  %v2358 = vpop.f32.mrf.mxu0
  %v2359 = vadd.f32 %v1875, %v2358
  %v2360 = vpop.f32.mrf.mxu0
  %2361 = vmatprep.mubr.f32.mxu0 0.0
  %2362 = vmatmul.mubr.f32.gmra.mxu0 %v1813
  %v2363 = vpop.f32.mrf.mxu0
  %v2364 = vadd.f32 %v1875, %v2363
  %v2365 = vpop.f32.mrf.mxu0
  %2366 = vmatprep.mubr.f32.mxu0 0.0
  %2367 = vmatmul.mubr.f32.gmra.mxu0 %v1814
  %v2368 = vpop.f32.mrf.mxu0
  %v2369 = vadd.f32 %v1875, %v2368
  %v2370 = vpop.f32.mrf.mxu0
  %2371 = vmatprep.mubr.f32.mxu0 0.0
  %2372 = vmatmul.mubr.f32.gmra.mxu0 %v1815
  %v2373 = vpop.f32.mrf.mxu0
  %v2374 = vadd.f32 %v1875, %v2373
  %v2375 = vpop.f32.mrf.mxu0
  %2376 = vmatprep.mubr.f32.mxu0 0.0
  %2377 = vmatmul.mubr.f32.gmra.mxu0 %v1816
  %v2378 = vpop.f32.mrf.mxu0
  %v2379 = vadd.f32 %v1875, %v2378
  %v2380 = vpop.f32.mrf.mxu0
  %2381 = vmatprep.mubr.f32.mxu0 0.0
  %2382 = vmatmul.mubr.f32.gmra.mxu0 %v1817
  %v2383 = vpop.f32.mrf.mxu0
  %v2384 = vadd.f32 %v1875, %v2383
  %v2385 = vpop.f32.mrf.mxu0
  %2386 = vmatprep.mubr.f32.mxu0 0.0
  %2387 = vmatmul.mubr.f32.gmra.mxu0 %v1818
  %v2388 = vpop.f32.mrf.mxu0
  %v2389 = vadd.f32 %v1875, %v2388
  %v2390 = vpop.f32.mrf.mxu0
  %2391 = vmatprep.mubr.f32.mxu0 0.0
  %2392 = vmatmul.mubr.f32.gmra.mxu0 %v1819
  %v2393 = vpop.f32.mrf.mxu0
  %v2394 = vadd.f32 %v1875, %v2393
  %v2395 = vpop.f32.mrf.mxu0
  %2396 = vmatprep.mubr.f32.mxu0 0.0
  %2397 = vmatmul.mubr.f32.gmra.mxu0 %v1820
  %v2398 = vpop.f32.mrf.mxu0
  %v2399 = vadd.f32 %v1875, %v2398
  %v2400 = vpop.f32.mrf.mxu0
  %2401 = vmatprep.mubr.f32.mxu0 0.0
  %2402 = vmatmul.mubr.f32.gmra.mxu0 %v1821
  %v2403 = vpop.f32.mrf.mxu0
  %v2404 = vadd.f32 %v1875, %v2403
  %v2405 = vpop.f32.mrf.mxu0
  %2406 = vmatprep.mubr.f32.mxu0 0.0
  %2407 = vmatmul.mubr.f32.gmra.mxu0 %v1822
  %v2408 = vpop.f32.mrf.mxu0
  %v2409 = vadd.f32 %v1875, %v2408
  %v2410 = vpop.f32.mrf.mxu0
  %2411 = vmatprep.mubr.f32.mxu0 0.0
  %2412 = vmatmul.mubr.f32.gmra.mxu0 %v1823
  %v2413 = vpop.f32.mrf.mxu0
  %v2414 = vadd.f32 %v1875, %v2413
  %v2415 = vpop.f32.mrf.mxu0
  %2416 = vmatprep.mubr.f32.mxu0 0.0
  %2417 = vmatmul.mubr.f32.gmra.mxu0 %v1824
  %v2418 = vpop.f32.mrf.mxu0
  %v2419 = vadd.f32 %v1875, %v2418
  %v2420 = vpop.f32.mrf.mxu0
  %2421 = vmatprep.mubr.f32.mxu0 0.0
  %2422 = vmatmul.mubr.f32.gmra.mxu0 %v1825
  %v2423 = vpop.f32.mrf.mxu0
  %v2424 = vadd.f32 %v1875, %v2423
  %v2425 = vpop.f32.mrf.mxu0
  %2426 = vmatprep.mubr.f32.mxu0 0.0
  %2427 = vmatmul.mubr.f32.gmra.mxu0 %v1826
  %v2428 = vpop.f32.mrf.mxu0
  %v2429 = vadd.f32 %v1875, %v2428
  %v2430 = vpop.f32.mrf.mxu0
  %2431 = vmatprep.mubr.f32.mxu0 0.0
  %2432 = vmatmul.mubr.f32.gmra.mxu0 %v1827
  %v2433 = vpop.f32.mrf.mxu0
  %v2434 = vadd.f32 %v1875, %v2433
  %v2435 = vpop.f32.mrf.mxu0
  %2436 = vmatprep.mubr.f32.mxu0 0.0
  %2437 = vmatmul.mubr.f32.gmra.mxu0 %v1828
  %v2438 = vpop.f32.mrf.mxu0
  %v2439 = vadd.f32 %v1875, %v2438
  %v2440 = vpop.f32.mrf.mxu0
  %2441 = vmatprep.mubr.f32.mxu0 0.0
  %2442 = vmatmul.mubr.f32.gmra.mxu0 %v1829
  %v2443 = vpop.f32.mrf.mxu0
  %v2444 = vadd.f32 %v1875, %v2443
  %v2445 = vpop.f32.mrf.mxu0
  %2446 = vmatprep.mubr.f32.mxu0 0.0
  %2447 = vmatmul.mubr.f32.gmra.mxu0 %v1830
  %v2448 = vpop.f32.mrf.mxu0
  %v2449 = vadd.f32 %v1875, %v2448
  %v2450 = vpop.f32.mrf.mxu0
  %2451 = vmatprep.mubr.f32.mxu0 0.0
  %2452 = vmatmul.mubr.f32.gmra.mxu0 %v1831
  %v2453 = vpop.f32.mrf.mxu0
  %v2454 = vadd.f32 %v1875, %v2453
  %v2455 = vpop.f32.mrf.mxu0
  %2456 = vmatprep.mubr.f32.mxu0 0.0
  %2457 = vmatmul.mubr.f32.gmra.mxu0 %v1832
  %v2458 = vpop.f32.mrf.mxu0
  %v2459 = vadd.f32 %v1875, %v2458
  %v2460 = vpop.f32.mrf.mxu0
  %2461 = vmatprep.mubr.f32.mxu0 0.0
  %2462 = vmatmul.mubr.f32.gmra.mxu0 %v1833
  %v2463 = vpop.f32.mrf.mxu0
  %v2464 = vadd.f32 %v1875, %v2463
  %v2465 = vpop.f32.mrf.mxu0
  %2466 = vmatprep.mubr.f32.mxu0 0.0
  %2467 = vmatmul.mubr.f32.gmra.mxu0 %v1834
  %v2468 = vpop.f32.mrf.mxu0
  %v2469 = vadd.f32 %v1875, %v2468
  %v2470 = vpop.f32.mrf.mxu0
  %2471 = vmatprep.mubr.f32.mxu0 0.0
  %2472 = vmatmul.mubr.f32.gmra.mxu0 %v1835
  %v2473 = vpop.f32.mrf.mxu0
  %v2474 = vadd.f32 %v1875, %v2473
  %v2475 = vpop.f32.mrf.mxu0
  %2476 = vmatprep.mubr.f32.mxu0 0.0
  %2477 = vmatmul.mubr.f32.gmra.mxu0 %v1836
  %v2478 = vpop.f32.mrf.mxu0
  %v2479 = vadd.f32 %v1875, %v2478
  %v2480 = vpop.f32.mrf.mxu0
  %2481 = vmatprep.mubr.f32.mxu0 0.0
  %2482 = vmatmul.mubr.f32.gmra.mxu0 %v1837
  %v2483 = vpop.f32.mrf.mxu0
  %v2484 = vadd.f32 %v1875, %v2483
  %v2485 = vpop.f32.mrf.mxu0
  %2486 = vmatprep.mubr.f32.mxu0 0.0
  %2487 = vmatmul.mubr.f32.gmra.mxu0 %v1838
  %v2488 = vpop.f32.mrf.mxu0
  %v2489 = vadd.f32 %v1875, %v2488
  %v2490 = vpop.f32.mrf.mxu0
  %2491 = vmatprep.mubr.f32.mxu0 0.0
  %2492 = vmatmul.mubr.f32.gmra.mxu0 %v1839
  %v2493 = vpop.f32.mrf.mxu0
  %v2494 = vadd.f32 %v1875, %v2493
  %v2495 = vpop.f32.mrf.mxu0
  %2496 = vmatprep.mubr.f32.mxu0 0.0
  %2497 = vmatmul.mubr.f32.gmra.mxu0 %v1840
  %v2498 = vpop.f32.mrf.mxu0
  %v2499 = vadd.f32 %v1875, %v2498
  %v2500 = vpop.f32.mrf.mxu0
  %2501 = vmatprep.mubr.f32.mxu0 0.0
  %2502 = vmatmul.mubr.f32.gmra.mxu0 %v1841
  %v2503 = vpop.f32.mrf.mxu0
  %v2504 = vadd.f32 %v1875, %v2503
  %v2505 = vpop.f32.mrf.mxu0
  %2506 = vmatprep.mubr.f32.mxu0 0.0
  %2507 = vmatmul.mubr.f32.gmra.mxu0 %v1842
  %v2508 = vpop.f32.mrf.mxu0
  %v2509 = vadd.f32 %v1875, %v2508
  %v2510 = vpop.f32.mrf.mxu0
  %2511 = vmatprep.mubr.f32.mxu0 0.0
  %2512 = vmatmul.mubr.f32.gmra.mxu0 %v1843
  %v2513 = vpop.f32.mrf.mxu0
  %v2514 = vadd.f32 %v1875, %v2513
  %v2515 = vpop.f32.mrf.mxu0
  %2516 = vmatprep.mubr.f32.mxu0 0.0
  %2517 = vmatmul.mubr.f32.gmra.mxu0 %v1844
  %v2518 = vpop.f32.mrf.mxu0
  %v2519 = vadd.f32 %v1875, %v2518
  %v2520 = vpop.f32.mrf.mxu0
  %2521 = vmatprep.mubr.f32.mxu0 0.0
  %2522 = vmatmul.mubr.f32.gmra.mxu0 %v1845
  %v2523 = vpop.f32.mrf.mxu0
  %v2524 = vadd.f32 %v1875, %v2523
  %v2525 = vpop.f32.mrf.mxu0
  %2526 = vmatprep.mubr.f32.mxu0 0.0
  %2527 = vmatmul.mubr.f32.gmra.mxu0 %v1846
  %v2528 = vpop.f32.mrf.mxu0
  %v2529 = vadd.f32 %v1875, %v2528
  %v2530 = vpop.f32.mrf.mxu0
  %2531 = vmatprep.mubr.f32.mxu0 0.0
  %2532 = vmatmul.mubr.f32.gmra.mxu0 %v1847
  %v2533 = vpop.f32.mrf.mxu0
  %v2534 = vadd.f32 %v1875, %v2533
  %v2535 = vpop.f32.mrf.mxu0
  %2536 = vmatprep.mubr.f32.mxu0 0.0
  %2537 = vmatmul.mubr.f32.gmra.mxu0 %v1848
  %v2538 = vpop.f32.mrf.mxu0
  %v2539 = vadd.f32 %v1875, %v2538
  %v2540 = vpop.f32.mrf.mxu0
  %2541 = vmatprep.mubr.f32.mxu0 0.0
  %2542 = vmatmul.mubr.f32.gmra.mxu0 %v1849
  %v2543 = vpop.f32.mrf.mxu0
  %v2544 = vadd.f32 %v1875, %v2543
  %v2545 = vpop.f32.mrf.mxu0
  %2546 = vmatprep.mubr.f32.mxu0 0.0
  %2547 = vmatmul.mubr.f32.gmra.mxu0 %v1850
  %v2548 = vpop.f32.mrf.mxu0
  %v2549 = vadd.f32 %v1875, %v2548
  %v2550 = vpop.f32.mrf.mxu0
  %2551 = vmatprep.mubr.f32.mxu0 0.0
  %2552 = vmatmul.mubr.f32.gmra.mxu0 %v1851
  %v2553 = vpop.f32.mrf.mxu0
  %v2554 = vadd.f32 %v1875, %v2553
  %v2555 = vpop.f32.mrf.mxu0
  %2556 = vmatprep.mubr.f32.mxu0 0.0
  %2557 = vmatmul.mubr.f32.gmra.mxu0 %v1852
  %v2558 = vpop.f32.mrf.mxu0
  %v2559 = vadd.f32 %v1875, %v2558
  %v2560 = vpop.f32.mrf.mxu0
  %2561 = vmatprep.mubr.f32.mxu0 0.0
  %2562 = vmatmul.mubr.f32.gmra.mxu0 %v1853
  %v2563 = vpop.f32.mrf.mxu0
  %v2564 = vadd.f32 %v1875, %v2563
  %v2565 = vpop.f32.mrf.mxu0
  %2566 = vdwg.mxu0
  %v2567 = vmul.f32 %v1944, 0.5
  %v2568 = vmul.f32 %v1949, 0.5
  %v2569 = vmul.f32 %v1954, 0.5
  %v2570 = vmul.f32 %v1959, 0.5
  %v2571 = vmul.f32 %v1964, 0.5
  %v2572 = vmul.f32 %v1969, 0.5
  %v2573 = vmul.f32 %v1974, 0.5
  %v2574 = vmul.f32 %v1979, 0.5
  %v2575 = vmul.f32 %v1984, 0.5
  %v2576 = vmul.f32 %v1989, 0.5
  %v2577 = vmul.f32 %v1994, 0.5
  %v2578 = vmul.f32 %v1999, 0.5
  %v2579 = vmul.f32 %v2004, 0.5
  %v2580 = vmul.f32 %v2009, 0.5
  %v2581 = vmul.f32 %v2014, 0.5
  %v2582 = vmul.f32 %v2019, 0.5
  %v2583 = vmul.f32 %v2024, 0.5
  %v2584 = vmul.f32 %v2029, 0.5
  %v2585 = vmul.f32 %v2034, 0.5
  %v2586 = vmul.f32 %v2039, 0.5
  %v2587 = vmul.f32 %v2044, 0.5
  %v2588 = vmul.f32 %v2049, 0.5
  %v2589 = vmul.f32 %v2054, 0.5
  %v2590 = vmul.f32 %v2059, 0.5
  %v2591 = vmul.f32 %v2064, 0.5
  %v2592 = vmul.f32 %v2069, 0.5
  %v2593 = vmul.f32 %v2074, 0.5
  %v2594 = vmul.f32 %v2079, 0.5
  %v2595 = vmul.f32 %v2084, 0.5
  %v2596 = vmul.f32 %v2089, 0.5
  %v2597 = vmul.f32 %v2094, 0.5
  %v2598 = vmul.f32 %v2099, 0.5
  %v2599 = vmul.f32 %v2104, 0.5
  %v2600 = vmul.f32 %v2109, 0.5
  %v2601 = vmul.f32 %v2114, 0.5
  %v2602 = vmul.f32 %v2119, 0.5
  %v2603 = vmul.f32 %v2124, 0.5
  %v2604 = vmul.f32 %v2129, 0.5
  %v2605 = vmul.f32 %v2134, 0.5
  %v2606 = vmul.f32 %v2139, 0.5
  %v2607 = vmul.f32 %v2144, 0.5
  %v2608 = vmul.f32 %v2149, 0.5
  %v2609 = vmul.f32 %v2154, 0.5
  %v2610 = vmul.f32 %v2159, 0.5
  %v2611 = vmul.f32 %v2164, 0.5
  %v2612 = vmul.f32 %v2169, 0.5
  %v2613 = vmul.f32 %v2174, 0.5
  %v2614 = vmul.f32 %v2179, 0.5
  %v2615 = vmul.f32 %v2184, 0.5
  %v2616 = vmul.f32 %v2189, 0.5
  %v2617 = vmul.f32 %v2194, 0.5
  %v2618 = vmul.f32 %v2199, 0.5
  %v2619 = vmul.f32 %v2204, 0.5
  %v2620 = vmul.f32 %v2209, 0.5
  %v2621 = vmul.f32 %v2214, 0.5
  %v2622 = vmul.f32 %v2219, 0.5
  %v2623 = vmul.f32 %v2224, 0.5
  %v2624 = vmul.f32 %v2229, 0.5
  %v2625 = vmul.f32 %v2234, 0.5
  %v2626 = vmul.f32 %v2239, 0.5
  %v2627 = vmul.f32 %v2244, 0.5
  %v2628 = vmul.f32 %v2249, 0.5
  %v2629 = vmul.f32 %v2254, 0.5
  %v2630 = vmul.f32 %v2259, 0.5
  %v2631 = vmul.f32 %v2264, 0.5
  %v2632 = vmul.f32 %v2269, 0.5
  %v2633 = vmul.f32 %v2274, 0.5
  %v2634 = vmul.f32 %v2279, 0.5
  %v2635 = vmul.f32 %v2284, 0.5
  %v2636 = vmul.f32 %v2289, 0.5
  %v2637 = vmul.f32 %v2294, 0.5
  %v2638 = vmul.f32 %v2299, 0.5
  %v2639 = vmul.f32 %v2304, 0.5
  %v2640 = vmul.f32 %v2309, 0.5
  %v2641 = vmul.f32 %v2314, 0.5
  %v2642 = vmul.f32 %v2319, 0.5
  %v2643 = vmul.f32 %v2324, 0.5
  %v2644 = vmul.f32 %v2329, 0.5
  %v2645 = vmul.f32 %v2334, 0.5
  %v2646 = vmul.f32 %v2339, 0.5
  %v2647 = vmul.f32 %v2344, 0.5
  %v2648 = vmul.f32 %v2349, 0.5
  %v2649 = vmul.f32 %v2354, 0.5
  %v2650 = vmul.f32 %v2359, 0.5
  %v2651 = vmul.f32 %v2364, 0.5
  %v2652 = vmul.f32 %v2369, 0.5
  %v2653 = vmul.f32 %v2374, 0.5
  %v2654 = vmul.f32 %v2379, 0.5
  %v2655 = vmul.f32 %v2384, 0.5
  %v2656 = vmul.f32 %v2389, 0.5
  %v2657 = vmul.f32 %v2394, 0.5
  %v2658 = vmul.f32 %v2399, 0.5
  %v2659 = vmul.f32 %v2404, 0.5
  %v2660 = vmul.f32 %v2409, 0.5
  %v2661 = vmul.f32 %v2414, 0.5
  %v2662 = vmul.f32 %v2419, 0.5
  %v2663 = vmul.f32 %v2424, 0.5
  %v2664 = vmul.f32 %v2429, 0.5
  %v2665 = vmul.f32 %v2434, 0.5
  %v2666 = vmul.f32 %v2439, 0.5
  %v2667 = vmul.f32 %v2444, 0.5
  %v2668 = vmul.f32 %v2449, 0.5
  %v2669 = vmul.f32 %v2454, 0.5
  %v2670 = vmul.f32 %v2459, 0.5
  %v2671 = vmul.f32 %v2464, 0.5
  %v2672 = vmul.f32 %v2469, 0.5
  %v2673 = vmul.f32 %v2474, 0.5
  %v2674 = vmul.f32 %v2479, 0.5
  %v2675 = vmul.f32 %v2484, 0.5
  %v2676 = vmul.f32 %v2489, 0.5
  %v2677 = vmul.f32 %v2494, 0.5
  %v2678 = vmul.f32 %v2499, 0.5
  %v2679 = vmul.f32 %v2504, 0.5
  %v2680 = vmul.f32 %v2509, 0.5
  %v2681 = vmul.f32 %v2514, 0.5
  %v2682 = vmul.f32 %v2519, 0.5
  %v2683 = vmul.f32 %v2524, 0.5
  %v2684 = vmul.f32 %v2529, 0.5
  %v2685 = vmul.f32 %v2534, 0.5
  %v2686 = vmul.f32 %v2539, 0.5
  %v2687 = vmul.f32 %v2544, 0.5
  %v2688 = vmul.f32 %v2549, 0.5
  %v2689 = vmul.f32 %v2554, 0.5
  %v2690 = vmul.f32 %v2559, 0.5
  %v2691 = vmul.f32 %v2564, 0.5
  %v2692 = vtanh.pop %v2567
  %v2693 = vtanh.pop %v2568
  %v2694 = vtanh.pop %v2569
  %v2695 = vtanh.pop %v2570
  %v2696 = vtanh.pop %v2571
  %v2697 = vtanh.pop %v2572
  %v2698 = vtanh.pop %v2573
  %v2699 = vtanh.pop %v2574
  %v2700 = vtanh.pop %v2575
  %v2701 = vtanh.pop %v2576
  %v2702 = vtanh.pop %v2577
  %v2703 = vtanh.pop %v2578
  %v2704 = vtanh.pop %v2579
  %v2705 = vtanh.pop %v2580
  %v2706 = vtanh.pop %v2581
  %v2707 = vtanh.pop %v2582
  %v2708 = vtanh.pop %v2583
  %v2709 = vtanh.pop %v2584
  %v2710 = vtanh.pop %v2585
  %v2711 = vtanh.pop %v2586
  %v2712 = vtanh.pop %v2587
  %v2713 = vtanh.pop %v2588
  %v2714 = vtanh.pop %v2589
  %v2715 = vtanh.pop %v2590
  %v2716 = vtanh.pop %v2591
  %v2717 = vtanh.pop %v2592
  %v2718 = vtanh.pop %v2593
  %v2719 = vtanh.pop %v2594
  %v2720 = vtanh.pop %v2595
  %v2721 = vtanh.pop %v2596
  %v2722 = vtanh.pop %v2597
  %v2723 = vtanh.pop %v2598
  %v2724 = vtanh.pop %v2599
  %v2725 = vtanh.pop %v2600
  %v2726 = vtanh.pop %v2601
  %v2727 = vtanh.pop %v2602
  %v2728 = vtanh.pop %v2603
  %v2729 = vtanh.pop %v2604
  %v2730 = vtanh.pop %v2605
  %v2731 = vtanh.pop %v2606
  %v2732 = vtanh.pop %v2607
  %v2733 = vtanh.pop %v2608
  %v2734 = vtanh.pop %v2609
  %v2735 = vtanh.pop %v2610
  %v2736 = vtanh.pop %v2611
  %v2737 = vtanh.pop %v2612
  %v2738 = vtanh.pop %v2613
  %v2739 = vtanh.pop %v2614
  %v2740 = vtanh.pop %v2615
  %v2741 = vtanh.pop %v2616
  %v2742 = vtanh.pop %v2617
  %v2743 = vtanh.pop %v2618
  %v2744 = vtanh.pop %v2619
  %v2745 = vtanh.pop %v2620
  %v2746 = vtanh.pop %v2621
  %v2747 = vtanh.pop %v2622
  %v2748 = vtanh.pop %v2623
  %v2749 = vtanh.pop %v2624
  %v2750 = vtanh.pop %v2625
  %v2751 = vtanh.pop %v2626
  %v2752 = vtanh.pop %v2627
  %v2753 = vtanh.pop %v2628
  %v2754 = vtanh.pop %v2629
  %v2755 = vtanh.pop %v2630
  %v2756 = vtanh.pop %v2631
  %v2757 = vtanh.pop %v2632
  %v2758 = vtanh.pop %v2633
  %v2759 = vtanh.pop %v2634
  %v2760 = vtanh.pop %v2635
  %v2761 = vtanh.pop %v2636
  %v2762 = vtanh.pop %v2637
  %v2763 = vtanh.pop %v2638
  %v2764 = vtanh.pop %v2639
  %v2765 = vtanh.pop %v2640
  %v2766 = vtanh.pop %v2641
  %v2767 = vtanh.pop %v2642
  %v2768 = vtanh.pop %v2643
  %v2769 = vtanh.pop %v2644
  %v2770 = vtanh.pop %v2645
  %v2771 = vtanh.pop %v2646
  %v2772 = vtanh.pop %v2647
  %v2773 = vtanh.pop %v2648
  %v2774 = vtanh.pop %v2649
  %v2775 = vtanh.pop %v2650
  %v2776 = vtanh.pop %v2651
  %v2777 = vtanh.pop %v2652
  %v2778 = vtanh.pop %v2653
  %v2779 = vtanh.pop %v2654
  %v2780 = vtanh.pop %v2655
  %v2781 = vtanh.pop %v2656
  %v2782 = vtanh.pop %v2657
  %v2783 = vtanh.pop %v2658
  %v2784 = vtanh.pop %v2659
  %v2785 = vtanh.pop %v2660
  %v2786 = vtanh.pop %v2661
  %v2787 = vtanh.pop %v2662
  %v2788 = vtanh.pop %v2663
  %v2789 = vtanh.pop %v2664
  %v2790 = vtanh.pop %v2665
  %v2791 = vtanh.pop %v2666
  %v2792 = vtanh.pop %v2667
  %v2793 = vtanh.pop %v2668
  %v2794 = vtanh.pop %v2669
  %v2795 = vtanh.pop %v2670
  %v2796 = vtanh.pop %v2671
  %v2797 = vtanh.pop %v2672
  %v2798 = vtanh.pop %v2673
  %v2799 = vtanh.pop %v2674
  %v2800 = vtanh.pop %v2675
  %v2801 = vtanh.pop %v2676
  %v2802 = vtanh.pop %v2677
  %v2803 = vtanh.pop %v2678
  %v2804 = vtanh.pop %v2679
  %v2805 = vtanh.pop %v2680
  %v2806 = vtanh.pop %v2681
  %v2807 = vtanh.pop %v2682
  %v2808 = vtanh.pop %v2683
  %v2809 = vtanh.pop %v2684
  %v2810 = vtanh.pop %v2685
  %v2811 = vtanh.pop %v2686
  %v2812 = vtanh.pop %v2687
  %v2813 = vtanh.pop %v2688
  %v2814 = vtanh.pop %v2689
  %v2815 = vtanh.pop %v2690
  %v2816 = vtanh.pop %v2691
  %v2817 = vmul.f32 %v2692, 0.5
  %v2818 = vmul.f32 %v2693, 0.5
  %v2819 = vmul.f32 %v2694, 0.5
  %v2820 = vmul.f32 %v2695, 0.5
  %v2821 = vmul.f32 %v2696, 0.5
  %v2822 = vmul.f32 %v2697, 0.5
  %v2823 = vmul.f32 %v2698, 0.5
  %v2824 = vmul.f32 %v2699, 0.5
  %v2825 = vmul.f32 %v2700, 0.5
  %v2826 = vmul.f32 %v2701, 0.5
  %v2827 = vmul.f32 %v2702, 0.5
  %v2828 = vmul.f32 %v2703, 0.5
  %v2829 = vmul.f32 %v2704, 0.5
  %v2830 = vmul.f32 %v2705, 0.5
  %v2831 = vmul.f32 %v2706, 0.5
  %v2832 = vmul.f32 %v2707, 0.5
  %v2833 = vmul.f32 %v2708, 0.5
  %v2834 = vmul.f32 %v2709, 0.5
  %v2835 = vmul.f32 %v2710, 0.5
  %v2836 = vmul.f32 %v2711, 0.5
  %v2837 = vmul.f32 %v2712, 0.5
  %v2838 = vmul.f32 %v2713, 0.5
  %v2839 = vmul.f32 %v2714, 0.5
  %v2840 = vmul.f32 %v2715, 0.5
  %v2841 = vmul.f32 %v2716, 0.5
  %v2842 = vmul.f32 %v2717, 0.5
  %v2843 = vmul.f32 %v2718, 0.5
  %v2844 = vmul.f32 %v2719, 0.5
  %v2845 = vmul.f32 %v2720, 0.5
  %v2846 = vmul.f32 %v2721, 0.5
  %v2847 = vmul.f32 %v2722, 0.5
  %v2848 = vmul.f32 %v2723, 0.5
  %v2849 = vmul.f32 %v2724, 0.5
  %v2850 = vmul.f32 %v2725, 0.5
  %v2851 = vmul.f32 %v2726, 0.5
  %v2852 = vmul.f32 %v2727, 0.5
  %v2853 = vmul.f32 %v2728, 0.5
  %v2854 = vmul.f32 %v2729, 0.5
  %v2855 = vmul.f32 %v2730, 0.5
  %v2856 = vmul.f32 %v2731, 0.5
  %v2857 = vmul.f32 %v2732, 0.5
  %v2858 = vmul.f32 %v2733, 0.5
  %v2859 = vmul.f32 %v2734, 0.5
  %v2860 = vmul.f32 %v2735, 0.5
  %v2861 = vmul.f32 %v2736, 0.5
  %v2862 = vmul.f32 %v2737, 0.5
  %v2863 = vmul.f32 %v2738, 0.5
  %v2864 = vmul.f32 %v2739, 0.5
  %v2865 = vmul.f32 %v2740, 0.5
  %v2866 = vmul.f32 %v2741, 0.5
  %v2867 = vmul.f32 %v2742, 0.5
  %v2868 = vmul.f32 %v2743, 0.5
  %v2869 = vmul.f32 %v2744, 0.5
  %v2870 = vmul.f32 %v2745, 0.5
  %v2871 = vmul.f32 %v2746, 0.5
  %v2872 = vmul.f32 %v2747, 0.5
  %v2873 = vmul.f32 %v2748, 0.5
  %v2874 = vmul.f32 %v2749, 0.5
  %v2875 = vmul.f32 %v2750, 0.5
  %v2876 = vmul.f32 %v2751, 0.5
  %v2877 = vmul.f32 %v2752, 0.5
  %v2878 = vmul.f32 %v2753, 0.5
  %v2879 = vmul.f32 %v2754, 0.5
  %v2880 = vmul.f32 %v2755, 0.5
  %v2881 = vmul.f32 %v2756, 0.5
  %v2882 = vmul.f32 %v2757, 0.5
  %v2883 = vmul.f32 %v2758, 0.5
  %v2884 = vmul.f32 %v2759, 0.5
  %v2885 = vmul.f32 %v2760, 0.5
  %v2886 = vmul.f32 %v2761, 0.5
  %v2887 = vmul.f32 %v2762, 0.5
  %v2888 = vmul.f32 %v2763, 0.5
  %v2889 = vmul.f32 %v2764, 0.5
  %v2890 = vmul.f32 %v2765, 0.5
  %v2891 = vmul.f32 %v2766, 0.5
  %v2892 = vmul.f32 %v2767, 0.5
  %v2893 = vmul.f32 %v2768, 0.5
  %v2894 = vmul.f32 %v2769, 0.5
  %v2895 = vmul.f32 %v2770, 0.5
  %v2896 = vmul.f32 %v2771, 0.5
  %v2897 = vmul.f32 %v2772, 0.5
  %v2898 = vmul.f32 %v2773, 0.5
  %v2899 = vmul.f32 %v2774, 0.5
  %v2900 = vmul.f32 %v2775, 0.5
  %v2901 = vmul.f32 %v2776, 0.5
  %v2902 = vmul.f32 %v2777, 0.5
  %v2903 = vmul.f32 %v2778, 0.5
  %v2904 = vmul.f32 %v2779, 0.5
  %v2905 = vmul.f32 %v2780, 0.5
  %v2906 = vmul.f32 %v2781, 0.5
  %v2907 = vmul.f32 %v2782, 0.5
  %v2908 = vmul.f32 %v2783, 0.5
  %v2909 = vmul.f32 %v2784, 0.5
  %v2910 = vmul.f32 %v2785, 0.5
  %v2911 = vmul.f32 %v2786, 0.5
  %v2912 = vmul.f32 %v2787, 0.5
  %v2913 = vmul.f32 %v2788, 0.5
  %v2914 = vmul.f32 %v2789, 0.5
  %v2915 = vmul.f32 %v2790, 0.5
  %v2916 = vmul.f32 %v2791, 0.5
  %v2917 = vmul.f32 %v2792, 0.5
  %v2918 = vmul.f32 %v2793, 0.5
  %v2919 = vmul.f32 %v2794, 0.5
  %v2920 = vmul.f32 %v2795, 0.5
  %v2921 = vmul.f32 %v2796, 0.5
  %v2922 = vmul.f32 %v2797, 0.5
  %v2923 = vmul.f32 %v2798, 0.5
  %v2924 = vmul.f32 %v2799, 0.5
  %v2925 = vmul.f32 %v2800, 0.5
  %v2926 = vmul.f32 %v2801, 0.5
  %v2927 = vmul.f32 %v2802, 0.5
  %v2928 = vmul.f32 %v2803, 0.5
  %v2929 = vmul.f32 %v2804, 0.5
  %v2930 = vmul.f32 %v2805, 0.5
  %v2931 = vmul.f32 %v2806, 0.5
  %v2932 = vmul.f32 %v2807, 0.5
  %v2933 = vmul.f32 %v2808, 0.5
  %v2934 = vmul.f32 %v2809, 0.5
  %v2935 = vmul.f32 %v2810, 0.5
  %v2936 = vmul.f32 %v2811, 0.5
  %v2937 = vmul.f32 %v2812, 0.5
  %v2938 = vmul.f32 %v2813, 0.5
  %v2939 = vmul.f32 %v2814, 0.5
  %v2940 = vmul.f32 %v2815, 0.5
  %v2941 = vmul.f32 %v2816, 0.5
  %v2942 = vadd.f32 %v2817, 0.5
  %v2943 = vadd.f32 %v2818, 0.5
  %v2944 = vadd.f32 %v2819, 0.5
  %v2945 = vadd.f32 %v2820, 0.5
  %v2946 = vadd.f32 %v2821, 0.5
  %v2947 = vadd.f32 %v2822, 0.5
  %v2948 = vadd.f32 %v2823, 0.5
  %v2949 = vadd.f32 %v2824, 0.5
  %v2950 = vadd.f32 %v2825, 0.5
  %v2951 = vadd.f32 %v2826, 0.5
  %v2952 = vadd.f32 %v2827, 0.5
  %v2953 = vadd.f32 %v2828, 0.5
  %v2954 = vadd.f32 %v2829, 0.5
  %v2955 = vadd.f32 %v2830, 0.5
  %v2956 = vadd.f32 %v2831, 0.5
  %v2957 = vadd.f32 %v2832, 0.5
  %v2958 = vadd.f32 %v2833, 0.5
  %v2959 = vadd.f32 %v2834, 0.5
  %v2960 = vadd.f32 %v2835, 0.5
  %v2961 = vadd.f32 %v2836, 0.5
  %v2962 = vadd.f32 %v2837, 0.5
  %v2963 = vadd.f32 %v2838, 0.5
  %v2964 = vadd.f32 %v2839, 0.5
  %v2965 = vadd.f32 %v2840, 0.5
  %v2966 = vadd.f32 %v2841, 0.5
  %v2967 = vadd.f32 %v2842, 0.5
  %v2968 = vadd.f32 %v2843, 0.5
  %v2969 = vadd.f32 %v2844, 0.5
  %v2970 = vadd.f32 %v2845, 0.5
  %v2971 = vadd.f32 %v2846, 0.5
  %v2972 = vadd.f32 %v2847, 0.5
  %v2973 = vadd.f32 %v2848, 0.5
  %v2974 = vadd.f32 %v2849, 0.5
  %v2975 = vadd.f32 %v2850, 0.5
  %v2976 = vadd.f32 %v2851, 0.5
  %v2977 = vadd.f32 %v2852, 0.5
  %v2978 = vadd.f32 %v2853, 0.5
  %v2979 = vadd.f32 %v2854, 0.5
  %v2980 = vadd.f32 %v2855, 0.5
  %v2981 = vadd.f32 %v2856, 0.5
  %v2982 = vadd.f32 %v2857, 0.5
  %v2983 = vadd.f32 %v2858, 0.5
  %v2984 = vadd.f32 %v2859, 0.5
  %v2985 = vadd.f32 %v2860, 0.5
  %v2986 = vadd.f32 %v2861, 0.5
  %v2987 = vadd.f32 %v2862, 0.5
  %v2988 = vadd.f32 %v2863, 0.5
  %v2989 = vadd.f32 %v2864, 0.5
  %v2990 = vadd.f32 %v2865, 0.5
  %v2991 = vadd.f32 %v2866, 0.5
  %v2992 = vadd.f32 %v2867, 0.5
  %v2993 = vadd.f32 %v2868, 0.5
  %v2994 = vadd.f32 %v2869, 0.5
  %v2995 = vadd.f32 %v2870, 0.5
  %v2996 = vadd.f32 %v2871, 0.5
  %v2997 = vadd.f32 %v2872, 0.5
  %v2998 = vadd.f32 %v2873, 0.5
  %v2999 = vadd.f32 %v2874, 0.5
  %v3000 = vadd.f32 %v2875, 0.5
  %v3001 = vadd.f32 %v2876, 0.5
  %v3002 = vadd.f32 %v2877, 0.5
  %v3003 = vadd.f32 %v2878, 0.5
  %v3004 = vadd.f32 %v2879, 0.5
  %v3005 = vadd.f32 %v2880, 0.5
  %v3006 = vadd.f32 %v2881, 0.5
  %v3007 = vadd.f32 %v2882, 0.5
  %v3008 = vadd.f32 %v2883, 0.5
  %v3009 = vadd.f32 %v2884, 0.5
  %v3010 = vadd.f32 %v2885, 0.5
  %v3011 = vadd.f32 %v2886, 0.5
  %v3012 = vadd.f32 %v2887, 0.5
  %v3013 = vadd.f32 %v2888, 0.5
  %v3014 = vadd.f32 %v2889, 0.5
  %v3015 = vadd.f32 %v2890, 0.5
  %v3016 = vadd.f32 %v2891, 0.5
  %v3017 = vadd.f32 %v2892, 0.5
  %v3018 = vadd.f32 %v2893, 0.5
  %v3019 = vadd.f32 %v2894, 0.5
  %v3020 = vadd.f32 %v2895, 0.5
  %v3021 = vadd.f32 %v2896, 0.5
  %v3022 = vadd.f32 %v2897, 0.5
  %v3023 = vadd.f32 %v2898, 0.5
  %v3024 = vadd.f32 %v2899, 0.5
  %v3025 = vadd.f32 %v2900, 0.5
  %v3026 = vadd.f32 %v2901, 0.5
  %v3027 = vadd.f32 %v2902, 0.5
  %v3028 = vadd.f32 %v2903, 0.5
  %v3029 = vadd.f32 %v2904, 0.5
  %v3030 = vadd.f32 %v2905, 0.5
  %v3031 = vadd.f32 %v2906, 0.5
  %v3032 = vadd.f32 %v2907, 0.5
  %v3033 = vadd.f32 %v2908, 0.5
  %v3034 = vadd.f32 %v2909, 0.5
  %v3035 = vadd.f32 %v2910, 0.5
  %v3036 = vadd.f32 %v2911, 0.5
  %v3037 = vadd.f32 %v2912, 0.5
  %v3038 = vadd.f32 %v2913, 0.5
  %v3039 = vadd.f32 %v2914, 0.5
  %v3040 = vadd.f32 %v2915, 0.5
  %v3041 = vadd.f32 %v2916, 0.5
  %v3042 = vadd.f32 %v2917, 0.5
  %v3043 = vadd.f32 %v2918, 0.5
  %v3044 = vadd.f32 %v2919, 0.5
  %v3045 = vadd.f32 %v2920, 0.5
  %v3046 = vadd.f32 %v2921, 0.5
  %v3047 = vadd.f32 %v2922, 0.5
  %v3048 = vadd.f32 %v2923, 0.5
  %v3049 = vadd.f32 %v2924, 0.5
  %v3050 = vadd.f32 %v2925, 0.5
  %v3051 = vadd.f32 %v2926, 0.5
  %v3052 = vadd.f32 %v2927, 0.5
  %v3053 = vadd.f32 %v2928, 0.5
  %v3054 = vadd.f32 %v2929, 0.5
  %v3055 = vadd.f32 %v2930, 0.5
  %v3056 = vadd.f32 %v2931, 0.5
  %v3057 = vadd.f32 %v2932, 0.5
  %v3058 = vadd.f32 %v2933, 0.5
  %v3059 = vadd.f32 %v2934, 0.5
  %v3060 = vadd.f32 %v2935, 0.5
  %v3061 = vadd.f32 %v2936, 0.5
  %v3062 = vadd.f32 %v2937, 0.5
  %v3063 = vadd.f32 %v2938, 0.5
  %v3064 = vadd.f32 %v2939, 0.5
  %v3065 = vadd.f32 %v2940, 0.5
  %v3066 = vadd.f32 %v2941, 0.5
  %v3067 = vmul.f32 %v1944, %v2942
  %v3068 = vmul.f32 %v1949, %v2943
  %v3069 = vmul.f32 %v1954, %v2944
  %v3070 = vmul.f32 %v1959, %v2945
  %v3071 = vmul.f32 %v1964, %v2946
  %v3072 = vmul.f32 %v1969, %v2947
  %v3073 = vmul.f32 %v1974, %v2948
  %v3074 = vmul.f32 %v1979, %v2949
  %v3075 = vmul.f32 %v1984, %v2950
  %v3076 = vmul.f32 %v1989, %v2951
  %v3077 = vmul.f32 %v1994, %v2952
  %v3078 = vmul.f32 %v1999, %v2953
  %v3079 = vmul.f32 %v2004, %v2954
  %v3080 = vmul.f32 %v2009, %v2955
  %v3081 = vmul.f32 %v2014, %v2956
  %v3082 = vmul.f32 %v2019, %v2957
  %v3083 = vmul.f32 %v2024, %v2958
  %v3084 = vmul.f32 %v2029, %v2959
  %v3085 = vmul.f32 %v2034, %v2960
  %v3086 = vmul.f32 %v2039, %v2961
  %v3087 = vmul.f32 %v2044, %v2962
  %v3088 = vmul.f32 %v2049, %v2963
  %v3089 = vmul.f32 %v2054, %v2964
  %v3090 = vmul.f32 %v2059, %v2965
  %v3091 = vmul.f32 %v2064, %v2966
  %v3092 = vmul.f32 %v2069, %v2967
  %v3093 = vmul.f32 %v2074, %v2968
  %v3094 = vmul.f32 %v2079, %v2969
  %v3095 = vmul.f32 %v2084, %v2970
  %v3096 = vmul.f32 %v2089, %v2971
  %v3097 = vmul.f32 %v2094, %v2972
  %v3098 = vmul.f32 %v2099, %v2973
  %v3099 = vmul.f32 %v2104, %v2974
  %v3100 = vmul.f32 %v2109, %v2975
  %v3101 = vmul.f32 %v2114, %v2976
  %v3102 = vmul.f32 %v2119, %v2977
  %v3103 = vmul.f32 %v2124, %v2978
  %v3104 = vmul.f32 %v2129, %v2979
  %v3105 = vmul.f32 %v2134, %v2980
  %v3106 = vmul.f32 %v2139, %v2981
  %v3107 = vmul.f32 %v2144, %v2982
  %v3108 = vmul.f32 %v2149, %v2983
  %v3109 = vmul.f32 %v2154, %v2984
  %v3110 = vmul.f32 %v2159, %v2985
  %v3111 = vmul.f32 %v2164, %v2986
  %v3112 = vmul.f32 %v2169, %v2987
  %v3113 = vmul.f32 %v2174, %v2988
  %v3114 = vmul.f32 %v2179, %v2989
  %v3115 = vmul.f32 %v2184, %v2990
  %v3116 = vmul.f32 %v2189, %v2991
  %v3117 = vmul.f32 %v2194, %v2992
  %v3118 = vmul.f32 %v2199, %v2993
  %v3119 = vmul.f32 %v2204, %v2994
  %v3120 = vmul.f32 %v2209, %v2995
  %v3121 = vmul.f32 %v2214, %v2996
  %v3122 = vmul.f32 %v2219, %v2997
  %v3123 = vmul.f32 %v2224, %v2998
  %v3124 = vmul.f32 %v2229, %v2999
  %v3125 = vmul.f32 %v2234, %v3000
  %v3126 = vmul.f32 %v2239, %v3001
  %v3127 = vmul.f32 %v2244, %v3002
  %v3128 = vmul.f32 %v2249, %v3003
  %v3129 = vmul.f32 %v2254, %v3004
  %v3130 = vmul.f32 %v2259, %v3005
  %v3131 = vmul.f32 %v2264, %v3006
  %v3132 = vmul.f32 %v2269, %v3007
  %v3133 = vmul.f32 %v2274, %v3008
  %v3134 = vmul.f32 %v2279, %v3009
  %v3135 = vmul.f32 %v2284, %v3010
  %v3136 = vmul.f32 %v2289, %v3011
  %v3137 = vmul.f32 %v2294, %v3012
  %v3138 = vmul.f32 %v2299, %v3013
  %v3139 = vmul.f32 %v2304, %v3014
  %v3140 = vmul.f32 %v2309, %v3015
  %v3141 = vmul.f32 %v2314, %v3016
  %v3142 = vmul.f32 %v2319, %v3017
  %v3143 = vmul.f32 %v2324, %v3018
  %v3144 = vmul.f32 %v2329, %v3019
  %v3145 = vmul.f32 %v2334, %v3020
  %v3146 = vmul.f32 %v2339, %v3021
  %v3147 = vmul.f32 %v2344, %v3022
  %v3148 = vmul.f32 %v2349, %v3023
  %v3149 = vmul.f32 %v2354, %v3024
  %v3150 = vmul.f32 %v2359, %v3025
  %v3151 = vmul.f32 %v2364, %v3026
  %v3152 = vmul.f32 %v2369, %v3027
  %v3153 = vmul.f32 %v2374, %v3028
  %v3154 = vmul.f32 %v2379, %v3029
  %v3155 = vmul.f32 %v2384, %v3030
  %v3156 = vmul.f32 %v2389, %v3031
  %v3157 = vmul.f32 %v2394, %v3032
  %v3158 = vmul.f32 %v2399, %v3033
  %v3159 = vmul.f32 %v2404, %v3034
  %v3160 = vmul.f32 %v2409, %v3035
  %v3161 = vmul.f32 %v2414, %v3036
  %v3162 = vmul.f32 %v2419, %v3037
  %v3163 = vmul.f32 %v2424, %v3038
  %v3164 = vmul.f32 %v2429, %v3039
  %v3165 = vmul.f32 %v2434, %v3040
  %v3166 = vmul.f32 %v2439, %v3041
  %v3167 = vmul.f32 %v2444, %v3042
  %v3168 = vmul.f32 %v2449, %v3043
  %v3169 = vmul.f32 %v2454, %v3044
  %v3170 = vmul.f32 %v2459, %v3045
  %v3171 = vmul.f32 %v2464, %v3046
  %v3172 = vmul.f32 %v2469, %v3047
  %v3173 = vmul.f32 %v2474, %v3048
  %v3174 = vmul.f32 %v2479, %v3049
  %v3175 = vmul.f32 %v2484, %v3050
  %v3176 = vmul.f32 %v2489, %v3051
  %v3177 = vmul.f32 %v2494, %v3052
  %v3178 = vmul.f32 %v2499, %v3053
  %v3179 = vmul.f32 %v2504, %v3054
  %v3180 = vmul.f32 %v2509, %v3055
  %v3181 = vmul.f32 %v2514, %v3056
  %v3182 = vmul.f32 %v2519, %v3057
  %v3183 = vmul.f32 %v2524, %v3058
  %v3184 = vmul.f32 %v2529, %v3059
  %v3185 = vmul.f32 %v2534, %v3060
  %v3186 = vmul.f32 %v2539, %v3061
  %v3187 = vmul.f32 %v2544, %v3062
  %v3188 = vmul.f32 %v2549, %v3063
  %v3189 = vmul.f32 %v2554, %v3064
  %v3190 = vmul.f32 %v2559, %v3065
  %v3191 = vmul.f32 %v2564, %v3066
  %v3192 = vadd.f32 %v3067, %v1729
  %v3193 = vadd.f32 %v3068, %v1730
  %v3194 = vadd.f32 %v3069, %v1731
  %v3195 = vadd.f32 %v3070, %v1732
  %v3196 = vadd.f32 %v3071, %v1733
  %v3197 = vadd.f32 %v3072, %v1734
  %v3198 = vadd.f32 %v3073, %v1735
  %v3199 = vadd.f32 %v3074, %v1736
  %v3200 = vadd.f32 %v3075, %v1737
  %v3201 = vadd.f32 %v3076, %v1738
  %v3202 = vadd.f32 %v3077, %v1739
  %v3203 = vadd.f32 %v3078, %v1740
  %v3204 = vadd.f32 %v3079, %v1741
  %v3205 = vadd.f32 %v3080, %v1742
  %v3206 = vadd.f32 %v3081, %v1743
  %v3207 = vadd.f32 %v3082, %v1744
  %v3208 = vadd.f32 %v3083, %v1745
  %v3209 = vadd.f32 %v3084, %v1746
  %v3210 = vadd.f32 %v3085, %v1747
  %v3211 = vadd.f32 %v3086, %v1748
  %v3212 = vadd.f32 %v3087, %v1749
  %v3213 = vadd.f32 %v3088, %v1750
  %v3214 = vadd.f32 %v3089, %v1751
  %v3215 = vadd.f32 %v3090, %v1752
  %v3216 = vadd.f32 %v3091, %v1753
  %v3217 = vadd.f32 %v3092, %v1754
  %v3218 = vadd.f32 %v3093, %v1755
  %v3219 = vadd.f32 %v3094, %v1756
  %v3220 = vadd.f32 %v3095, %v1757
  %v3221 = vadd.f32 %v3096, %v1758
  %v3222 = vadd.f32 %v3097, %v1759
  %v3223 = vadd.f32 %v3098, %v1760
  %v3224 = vadd.f32 %v3099, %v1761
  %v3225 = vadd.f32 %v3100, %v1762
  %v3226 = vadd.f32 %v3101, %v1763
  %v3227 = vadd.f32 %v3102, %v1764
  %v3228 = vadd.f32 %v3103, %v1765
  %v3229 = vadd.f32 %v3104, %v1766
  %v3230 = vadd.f32 %v3105, %v1767
  %v3231 = vadd.f32 %v3106, %v1768
  %v3232 = vadd.f32 %v3107, %v1769
  %v3233 = vadd.f32 %v3108, %v1770
  %v3234 = vadd.f32 %v3109, %v1771
  %v3235 = vadd.f32 %v3110, %v1772
  %v3236 = vadd.f32 %v3111, %v1773
  %v3237 = vadd.f32 %v3112, %v1774
  %v3238 = vadd.f32 %v3113, %v1775
  %v3239 = vadd.f32 %v3114, %v1776
  %v3240 = vadd.f32 %v3115, %v1777
  %v3241 = vadd.f32 %v3116, %v1778
  %v3242 = vadd.f32 %v3117, %v1779
  %v3243 = vadd.f32 %v3118, %v1780
  %v3244 = vadd.f32 %v3119, %v1781
  %v3245 = vadd.f32 %v3120, %v1782
  %v3246 = vadd.f32 %v3121, %v1783
  %v3247 = vadd.f32 %v3122, %v1784
  %v3248 = vadd.f32 %v3123, %v1785
  %v3249 = vadd.f32 %v3124, %v1786
  %v3250 = vadd.f32 %v3125, %v1787
  %v3251 = vadd.f32 %v3126, %v1788
  %v3252 = vadd.f32 %v3127, %v1789
  %v3253 = vadd.f32 %v3128, %v1790
  %v3254 = vadd.f32 %v3129, %v1791
  %v3255 = vadd.f32 %v3130, %v1792
  %v3256 = vadd.f32 %v3131, %v1793
  %v3257 = vadd.f32 %v3132, %v1794
  %v3258 = vadd.f32 %v3133, %v1795
  %v3259 = vadd.f32 %v3134, %v1796
  %v3260 = vadd.f32 %v3135, %v1797
  %v3261 = vadd.f32 %v3136, %v1798
  %v3262 = vadd.f32 %v3137, %v1799
  %v3263 = vadd.f32 %v3138, %v1800
  %v3264 = vadd.f32 %v3139, %v1801
  %v3265 = vadd.f32 %v3140, %v1802
  %v3266 = vadd.f32 %v3141, %v1803
  %v3267 = vadd.f32 %v3142, %v1804
  %v3268 = vadd.f32 %v3143, %v1805
  %v3269 = vadd.f32 %v3144, %v1806
  %v3270 = vadd.f32 %v3145, %v1807
  %v3271 = vadd.f32 %v3146, %v1808
  %v3272 = vadd.f32 %v3147, %v1809
  %v3273 = vadd.f32 %v3148, %v1810
  %v3274 = vadd.f32 %v3149, %v1811
  %v3275 = vadd.f32 %v3150, %v1812
  %v3276 = vadd.f32 %v3151, %v1813
  %v3277 = vadd.f32 %v3152, %v1814
  %v3278 = vadd.f32 %v3153, %v1815
  %v3279 = vadd.f32 %v3154, %v1816
  %v3280 = vadd.f32 %v3155, %v1817
  %v3281 = vadd.f32 %v3156, %v1818
  %v3282 = vadd.f32 %v3157, %v1819
  %v3283 = vadd.f32 %v3158, %v1820
  %v3284 = vadd.f32 %v3159, %v1821
  %v3285 = vadd.f32 %v3160, %v1822
  %v3286 = vadd.f32 %v3161, %v1823
  %v3287 = vadd.f32 %v3162, %v1824
  %v3288 = vadd.f32 %v3163, %v1825
  %v3289 = vadd.f32 %v3164, %v1826
  %v3290 = vadd.f32 %v3165, %v1827
  %v3291 = vadd.f32 %v3166, %v1828
  %v3292 = vadd.f32 %v3167, %v1829
  %v3293 = vadd.f32 %v3168, %v1830
  %v3294 = vadd.f32 %v3169, %v1831
  %v3295 = vadd.f32 %v3170, %v1832
  %v3296 = vadd.f32 %v3171, %v1833
  %v3297 = vadd.f32 %v3172, %v1834
  %v3298 = vadd.f32 %v3173, %v1835
  %v3299 = vadd.f32 %v3174, %v1836
  %v3300 = vadd.f32 %v3175, %v1837
  %v3301 = vadd.f32 %v3176, %v1838
  %v3302 = vadd.f32 %v3177, %v1839
  %v3303 = vadd.f32 %v3178, %v1840
  %v3304 = vadd.f32 %v3179, %v1841
  %v3305 = vadd.f32 %v3180, %v1842
  %v3306 = vadd.f32 %v3181, %v1843
  %v3307 = vadd.f32 %v3182, %v1844
  %v3308 = vadd.f32 %v3183, %v1845
  %v3309 = vadd.f32 %v3184, %v1846
  %v3310 = vadd.f32 %v3185, %v1847
  %v3311 = vadd.f32 %v3186, %v1848
  %v3312 = vadd.f32 %v3187, %v1849
  %v3313 = vadd.f32 %v3188, %v1850
  %v3314 = vadd.f32 %v3189, %v1851
  %v3315 = vadd.f32 %v3190, %v1852
  %v3316 = vadd.f32 %v3191, %v1853
  %s3317 = scalar_lea.vmem %s3, 128
  %v3318 = vld [vmem:[%s3317] sm:$0xff]
  %v3319 = vld [vmem:[%s3317 + $0x8] sm:$0xff]
  %v3320 = vld [vmem:[%s3317 + $0x10] sm:$0xff]
  %v3321 = vld [vmem:[%s3317 + $0x18] sm:$0xff]
  %v3322 = vld [vmem:[%s3317 + $0x20] sm:$0xff]
  %v3323 = vld [vmem:[%s3317 + $0x28] sm:$0xff]
  %v3324 = vld [vmem:[%s3317 + $0x30] sm:$0xff]
  %v3325 = vld [vmem:[%s3317 + $0x38] sm:$0xff]
  %v3326 = vld [vmem:[%s3317 + $0x40] sm:$0xff]
  %v3327 = vld [vmem:[%s3317 + $0x48] sm:$0xff]
  %v3328 = vld [vmem:[%s3317 + $0x50] sm:$0xff]
  %v3329 = vld [vmem:[%s3317 + $0x58] sm:$0xff]
  %v3330 = vld [vmem:[%s3317 + $0x60] sm:$0xff]
  %v3331 = vld [vmem:[%s3317 + $0x68] sm:$0xff]
  %v3332 = vld [vmem:[%s3317 + $0x70] sm:$0xff]
  %v3333 = vld [vmem:[%s3317 + $0x78] sm:$0xff]
  %s3334 = scalar_lea.vmem %s4, 1
  %v3335 = vld [vmem:[%s3334] sm:$0x1]
  %v3337 = vlaneseq
  %v3338 = vshrl.u32 %v3337, 7
  %v3339 = vsub.s32 0, %v3338
  %v3340 = vrot.slane %v3335, %v3339
  %3342 = vmatprep.subr.mxu0 0.0
  %3343 = vmatpush1.msra.mxu0 %v3333
  %3344 = vmatprep.subr.mxu0 0.0
  %3345 = vmatpush1.msra.mxu0 %v3332
  %3346 = vmatprep.subr.mxu0 0.0
  %3347 = vmatpush1.msra.mxu0 %v3331
  %3348 = vmatprep.subr.mxu0 0.0
  %3349 = vmatpush1.msra.mxu0 %v3330
  %3350 = vmatprep.subr.mxu0 0.0
  %3351 = vmatpush1.msra.mxu0 %v3329
  %3352 = vmatprep.subr.mxu0 0.0
  %3353 = vmatpush1.msra.mxu0 %v3328
  %3354 = vmatprep.subr.mxu0 0.0
  %3355 = vmatpush1.msra.mxu0 %v3327
  %3356 = vmatprep.subr.mxu0 0.0
  %3357 = vmatpush1.msra.mxu0 %v3326
  %3358 = vmatprep.subr.mxu0 0.0
  %3359 = vmatpush1.msra.mxu0 %v3325
  %3360 = vmatprep.subr.mxu0 0.0
  %3361 = vmatpush1.msra.mxu0 %v3324
  %3362 = vmatprep.subr.mxu0 0.0
  %3363 = vmatpush1.msra.mxu0 %v3323
  %3364 = vmatprep.subr.mxu0 0.0
  %3365 = vmatpush1.msra.mxu0 %v3322
  %3366 = vmatprep.subr.mxu0 0.0
  %3367 = vmatpush1.msra.mxu0 %v3321
  %3368 = vmatprep.subr.mxu0 0.0
  %3369 = vmatpush1.msra.mxu0 %v3320
  %3370 = vmatprep.subr.mxu0 0.0
  %3371 = vmatpush1.msra.mxu0 %v3319
  %3372 = vmatprep.subr.mxu0 0.0
  %3373 = vmatpush1.msra.mxu0 %v3318
  %3374 = vmatprep.subr.mxu0 0.0
  %3375 = vmatpush2.msra.mxu0 0.0
  %3376 = vmatprep.subr.mxu0 0.0
  %3377 = vmatpush2.msra.mxu0 0.0
  %3378 = vmatprep.subr.mxu0 0.0
  %3379 = vmatpush2.msra.mxu0 0.0
  %3380 = vmatprep.subr.mxu0 0.0
  %3381 = vmatpush2.msra.mxu0 0.0
  %3382 = vmatprep.subr.mxu0 0.0
  %3383 = vmatpush2.msra.mxu0 0.0
  %3384 = vmatprep.subr.mxu0 0.0
  %3385 = vmatpush2.msra.mxu0 0.0
  %3386 = vmatprep.subr.mxu0 0.0
  %3387 = vmatpush2.msra.mxu0 0.0
  %3388 = vmatprep.subr.mxu0 0.0
  %3389 = vmatpush2.msra.mxu0 0.0
  %3390 = vmatprep.subr.mxu0 0.0
  %3391 = vmatpush2.msra.mxu0 0.0
  %3392 = vmatprep.subr.mxu0 0.0
  %3393 = vmatpush2.msra.mxu0 0.0
  %3394 = vmatprep.subr.mxu0 0.0
  %3395 = vmatpush2.msra.mxu0 0.0
  %3396 = vmatprep.subr.mxu0 0.0
  %3397 = vmatpush2.msra.mxu0 0.0
  %3398 = vmatprep.subr.mxu0 0.0
  %3399 = vmatpush2.msra.mxu0 0.0
  %3400 = vmatprep.subr.mxu0 0.0
  %3401 = vmatpush2.msra.mxu0 0.0
  %3402 = vmatprep.subr.mxu0 0.0
  %3403 = vmatpush2.msra.mxu0 0.0
  %3404 = vmatprep.subr.mxu0 0.0
  %3405 = vmatpush2.msra.mxu0 0.0
  %3406 = vmatprep.mubr.f32.mxu0 0.0
  %3407 = vmatmul.mubr.f32.gmra.mxu0 %v3192
  %v3408 = vpop.f32.mrf.mxu0
  %v3409 = vadd.f32 %v3340, %v3408
  %v3410 = vpop.f32.mrf.mxu0
  %3411 = vmatprep.mubr.f32.mxu0 0.0
  %3412 = vmatmul.mubr.f32.gmra.mxu0 %v3193
  %v3413 = vpop.f32.mrf.mxu0
  %v3414 = vadd.f32 %v3340, %v3413
  %v3415 = vpop.f32.mrf.mxu0
  %3416 = vmatprep.mubr.f32.mxu0 0.0
  %3417 = vmatmul.mubr.f32.gmra.mxu0 %v3194
  %v3418 = vpop.f32.mrf.mxu0
  %v3419 = vadd.f32 %v3340, %v3418
  %v3420 = vpop.f32.mrf.mxu0
  %3421 = vmatprep.mubr.f32.mxu0 0.0
  %3422 = vmatmul.mubr.f32.gmra.mxu0 %v3195
  %v3423 = vpop.f32.mrf.mxu0
  %v3424 = vadd.f32 %v3340, %v3423
  %v3425 = vpop.f32.mrf.mxu0
  %3426 = vmatprep.mubr.f32.mxu0 0.0
  %3427 = vmatmul.mubr.f32.gmra.mxu0 %v3196
  %v3428 = vpop.f32.mrf.mxu0
  %v3429 = vadd.f32 %v3340, %v3428
  %v3430 = vpop.f32.mrf.mxu0
  %3431 = vmatprep.mubr.f32.mxu0 0.0
  %3432 = vmatmul.mubr.f32.gmra.mxu0 %v3197
  %v3433 = vpop.f32.mrf.mxu0
  %v3434 = vadd.f32 %v3340, %v3433
  %v3435 = vpop.f32.mrf.mxu0
  %3436 = vmatprep.mubr.f32.mxu0 0.0
  %3437 = vmatmul.mubr.f32.gmra.mxu0 %v3198
  %v3438 = vpop.f32.mrf.mxu0
  %v3439 = vadd.f32 %v3340, %v3438
  %v3440 = vpop.f32.mrf.mxu0
  %3441 = vmatprep.mubr.f32.mxu0 0.0
  %3442 = vmatmul.mubr.f32.gmra.mxu0 %v3199
  %v3443 = vpop.f32.mrf.mxu0
  %v3444 = vadd.f32 %v3340, %v3443
  %v3445 = vpop.f32.mrf.mxu0
  %3446 = vmatprep.mubr.f32.mxu0 0.0
  %3447 = vmatmul.mubr.f32.gmra.mxu0 %v3200
  %v3448 = vpop.f32.mrf.mxu0
  %v3449 = vadd.f32 %v3340, %v3448
  %v3450 = vpop.f32.mrf.mxu0
  %3451 = vmatprep.mubr.f32.mxu0 0.0
  %3452 = vmatmul.mubr.f32.gmra.mxu0 %v3201
  %v3453 = vpop.f32.mrf.mxu0
  %v3454 = vadd.f32 %v3340, %v3453
  %v3455 = vpop.f32.mrf.mxu0
  %3456 = vmatprep.mubr.f32.mxu0 0.0
  %3457 = vmatmul.mubr.f32.gmra.mxu0 %v3202
  %v3458 = vpop.f32.mrf.mxu0
  %v3459 = vadd.f32 %v3340, %v3458
  %v3460 = vpop.f32.mrf.mxu0
  %3461 = vmatprep.mubr.f32.mxu0 0.0
  %3462 = vmatmul.mubr.f32.gmra.mxu0 %v3203
  %v3463 = vpop.f32.mrf.mxu0
  %v3464 = vadd.f32 %v3340, %v3463
  %v3465 = vpop.f32.mrf.mxu0
  %3466 = vmatprep.mubr.f32.mxu0 0.0
  %3467 = vmatmul.mubr.f32.gmra.mxu0 %v3204
  %v3468 = vpop.f32.mrf.mxu0
  %v3469 = vadd.f32 %v3340, %v3468
  %v3470 = vpop.f32.mrf.mxu0
  %3471 = vmatprep.mubr.f32.mxu0 0.0
  %3472 = vmatmul.mubr.f32.gmra.mxu0 %v3205
  %v3473 = vpop.f32.mrf.mxu0
  %v3474 = vadd.f32 %v3340, %v3473
  %v3475 = vpop.f32.mrf.mxu0
  %3476 = vmatprep.mubr.f32.mxu0 0.0
  %3477 = vmatmul.mubr.f32.gmra.mxu0 %v3206
  %v3478 = vpop.f32.mrf.mxu0
  %v3479 = vadd.f32 %v3340, %v3478
  %v3480 = vpop.f32.mrf.mxu0
  %3481 = vmatprep.mubr.f32.mxu0 0.0
  %3482 = vmatmul.mubr.f32.gmra.mxu0 %v3207
  %v3483 = vpop.f32.mrf.mxu0
  %v3484 = vadd.f32 %v3340, %v3483
  %v3485 = vpop.f32.mrf.mxu0
  %3486 = vmatprep.mubr.f32.mxu0 0.0
  %3487 = vmatmul.mubr.f32.gmra.mxu0 %v3208
  %v3488 = vpop.f32.mrf.mxu0
  %v3489 = vadd.f32 %v3340, %v3488
  %v3490 = vpop.f32.mrf.mxu0
  %3491 = vmatprep.mubr.f32.mxu0 0.0
  %3492 = vmatmul.mubr.f32.gmra.mxu0 %v3209
  %v3493 = vpop.f32.mrf.mxu0
  %v3494 = vadd.f32 %v3340, %v3493
  %v3495 = vpop.f32.mrf.mxu0
  %3496 = vmatprep.mubr.f32.mxu0 0.0
  %3497 = vmatmul.mubr.f32.gmra.mxu0 %v3210
  %v3498 = vpop.f32.mrf.mxu0
  %v3499 = vadd.f32 %v3340, %v3498
  %v3500 = vpop.f32.mrf.mxu0
  %3501 = vmatprep.mubr.f32.mxu0 0.0
  %3502 = vmatmul.mubr.f32.gmra.mxu0 %v3211
  %v3503 = vpop.f32.mrf.mxu0
  %v3504 = vadd.f32 %v3340, %v3503
  %v3505 = vpop.f32.mrf.mxu0
  %3506 = vmatprep.mubr.f32.mxu0 0.0
  %3507 = vmatmul.mubr.f32.gmra.mxu0 %v3212
  %v3508 = vpop.f32.mrf.mxu0
  %v3509 = vadd.f32 %v3340, %v3508
  %v3510 = vpop.f32.mrf.mxu0
  %3511 = vmatprep.mubr.f32.mxu0 0.0
  %3512 = vmatmul.mubr.f32.gmra.mxu0 %v3213
  %v3513 = vpop.f32.mrf.mxu0
  %v3514 = vadd.f32 %v3340, %v3513
  %v3515 = vpop.f32.mrf.mxu0
  %3516 = vmatprep.mubr.f32.mxu0 0.0
  %3517 = vmatmul.mubr.f32.gmra.mxu0 %v3214
  %v3518 = vpop.f32.mrf.mxu0
  %v3519 = vadd.f32 %v3340, %v3518
  %v3520 = vpop.f32.mrf.mxu0
  %3521 = vmatprep.mubr.f32.mxu0 0.0
  %3522 = vmatmul.mubr.f32.gmra.mxu0 %v3215
  %v3523 = vpop.f32.mrf.mxu0
  %v3524 = vadd.f32 %v3340, %v3523
  %v3525 = vpop.f32.mrf.mxu0
  %3526 = vmatprep.mubr.f32.mxu0 0.0
  %3527 = vmatmul.mubr.f32.gmra.mxu0 %v3216
  %v3528 = vpop.f32.mrf.mxu0
  %v3529 = vadd.f32 %v3340, %v3528
  %v3530 = vpop.f32.mrf.mxu0
  %3531 = vmatprep.mubr.f32.mxu0 0.0
  %3532 = vmatmul.mubr.f32.gmra.mxu0 %v3217
  %v3533 = vpop.f32.mrf.mxu0
  %v3534 = vadd.f32 %v3340, %v3533
  %v3535 = vpop.f32.mrf.mxu0
  %3536 = vmatprep.mubr.f32.mxu0 0.0
  %3537 = vmatmul.mubr.f32.gmra.mxu0 %v3218
  %v3538 = vpop.f32.mrf.mxu0
  %v3539 = vadd.f32 %v3340, %v3538
  %v3540 = vpop.f32.mrf.mxu0
  %3541 = vmatprep.mubr.f32.mxu0 0.0
  %3542 = vmatmul.mubr.f32.gmra.mxu0 %v3219
  %v3543 = vpop.f32.mrf.mxu0
  %v3544 = vadd.f32 %v3340, %v3543
  %v3545 = vpop.f32.mrf.mxu0
  %3546 = vmatprep.mubr.f32.mxu0 0.0
  %3547 = vmatmul.mubr.f32.gmra.mxu0 %v3220
  %v3548 = vpop.f32.mrf.mxu0
  %v3549 = vadd.f32 %v3340, %v3548
  %v3550 = vpop.f32.mrf.mxu0
  %3551 = vmatprep.mubr.f32.mxu0 0.0
  %3552 = vmatmul.mubr.f32.gmra.mxu0 %v3221
  %v3553 = vpop.f32.mrf.mxu0
  %v3554 = vadd.f32 %v3340, %v3553
  %v3555 = vpop.f32.mrf.mxu0
  %3556 = vmatprep.mubr.f32.mxu0 0.0
  %3557 = vmatmul.mubr.f32.gmra.mxu0 %v3222
  %v3558 = vpop.f32.mrf.mxu0
  %v3559 = vadd.f32 %v3340, %v3558
  %v3560 = vpop.f32.mrf.mxu0
  %3561 = vmatprep.mubr.f32.mxu0 0.0
  %3562 = vmatmul.mubr.f32.gmra.mxu0 %v3223
  %v3563 = vpop.f32.mrf.mxu0
  %v3564 = vadd.f32 %v3340, %v3563
  %v3565 = vpop.f32.mrf.mxu0
  %3566 = vmatprep.mubr.f32.mxu0 0.0
  %3567 = vmatmul.mubr.f32.gmra.mxu0 %v3224
  %v3568 = vpop.f32.mrf.mxu0
  %v3569 = vadd.f32 %v3340, %v3568
  %v3570 = vpop.f32.mrf.mxu0
  %3571 = vmatprep.mubr.f32.mxu0 0.0
  %3572 = vmatmul.mubr.f32.gmra.mxu0 %v3225
  %v3573 = vpop.f32.mrf.mxu0
  %v3574 = vadd.f32 %v3340, %v3573
  %v3575 = vpop.f32.mrf.mxu0
  %3576 = vmatprep.mubr.f32.mxu0 0.0
  %3577 = vmatmul.mubr.f32.gmra.mxu0 %v3226
  %v3578 = vpop.f32.mrf.mxu0
  %v3579 = vadd.f32 %v3340, %v3578
  %v3580 = vpop.f32.mrf.mxu0
  %3581 = vmatprep.mubr.f32.mxu0 0.0
  %3582 = vmatmul.mubr.f32.gmra.mxu0 %v3227
  %v3583 = vpop.f32.mrf.mxu0
  %v3584 = vadd.f32 %v3340, %v3583
  %v3585 = vpop.f32.mrf.mxu0
  %3586 = vmatprep.mubr.f32.mxu0 0.0
  %3587 = vmatmul.mubr.f32.gmra.mxu0 %v3228
  %v3588 = vpop.f32.mrf.mxu0
  %v3589 = vadd.f32 %v3340, %v3588
  %v3590 = vpop.f32.mrf.mxu0
  %3591 = vmatprep.mubr.f32.mxu0 0.0
  %3592 = vmatmul.mubr.f32.gmra.mxu0 %v3229
  %v3593 = vpop.f32.mrf.mxu0
  %v3594 = vadd.f32 %v3340, %v3593
  %v3595 = vpop.f32.mrf.mxu0
  %3596 = vmatprep.mubr.f32.mxu0 0.0
  %3597 = vmatmul.mubr.f32.gmra.mxu0 %v3230
  %v3598 = vpop.f32.mrf.mxu0
  %v3599 = vadd.f32 %v3340, %v3598
  %v3600 = vpop.f32.mrf.mxu0
  %3601 = vmatprep.mubr.f32.mxu0 0.0
  %3602 = vmatmul.mubr.f32.gmra.mxu0 %v3231
  %v3603 = vpop.f32.mrf.mxu0
  %v3604 = vadd.f32 %v3340, %v3603
  %v3605 = vpop.f32.mrf.mxu0
  %3606 = vmatprep.mubr.f32.mxu0 0.0
  %3607 = vmatmul.mubr.f32.gmra.mxu0 %v3232
  %v3608 = vpop.f32.mrf.mxu0
  %v3609 = vadd.f32 %v3340, %v3608
  %v3610 = vpop.f32.mrf.mxu0
  %3611 = vmatprep.mubr.f32.mxu0 0.0
  %3612 = vmatmul.mubr.f32.gmra.mxu0 %v3233
  %v3613 = vpop.f32.mrf.mxu0
  %v3614 = vadd.f32 %v3340, %v3613
  %v3615 = vpop.f32.mrf.mxu0
  %3616 = vmatprep.mubr.f32.mxu0 0.0
  %3617 = vmatmul.mubr.f32.gmra.mxu0 %v3234
  %v3618 = vpop.f32.mrf.mxu0
  %v3619 = vadd.f32 %v3340, %v3618
  %v3620 = vpop.f32.mrf.mxu0
  %3621 = vmatprep.mubr.f32.mxu0 0.0
  %3622 = vmatmul.mubr.f32.gmra.mxu0 %v3235
  %v3623 = vpop.f32.mrf.mxu0
  %v3624 = vadd.f32 %v3340, %v3623
  %v3625 = vpop.f32.mrf.mxu0
  %3626 = vmatprep.mubr.f32.mxu0 0.0
  %3627 = vmatmul.mubr.f32.gmra.mxu0 %v3236
  %v3628 = vpop.f32.mrf.mxu0
  %v3629 = vadd.f32 %v3340, %v3628
  %v3630 = vpop.f32.mrf.mxu0
  %3631 = vmatprep.mubr.f32.mxu0 0.0
  %3632 = vmatmul.mubr.f32.gmra.mxu0 %v3237
  %v3633 = vpop.f32.mrf.mxu0
  %v3634 = vadd.f32 %v3340, %v3633
  %v3635 = vpop.f32.mrf.mxu0
  %3636 = vmatprep.mubr.f32.mxu0 0.0
  %3637 = vmatmul.mubr.f32.gmra.mxu0 %v3238
  %v3638 = vpop.f32.mrf.mxu0
  %v3639 = vadd.f32 %v3340, %v3638
  %v3640 = vpop.f32.mrf.mxu0
  %3641 = vmatprep.mubr.f32.mxu0 0.0
  %3642 = vmatmul.mubr.f32.gmra.mxu0 %v3239
  %v3643 = vpop.f32.mrf.mxu0
  %v3644 = vadd.f32 %v3340, %v3643
  %v3645 = vpop.f32.mrf.mxu0
  %3646 = vmatprep.mubr.f32.mxu0 0.0
  %3647 = vmatmul.mubr.f32.gmra.mxu0 %v3240
  %v3648 = vpop.f32.mrf.mxu0
  %v3649 = vadd.f32 %v3340, %v3648
  %v3650 = vpop.f32.mrf.mxu0
  %3651 = vmatprep.mubr.f32.mxu0 0.0
  %3652 = vmatmul.mubr.f32.gmra.mxu0 %v3241
  %v3653 = vpop.f32.mrf.mxu0
  %v3654 = vadd.f32 %v3340, %v3653
  %v3655 = vpop.f32.mrf.mxu0
  %3656 = vmatprep.mubr.f32.mxu0 0.0
  %3657 = vmatmul.mubr.f32.gmra.mxu0 %v3242
  %v3658 = vpop.f32.mrf.mxu0
  %v3659 = vadd.f32 %v3340, %v3658
  %v3660 = vpop.f32.mrf.mxu0
  %3661 = vmatprep.mubr.f32.mxu0 0.0
  %3662 = vmatmul.mubr.f32.gmra.mxu0 %v3243
  %v3663 = vpop.f32.mrf.mxu0
  %v3664 = vadd.f32 %v3340, %v3663
  %v3665 = vpop.f32.mrf.mxu0
  %3666 = vmatprep.mubr.f32.mxu0 0.0
  %3667 = vmatmul.mubr.f32.gmra.mxu0 %v3244
  %v3668 = vpop.f32.mrf.mxu0
  %v3669 = vadd.f32 %v3340, %v3668
  %v3670 = vpop.f32.mrf.mxu0
  %3671 = vmatprep.mubr.f32.mxu0 0.0
  %3672 = vmatmul.mubr.f32.gmra.mxu0 %v3245
  %v3673 = vpop.f32.mrf.mxu0
  %v3674 = vadd.f32 %v3340, %v3673
  %v3675 = vpop.f32.mrf.mxu0
  %3676 = vmatprep.mubr.f32.mxu0 0.0
  %3677 = vmatmul.mubr.f32.gmra.mxu0 %v3246
  %v3678 = vpop.f32.mrf.mxu0
  %v3679 = vadd.f32 %v3340, %v3678
  %v3680 = vpop.f32.mrf.mxu0
  %3681 = vmatprep.mubr.f32.mxu0 0.0
  %3682 = vmatmul.mubr.f32.gmra.mxu0 %v3247
  %v3683 = vpop.f32.mrf.mxu0
  %v3684 = vadd.f32 %v3340, %v3683
  %v3685 = vpop.f32.mrf.mxu0
  %3686 = vmatprep.mubr.f32.mxu0 0.0
  %3687 = vmatmul.mubr.f32.gmra.mxu0 %v3248
  %v3688 = vpop.f32.mrf.mxu0
  %v3689 = vadd.f32 %v3340, %v3688
  %v3690 = vpop.f32.mrf.mxu0
  %3691 = vmatprep.mubr.f32.mxu0 0.0
  %3692 = vmatmul.mubr.f32.gmra.mxu0 %v3249
  %v3693 = vpop.f32.mrf.mxu0
  %v3694 = vadd.f32 %v3340, %v3693
  %v3695 = vpop.f32.mrf.mxu0
  %3696 = vmatprep.mubr.f32.mxu0 0.0
  %3697 = vmatmul.mubr.f32.gmra.mxu0 %v3250
  %v3698 = vpop.f32.mrf.mxu0
  %v3699 = vadd.f32 %v3340, %v3698
  %v3700 = vpop.f32.mrf.mxu0
  %3701 = vmatprep.mubr.f32.mxu0 0.0
  %3702 = vmatmul.mubr.f32.gmra.mxu0 %v3251
  %v3703 = vpop.f32.mrf.mxu0
  %v3704 = vadd.f32 %v3340, %v3703
  %v3705 = vpop.f32.mrf.mxu0
  %3706 = vmatprep.mubr.f32.mxu0 0.0
  %3707 = vmatmul.mubr.f32.gmra.mxu0 %v3252
  %v3708 = vpop.f32.mrf.mxu0
  %v3709 = vadd.f32 %v3340, %v3708
  %v3710 = vpop.f32.mrf.mxu0
  %3711 = vmatprep.mubr.f32.mxu0 0.0
  %3712 = vmatmul.mubr.f32.gmra.mxu0 %v3253
  %v3713 = vpop.f32.mrf.mxu0
  %v3714 = vadd.f32 %v3340, %v3713
  %v3715 = vpop.f32.mrf.mxu0
  %3716 = vmatprep.mubr.f32.mxu0 0.0
  %3717 = vmatmul.mubr.f32.gmra.mxu0 %v3254
  %v3718 = vpop.f32.mrf.mxu0
  %v3719 = vadd.f32 %v3340, %v3718
  %v3720 = vpop.f32.mrf.mxu0
  %3721 = vmatprep.mubr.f32.mxu0 0.0
  %3722 = vmatmul.mubr.f32.gmra.mxu0 %v3255
  %v3723 = vpop.f32.mrf.mxu0
  %v3724 = vadd.f32 %v3340, %v3723
  %v3725 = vpop.f32.mrf.mxu0
  %3726 = vmatprep.mubr.f32.mxu0 0.0
  %3727 = vmatmul.mubr.f32.gmra.mxu0 %v3256
  %v3728 = vpop.f32.mrf.mxu0
  %v3729 = vadd.f32 %v3340, %v3728
  %v3730 = vpop.f32.mrf.mxu0
  %3731 = vmatprep.mubr.f32.mxu0 0.0
  %3732 = vmatmul.mubr.f32.gmra.mxu0 %v3257
  %v3733 = vpop.f32.mrf.mxu0
  %v3734 = vadd.f32 %v3340, %v3733
  %v3735 = vpop.f32.mrf.mxu0
  %3736 = vmatprep.mubr.f32.mxu0 0.0
  %3737 = vmatmul.mubr.f32.gmra.mxu0 %v3258
  %v3738 = vpop.f32.mrf.mxu0
  %v3739 = vadd.f32 %v3340, %v3738
  %v3740 = vpop.f32.mrf.mxu0
  %3741 = vmatprep.mubr.f32.mxu0 0.0
  %3742 = vmatmul.mubr.f32.gmra.mxu0 %v3259
  %v3743 = vpop.f32.mrf.mxu0
  %v3744 = vadd.f32 %v3340, %v3743
  %v3745 = vpop.f32.mrf.mxu0
  %3746 = vmatprep.mubr.f32.mxu0 0.0
  %3747 = vmatmul.mubr.f32.gmra.mxu0 %v3260
  %v3748 = vpop.f32.mrf.mxu0
  %v3749 = vadd.f32 %v3340, %v3748
  %v3750 = vpop.f32.mrf.mxu0
  %3751 = vmatprep.mubr.f32.mxu0 0.0
  %3752 = vmatmul.mubr.f32.gmra.mxu0 %v3261
  %v3753 = vpop.f32.mrf.mxu0
  %v3754 = vadd.f32 %v3340, %v3753
  %v3755 = vpop.f32.mrf.mxu0
  %3756 = vmatprep.mubr.f32.mxu0 0.0
  %3757 = vmatmul.mubr.f32.gmra.mxu0 %v3262
  %v3758 = vpop.f32.mrf.mxu0
  %v3759 = vadd.f32 %v3340, %v3758
  %v3760 = vpop.f32.mrf.mxu0
  %3761 = vmatprep.mubr.f32.mxu0 0.0
  %3762 = vmatmul.mubr.f32.gmra.mxu0 %v3263
  %v3763 = vpop.f32.mrf.mxu0
  %v3764 = vadd.f32 %v3340, %v3763
  %v3765 = vpop.f32.mrf.mxu0
  %3766 = vmatprep.mubr.f32.mxu0 0.0
  %3767 = vmatmul.mubr.f32.gmra.mxu0 %v3264
  %v3768 = vpop.f32.mrf.mxu0
  %v3769 = vadd.f32 %v3340, %v3768
  %v3770 = vpop.f32.mrf.mxu0
  %3771 = vmatprep.mubr.f32.mxu0 0.0
  %3772 = vmatmul.mubr.f32.gmra.mxu0 %v3265
  %v3773 = vpop.f32.mrf.mxu0
  %v3774 = vadd.f32 %v3340, %v3773
  %v3775 = vpop.f32.mrf.mxu0
  %3776 = vmatprep.mubr.f32.mxu0 0.0
  %3777 = vmatmul.mubr.f32.gmra.mxu0 %v3266
  %v3778 = vpop.f32.mrf.mxu0
  %v3779 = vadd.f32 %v3340, %v3778
  %v3780 = vpop.f32.mrf.mxu0
  %3781 = vmatprep.mubr.f32.mxu0 0.0
  %3782 = vmatmul.mubr.f32.gmra.mxu0 %v3267
  %v3783 = vpop.f32.mrf.mxu0
  %v3784 = vadd.f32 %v3340, %v3783
  %v3785 = vpop.f32.mrf.mxu0
  %3786 = vmatprep.mubr.f32.mxu0 0.0
  %3787 = vmatmul.mubr.f32.gmra.mxu0 %v3268
  %v3788 = vpop.f32.mrf.mxu0
  %v3789 = vadd.f32 %v3340, %v3788
  %v3790 = vpop.f32.mrf.mxu0
  %3791 = vmatprep.mubr.f32.mxu0 0.0
  %3792 = vmatmul.mubr.f32.gmra.mxu0 %v3269
  %v3793 = vpop.f32.mrf.mxu0
  %v3794 = vadd.f32 %v3340, %v3793
  %v3795 = vpop.f32.mrf.mxu0
  %3796 = vmatprep.mubr.f32.mxu0 0.0
  %3797 = vmatmul.mubr.f32.gmra.mxu0 %v3270
  %v3798 = vpop.f32.mrf.mxu0
  %v3799 = vadd.f32 %v3340, %v3798
  %v3800 = vpop.f32.mrf.mxu0
  %3801 = vmatprep.mubr.f32.mxu0 0.0
  %3802 = vmatmul.mubr.f32.gmra.mxu0 %v3271
  %v3803 = vpop.f32.mrf.mxu0
  %v3804 = vadd.f32 %v3340, %v3803
  %v3805 = vpop.f32.mrf.mxu0
  %3806 = vmatprep.mubr.f32.mxu0 0.0
  %3807 = vmatmul.mubr.f32.gmra.mxu0 %v3272
  %v3808 = vpop.f32.mrf.mxu0
  %v3809 = vadd.f32 %v3340, %v3808
  %v3810 = vpop.f32.mrf.mxu0
  %3811 = vmatprep.mubr.f32.mxu0 0.0
  %3812 = vmatmul.mubr.f32.gmra.mxu0 %v3273
  %v3813 = vpop.f32.mrf.mxu0
  %v3814 = vadd.f32 %v3340, %v3813
  %v3815 = vpop.f32.mrf.mxu0
  %3816 = vmatprep.mubr.f32.mxu0 0.0
  %3817 = vmatmul.mubr.f32.gmra.mxu0 %v3274
  %v3818 = vpop.f32.mrf.mxu0
  %v3819 = vadd.f32 %v3340, %v3818
  %v3820 = vpop.f32.mrf.mxu0
  %3821 = vmatprep.mubr.f32.mxu0 0.0
  %3822 = vmatmul.mubr.f32.gmra.mxu0 %v3275
  %v3823 = vpop.f32.mrf.mxu0
  %v3824 = vadd.f32 %v3340, %v3823
  %v3825 = vpop.f32.mrf.mxu0
  %3826 = vmatprep.mubr.f32.mxu0 0.0
  %3827 = vmatmul.mubr.f32.gmra.mxu0 %v3276
  %v3828 = vpop.f32.mrf.mxu0
  %v3829 = vadd.f32 %v3340, %v3828
  %v3830 = vpop.f32.mrf.mxu0
  %3831 = vmatprep.mubr.f32.mxu0 0.0
  %3832 = vmatmul.mubr.f32.gmra.mxu0 %v3277
  %v3833 = vpop.f32.mrf.mxu0
  %v3834 = vadd.f32 %v3340, %v3833
  %v3835 = vpop.f32.mrf.mxu0
  %3836 = vmatprep.mubr.f32.mxu0 0.0
  %3837 = vmatmul.mubr.f32.gmra.mxu0 %v3278
  %v3838 = vpop.f32.mrf.mxu0
  %v3839 = vadd.f32 %v3340, %v3838
  %v3840 = vpop.f32.mrf.mxu0
  %3841 = vmatprep.mubr.f32.mxu0 0.0
  %3842 = vmatmul.mubr.f32.gmra.mxu0 %v3279
  %v3843 = vpop.f32.mrf.mxu0
  %v3844 = vadd.f32 %v3340, %v3843
  %v3845 = vpop.f32.mrf.mxu0
  %3846 = vmatprep.mubr.f32.mxu0 0.0
  %3847 = vmatmul.mubr.f32.gmra.mxu0 %v3280
  %v3848 = vpop.f32.mrf.mxu0
  %v3849 = vadd.f32 %v3340, %v3848
  %v3850 = vpop.f32.mrf.mxu0
  %3851 = vmatprep.mubr.f32.mxu0 0.0
  %3852 = vmatmul.mubr.f32.gmra.mxu0 %v3281
  %v3853 = vpop.f32.mrf.mxu0
  %v3854 = vadd.f32 %v3340, %v3853
  %v3855 = vpop.f32.mrf.mxu0
  %3856 = vmatprep.mubr.f32.mxu0 0.0
  %3857 = vmatmul.mubr.f32.gmra.mxu0 %v3282
  %v3858 = vpop.f32.mrf.mxu0
  %v3859 = vadd.f32 %v3340, %v3858
  %v3860 = vpop.f32.mrf.mxu0
  %3861 = vmatprep.mubr.f32.mxu0 0.0
  %3862 = vmatmul.mubr.f32.gmra.mxu0 %v3283
  %v3863 = vpop.f32.mrf.mxu0
  %v3864 = vadd.f32 %v3340, %v3863
  %v3865 = vpop.f32.mrf.mxu0
  %3866 = vmatprep.mubr.f32.mxu0 0.0
  %3867 = vmatmul.mubr.f32.gmra.mxu0 %v3284
  %v3868 = vpop.f32.mrf.mxu0
  %v3869 = vadd.f32 %v3340, %v3868
  %v3870 = vpop.f32.mrf.mxu0
  %3871 = vmatprep.mubr.f32.mxu0 0.0
  %3872 = vmatmul.mubr.f32.gmra.mxu0 %v3285
  %v3873 = vpop.f32.mrf.mxu0
  %v3874 = vadd.f32 %v3340, %v3873
  %v3875 = vpop.f32.mrf.mxu0
  %3876 = vmatprep.mubr.f32.mxu0 0.0
  %3877 = vmatmul.mubr.f32.gmra.mxu0 %v3286
  %v3878 = vpop.f32.mrf.mxu0
  %v3879 = vadd.f32 %v3340, %v3878
  %v3880 = vpop.f32.mrf.mxu0
  %3881 = vmatprep.mubr.f32.mxu0 0.0
  %3882 = vmatmul.mubr.f32.gmra.mxu0 %v3287
  %v3883 = vpop.f32.mrf.mxu0
  %v3884 = vadd.f32 %v3340, %v3883
  %v3885 = vpop.f32.mrf.mxu0
  %3886 = vmatprep.mubr.f32.mxu0 0.0
  %3887 = vmatmul.mubr.f32.gmra.mxu0 %v3288
  %v3888 = vpop.f32.mrf.mxu0
  %v3889 = vadd.f32 %v3340, %v3888
  %v3890 = vpop.f32.mrf.mxu0
  %3891 = vmatprep.mubr.f32.mxu0 0.0
  %3892 = vmatmul.mubr.f32.gmra.mxu0 %v3289
  %v3893 = vpop.f32.mrf.mxu0
  %v3894 = vadd.f32 %v3340, %v3893
  %v3895 = vpop.f32.mrf.mxu0
  %3896 = vmatprep.mubr.f32.mxu0 0.0
  %3897 = vmatmul.mubr.f32.gmra.mxu0 %v3290
  %v3898 = vpop.f32.mrf.mxu0
  %v3899 = vadd.f32 %v3340, %v3898
  %v3900 = vpop.f32.mrf.mxu0
  %3901 = vmatprep.mubr.f32.mxu0 0.0
  %3902 = vmatmul.mubr.f32.gmra.mxu0 %v3291
  %v3903 = vpop.f32.mrf.mxu0
  %v3904 = vadd.f32 %v3340, %v3903
  %v3905 = vpop.f32.mrf.mxu0
  %3906 = vmatprep.mubr.f32.mxu0 0.0
  %3907 = vmatmul.mubr.f32.gmra.mxu0 %v3292
  %v3908 = vpop.f32.mrf.mxu0
  %v3909 = vadd.f32 %v3340, %v3908
  %v3910 = vpop.f32.mrf.mxu0
  %3911 = vmatprep.mubr.f32.mxu0 0.0
  %3912 = vmatmul.mubr.f32.gmra.mxu0 %v3293
  %v3913 = vpop.f32.mrf.mxu0
  %v3914 = vadd.f32 %v3340, %v3913
  %v3915 = vpop.f32.mrf.mxu0
  %3916 = vmatprep.mubr.f32.mxu0 0.0
  %3917 = vmatmul.mubr.f32.gmra.mxu0 %v3294
  %v3918 = vpop.f32.mrf.mxu0
  %v3919 = vadd.f32 %v3340, %v3918
  %v3920 = vpop.f32.mrf.mxu0
  %3921 = vmatprep.mubr.f32.mxu0 0.0
  %3922 = vmatmul.mubr.f32.gmra.mxu0 %v3295
  %v3923 = vpop.f32.mrf.mxu0
  %v3924 = vadd.f32 %v3340, %v3923
  %v3925 = vpop.f32.mrf.mxu0
  %3926 = vmatprep.mubr.f32.mxu0 0.0
  %3927 = vmatmul.mubr.f32.gmra.mxu0 %v3296
  %v3928 = vpop.f32.mrf.mxu0
  %v3929 = vadd.f32 %v3340, %v3928
  %v3930 = vpop.f32.mrf.mxu0
  %3931 = vmatprep.mubr.f32.mxu0 0.0
  %3932 = vmatmul.mubr.f32.gmra.mxu0 %v3297
  %v3933 = vpop.f32.mrf.mxu0
  %v3934 = vadd.f32 %v3340, %v3933
  %v3935 = vpop.f32.mrf.mxu0
  %3936 = vmatprep.mubr.f32.mxu0 0.0
  %3937 = vmatmul.mubr.f32.gmra.mxu0 %v3298
  %v3938 = vpop.f32.mrf.mxu0
  %v3939 = vadd.f32 %v3340, %v3938
  %v3940 = vpop.f32.mrf.mxu0
  %3941 = vmatprep.mubr.f32.mxu0 0.0
  %3942 = vmatmul.mubr.f32.gmra.mxu0 %v3299
  %v3943 = vpop.f32.mrf.mxu0
  %v3944 = vadd.f32 %v3340, %v3943
  %v3945 = vpop.f32.mrf.mxu0
  %3946 = vmatprep.mubr.f32.mxu0 0.0
  %3947 = vmatmul.mubr.f32.gmra.mxu0 %v3300
  %v3948 = vpop.f32.mrf.mxu0
  %v3949 = vadd.f32 %v3340, %v3948
  %v3950 = vpop.f32.mrf.mxu0
  %3951 = vmatprep.mubr.f32.mxu0 0.0
  %3952 = vmatmul.mubr.f32.gmra.mxu0 %v3301
  %v3953 = vpop.f32.mrf.mxu0
  %v3954 = vadd.f32 %v3340, %v3953
  %v3955 = vpop.f32.mrf.mxu0
  %3956 = vmatprep.mubr.f32.mxu0 0.0
  %3957 = vmatmul.mubr.f32.gmra.mxu0 %v3302
  %v3958 = vpop.f32.mrf.mxu0
  %v3959 = vadd.f32 %v3340, %v3958
  %v3960 = vpop.f32.mrf.mxu0
  %3961 = vmatprep.mubr.f32.mxu0 0.0
  %3962 = vmatmul.mubr.f32.gmra.mxu0 %v3303
  %v3963 = vpop.f32.mrf.mxu0
  %v3964 = vadd.f32 %v3340, %v3963
  %v3965 = vpop.f32.mrf.mxu0
  %3966 = vmatprep.mubr.f32.mxu0 0.0
  %3967 = vmatmul.mubr.f32.gmra.mxu0 %v3304
  %v3968 = vpop.f32.mrf.mxu0
  %v3969 = vadd.f32 %v3340, %v3968
  %v3970 = vpop.f32.mrf.mxu0
  %3971 = vmatprep.mubr.f32.mxu0 0.0
  %3972 = vmatmul.mubr.f32.gmra.mxu0 %v3305
  %v3973 = vpop.f32.mrf.mxu0
  %v3974 = vadd.f32 %v3340, %v3973
  %v3975 = vpop.f32.mrf.mxu0
  %3976 = vmatprep.mubr.f32.mxu0 0.0
  %3977 = vmatmul.mubr.f32.gmra.mxu0 %v3306
  %v3978 = vpop.f32.mrf.mxu0
  %v3979 = vadd.f32 %v3340, %v3978
  %v3980 = vpop.f32.mrf.mxu0
  %3981 = vmatprep.mubr.f32.mxu0 0.0
  %3982 = vmatmul.mubr.f32.gmra.mxu0 %v3307
  %v3983 = vpop.f32.mrf.mxu0
  %v3984 = vadd.f32 %v3340, %v3983
  %v3985 = vpop.f32.mrf.mxu0
  %3986 = vmatprep.mubr.f32.mxu0 0.0
  %3987 = vmatmul.mubr.f32.gmra.mxu0 %v3308
  %v3988 = vpop.f32.mrf.mxu0
  %v3989 = vadd.f32 %v3340, %v3988
  %v3990 = vpop.f32.mrf.mxu0
  %3991 = vmatprep.mubr.f32.mxu0 0.0
  %3992 = vmatmul.mubr.f32.gmra.mxu0 %v3309
  %v3993 = vpop.f32.mrf.mxu0
  %v3994 = vadd.f32 %v3340, %v3993
  %v3995 = vpop.f32.mrf.mxu0
  %3996 = vmatprep.mubr.f32.mxu0 0.0
  %3997 = vmatmul.mubr.f32.gmra.mxu0 %v3310
  %v3998 = vpop.f32.mrf.mxu0
  %v3999 = vadd.f32 %v3340, %v3998
  %v4000 = vpop.f32.mrf.mxu0
  %4001 = vmatprep.mubr.f32.mxu0 0.0
  %4002 = vmatmul.mubr.f32.gmra.mxu0 %v3311
  %v4003 = vpop.f32.mrf.mxu0
  %v4004 = vadd.f32 %v3340, %v4003
  %v4005 = vpop.f32.mrf.mxu0
  %4006 = vmatprep.mubr.f32.mxu0 0.0
  %4007 = vmatmul.mubr.f32.gmra.mxu0 %v3312
  %v4008 = vpop.f32.mrf.mxu0
  %v4009 = vadd.f32 %v3340, %v4008
  %v4010 = vpop.f32.mrf.mxu0
  %4011 = vmatprep.mubr.f32.mxu0 0.0
  %4012 = vmatmul.mubr.f32.gmra.mxu0 %v3313
  %v4013 = vpop.f32.mrf.mxu0
  %v4014 = vadd.f32 %v3340, %v4013
  %v4015 = vpop.f32.mrf.mxu0
  %4016 = vmatprep.mubr.f32.mxu0 0.0
  %4017 = vmatmul.mubr.f32.gmra.mxu0 %v3314
  %v4018 = vpop.f32.mrf.mxu0
  %v4019 = vadd.f32 %v3340, %v4018
  %v4020 = vpop.f32.mrf.mxu0
  %4021 = vmatprep.mubr.f32.mxu0 0.0
  %4022 = vmatmul.mubr.f32.gmra.mxu0 %v3315
  %v4023 = vpop.f32.mrf.mxu0
  %v4024 = vadd.f32 %v3340, %v4023
  %v4025 = vpop.f32.mrf.mxu0
  %4026 = vmatprep.mubr.f32.mxu0 0.0
  %4027 = vmatmul.mubr.f32.gmra.mxu0 %v3316
  %v4028 = vpop.f32.mrf.mxu0
  %v4029 = vadd.f32 %v3340, %v4028
  %v4030 = vpop.f32.mrf.mxu0
  %4031 = vdwg.mxu0
  %v4032 = vmul.f32 %v3409, 0.5
  %v4033 = vmul.f32 %v3414, 0.5
  %v4034 = vmul.f32 %v3419, 0.5
  %v4035 = vmul.f32 %v3424, 0.5
  %v4036 = vmul.f32 %v3429, 0.5
  %v4037 = vmul.f32 %v3434, 0.5
  %v4038 = vmul.f32 %v3439, 0.5
  %v4039 = vmul.f32 %v3444, 0.5
  %v4040 = vmul.f32 %v3449, 0.5
  %v4041 = vmul.f32 %v3454, 0.5
  %v4042 = vmul.f32 %v3459, 0.5
  %v4043 = vmul.f32 %v3464, 0.5
  %v4044 = vmul.f32 %v3469, 0.5
  %v4045 = vmul.f32 %v3474, 0.5
  %v4046 = vmul.f32 %v3479, 0.5
  %v4047 = vmul.f32 %v3484, 0.5
  %v4048 = vmul.f32 %v3489, 0.5
  %v4049 = vmul.f32 %v3494, 0.5
  %v4050 = vmul.f32 %v3499, 0.5
  %v4051 = vmul.f32 %v3504, 0.5
  %v4052 = vmul.f32 %v3509, 0.5
  %v4053 = vmul.f32 %v3514, 0.5
  %v4054 = vmul.f32 %v3519, 0.5
  %v4055 = vmul.f32 %v3524, 0.5
  %v4056 = vmul.f32 %v3529, 0.5
  %v4057 = vmul.f32 %v3534, 0.5
  %v4058 = vmul.f32 %v3539, 0.5
  %v4059 = vmul.f32 %v3544, 0.5
  %v4060 = vmul.f32 %v3549, 0.5
  %v4061 = vmul.f32 %v3554, 0.5
  %v4062 = vmul.f32 %v3559, 0.5
  %v4063 = vmul.f32 %v3564, 0.5
  %v4064 = vmul.f32 %v3569, 0.5
  %v4065 = vmul.f32 %v3574, 0.5
  %v4066 = vmul.f32 %v3579, 0.5
  %v4067 = vmul.f32 %v3584, 0.5
  %v4068 = vmul.f32 %v3589, 0.5
  %v4069 = vmul.f32 %v3594, 0.5
  %v4070 = vmul.f32 %v3599, 0.5
  %v4071 = vmul.f32 %v3604, 0.5
  %v4072 = vmul.f32 %v3609, 0.5
  %v4073 = vmul.f32 %v3614, 0.5
  %v4074 = vmul.f32 %v3619, 0.5
  %v4075 = vmul.f32 %v3624, 0.5
  %v4076 = vmul.f32 %v3629, 0.5
  %v4077 = vmul.f32 %v3634, 0.5
  %v4078 = vmul.f32 %v3639, 0.5
  %v4079 = vmul.f32 %v3644, 0.5
  %v4080 = vmul.f32 %v3649, 0.5
  %v4081 = vmul.f32 %v3654, 0.5
  %v4082 = vmul.f32 %v3659, 0.5
  %v4083 = vmul.f32 %v3664, 0.5
  %v4084 = vmul.f32 %v3669, 0.5
  %v4085 = vmul.f32 %v3674, 0.5
  %v4086 = vmul.f32 %v3679, 0.5
  %v4087 = vmul.f32 %v3684, 0.5
  %v4088 = vmul.f32 %v3689, 0.5
  %v4089 = vmul.f32 %v3694, 0.5
  %v4090 = vmul.f32 %v3699, 0.5
  %v4091 = vmul.f32 %v3704, 0.5
  %v4092 = vmul.f32 %v3709, 0.5
  %v4093 = vmul.f32 %v3714, 0.5
  %v4094 = vmul.f32 %v3719, 0.5
  %v4095 = vmul.f32 %v3724, 0.5
  %v4096 = vmul.f32 %v3729, 0.5
  %v4097 = vmul.f32 %v3734, 0.5
  %v4098 = vmul.f32 %v3739, 0.5
  %v4099 = vmul.f32 %v3744, 0.5
  %v4100 = vmul.f32 %v3749, 0.5
  %v4101 = vmul.f32 %v3754, 0.5
  %v4102 = vmul.f32 %v3759, 0.5
  %v4103 = vmul.f32 %v3764, 0.5
  %v4104 = vmul.f32 %v3769, 0.5
  %v4105 = vmul.f32 %v3774, 0.5
  %v4106 = vmul.f32 %v3779, 0.5
  %v4107 = vmul.f32 %v3784, 0.5
  %v4108 = vmul.f32 %v3789, 0.5
  %v4109 = vmul.f32 %v3794, 0.5
  %v4110 = vmul.f32 %v3799, 0.5
  %v4111 = vmul.f32 %v3804, 0.5
  %v4112 = vmul.f32 %v3809, 0.5
  %v4113 = vmul.f32 %v3814, 0.5
  %v4114 = vmul.f32 %v3819, 0.5
  %v4115 = vmul.f32 %v3824, 0.5
  %v4116 = vmul.f32 %v3829, 0.5
  %v4117 = vmul.f32 %v3834, 0.5
  %v4118 = vmul.f32 %v3839, 0.5
  %v4119 = vmul.f32 %v3844, 0.5
  %v4120 = vmul.f32 %v3849, 0.5
  %v4121 = vmul.f32 %v3854, 0.5
  %v4122 = vmul.f32 %v3859, 0.5
  %v4123 = vmul.f32 %v3864, 0.5
  %v4124 = vmul.f32 %v3869, 0.5
  %v4125 = vmul.f32 %v3874, 0.5
  %v4126 = vmul.f32 %v3879, 0.5
  %v4127 = vmul.f32 %v3884, 0.5
  %v4128 = vmul.f32 %v3889, 0.5
  %v4129 = vmul.f32 %v3894, 0.5
  %v4130 = vmul.f32 %v3899, 0.5
  %v4131 = vmul.f32 %v3904, 0.5
  %v4132 = vmul.f32 %v3909, 0.5
  %v4133 = vmul.f32 %v3914, 0.5
  %v4134 = vmul.f32 %v3919, 0.5
  %v4135 = vmul.f32 %v3924, 0.5
  %v4136 = vmul.f32 %v3929, 0.5
  %v4137 = vmul.f32 %v3934, 0.5
  %v4138 = vmul.f32 %v3939, 0.5
  %v4139 = vmul.f32 %v3944, 0.5
  %v4140 = vmul.f32 %v3949, 0.5
  %v4141 = vmul.f32 %v3954, 0.5
  %v4142 = vmul.f32 %v3959, 0.5
  %v4143 = vmul.f32 %v3964, 0.5
  %v4144 = vmul.f32 %v3969, 0.5
  %v4145 = vmul.f32 %v3974, 0.5
  %v4146 = vmul.f32 %v3979, 0.5
  %v4147 = vmul.f32 %v3984, 0.5
  %v4148 = vmul.f32 %v3989, 0.5
  %v4149 = vmul.f32 %v3994, 0.5
  %v4150 = vmul.f32 %v3999, 0.5
  %v4151 = vmul.f32 %v4004, 0.5
  %v4152 = vmul.f32 %v4009, 0.5
  %v4153 = vmul.f32 %v4014, 0.5
  %v4154 = vmul.f32 %v4019, 0.5
  %v4155 = vmul.f32 %v4024, 0.5
  %v4156 = vmul.f32 %v4029, 0.5
  %v4157 = vtanh.pop %v4032
  %v4158 = vtanh.pop %v4033
  %v4159 = vtanh.pop %v4034
  %v4160 = vtanh.pop %v4035
  %v4161 = vtanh.pop %v4036
  %v4162 = vtanh.pop %v4037
  %v4163 = vtanh.pop %v4038
  %v4164 = vtanh.pop %v4039
  %v4165 = vtanh.pop %v4040
  %v4166 = vtanh.pop %v4041
  %v4167 = vtanh.pop %v4042
  %v4168 = vtanh.pop %v4043
  %v4169 = vtanh.pop %v4044
  %v4170 = vtanh.pop %v4045
  %v4171 = vtanh.pop %v4046
  %v4172 = vtanh.pop %v4047
  %v4173 = vtanh.pop %v4048
  %v4174 = vtanh.pop %v4049
  %v4175 = vtanh.pop %v4050
  %v4176 = vtanh.pop %v4051
  %v4177 = vtanh.pop %v4052
  %v4178 = vtanh.pop %v4053
  %v4179 = vtanh.pop %v4054
  %v4180 = vtanh.pop %v4055
  %v4181 = vtanh.pop %v4056
  %v4182 = vtanh.pop %v4057
  %v4183 = vtanh.pop %v4058
  %v4184 = vtanh.pop %v4059
  %v4185 = vtanh.pop %v4060
  %v4186 = vtanh.pop %v4061
  %v4187 = vtanh.pop %v4062
  %v4188 = vtanh.pop %v4063
  %v4189 = vtanh.pop %v4064
  %v4190 = vtanh.pop %v4065
  %v4191 = vtanh.pop %v4066
  %v4192 = vtanh.pop %v4067
  %v4193 = vtanh.pop %v4068
  %v4194 = vtanh.pop %v4069
  %v4195 = vtanh.pop %v4070
  %v4196 = vtanh.pop %v4071
  %v4197 = vtanh.pop %v4072
  %v4198 = vtanh.pop %v4073
  %v4199 = vtanh.pop %v4074
  %v4200 = vtanh.pop %v4075
  %v4201 = vtanh.pop %v4076
  %v4202 = vtanh.pop %v4077
  %v4203 = vtanh.pop %v4078
  %v4204 = vtanh.pop %v4079
  %v4205 = vtanh.pop %v4080
  %v4206 = vtanh.pop %v4081
  %v4207 = vtanh.pop %v4082
  %v4208 = vtanh.pop %v4083
  %v4209 = vtanh.pop %v4084
  %v4210 = vtanh.pop %v4085
  %v4211 = vtanh.pop %v4086
  %v4212 = vtanh.pop %v4087
  %v4213 = vtanh.pop %v4088
  %v4214 = vtanh.pop %v4089
  %v4215 = vtanh.pop %v4090
  %v4216 = vtanh.pop %v4091
  %v4217 = vtanh.pop %v4092
  %v4218 = vtanh.pop %v4093
  %v4219 = vtanh.pop %v4094
  %v4220 = vtanh.pop %v4095
  %v4221 = vtanh.pop %v4096
  %v4222 = vtanh.pop %v4097
  %v4223 = vtanh.pop %v4098
  %v4224 = vtanh.pop %v4099
  %v4225 = vtanh.pop %v4100
  %v4226 = vtanh.pop %v4101
  %v4227 = vtanh.pop %v4102
  %v4228 = vtanh.pop %v4103
  %v4229 = vtanh.pop %v4104
  %v4230 = vtanh.pop %v4105
  %v4231 = vtanh.pop %v4106
  %v4232 = vtanh.pop %v4107
  %v4233 = vtanh.pop %v4108
  %v4234 = vtanh.pop %v4109
  %v4235 = vtanh.pop %v4110
  %v4236 = vtanh.pop %v4111
  %v4237 = vtanh.pop %v4112
  %v4238 = vtanh.pop %v4113
  %v4239 = vtanh.pop %v4114
  %v4240 = vtanh.pop %v4115
  %v4241 = vtanh.pop %v4116
  %v4242 = vtanh.pop %v4117
  %v4243 = vtanh.pop %v4118
  %v4244 = vtanh.pop %v4119
  %v4245 = vtanh.pop %v4120
  %v4246 = vtanh.pop %v4121
  %v4247 = vtanh.pop %v4122
  %v4248 = vtanh.pop %v4123
  %v4249 = vtanh.pop %v4124
  %v4250 = vtanh.pop %v4125
  %v4251 = vtanh.pop %v4126
  %v4252 = vtanh.pop %v4127
  %v4253 = vtanh.pop %v4128
  %v4254 = vtanh.pop %v4129
  %v4255 = vtanh.pop %v4130
  %v4256 = vtanh.pop %v4131
  %v4257 = vtanh.pop %v4132
  %v4258 = vtanh.pop %v4133
  %v4259 = vtanh.pop %v4134
  %v4260 = vtanh.pop %v4135
  %v4261 = vtanh.pop %v4136
  %v4262 = vtanh.pop %v4137
  %v4263 = vtanh.pop %v4138
  %v4264 = vtanh.pop %v4139
  %v4265 = vtanh.pop %v4140
  %v4266 = vtanh.pop %v4141
  %v4267 = vtanh.pop %v4142
  %v4268 = vtanh.pop %v4143
  %v4269 = vtanh.pop %v4144
  %v4270 = vtanh.pop %v4145
  %v4271 = vtanh.pop %v4146
  %v4272 = vtanh.pop %v4147
  %v4273 = vtanh.pop %v4148
  %v4274 = vtanh.pop %v4149
  %v4275 = vtanh.pop %v4150
  %v4276 = vtanh.pop %v4151
  %v4277 = vtanh.pop %v4152
  %v4278 = vtanh.pop %v4153
  %v4279 = vtanh.pop %v4154
  %v4280 = vtanh.pop %v4155
  %v4281 = vtanh.pop %v4156
  %v4282 = vmul.f32 %v4157, 0.5
  %v4283 = vmul.f32 %v4158, 0.5
  %v4284 = vmul.f32 %v4159, 0.5
  %v4285 = vmul.f32 %v4160, 0.5
  %v4286 = vmul.f32 %v4161, 0.5
  %v4287 = vmul.f32 %v4162, 0.5
  %v4288 = vmul.f32 %v4163, 0.5
  %v4289 = vmul.f32 %v4164, 0.5
  %v4290 = vmul.f32 %v4165, 0.5
  %v4291 = vmul.f32 %v4166, 0.5
  %v4292 = vmul.f32 %v4167, 0.5
  %v4293 = vmul.f32 %v4168, 0.5
  %v4294 = vmul.f32 %v4169, 0.5
  %v4295 = vmul.f32 %v4170, 0.5
  %v4296 = vmul.f32 %v4171, 0.5
  %v4297 = vmul.f32 %v4172, 0.5
  %v4298 = vmul.f32 %v4173, 0.5
  %v4299 = vmul.f32 %v4174, 0.5
  %v4300 = vmul.f32 %v4175, 0.5
  %v4301 = vmul.f32 %v4176, 0.5
  %v4302 = vmul.f32 %v4177, 0.5
  %v4303 = vmul.f32 %v4178, 0.5
  %v4304 = vmul.f32 %v4179, 0.5
  %v4305 = vmul.f32 %v4180, 0.5
  %v4306 = vmul.f32 %v4181, 0.5
  %v4307 = vmul.f32 %v4182, 0.5
  %v4308 = vmul.f32 %v4183, 0.5
  %v4309 = vmul.f32 %v4184, 0.5
  %v4310 = vmul.f32 %v4185, 0.5
  %v4311 = vmul.f32 %v4186, 0.5
  %v4312 = vmul.f32 %v4187, 0.5
  %v4313 = vmul.f32 %v4188, 0.5
  %v4314 = vmul.f32 %v4189, 0.5
  %v4315 = vmul.f32 %v4190, 0.5
  %v4316 = vmul.f32 %v4191, 0.5
  %v4317 = vmul.f32 %v4192, 0.5
  %v4318 = vmul.f32 %v4193, 0.5
  %v4319 = vmul.f32 %v4194, 0.5
  %v4320 = vmul.f32 %v4195, 0.5
  %v4321 = vmul.f32 %v4196, 0.5
  %v4322 = vmul.f32 %v4197, 0.5
  %v4323 = vmul.f32 %v4198, 0.5
  %v4324 = vmul.f32 %v4199, 0.5
  %v4325 = vmul.f32 %v4200, 0.5
  %v4326 = vmul.f32 %v4201, 0.5
  %v4327 = vmul.f32 %v4202, 0.5
  %v4328 = vmul.f32 %v4203, 0.5
  %v4329 = vmul.f32 %v4204, 0.5
  %v4330 = vmul.f32 %v4205, 0.5
  %v4331 = vmul.f32 %v4206, 0.5
  %v4332 = vmul.f32 %v4207, 0.5
  %v4333 = vmul.f32 %v4208, 0.5
  %v4334 = vmul.f32 %v4209, 0.5
  %v4335 = vmul.f32 %v4210, 0.5
  %v4336 = vmul.f32 %v4211, 0.5
  %v4337 = vmul.f32 %v4212, 0.5
  %v4338 = vmul.f32 %v4213, 0.5
  %v4339 = vmul.f32 %v4214, 0.5
  %v4340 = vmul.f32 %v4215, 0.5
  %v4341 = vmul.f32 %v4216, 0.5
  %v4342 = vmul.f32 %v4217, 0.5
  %v4343 = vmul.f32 %v4218, 0.5
  %v4344 = vmul.f32 %v4219, 0.5
  %v4345 = vmul.f32 %v4220, 0.5
  %v4346 = vmul.f32 %v4221, 0.5
  %v4347 = vmul.f32 %v4222, 0.5
  %v4348 = vmul.f32 %v4223, 0.5
  %v4349 = vmul.f32 %v4224, 0.5
  %v4350 = vmul.f32 %v4225, 0.5
  %v4351 = vmul.f32 %v4226, 0.5
  %v4352 = vmul.f32 %v4227, 0.5
  %v4353 = vmul.f32 %v4228, 0.5
  %v4354 = vmul.f32 %v4229, 0.5
  %v4355 = vmul.f32 %v4230, 0.5
  %v4356 = vmul.f32 %v4231, 0.5
  %v4357 = vmul.f32 %v4232, 0.5
  %v4358 = vmul.f32 %v4233, 0.5
  %v4359 = vmul.f32 %v4234, 0.5
  %v4360 = vmul.f32 %v4235, 0.5
  %v4361 = vmul.f32 %v4236, 0.5
  %v4362 = vmul.f32 %v4237, 0.5
  %v4363 = vmul.f32 %v4238, 0.5
  %v4364 = vmul.f32 %v4239, 0.5
  %v4365 = vmul.f32 %v4240, 0.5
  %v4366 = vmul.f32 %v4241, 0.5
  %v4367 = vmul.f32 %v4242, 0.5
  %v4368 = vmul.f32 %v4243, 0.5
  %v4369 = vmul.f32 %v4244, 0.5
  %v4370 = vmul.f32 %v4245, 0.5
  %v4371 = vmul.f32 %v4246, 0.5
  %v4372 = vmul.f32 %v4247, 0.5
  %v4373 = vmul.f32 %v4248, 0.5
  %v4374 = vmul.f32 %v4249, 0.5
  %v4375 = vmul.f32 %v4250, 0.5
  %v4376 = vmul.f32 %v4251, 0.5
  %v4377 = vmul.f32 %v4252, 0.5
  %v4378 = vmul.f32 %v4253, 0.5
  %v4379 = vmul.f32 %v4254, 0.5
  %v4380 = vmul.f32 %v4255, 0.5
  %v4381 = vmul.f32 %v4256, 0.5
  %v4382 = vmul.f32 %v4257, 0.5
  %v4383 = vmul.f32 %v4258, 0.5
  %v4384 = vmul.f32 %v4259, 0.5
  %v4385 = vmul.f32 %v4260, 0.5
  %v4386 = vmul.f32 %v4261, 0.5
  %v4387 = vmul.f32 %v4262, 0.5
  %v4388 = vmul.f32 %v4263, 0.5
  %v4389 = vmul.f32 %v4264, 0.5
  %v4390 = vmul.f32 %v4265, 0.5
  %v4391 = vmul.f32 %v4266, 0.5
  %v4392 = vmul.f32 %v4267, 0.5
  %v4393 = vmul.f32 %v4268, 0.5
  %v4394 = vmul.f32 %v4269, 0.5
  %v4395 = vmul.f32 %v4270, 0.5
  %v4396 = vmul.f32 %v4271, 0.5
  %v4397 = vmul.f32 %v4272, 0.5
  %v4398 = vmul.f32 %v4273, 0.5
  %v4399 = vmul.f32 %v4274, 0.5
  %v4400 = vmul.f32 %v4275, 0.5
  %v4401 = vmul.f32 %v4276, 0.5
  %v4402 = vmul.f32 %v4277, 0.5
  %v4403 = vmul.f32 %v4278, 0.5
  %v4404 = vmul.f32 %v4279, 0.5
  %v4405 = vmul.f32 %v4280, 0.5
  %v4406 = vmul.f32 %v4281, 0.5
  %v4407 = vadd.f32 %v4282, 0.5
  %v4408 = vadd.f32 %v4283, 0.5
  %v4409 = vadd.f32 %v4284, 0.5
  %v4410 = vadd.f32 %v4285, 0.5
  %v4411 = vadd.f32 %v4286, 0.5
  %v4412 = vadd.f32 %v4287, 0.5
  %v4413 = vadd.f32 %v4288, 0.5
  %v4414 = vadd.f32 %v4289, 0.5
  %v4415 = vadd.f32 %v4290, 0.5
  %v4416 = vadd.f32 %v4291, 0.5
  %v4417 = vadd.f32 %v4292, 0.5
  %v4418 = vadd.f32 %v4293, 0.5
  %v4419 = vadd.f32 %v4294, 0.5
  %v4420 = vadd.f32 %v4295, 0.5
  %v4421 = vadd.f32 %v4296, 0.5
  %v4422 = vadd.f32 %v4297, 0.5
  %v4423 = vadd.f32 %v4298, 0.5
  %v4424 = vadd.f32 %v4299, 0.5
  %v4425 = vadd.f32 %v4300, 0.5
  %v4426 = vadd.f32 %v4301, 0.5
  %v4427 = vadd.f32 %v4302, 0.5
  %v4428 = vadd.f32 %v4303, 0.5
  %v4429 = vadd.f32 %v4304, 0.5
  %v4430 = vadd.f32 %v4305, 0.5
  %v4431 = vadd.f32 %v4306, 0.5
  %v4432 = vadd.f32 %v4307, 0.5
  %v4433 = vadd.f32 %v4308, 0.5
  %v4434 = vadd.f32 %v4309, 0.5
  %v4435 = vadd.f32 %v4310, 0.5
  %v4436 = vadd.f32 %v4311, 0.5
  %v4437 = vadd.f32 %v4312, 0.5
  %v4438 = vadd.f32 %v4313, 0.5
  %v4439 = vadd.f32 %v4314, 0.5
  %v4440 = vadd.f32 %v4315, 0.5
  %v4441 = vadd.f32 %v4316, 0.5
  %v4442 = vadd.f32 %v4317, 0.5
  %v4443 = vadd.f32 %v4318, 0.5
  %v4444 = vadd.f32 %v4319, 0.5
  %v4445 = vadd.f32 %v4320, 0.5
  %v4446 = vadd.f32 %v4321, 0.5
  %v4447 = vadd.f32 %v4322, 0.5
  %v4448 = vadd.f32 %v4323, 0.5
  %v4449 = vadd.f32 %v4324, 0.5
  %v4450 = vadd.f32 %v4325, 0.5
  %v4451 = vadd.f32 %v4326, 0.5
  %v4452 = vadd.f32 %v4327, 0.5
  %v4453 = vadd.f32 %v4328, 0.5
  %v4454 = vadd.f32 %v4329, 0.5
  %v4455 = vadd.f32 %v4330, 0.5
  %v4456 = vadd.f32 %v4331, 0.5
  %v4457 = vadd.f32 %v4332, 0.5
  %v4458 = vadd.f32 %v4333, 0.5
  %v4459 = vadd.f32 %v4334, 0.5
  %v4460 = vadd.f32 %v4335, 0.5
  %v4461 = vadd.f32 %v4336, 0.5
  %v4462 = vadd.f32 %v4337, 0.5
  %v4463 = vadd.f32 %v4338, 0.5
  %v4464 = vadd.f32 %v4339, 0.5
  %v4465 = vadd.f32 %v4340, 0.5
  %v4466 = vadd.f32 %v4341, 0.5
  %v4467 = vadd.f32 %v4342, 0.5
  %v4468 = vadd.f32 %v4343, 0.5
  %v4469 = vadd.f32 %v4344, 0.5
  %v4470 = vadd.f32 %v4345, 0.5
  %v4471 = vadd.f32 %v4346, 0.5
  %v4472 = vadd.f32 %v4347, 0.5
  %v4473 = vadd.f32 %v4348, 0.5
  %v4474 = vadd.f32 %v4349, 0.5
  %v4475 = vadd.f32 %v4350, 0.5
  %v4476 = vadd.f32 %v4351, 0.5
  %v4477 = vadd.f32 %v4352, 0.5
  %v4478 = vadd.f32 %v4353, 0.5
  %v4479 = vadd.f32 %v4354, 0.5
  %v4480 = vadd.f32 %v4355, 0.5
  %v4481 = vadd.f32 %v4356, 0.5
  %v4482 = vadd.f32 %v4357, 0.5
  %v4483 = vadd.f32 %v4358, 0.5
  %v4484 = vadd.f32 %v4359, 0.5
  %v4485 = vadd.f32 %v4360, 0.5
  %v4486 = vadd.f32 %v4361, 0.5
  %v4487 = vadd.f32 %v4362, 0.5
  %v4488 = vadd.f32 %v4363, 0.5
  %v4489 = vadd.f32 %v4364, 0.5
  %v4490 = vadd.f32 %v4365, 0.5
  %v4491 = vadd.f32 %v4366, 0.5
  %v4492 = vadd.f32 %v4367, 0.5
  %v4493 = vadd.f32 %v4368, 0.5
  %v4494 = vadd.f32 %v4369, 0.5
  %v4495 = vadd.f32 %v4370, 0.5
  %v4496 = vadd.f32 %v4371, 0.5
  %v4497 = vadd.f32 %v4372, 0.5
  %v4498 = vadd.f32 %v4373, 0.5
  %v4499 = vadd.f32 %v4374, 0.5
  %v4500 = vadd.f32 %v4375, 0.5
  %v4501 = vadd.f32 %v4376, 0.5
  %v4502 = vadd.f32 %v4377, 0.5
  %v4503 = vadd.f32 %v4378, 0.5
  %v4504 = vadd.f32 %v4379, 0.5
  %v4505 = vadd.f32 %v4380, 0.5
  %v4506 = vadd.f32 %v4381, 0.5
  %v4507 = vadd.f32 %v4382, 0.5
  %v4508 = vadd.f32 %v4383, 0.5
  %v4509 = vadd.f32 %v4384, 0.5
  %v4510 = vadd.f32 %v4385, 0.5
  %v4511 = vadd.f32 %v4386, 0.5
  %v4512 = vadd.f32 %v4387, 0.5
  %v4513 = vadd.f32 %v4388, 0.5
  %v4514 = vadd.f32 %v4389, 0.5
  %v4515 = vadd.f32 %v4390, 0.5
  %v4516 = vadd.f32 %v4391, 0.5
  %v4517 = vadd.f32 %v4392, 0.5
  %v4518 = vadd.f32 %v4393, 0.5
  %v4519 = vadd.f32 %v4394, 0.5
  %v4520 = vadd.f32 %v4395, 0.5
  %v4521 = vadd.f32 %v4396, 0.5
  %v4522 = vadd.f32 %v4397, 0.5
  %v4523 = vadd.f32 %v4398, 0.5
  %v4524 = vadd.f32 %v4399, 0.5
  %v4525 = vadd.f32 %v4400, 0.5
  %v4526 = vadd.f32 %v4401, 0.5
  %v4527 = vadd.f32 %v4402, 0.5
  %v4528 = vadd.f32 %v4403, 0.5
  %v4529 = vadd.f32 %v4404, 0.5
  %v4530 = vadd.f32 %v4405, 0.5
  %v4531 = vadd.f32 %v4406, 0.5
  %v4532 = vmul.f32 %v3409, %v4407
  %v4533 = vmul.f32 %v3414, %v4408
  %v4534 = vmul.f32 %v3419, %v4409
  %v4535 = vmul.f32 %v3424, %v4410
  %v4536 = vmul.f32 %v3429, %v4411
  %v4537 = vmul.f32 %v3434, %v4412
  %v4538 = vmul.f32 %v3439, %v4413
  %v4539 = vmul.f32 %v3444, %v4414
  %v4540 = vmul.f32 %v3449, %v4415
  %v4541 = vmul.f32 %v3454, %v4416
  %v4542 = vmul.f32 %v3459, %v4417
  %v4543 = vmul.f32 %v3464, %v4418
  %v4544 = vmul.f32 %v3469, %v4419
  %v4545 = vmul.f32 %v3474, %v4420
  %v4546 = vmul.f32 %v3479, %v4421
  %v4547 = vmul.f32 %v3484, %v4422
  %v4548 = vmul.f32 %v3489, %v4423
  %v4549 = vmul.f32 %v3494, %v4424
  %v4550 = vmul.f32 %v3499, %v4425
  %v4551 = vmul.f32 %v3504, %v4426
  %v4552 = vmul.f32 %v3509, %v4427
  %v4553 = vmul.f32 %v3514, %v4428
  %v4554 = vmul.f32 %v3519, %v4429
  %v4555 = vmul.f32 %v3524, %v4430
  %v4556 = vmul.f32 %v3529, %v4431
  %v4557 = vmul.f32 %v3534, %v4432
  %v4558 = vmul.f32 %v3539, %v4433
  %v4559 = vmul.f32 %v3544, %v4434
  %v4560 = vmul.f32 %v3549, %v4435
  %v4561 = vmul.f32 %v3554, %v4436
  %v4562 = vmul.f32 %v3559, %v4437
  %v4563 = vmul.f32 %v3564, %v4438
  %v4564 = vmul.f32 %v3569, %v4439
  %v4565 = vmul.f32 %v3574, %v4440
  %v4566 = vmul.f32 %v3579, %v4441
  %v4567 = vmul.f32 %v3584, %v4442
  %v4568 = vmul.f32 %v3589, %v4443
  %v4569 = vmul.f32 %v3594, %v4444
  %v4570 = vmul.f32 %v3599, %v4445
  %v4571 = vmul.f32 %v3604, %v4446
  %v4572 = vmul.f32 %v3609, %v4447
  %v4573 = vmul.f32 %v3614, %v4448
  %v4574 = vmul.f32 %v3619, %v4449
  %v4575 = vmul.f32 %v3624, %v4450
  %v4576 = vmul.f32 %v3629, %v4451
  %v4577 = vmul.f32 %v3634, %v4452
  %v4578 = vmul.f32 %v3639, %v4453
  %v4579 = vmul.f32 %v3644, %v4454
  %v4580 = vmul.f32 %v3649, %v4455
  %v4581 = vmul.f32 %v3654, %v4456
  %v4582 = vmul.f32 %v3659, %v4457
  %v4583 = vmul.f32 %v3664, %v4458
  %v4584 = vmul.f32 %v3669, %v4459
  %v4585 = vmul.f32 %v3674, %v4460
  %v4586 = vmul.f32 %v3679, %v4461
  %v4587 = vmul.f32 %v3684, %v4462
  %v4588 = vmul.f32 %v3689, %v4463
  %v4589 = vmul.f32 %v3694, %v4464
  %v4590 = vmul.f32 %v3699, %v4465
  %v4591 = vmul.f32 %v3704, %v4466
  %v4592 = vmul.f32 %v3709, %v4467
  %v4593 = vmul.f32 %v3714, %v4468
  %v4594 = vmul.f32 %v3719, %v4469
  %v4595 = vmul.f32 %v3724, %v4470
  %v4596 = vmul.f32 %v3729, %v4471
  %v4597 = vmul.f32 %v3734, %v4472
  %v4598 = vmul.f32 %v3739, %v4473
  %v4599 = vmul.f32 %v3744, %v4474
  %v4600 = vmul.f32 %v3749, %v4475
  %v4601 = vmul.f32 %v3754, %v4476
  %v4602 = vmul.f32 %v3759, %v4477
  %v4603 = vmul.f32 %v3764, %v4478
  %v4604 = vmul.f32 %v3769, %v4479
  %v4605 = vmul.f32 %v3774, %v4480
  %v4606 = vmul.f32 %v3779, %v4481
  %v4607 = vmul.f32 %v3784, %v4482
  %v4608 = vmul.f32 %v3789, %v4483
  %v4609 = vmul.f32 %v3794, %v4484
  %v4610 = vmul.f32 %v3799, %v4485
  %v4611 = vmul.f32 %v3804, %v4486
  %v4612 = vmul.f32 %v3809, %v4487
  %v4613 = vmul.f32 %v3814, %v4488
  %v4614 = vmul.f32 %v3819, %v4489
  %v4615 = vmul.f32 %v3824, %v4490
  %v4616 = vmul.f32 %v3829, %v4491
  %v4617 = vmul.f32 %v3834, %v4492
  %v4618 = vmul.f32 %v3839, %v4493
  %v4619 = vmul.f32 %v3844, %v4494
  %v4620 = vmul.f32 %v3849, %v4495
  %v4621 = vmul.f32 %v3854, %v4496
  %v4622 = vmul.f32 %v3859, %v4497
  %v4623 = vmul.f32 %v3864, %v4498
  %v4624 = vmul.f32 %v3869, %v4499
  %v4625 = vmul.f32 %v3874, %v4500
  %v4626 = vmul.f32 %v3879, %v4501
  %v4627 = vmul.f32 %v3884, %v4502
  %v4628 = vmul.f32 %v3889, %v4503
  %v4629 = vmul.f32 %v3894, %v4504
  %v4630 = vmul.f32 %v3899, %v4505
  %v4631 = vmul.f32 %v3904, %v4506
  %v4632 = vmul.f32 %v3909, %v4507
  %v4633 = vmul.f32 %v3914, %v4508
  %v4634 = vmul.f32 %v3919, %v4509
  %v4635 = vmul.f32 %v3924, %v4510
  %v4636 = vmul.f32 %v3929, %v4511
  %v4637 = vmul.f32 %v3934, %v4512
  %v4638 = vmul.f32 %v3939, %v4513
  %v4639 = vmul.f32 %v3944, %v4514
  %v4640 = vmul.f32 %v3949, %v4515
  %v4641 = vmul.f32 %v3954, %v4516
  %v4642 = vmul.f32 %v3959, %v4517
  %v4643 = vmul.f32 %v3964, %v4518
  %v4644 = vmul.f32 %v3969, %v4519
  %v4645 = vmul.f32 %v3974, %v4520
  %v4646 = vmul.f32 %v3979, %v4521
  %v4647 = vmul.f32 %v3984, %v4522
  %v4648 = vmul.f32 %v3989, %v4523
  %v4649 = vmul.f32 %v3994, %v4524
  %v4650 = vmul.f32 %v3999, %v4525
  %v4651 = vmul.f32 %v4004, %v4526
  %v4652 = vmul.f32 %v4009, %v4527
  %v4653 = vmul.f32 %v4014, %v4528
  %v4654 = vmul.f32 %v4019, %v4529
  %v4655 = vmul.f32 %v4024, %v4530
  %v4656 = vmul.f32 %v4029, %v4531
  %v4657 = vadd.f32 %v4532, %v3192
  %v4658 = vadd.f32 %v4533, %v3193
  %v4659 = vadd.f32 %v4534, %v3194
  %v4660 = vadd.f32 %v4535, %v3195
  %v4661 = vadd.f32 %v4536, %v3196
  %v4662 = vadd.f32 %v4537, %v3197
  %v4663 = vadd.f32 %v4538, %v3198
  %v4664 = vadd.f32 %v4539, %v3199
  %v4665 = vadd.f32 %v4540, %v3200
  %v4666 = vadd.f32 %v4541, %v3201
  %v4667 = vadd.f32 %v4542, %v3202
  %v4668 = vadd.f32 %v4543, %v3203
  %v4669 = vadd.f32 %v4544, %v3204
  %v4670 = vadd.f32 %v4545, %v3205
  %v4671 = vadd.f32 %v4546, %v3206
  %v4672 = vadd.f32 %v4547, %v3207
  %v4673 = vadd.f32 %v4548, %v3208
  %v4674 = vadd.f32 %v4549, %v3209
  %v4675 = vadd.f32 %v4550, %v3210
  %v4676 = vadd.f32 %v4551, %v3211
  %v4677 = vadd.f32 %v4552, %v3212
  %v4678 = vadd.f32 %v4553, %v3213
  %v4679 = vadd.f32 %v4554, %v3214
  %v4680 = vadd.f32 %v4555, %v3215
  %v4681 = vadd.f32 %v4556, %v3216
  %v4682 = vadd.f32 %v4557, %v3217
  %v4683 = vadd.f32 %v4558, %v3218
  %v4684 = vadd.f32 %v4559, %v3219
  %v4685 = vadd.f32 %v4560, %v3220
  %v4686 = vadd.f32 %v4561, %v3221
  %v4687 = vadd.f32 %v4562, %v3222
  %v4688 = vadd.f32 %v4563, %v3223
  %v4689 = vadd.f32 %v4564, %v3224
  %v4690 = vadd.f32 %v4565, %v3225
  %v4691 = vadd.f32 %v4566, %v3226
  %v4692 = vadd.f32 %v4567, %v3227
  %v4693 = vadd.f32 %v4568, %v3228
  %v4694 = vadd.f32 %v4569, %v3229
  %v4695 = vadd.f32 %v4570, %v3230
  %v4696 = vadd.f32 %v4571, %v3231
  %v4697 = vadd.f32 %v4572, %v3232
  %v4698 = vadd.f32 %v4573, %v3233
  %v4699 = vadd.f32 %v4574, %v3234
  %v4700 = vadd.f32 %v4575, %v3235
  %v4701 = vadd.f32 %v4576, %v3236
  %v4702 = vadd.f32 %v4577, %v3237
  %v4703 = vadd.f32 %v4578, %v3238
  %v4704 = vadd.f32 %v4579, %v3239
  %v4705 = vadd.f32 %v4580, %v3240
  %v4706 = vadd.f32 %v4581, %v3241
  %v4707 = vadd.f32 %v4582, %v3242
  %v4708 = vadd.f32 %v4583, %v3243
  %v4709 = vadd.f32 %v4584, %v3244
  %v4710 = vadd.f32 %v4585, %v3245
  %v4711 = vadd.f32 %v4586, %v3246
  %v4712 = vadd.f32 %v4587, %v3247
  %v4713 = vadd.f32 %v4588, %v3248
  %v4714 = vadd.f32 %v4589, %v3249
  %v4715 = vadd.f32 %v4590, %v3250
  %v4716 = vadd.f32 %v4591, %v3251
  %v4717 = vadd.f32 %v4592, %v3252
  %v4718 = vadd.f32 %v4593, %v3253
  %v4719 = vadd.f32 %v4594, %v3254
  %v4720 = vadd.f32 %v4595, %v3255
  %v4721 = vadd.f32 %v4596, %v3256
  %v4722 = vadd.f32 %v4597, %v3257
  %v4723 = vadd.f32 %v4598, %v3258
  %v4724 = vadd.f32 %v4599, %v3259
  %v4725 = vadd.f32 %v4600, %v3260
  %v4726 = vadd.f32 %v4601, %v3261
  %v4727 = vadd.f32 %v4602, %v3262
  %v4728 = vadd.f32 %v4603, %v3263
  %v4729 = vadd.f32 %v4604, %v3264
  %v4730 = vadd.f32 %v4605, %v3265
  %v4731 = vadd.f32 %v4606, %v3266
  %v4732 = vadd.f32 %v4607, %v3267
  %v4733 = vadd.f32 %v4608, %v3268
  %v4734 = vadd.f32 %v4609, %v3269
  %v4735 = vadd.f32 %v4610, %v3270
  %v4736 = vadd.f32 %v4611, %v3271
  %v4737 = vadd.f32 %v4612, %v3272
  %v4738 = vadd.f32 %v4613, %v3273
  %v4739 = vadd.f32 %v4614, %v3274
  %v4740 = vadd.f32 %v4615, %v3275
  %v4741 = vadd.f32 %v4616, %v3276
  %v4742 = vadd.f32 %v4617, %v3277
  %v4743 = vadd.f32 %v4618, %v3278
  %v4744 = vadd.f32 %v4619, %v3279
  %v4745 = vadd.f32 %v4620, %v3280
  %v4746 = vadd.f32 %v4621, %v3281
  %v4747 = vadd.f32 %v4622, %v3282
  %v4748 = vadd.f32 %v4623, %v3283
  %v4749 = vadd.f32 %v4624, %v3284
  %v4750 = vadd.f32 %v4625, %v3285
  %v4751 = vadd.f32 %v4626, %v3286
  %v4752 = vadd.f32 %v4627, %v3287
  %v4753 = vadd.f32 %v4628, %v3288
  %v4754 = vadd.f32 %v4629, %v3289
  %v4755 = vadd.f32 %v4630, %v3290
  %v4756 = vadd.f32 %v4631, %v3291
  %v4757 = vadd.f32 %v4632, %v3292
  %v4758 = vadd.f32 %v4633, %v3293
  %v4759 = vadd.f32 %v4634, %v3294
  %v4760 = vadd.f32 %v4635, %v3295
  %v4761 = vadd.f32 %v4636, %v3296
  %v4762 = vadd.f32 %v4637, %v3297
  %v4763 = vadd.f32 %v4638, %v3298
  %v4764 = vadd.f32 %v4639, %v3299
  %v4765 = vadd.f32 %v4640, %v3300
  %v4766 = vadd.f32 %v4641, %v3301
  %v4767 = vadd.f32 %v4642, %v3302
  %v4768 = vadd.f32 %v4643, %v3303
  %v4769 = vadd.f32 %v4644, %v3304
  %v4770 = vadd.f32 %v4645, %v3305
  %v4771 = vadd.f32 %v4646, %v3306
  %v4772 = vadd.f32 %v4647, %v3307
  %v4773 = vadd.f32 %v4648, %v3308
  %v4774 = vadd.f32 %v4649, %v3309
  %v4775 = vadd.f32 %v4650, %v3310
  %v4776 = vadd.f32 %v4651, %v3311
  %v4777 = vadd.f32 %v4652, %v3312
  %v4778 = vadd.f32 %v4653, %v3313
  %v4779 = vadd.f32 %v4654, %v3314
  %v4780 = vadd.f32 %v4655, %v3315
  %v4781 = vadd.f32 %v4656, %v3316
  %s4782 = scalar_lea.vmem %s3, 256
  %v4783 = vld [vmem:[%s4782] sm:$0xff]
  %v4784 = vld [vmem:[%s4782 + $0x8] sm:$0xff]
  %v4785 = vld [vmem:[%s4782 + $0x10] sm:$0xff]
  %v4786 = vld [vmem:[%s4782 + $0x18] sm:$0xff]
  %v4787 = vld [vmem:[%s4782 + $0x20] sm:$0xff]
  %v4788 = vld [vmem:[%s4782 + $0x28] sm:$0xff]
  %v4789 = vld [vmem:[%s4782 + $0x30] sm:$0xff]
  %v4790 = vld [vmem:[%s4782 + $0x38] sm:$0xff]
  %v4791 = vld [vmem:[%s4782 + $0x40] sm:$0xff]
  %v4792 = vld [vmem:[%s4782 + $0x48] sm:$0xff]
  %v4793 = vld [vmem:[%s4782 + $0x50] sm:$0xff]
  %v4794 = vld [vmem:[%s4782 + $0x58] sm:$0xff]
  %v4795 = vld [vmem:[%s4782 + $0x60] sm:$0xff]
  %v4796 = vld [vmem:[%s4782 + $0x68] sm:$0xff]
  %v4797 = vld [vmem:[%s4782 + $0x70] sm:$0xff]
  %v4798 = vld [vmem:[%s4782 + $0x78] sm:$0xff]
  %s4799 = scalar_lea.vmem %s4, 2
  %v4800 = vld [vmem:[%s4799] sm:$0x1]
  %v4802 = vlaneseq
  %v4803 = vshrl.u32 %v4802, 7
  %v4804 = vsub.s32 0, %v4803
  %v4805 = vrot.slane %v4800, %v4804
  %4807 = vmatprep.subr.mxu0 0.0
  %4808 = vmatpush1.msra.mxu0 %v4798
  %4809 = vmatprep.subr.mxu0 0.0
  %4810 = vmatpush1.msra.mxu0 %v4797
  %4811 = vmatprep.subr.mxu0 0.0
  %4812 = vmatpush1.msra.mxu0 %v4796
  %4813 = vmatprep.subr.mxu0 0.0
  %4814 = vmatpush1.msra.mxu0 %v4795
  %4815 = vmatprep.subr.mxu0 0.0
  %4816 = vmatpush1.msra.mxu0 %v4794
  %4817 = vmatprep.subr.mxu0 0.0
  %4818 = vmatpush1.msra.mxu0 %v4793
  %4819 = vmatprep.subr.mxu0 0.0
  %4820 = vmatpush1.msra.mxu0 %v4792
  %4821 = vmatprep.subr.mxu0 0.0
  %4822 = vmatpush1.msra.mxu0 %v4791
  %4823 = vmatprep.subr.mxu0 0.0
  %4824 = vmatpush1.msra.mxu0 %v4790
  %4825 = vmatprep.subr.mxu0 0.0
  %4826 = vmatpush1.msra.mxu0 %v4789
  %4827 = vmatprep.subr.mxu0 0.0
  %4828 = vmatpush1.msra.mxu0 %v4788
  %4829 = vmatprep.subr.mxu0 0.0
  %4830 = vmatpush1.msra.mxu0 %v4787
  %4831 = vmatprep.subr.mxu0 0.0
  %4832 = vmatpush1.msra.mxu0 %v4786
  %4833 = vmatprep.subr.mxu0 0.0
  %4834 = vmatpush1.msra.mxu0 %v4785
  %4835 = vmatprep.subr.mxu0 0.0
  %4836 = vmatpush1.msra.mxu0 %v4784
  %4837 = vmatprep.subr.mxu0 0.0
  %4838 = vmatpush1.msra.mxu0 %v4783
  %4839 = vmatprep.subr.mxu0 0.0
  %4840 = vmatpush2.msra.mxu0 0.0
  %4841 = vmatprep.subr.mxu0 0.0
  %4842 = vmatpush2.msra.mxu0 0.0
  %4843 = vmatprep.subr.mxu0 0.0
  %4844 = vmatpush2.msra.mxu0 0.0
  %4845 = vmatprep.subr.mxu0 0.0
  %4846 = vmatpush2.msra.mxu0 0.0
  %4847 = vmatprep.subr.mxu0 0.0
  %4848 = vmatpush2.msra.mxu0 0.0
  %4849 = vmatprep.subr.mxu0 0.0
  %4850 = vmatpush2.msra.mxu0 0.0
  %4851 = vmatprep.subr.mxu0 0.0
  %4852 = vmatpush2.msra.mxu0 0.0
  %4853 = vmatprep.subr.mxu0 0.0
  %4854 = vmatpush2.msra.mxu0 0.0
  %4855 = vmatprep.subr.mxu0 0.0
  %4856 = vmatpush2.msra.mxu0 0.0
  %4857 = vmatprep.subr.mxu0 0.0
  %4858 = vmatpush2.msra.mxu0 0.0
  %4859 = vmatprep.subr.mxu0 0.0
  %4860 = vmatpush2.msra.mxu0 0.0
  %4861 = vmatprep.subr.mxu0 0.0
  %4862 = vmatpush2.msra.mxu0 0.0
  %4863 = vmatprep.subr.mxu0 0.0
  %4864 = vmatpush2.msra.mxu0 0.0
  %4865 = vmatprep.subr.mxu0 0.0
  %4866 = vmatpush2.msra.mxu0 0.0
  %4867 = vmatprep.subr.mxu0 0.0
  %4868 = vmatpush2.msra.mxu0 0.0
  %4869 = vmatprep.subr.mxu0 0.0
  %4870 = vmatpush2.msra.mxu0 0.0
  %4871 = vmatprep.mubr.f32.mxu0 0.0
  %4872 = vmatmul.mubr.f32.gmra.mxu0 %v4657
  %v4873 = vpop.f32.mrf.mxu0
  %v4874 = vadd.f32 %v4805, %v4873
  %v4875 = vpop.f32.mrf.mxu0
  %4876 = vmatprep.mubr.f32.mxu0 0.0
  %4877 = vmatmul.mubr.f32.gmra.mxu0 %v4658
  %v4878 = vpop.f32.mrf.mxu0
  %v4879 = vadd.f32 %v4805, %v4878
  %v4880 = vpop.f32.mrf.mxu0
  %4881 = vmatprep.mubr.f32.mxu0 0.0
  %4882 = vmatmul.mubr.f32.gmra.mxu0 %v4659
  %v4883 = vpop.f32.mrf.mxu0
  %v4884 = vadd.f32 %v4805, %v4883
  %v4885 = vpop.f32.mrf.mxu0
  %4886 = vmatprep.mubr.f32.mxu0 0.0
  %4887 = vmatmul.mubr.f32.gmra.mxu0 %v4660
  %v4888 = vpop.f32.mrf.mxu0
  %v4889 = vadd.f32 %v4805, %v4888
  %v4890 = vpop.f32.mrf.mxu0
  %4891 = vmatprep.mubr.f32.mxu0 0.0
  %4892 = vmatmul.mubr.f32.gmra.mxu0 %v4661
  %v4893 = vpop.f32.mrf.mxu0
  %v4894 = vadd.f32 %v4805, %v4893
  %v4895 = vpop.f32.mrf.mxu0
  %4896 = vmatprep.mubr.f32.mxu0 0.0
  %4897 = vmatmul.mubr.f32.gmra.mxu0 %v4662
  %v4898 = vpop.f32.mrf.mxu0
  %v4899 = vadd.f32 %v4805, %v4898
  %v4900 = vpop.f32.mrf.mxu0
  %4901 = vmatprep.mubr.f32.mxu0 0.0
  %4902 = vmatmul.mubr.f32.gmra.mxu0 %v4663
  %v4903 = vpop.f32.mrf.mxu0
  %v4904 = vadd.f32 %v4805, %v4903
  %v4905 = vpop.f32.mrf.mxu0
  %4906 = vmatprep.mubr.f32.mxu0 0.0
  %4907 = vmatmul.mubr.f32.gmra.mxu0 %v4664
  %v4908 = vpop.f32.mrf.mxu0
  %v4909 = vadd.f32 %v4805, %v4908
  %v4910 = vpop.f32.mrf.mxu0
  %4911 = vmatprep.mubr.f32.mxu0 0.0
  %4912 = vmatmul.mubr.f32.gmra.mxu0 %v4665
  %v4913 = vpop.f32.mrf.mxu0
  %v4914 = vadd.f32 %v4805, %v4913
  %v4915 = vpop.f32.mrf.mxu0
  %4916 = vmatprep.mubr.f32.mxu0 0.0
  %4917 = vmatmul.mubr.f32.gmra.mxu0 %v4666
  %v4918 = vpop.f32.mrf.mxu0
  %v4919 = vadd.f32 %v4805, %v4918
  %v4920 = vpop.f32.mrf.mxu0
  %4921 = vmatprep.mubr.f32.mxu0 0.0
  %4922 = vmatmul.mubr.f32.gmra.mxu0 %v4667
  %v4923 = vpop.f32.mrf.mxu0
  %v4924 = vadd.f32 %v4805, %v4923
  %v4925 = vpop.f32.mrf.mxu0
  %4926 = vmatprep.mubr.f32.mxu0 0.0
  %4927 = vmatmul.mubr.f32.gmra.mxu0 %v4668
  %v4928 = vpop.f32.mrf.mxu0
  %v4929 = vadd.f32 %v4805, %v4928
  %v4930 = vpop.f32.mrf.mxu0
  %4931 = vmatprep.mubr.f32.mxu0 0.0
  %4932 = vmatmul.mubr.f32.gmra.mxu0 %v4669
  %v4933 = vpop.f32.mrf.mxu0
  %v4934 = vadd.f32 %v4805, %v4933
  %v4935 = vpop.f32.mrf.mxu0
  %4936 = vmatprep.mubr.f32.mxu0 0.0
  %4937 = vmatmul.mubr.f32.gmra.mxu0 %v4670
  %v4938 = vpop.f32.mrf.mxu0
  %v4939 = vadd.f32 %v4805, %v4938
  %v4940 = vpop.f32.mrf.mxu0
  %4941 = vmatprep.mubr.f32.mxu0 0.0
  %4942 = vmatmul.mubr.f32.gmra.mxu0 %v4671
  %v4943 = vpop.f32.mrf.mxu0
  %v4944 = vadd.f32 %v4805, %v4943
  %v4945 = vpop.f32.mrf.mxu0
  %4946 = vmatprep.mubr.f32.mxu0 0.0
  %4947 = vmatmul.mubr.f32.gmra.mxu0 %v4672
  %v4948 = vpop.f32.mrf.mxu0
  %v4949 = vadd.f32 %v4805, %v4948
  %v4950 = vpop.f32.mrf.mxu0
  %4951 = vmatprep.mubr.f32.mxu0 0.0
  %4952 = vmatmul.mubr.f32.gmra.mxu0 %v4673
  %v4953 = vpop.f32.mrf.mxu0
  %v4954 = vadd.f32 %v4805, %v4953
  %v4955 = vpop.f32.mrf.mxu0
  %4956 = vmatprep.mubr.f32.mxu0 0.0
  %4957 = vmatmul.mubr.f32.gmra.mxu0 %v4674
  %v4958 = vpop.f32.mrf.mxu0
  %v4959 = vadd.f32 %v4805, %v4958
  %v4960 = vpop.f32.mrf.mxu0
  %4961 = vmatprep.mubr.f32.mxu0 0.0
  %4962 = vmatmul.mubr.f32.gmra.mxu0 %v4675
  %v4963 = vpop.f32.mrf.mxu0
  %v4964 = vadd.f32 %v4805, %v4963
  %v4965 = vpop.f32.mrf.mxu0
  %4966 = vmatprep.mubr.f32.mxu0 0.0
  %4967 = vmatmul.mubr.f32.gmra.mxu0 %v4676
  %v4968 = vpop.f32.mrf.mxu0
  %v4969 = vadd.f32 %v4805, %v4968
  %v4970 = vpop.f32.mrf.mxu0
  %4971 = vmatprep.mubr.f32.mxu0 0.0
  %4972 = vmatmul.mubr.f32.gmra.mxu0 %v4677
  %v4973 = vpop.f32.mrf.mxu0
  %v4974 = vadd.f32 %v4805, %v4973
  %v4975 = vpop.f32.mrf.mxu0
  %4976 = vmatprep.mubr.f32.mxu0 0.0
  %4977 = vmatmul.mubr.f32.gmra.mxu0 %v4678
  %v4978 = vpop.f32.mrf.mxu0
  %v4979 = vadd.f32 %v4805, %v4978
  %v4980 = vpop.f32.mrf.mxu0
  %4981 = vmatprep.mubr.f32.mxu0 0.0
  %4982 = vmatmul.mubr.f32.gmra.mxu0 %v4679
  %v4983 = vpop.f32.mrf.mxu0
  %v4984 = vadd.f32 %v4805, %v4983
  %v4985 = vpop.f32.mrf.mxu0
  %4986 = vmatprep.mubr.f32.mxu0 0.0
  %4987 = vmatmul.mubr.f32.gmra.mxu0 %v4680
  %v4988 = vpop.f32.mrf.mxu0
  %v4989 = vadd.f32 %v4805, %v4988
  %v4990 = vpop.f32.mrf.mxu0
  %4991 = vmatprep.mubr.f32.mxu0 0.0
  %4992 = vmatmul.mubr.f32.gmra.mxu0 %v4681
  %v4993 = vpop.f32.mrf.mxu0
  %v4994 = vadd.f32 %v4805, %v4993
  %v4995 = vpop.f32.mrf.mxu0
  %4996 = vmatprep.mubr.f32.mxu0 0.0
  %4997 = vmatmul.mubr.f32.gmra.mxu0 %v4682
  %v4998 = vpop.f32.mrf.mxu0
  %v4999 = vadd.f32 %v4805, %v4998
  %v5000 = vpop.f32.mrf.mxu0
  %5001 = vmatprep.mubr.f32.mxu0 0.0
  %5002 = vmatmul.mubr.f32.gmra.mxu0 %v4683
  %v5003 = vpop.f32.mrf.mxu0
  %v5004 = vadd.f32 %v4805, %v5003
  %v5005 = vpop.f32.mrf.mxu0
  %5006 = vmatprep.mubr.f32.mxu0 0.0
  %5007 = vmatmul.mubr.f32.gmra.mxu0 %v4684
  %v5008 = vpop.f32.mrf.mxu0
  %v5009 = vadd.f32 %v4805, %v5008
  %v5010 = vpop.f32.mrf.mxu0
  %5011 = vmatprep.mubr.f32.mxu0 0.0
  %5012 = vmatmul.mubr.f32.gmra.mxu0 %v4685
  %v5013 = vpop.f32.mrf.mxu0
  %v5014 = vadd.f32 %v4805, %v5013
  %v5015 = vpop.f32.mrf.mxu0
  %5016 = vmatprep.mubr.f32.mxu0 0.0
  %5017 = vmatmul.mubr.f32.gmra.mxu0 %v4686
  %v5018 = vpop.f32.mrf.mxu0
  %v5019 = vadd.f32 %v4805, %v5018
  %v5020 = vpop.f32.mrf.mxu0
  %5021 = vmatprep.mubr.f32.mxu0 0.0
  %5022 = vmatmul.mubr.f32.gmra.mxu0 %v4687
  %v5023 = vpop.f32.mrf.mxu0
  %v5024 = vadd.f32 %v4805, %v5023
  %v5025 = vpop.f32.mrf.mxu0
  %5026 = vmatprep.mubr.f32.mxu0 0.0
  %5027 = vmatmul.mubr.f32.gmra.mxu0 %v4688
  %v5028 = vpop.f32.mrf.mxu0
  %v5029 = vadd.f32 %v4805, %v5028
  %v5030 = vpop.f32.mrf.mxu0
  %5031 = vmatprep.mubr.f32.mxu0 0.0
  %5032 = vmatmul.mubr.f32.gmra.mxu0 %v4689
  %v5033 = vpop.f32.mrf.mxu0
  %v5034 = vadd.f32 %v4805, %v5033
  %v5035 = vpop.f32.mrf.mxu0
  %5036 = vmatprep.mubr.f32.mxu0 0.0
  %5037 = vmatmul.mubr.f32.gmra.mxu0 %v4690
  %v5038 = vpop.f32.mrf.mxu0
  %v5039 = vadd.f32 %v4805, %v5038
  %v5040 = vpop.f32.mrf.mxu0
  %5041 = vmatprep.mubr.f32.mxu0 0.0
  %5042 = vmatmul.mubr.f32.gmra.mxu0 %v4691
  %v5043 = vpop.f32.mrf.mxu0
  %v5044 = vadd.f32 %v4805, %v5043
  %v5045 = vpop.f32.mrf.mxu0
  %5046 = vmatprep.mubr.f32.mxu0 0.0
  %5047 = vmatmul.mubr.f32.gmra.mxu0 %v4692
  %v5048 = vpop.f32.mrf.mxu0
  %v5049 = vadd.f32 %v4805, %v5048
  %v5050 = vpop.f32.mrf.mxu0
  %5051 = vmatprep.mubr.f32.mxu0 0.0
  %5052 = vmatmul.mubr.f32.gmra.mxu0 %v4693
  %v5053 = vpop.f32.mrf.mxu0
  %v5054 = vadd.f32 %v4805, %v5053
  %v5055 = vpop.f32.mrf.mxu0
  %5056 = vmatprep.mubr.f32.mxu0 0.0
  %5057 = vmatmul.mubr.f32.gmra.mxu0 %v4694
  %v5058 = vpop.f32.mrf.mxu0
  %v5059 = vadd.f32 %v4805, %v5058
  %v5060 = vpop.f32.mrf.mxu0
  %5061 = vmatprep.mubr.f32.mxu0 0.0
  %5062 = vmatmul.mubr.f32.gmra.mxu0 %v4695
  %v5063 = vpop.f32.mrf.mxu0
  %v5064 = vadd.f32 %v4805, %v5063
  %v5065 = vpop.f32.mrf.mxu0
  %5066 = vmatprep.mubr.f32.mxu0 0.0
  %5067 = vmatmul.mubr.f32.gmra.mxu0 %v4696
  %v5068 = vpop.f32.mrf.mxu0
  %v5069 = vadd.f32 %v4805, %v5068
  %v5070 = vpop.f32.mrf.mxu0
  %5071 = vmatprep.mubr.f32.mxu0 0.0
  %5072 = vmatmul.mubr.f32.gmra.mxu0 %v4697
  %v5073 = vpop.f32.mrf.mxu0
  %v5074 = vadd.f32 %v4805, %v5073
  %v5075 = vpop.f32.mrf.mxu0
  %5076 = vmatprep.mubr.f32.mxu0 0.0
  %5077 = vmatmul.mubr.f32.gmra.mxu0 %v4698
  %v5078 = vpop.f32.mrf.mxu0
  %v5079 = vadd.f32 %v4805, %v5078
  %v5080 = vpop.f32.mrf.mxu0
  %5081 = vmatprep.mubr.f32.mxu0 0.0
  %5082 = vmatmul.mubr.f32.gmra.mxu0 %v4699
  %v5083 = vpop.f32.mrf.mxu0
  %v5084 = vadd.f32 %v4805, %v5083
  %v5085 = vpop.f32.mrf.mxu0
  %5086 = vmatprep.mubr.f32.mxu0 0.0
  %5087 = vmatmul.mubr.f32.gmra.mxu0 %v4700
  %v5088 = vpop.f32.mrf.mxu0
  %v5089 = vadd.f32 %v4805, %v5088
  %v5090 = vpop.f32.mrf.mxu0
  %5091 = vmatprep.mubr.f32.mxu0 0.0
  %5092 = vmatmul.mubr.f32.gmra.mxu0 %v4701
  %v5093 = vpop.f32.mrf.mxu0
  %v5094 = vadd.f32 %v4805, %v5093
  %v5095 = vpop.f32.mrf.mxu0
  %5096 = vmatprep.mubr.f32.mxu0 0.0
  %5097 = vmatmul.mubr.f32.gmra.mxu0 %v4702
  %v5098 = vpop.f32.mrf.mxu0
  %v5099 = vadd.f32 %v4805, %v5098
  %v5100 = vpop.f32.mrf.mxu0
  %5101 = vmatprep.mubr.f32.mxu0 0.0
  %5102 = vmatmul.mubr.f32.gmra.mxu0 %v4703
  %v5103 = vpop.f32.mrf.mxu0
  %v5104 = vadd.f32 %v4805, %v5103
  %v5105 = vpop.f32.mrf.mxu0
  %5106 = vmatprep.mubr.f32.mxu0 0.0
  %5107 = vmatmul.mubr.f32.gmra.mxu0 %v4704
  %v5108 = vpop.f32.mrf.mxu0
  %v5109 = vadd.f32 %v4805, %v5108
  %v5110 = vpop.f32.mrf.mxu0
  %5111 = vmatprep.mubr.f32.mxu0 0.0
  %5112 = vmatmul.mubr.f32.gmra.mxu0 %v4705
  %v5113 = vpop.f32.mrf.mxu0
  %v5114 = vadd.f32 %v4805, %v5113
  %v5115 = vpop.f32.mrf.mxu0
  %5116 = vmatprep.mubr.f32.mxu0 0.0
  %5117 = vmatmul.mubr.f32.gmra.mxu0 %v4706
  %v5118 = vpop.f32.mrf.mxu0
  %v5119 = vadd.f32 %v4805, %v5118
  %v5120 = vpop.f32.mrf.mxu0
  %5121 = vmatprep.mubr.f32.mxu0 0.0
  %5122 = vmatmul.mubr.f32.gmra.mxu0 %v4707
  %v5123 = vpop.f32.mrf.mxu0
  %v5124 = vadd.f32 %v4805, %v5123
  %v5125 = vpop.f32.mrf.mxu0
  %5126 = vmatprep.mubr.f32.mxu0 0.0
  %5127 = vmatmul.mubr.f32.gmra.mxu0 %v4708
  %v5128 = vpop.f32.mrf.mxu0
  %v5129 = vadd.f32 %v4805, %v5128
  %v5130 = vpop.f32.mrf.mxu0
  %5131 = vmatprep.mubr.f32.mxu0 0.0
  %5132 = vmatmul.mubr.f32.gmra.mxu0 %v4709
  %v5133 = vpop.f32.mrf.mxu0
  %v5134 = vadd.f32 %v4805, %v5133
  %v5135 = vpop.f32.mrf.mxu0
  %5136 = vmatprep.mubr.f32.mxu0 0.0
  %5137 = vmatmul.mubr.f32.gmra.mxu0 %v4710
  %v5138 = vpop.f32.mrf.mxu0
  %v5139 = vadd.f32 %v4805, %v5138
  %v5140 = vpop.f32.mrf.mxu0
  %5141 = vmatprep.mubr.f32.mxu0 0.0
  %5142 = vmatmul.mubr.f32.gmra.mxu0 %v4711
  %v5143 = vpop.f32.mrf.mxu0
  %v5144 = vadd.f32 %v4805, %v5143
  %v5145 = vpop.f32.mrf.mxu0
  %5146 = vmatprep.mubr.f32.mxu0 0.0
  %5147 = vmatmul.mubr.f32.gmra.mxu0 %v4712
  %v5148 = vpop.f32.mrf.mxu0
  %v5149 = vadd.f32 %v4805, %v5148
  %v5150 = vpop.f32.mrf.mxu0
  %5151 = vmatprep.mubr.f32.mxu0 0.0
  %5152 = vmatmul.mubr.f32.gmra.mxu0 %v4713
  %v5153 = vpop.f32.mrf.mxu0
  %v5154 = vadd.f32 %v4805, %v5153
  %v5155 = vpop.f32.mrf.mxu0
  %5156 = vmatprep.mubr.f32.mxu0 0.0
  %5157 = vmatmul.mubr.f32.gmra.mxu0 %v4714
  %v5158 = vpop.f32.mrf.mxu0
  %v5159 = vadd.f32 %v4805, %v5158
  %v5160 = vpop.f32.mrf.mxu0
  %5161 = vmatprep.mubr.f32.mxu0 0.0
  %5162 = vmatmul.mubr.f32.gmra.mxu0 %v4715
  %v5163 = vpop.f32.mrf.mxu0
  %v5164 = vadd.f32 %v4805, %v5163
  %v5165 = vpop.f32.mrf.mxu0
  %5166 = vmatprep.mubr.f32.mxu0 0.0
  %5167 = vmatmul.mubr.f32.gmra.mxu0 %v4716
  %v5168 = vpop.f32.mrf.mxu0
  %v5169 = vadd.f32 %v4805, %v5168
  %v5170 = vpop.f32.mrf.mxu0
  %5171 = vmatprep.mubr.f32.mxu0 0.0
  %5172 = vmatmul.mubr.f32.gmra.mxu0 %v4717
  %v5173 = vpop.f32.mrf.mxu0
  %v5174 = vadd.f32 %v4805, %v5173
  %v5175 = vpop.f32.mrf.mxu0
  %5176 = vmatprep.mubr.f32.mxu0 0.0
  %5177 = vmatmul.mubr.f32.gmra.mxu0 %v4718
  %v5178 = vpop.f32.mrf.mxu0
  %v5179 = vadd.f32 %v4805, %v5178
  %v5180 = vpop.f32.mrf.mxu0
  %5181 = vmatprep.mubr.f32.mxu0 0.0
  %5182 = vmatmul.mubr.f32.gmra.mxu0 %v4719
  %v5183 = vpop.f32.mrf.mxu0
  %v5184 = vadd.f32 %v4805, %v5183
  %v5185 = vpop.f32.mrf.mxu0
  %5186 = vmatprep.mubr.f32.mxu0 0.0
  %5187 = vmatmul.mubr.f32.gmra.mxu0 %v4720
  %v5188 = vpop.f32.mrf.mxu0
  %v5189 = vadd.f32 %v4805, %v5188
  %v5190 = vpop.f32.mrf.mxu0
  %5191 = vmatprep.mubr.f32.mxu0 0.0
  %5192 = vmatmul.mubr.f32.gmra.mxu0 %v4721
  %v5193 = vpop.f32.mrf.mxu0
  %v5194 = vadd.f32 %v4805, %v5193
  %v5195 = vpop.f32.mrf.mxu0
  %5196 = vmatprep.mubr.f32.mxu0 0.0
  %5197 = vmatmul.mubr.f32.gmra.mxu0 %v4722
  %v5198 = vpop.f32.mrf.mxu0
  %v5199 = vadd.f32 %v4805, %v5198
  %v5200 = vpop.f32.mrf.mxu0
  %5201 = vmatprep.mubr.f32.mxu0 0.0
  %5202 = vmatmul.mubr.f32.gmra.mxu0 %v4723
  %v5203 = vpop.f32.mrf.mxu0
  %v5204 = vadd.f32 %v4805, %v5203
  %v5205 = vpop.f32.mrf.mxu0
  %5206 = vmatprep.mubr.f32.mxu0 0.0
  %5207 = vmatmul.mubr.f32.gmra.mxu0 %v4724
  %v5208 = vpop.f32.mrf.mxu0
  %v5209 = vadd.f32 %v4805, %v5208
  %v5210 = vpop.f32.mrf.mxu0
  %5211 = vmatprep.mubr.f32.mxu0 0.0
  %5212 = vmatmul.mubr.f32.gmra.mxu0 %v4725
  %v5213 = vpop.f32.mrf.mxu0
  %v5214 = vadd.f32 %v4805, %v5213
  %v5215 = vpop.f32.mrf.mxu0
  %5216 = vmatprep.mubr.f32.mxu0 0.0
  %5217 = vmatmul.mubr.f32.gmra.mxu0 %v4726
  %v5218 = vpop.f32.mrf.mxu0
  %v5219 = vadd.f32 %v4805, %v5218
  %v5220 = vpop.f32.mrf.mxu0
  %5221 = vmatprep.mubr.f32.mxu0 0.0
  %5222 = vmatmul.mubr.f32.gmra.mxu0 %v4727
  %v5223 = vpop.f32.mrf.mxu0
  %v5224 = vadd.f32 %v4805, %v5223
  %v5225 = vpop.f32.mrf.mxu0
  %5226 = vmatprep.mubr.f32.mxu0 0.0
  %5227 = vmatmul.mubr.f32.gmra.mxu0 %v4728
  %v5228 = vpop.f32.mrf.mxu0
  %v5229 = vadd.f32 %v4805, %v5228
  %v5230 = vpop.f32.mrf.mxu0
  %5231 = vmatprep.mubr.f32.mxu0 0.0
  %5232 = vmatmul.mubr.f32.gmra.mxu0 %v4729
  %v5233 = vpop.f32.mrf.mxu0
  %v5234 = vadd.f32 %v4805, %v5233
  %v5235 = vpop.f32.mrf.mxu0
  %5236 = vmatprep.mubr.f32.mxu0 0.0
  %5237 = vmatmul.mubr.f32.gmra.mxu0 %v4730
  %v5238 = vpop.f32.mrf.mxu0
  %v5239 = vadd.f32 %v4805, %v5238
  %v5240 = vpop.f32.mrf.mxu0
  %5241 = vmatprep.mubr.f32.mxu0 0.0
  %5242 = vmatmul.mubr.f32.gmra.mxu0 %v4731
  %v5243 = vpop.f32.mrf.mxu0
  %v5244 = vadd.f32 %v4805, %v5243
  %v5245 = vpop.f32.mrf.mxu0
  %5246 = vmatprep.mubr.f32.mxu0 0.0
  %5247 = vmatmul.mubr.f32.gmra.mxu0 %v4732
  %v5248 = vpop.f32.mrf.mxu0
  %v5249 = vadd.f32 %v4805, %v5248
  %v5250 = vpop.f32.mrf.mxu0
  %5251 = vmatprep.mubr.f32.mxu0 0.0
  %5252 = vmatmul.mubr.f32.gmra.mxu0 %v4733
  %v5253 = vpop.f32.mrf.mxu0
  %v5254 = vadd.f32 %v4805, %v5253
  %v5255 = vpop.f32.mrf.mxu0
  %5256 = vmatprep.mubr.f32.mxu0 0.0
  %5257 = vmatmul.mubr.f32.gmra.mxu0 %v4734
  %v5258 = vpop.f32.mrf.mxu0
  %v5259 = vadd.f32 %v4805, %v5258
  %v5260 = vpop.f32.mrf.mxu0
  %5261 = vmatprep.mubr.f32.mxu0 0.0
  %5262 = vmatmul.mubr.f32.gmra.mxu0 %v4735
  %v5263 = vpop.f32.mrf.mxu0
  %v5264 = vadd.f32 %v4805, %v5263
  %v5265 = vpop.f32.mrf.mxu0
  %5266 = vmatprep.mubr.f32.mxu0 0.0
  %5267 = vmatmul.mubr.f32.gmra.mxu0 %v4736
  %v5268 = vpop.f32.mrf.mxu0
  %v5269 = vadd.f32 %v4805, %v5268
  %v5270 = vpop.f32.mrf.mxu0
  %5271 = vmatprep.mubr.f32.mxu0 0.0
  %5272 = vmatmul.mubr.f32.gmra.mxu0 %v4737
  %v5273 = vpop.f32.mrf.mxu0
  %v5274 = vadd.f32 %v4805, %v5273
  %v5275 = vpop.f32.mrf.mxu0
  %5276 = vmatprep.mubr.f32.mxu0 0.0
  %5277 = vmatmul.mubr.f32.gmra.mxu0 %v4738
  %v5278 = vpop.f32.mrf.mxu0
  %v5279 = vadd.f32 %v4805, %v5278
  %v5280 = vpop.f32.mrf.mxu0
  %5281 = vmatprep.mubr.f32.mxu0 0.0
  %5282 = vmatmul.mubr.f32.gmra.mxu0 %v4739
  %v5283 = vpop.f32.mrf.mxu0
  %v5284 = vadd.f32 %v4805, %v5283
  %v5285 = vpop.f32.mrf.mxu0
  %5286 = vmatprep.mubr.f32.mxu0 0.0
  %5287 = vmatmul.mubr.f32.gmra.mxu0 %v4740
  %v5288 = vpop.f32.mrf.mxu0
  %v5289 = vadd.f32 %v4805, %v5288
  %v5290 = vpop.f32.mrf.mxu0
  %5291 = vmatprep.mubr.f32.mxu0 0.0
  %5292 = vmatmul.mubr.f32.gmra.mxu0 %v4741
  %v5293 = vpop.f32.mrf.mxu0
  %v5294 = vadd.f32 %v4805, %v5293
  %v5295 = vpop.f32.mrf.mxu0
  %5296 = vmatprep.mubr.f32.mxu0 0.0
  %5297 = vmatmul.mubr.f32.gmra.mxu0 %v4742
  %v5298 = vpop.f32.mrf.mxu0
  %v5299 = vadd.f32 %v4805, %v5298
  %v5300 = vpop.f32.mrf.mxu0
  %5301 = vmatprep.mubr.f32.mxu0 0.0
  %5302 = vmatmul.mubr.f32.gmra.mxu0 %v4743
  %v5303 = vpop.f32.mrf.mxu0
  %v5304 = vadd.f32 %v4805, %v5303
  %v5305 = vpop.f32.mrf.mxu0
  %5306 = vmatprep.mubr.f32.mxu0 0.0
  %5307 = vmatmul.mubr.f32.gmra.mxu0 %v4744
  %v5308 = vpop.f32.mrf.mxu0
  %v5309 = vadd.f32 %v4805, %v5308
  %v5310 = vpop.f32.mrf.mxu0
  %5311 = vmatprep.mubr.f32.mxu0 0.0
  %5312 = vmatmul.mubr.f32.gmra.mxu0 %v4745
  %v5313 = vpop.f32.mrf.mxu0
  %v5314 = vadd.f32 %v4805, %v5313
  %v5315 = vpop.f32.mrf.mxu0
  %5316 = vmatprep.mubr.f32.mxu0 0.0
  %5317 = vmatmul.mubr.f32.gmra.mxu0 %v4746
  %v5318 = vpop.f32.mrf.mxu0
  %v5319 = vadd.f32 %v4805, %v5318
  %v5320 = vpop.f32.mrf.mxu0
  %5321 = vmatprep.mubr.f32.mxu0 0.0
  %5322 = vmatmul.mubr.f32.gmra.mxu0 %v4747
  %v5323 = vpop.f32.mrf.mxu0
  %v5324 = vadd.f32 %v4805, %v5323
  %v5325 = vpop.f32.mrf.mxu0
  %5326 = vmatprep.mubr.f32.mxu0 0.0
  %5327 = vmatmul.mubr.f32.gmra.mxu0 %v4748
  %v5328 = vpop.f32.mrf.mxu0
  %v5329 = vadd.f32 %v4805, %v5328
  %v5330 = vpop.f32.mrf.mxu0
  %5331 = vmatprep.mubr.f32.mxu0 0.0
  %5332 = vmatmul.mubr.f32.gmra.mxu0 %v4749
  %v5333 = vpop.f32.mrf.mxu0
  %v5334 = vadd.f32 %v4805, %v5333
  %v5335 = vpop.f32.mrf.mxu0
  %5336 = vmatprep.mubr.f32.mxu0 0.0
  %5337 = vmatmul.mubr.f32.gmra.mxu0 %v4750
  %v5338 = vpop.f32.mrf.mxu0
  %v5339 = vadd.f32 %v4805, %v5338
  %v5340 = vpop.f32.mrf.mxu0
  %5341 = vmatprep.mubr.f32.mxu0 0.0
  %5342 = vmatmul.mubr.f32.gmra.mxu0 %v4751
  %v5343 = vpop.f32.mrf.mxu0
  %v5344 = vadd.f32 %v4805, %v5343
  %v5345 = vpop.f32.mrf.mxu0
  %5346 = vmatprep.mubr.f32.mxu0 0.0
  %5347 = vmatmul.mubr.f32.gmra.mxu0 %v4752
  %v5348 = vpop.f32.mrf.mxu0
  %v5349 = vadd.f32 %v4805, %v5348
  %v5350 = vpop.f32.mrf.mxu0
  %5351 = vmatprep.mubr.f32.mxu0 0.0
  %5352 = vmatmul.mubr.f32.gmra.mxu0 %v4753
  %v5353 = vpop.f32.mrf.mxu0
  %v5354 = vadd.f32 %v4805, %v5353
  %v5355 = vpop.f32.mrf.mxu0
  %5356 = vmatprep.mubr.f32.mxu0 0.0
  %5357 = vmatmul.mubr.f32.gmra.mxu0 %v4754
  %v5358 = vpop.f32.mrf.mxu0
  %v5359 = vadd.f32 %v4805, %v5358
  %v5360 = vpop.f32.mrf.mxu0
  %5361 = vmatprep.mubr.f32.mxu0 0.0
  %5362 = vmatmul.mubr.f32.gmra.mxu0 %v4755
  %v5363 = vpop.f32.mrf.mxu0
  %v5364 = vadd.f32 %v4805, %v5363
  %v5365 = vpop.f32.mrf.mxu0
  %5366 = vmatprep.mubr.f32.mxu0 0.0
  %5367 = vmatmul.mubr.f32.gmra.mxu0 %v4756
  %v5368 = vpop.f32.mrf.mxu0
  %v5369 = vadd.f32 %v4805, %v5368
  %v5370 = vpop.f32.mrf.mxu0
  %5371 = vmatprep.mubr.f32.mxu0 0.0
  %5372 = vmatmul.mubr.f32.gmra.mxu0 %v4757
  %v5373 = vpop.f32.mrf.mxu0
  %v5374 = vadd.f32 %v4805, %v5373
  %v5375 = vpop.f32.mrf.mxu0
  %5376 = vmatprep.mubr.f32.mxu0 0.0
  %5377 = vmatmul.mubr.f32.gmra.mxu0 %v4758
  %v5378 = vpop.f32.mrf.mxu0
  %v5379 = vadd.f32 %v4805, %v5378
  %v5380 = vpop.f32.mrf.mxu0
  %5381 = vmatprep.mubr.f32.mxu0 0.0
  %5382 = vmatmul.mubr.f32.gmra.mxu0 %v4759
  %v5383 = vpop.f32.mrf.mxu0
  %v5384 = vadd.f32 %v4805, %v5383
  %v5385 = vpop.f32.mrf.mxu0
  %5386 = vmatprep.mubr.f32.mxu0 0.0
  %5387 = vmatmul.mubr.f32.gmra.mxu0 %v4760
  %v5388 = vpop.f32.mrf.mxu0
  %v5389 = vadd.f32 %v4805, %v5388
  %v5390 = vpop.f32.mrf.mxu0
  %5391 = vmatprep.mubr.f32.mxu0 0.0
  %5392 = vmatmul.mubr.f32.gmra.mxu0 %v4761
  %v5393 = vpop.f32.mrf.mxu0
  %v5394 = vadd.f32 %v4805, %v5393
  %v5395 = vpop.f32.mrf.mxu0
  %5396 = vmatprep.mubr.f32.mxu0 0.0
  %5397 = vmatmul.mubr.f32.gmra.mxu0 %v4762
  %v5398 = vpop.f32.mrf.mxu0
  %v5399 = vadd.f32 %v4805, %v5398
  %v5400 = vpop.f32.mrf.mxu0
  %5401 = vmatprep.mubr.f32.mxu0 0.0
  %5402 = vmatmul.mubr.f32.gmra.mxu0 %v4763
  %v5403 = vpop.f32.mrf.mxu0
  %v5404 = vadd.f32 %v4805, %v5403
  %v5405 = vpop.f32.mrf.mxu0
  %5406 = vmatprep.mubr.f32.mxu0 0.0
  %5407 = vmatmul.mubr.f32.gmra.mxu0 %v4764
  %v5408 = vpop.f32.mrf.mxu0
  %v5409 = vadd.f32 %v4805, %v5408
  %v5410 = vpop.f32.mrf.mxu0
  %5411 = vmatprep.mubr.f32.mxu0 0.0
  %5412 = vmatmul.mubr.f32.gmra.mxu0 %v4765
  %v5413 = vpop.f32.mrf.mxu0
  %v5414 = vadd.f32 %v4805, %v5413
  %v5415 = vpop.f32.mrf.mxu0
  %5416 = vmatprep.mubr.f32.mxu0 0.0
  %5417 = vmatmul.mubr.f32.gmra.mxu0 %v4766
  %v5418 = vpop.f32.mrf.mxu0
  %v5419 = vadd.f32 %v4805, %v5418
  %v5420 = vpop.f32.mrf.mxu0
  %5421 = vmatprep.mubr.f32.mxu0 0.0
  %5422 = vmatmul.mubr.f32.gmra.mxu0 %v4767
  %v5423 = vpop.f32.mrf.mxu0
  %v5424 = vadd.f32 %v4805, %v5423
  %v5425 = vpop.f32.mrf.mxu0
  %5426 = vmatprep.mubr.f32.mxu0 0.0
  %5427 = vmatmul.mubr.f32.gmra.mxu0 %v4768
  %v5428 = vpop.f32.mrf.mxu0
  %v5429 = vadd.f32 %v4805, %v5428
  %v5430 = vpop.f32.mrf.mxu0
  %5431 = vmatprep.mubr.f32.mxu0 0.0
  %5432 = vmatmul.mubr.f32.gmra.mxu0 %v4769
  %v5433 = vpop.f32.mrf.mxu0
  %v5434 = vadd.f32 %v4805, %v5433
  %v5435 = vpop.f32.mrf.mxu0
  %5436 = vmatprep.mubr.f32.mxu0 0.0
  %5437 = vmatmul.mubr.f32.gmra.mxu0 %v4770
  %v5438 = vpop.f32.mrf.mxu0
  %v5439 = vadd.f32 %v4805, %v5438
  %v5440 = vpop.f32.mrf.mxu0
  %5441 = vmatprep.mubr.f32.mxu0 0.0
  %5442 = vmatmul.mubr.f32.gmra.mxu0 %v4771
  %v5443 = vpop.f32.mrf.mxu0
  %v5444 = vadd.f32 %v4805, %v5443
  %v5445 = vpop.f32.mrf.mxu0
  %5446 = vmatprep.mubr.f32.mxu0 0.0
  %5447 = vmatmul.mubr.f32.gmra.mxu0 %v4772
  %v5448 = vpop.f32.mrf.mxu0
  %v5449 = vadd.f32 %v4805, %v5448
  %v5450 = vpop.f32.mrf.mxu0
  %5451 = vmatprep.mubr.f32.mxu0 0.0
  %5452 = vmatmul.mubr.f32.gmra.mxu0 %v4773
  %v5453 = vpop.f32.mrf.mxu0
  %v5454 = vadd.f32 %v4805, %v5453
  %v5455 = vpop.f32.mrf.mxu0
  %5456 = vmatprep.mubr.f32.mxu0 0.0
  %5457 = vmatmul.mubr.f32.gmra.mxu0 %v4774
  %v5458 = vpop.f32.mrf.mxu0
  %v5459 = vadd.f32 %v4805, %v5458
  %v5460 = vpop.f32.mrf.mxu0
  %5461 = vmatprep.mubr.f32.mxu0 0.0
  %5462 = vmatmul.mubr.f32.gmra.mxu0 %v4775
  %v5463 = vpop.f32.mrf.mxu0
  %v5464 = vadd.f32 %v4805, %v5463
  %v5465 = vpop.f32.mrf.mxu0
  %5466 = vmatprep.mubr.f32.mxu0 0.0
  %5467 = vmatmul.mubr.f32.gmra.mxu0 %v4776
  %v5468 = vpop.f32.mrf.mxu0
  %v5469 = vadd.f32 %v4805, %v5468
  %v5470 = vpop.f32.mrf.mxu0
  %5471 = vmatprep.mubr.f32.mxu0 0.0
  %5472 = vmatmul.mubr.f32.gmra.mxu0 %v4777
  %v5473 = vpop.f32.mrf.mxu0
  %v5474 = vadd.f32 %v4805, %v5473
  %v5475 = vpop.f32.mrf.mxu0
  %5476 = vmatprep.mubr.f32.mxu0 0.0
  %5477 = vmatmul.mubr.f32.gmra.mxu0 %v4778
  %v5478 = vpop.f32.mrf.mxu0
  %v5479 = vadd.f32 %v4805, %v5478
  %v5480 = vpop.f32.mrf.mxu0
  %5481 = vmatprep.mubr.f32.mxu0 0.0
  %5482 = vmatmul.mubr.f32.gmra.mxu0 %v4779
  %v5483 = vpop.f32.mrf.mxu0
  %v5484 = vadd.f32 %v4805, %v5483
  %v5485 = vpop.f32.mrf.mxu0
  %5486 = vmatprep.mubr.f32.mxu0 0.0
  %5487 = vmatmul.mubr.f32.gmra.mxu0 %v4780
  %v5488 = vpop.f32.mrf.mxu0
  %v5489 = vadd.f32 %v4805, %v5488
  %v5490 = vpop.f32.mrf.mxu0
  %5491 = vmatprep.mubr.f32.mxu0 0.0
  %5492 = vmatmul.mubr.f32.gmra.mxu0 %v4781
  %v5493 = vpop.f32.mrf.mxu0
  %v5494 = vadd.f32 %v4805, %v5493
  %v5495 = vpop.f32.mrf.mxu0
  %5496 = vdwg.mxu0
  %v5497 = vmul.f32 %v4874, 0.5
  %v5498 = vmul.f32 %v4879, 0.5
  %v5499 = vmul.f32 %v4884, 0.5
  %v5500 = vmul.f32 %v4889, 0.5
  %v5501 = vmul.f32 %v4894, 0.5
  %v5502 = vmul.f32 %v4899, 0.5
  %v5503 = vmul.f32 %v4904, 0.5
  %v5504 = vmul.f32 %v4909, 0.5
  %v5505 = vmul.f32 %v4914, 0.5
  %v5506 = vmul.f32 %v4919, 0.5
  %v5507 = vmul.f32 %v4924, 0.5
  %v5508 = vmul.f32 %v4929, 0.5
  %v5509 = vmul.f32 %v4934, 0.5
  %v5510 = vmul.f32 %v4939, 0.5
  %v5511 = vmul.f32 %v4944, 0.5
  %v5512 = vmul.f32 %v4949, 0.5
  %v5513 = vmul.f32 %v4954, 0.5
  %v5514 = vmul.f32 %v4959, 0.5
  %v5515 = vmul.f32 %v4964, 0.5
  %v5516 = vmul.f32 %v4969, 0.5
  %v5517 = vmul.f32 %v4974, 0.5
  %v5518 = vmul.f32 %v4979, 0.5
  %v5519 = vmul.f32 %v4984, 0.5
  %v5520 = vmul.f32 %v4989, 0.5
  %v5521 = vmul.f32 %v4994, 0.5
  %v5522 = vmul.f32 %v4999, 0.5
  %v5523 = vmul.f32 %v5004, 0.5
  %v5524 = vmul.f32 %v5009, 0.5
  %v5525 = vmul.f32 %v5014, 0.5
  %v5526 = vmul.f32 %v5019, 0.5
  %v5527 = vmul.f32 %v5024, 0.5
  %v5528 = vmul.f32 %v5029, 0.5
  %v5529 = vmul.f32 %v5034, 0.5
  %v5530 = vmul.f32 %v5039, 0.5
  %v5531 = vmul.f32 %v5044, 0.5
  %v5532 = vmul.f32 %v5049, 0.5
  %v5533 = vmul.f32 %v5054, 0.5
  %v5534 = vmul.f32 %v5059, 0.5
  %v5535 = vmul.f32 %v5064, 0.5
  %v5536 = vmul.f32 %v5069, 0.5
  %v5537 = vmul.f32 %v5074, 0.5
  %v5538 = vmul.f32 %v5079, 0.5
  %v5539 = vmul.f32 %v5084, 0.5
  %v5540 = vmul.f32 %v5089, 0.5
  %v5541 = vmul.f32 %v5094, 0.5
  %v5542 = vmul.f32 %v5099, 0.5
  %v5543 = vmul.f32 %v5104, 0.5
  %v5544 = vmul.f32 %v5109, 0.5
  %v5545 = vmul.f32 %v5114, 0.5
  %v5546 = vmul.f32 %v5119, 0.5
  %v5547 = vmul.f32 %v5124, 0.5
  %v5548 = vmul.f32 %v5129, 0.5
  %v5549 = vmul.f32 %v5134, 0.5
  %v5550 = vmul.f32 %v5139, 0.5
  %v5551 = vmul.f32 %v5144, 0.5
  %v5552 = vmul.f32 %v5149, 0.5
  %v5553 = vmul.f32 %v5154, 0.5
  %v5554 = vmul.f32 %v5159, 0.5
  %v5555 = vmul.f32 %v5164, 0.5
  %v5556 = vmul.f32 %v5169, 0.5
  %v5557 = vmul.f32 %v5174, 0.5
  %v5558 = vmul.f32 %v5179, 0.5
  %v5559 = vmul.f32 %v5184, 0.5
  %v5560 = vmul.f32 %v5189, 0.5
  %v5561 = vmul.f32 %v5194, 0.5
  %v5562 = vmul.f32 %v5199, 0.5
  %v5563 = vmul.f32 %v5204, 0.5
  %v5564 = vmul.f32 %v5209, 0.5
  %v5565 = vmul.f32 %v5214, 0.5
  %v5566 = vmul.f32 %v5219, 0.5
  %v5567 = vmul.f32 %v5224, 0.5
  %v5568 = vmul.f32 %v5229, 0.5
  %v5569 = vmul.f32 %v5234, 0.5
  %v5570 = vmul.f32 %v5239, 0.5
  %v5571 = vmul.f32 %v5244, 0.5
  %v5572 = vmul.f32 %v5249, 0.5
  %v5573 = vmul.f32 %v5254, 0.5
  %v5574 = vmul.f32 %v5259, 0.5
  %v5575 = vmul.f32 %v5264, 0.5
  %v5576 = vmul.f32 %v5269, 0.5
  %v5577 = vmul.f32 %v5274, 0.5
  %v5578 = vmul.f32 %v5279, 0.5
  %v5579 = vmul.f32 %v5284, 0.5
  %v5580 = vmul.f32 %v5289, 0.5
  %v5581 = vmul.f32 %v5294, 0.5
  %v5582 = vmul.f32 %v5299, 0.5
  %v5583 = vmul.f32 %v5304, 0.5
  %v5584 = vmul.f32 %v5309, 0.5
  %v5585 = vmul.f32 %v5314, 0.5
  %v5586 = vmul.f32 %v5319, 0.5
  %v5587 = vmul.f32 %v5324, 0.5
  %v5588 = vmul.f32 %v5329, 0.5
  %v5589 = vmul.f32 %v5334, 0.5
  %v5590 = vmul.f32 %v5339, 0.5
  %v5591 = vmul.f32 %v5344, 0.5
  %v5592 = vmul.f32 %v5349, 0.5
  %v5593 = vmul.f32 %v5354, 0.5
  %v5594 = vmul.f32 %v5359, 0.5
  %v5595 = vmul.f32 %v5364, 0.5
  %v5596 = vmul.f32 %v5369, 0.5
  %v5597 = vmul.f32 %v5374, 0.5
  %v5598 = vmul.f32 %v5379, 0.5
  %v5599 = vmul.f32 %v5384, 0.5
  %v5600 = vmul.f32 %v5389, 0.5
  %v5601 = vmul.f32 %v5394, 0.5
  %v5602 = vmul.f32 %v5399, 0.5
  %v5603 = vmul.f32 %v5404, 0.5
  %v5604 = vmul.f32 %v5409, 0.5
  %v5605 = vmul.f32 %v5414, 0.5
  %v5606 = vmul.f32 %v5419, 0.5
  %v5607 = vmul.f32 %v5424, 0.5
  %v5608 = vmul.f32 %v5429, 0.5
  %v5609 = vmul.f32 %v5434, 0.5
  %v5610 = vmul.f32 %v5439, 0.5
  %v5611 = vmul.f32 %v5444, 0.5
  %v5612 = vmul.f32 %v5449, 0.5
  %v5613 = vmul.f32 %v5454, 0.5
  %v5614 = vmul.f32 %v5459, 0.5
  %v5615 = vmul.f32 %v5464, 0.5
  %v5616 = vmul.f32 %v5469, 0.5
  %v5617 = vmul.f32 %v5474, 0.5
  %v5618 = vmul.f32 %v5479, 0.5
  %v5619 = vmul.f32 %v5484, 0.5
  %v5620 = vmul.f32 %v5489, 0.5
  %v5621 = vmul.f32 %v5494, 0.5
  %v5622 = vtanh.pop %v5497
  %v5623 = vtanh.pop %v5498
  %v5624 = vtanh.pop %v5499
  %v5625 = vtanh.pop %v5500
  %v5626 = vtanh.pop %v5501
  %v5627 = vtanh.pop %v5502
  %v5628 = vtanh.pop %v5503
  %v5629 = vtanh.pop %v5504
  %v5630 = vtanh.pop %v5505
  %v5631 = vtanh.pop %v5506
  %v5632 = vtanh.pop %v5507
  %v5633 = vtanh.pop %v5508
  %v5634 = vtanh.pop %v5509
  %v5635 = vtanh.pop %v5510
  %v5636 = vtanh.pop %v5511
  %v5637 = vtanh.pop %v5512
  %v5638 = vtanh.pop %v5513
  %v5639 = vtanh.pop %v5514
  %v5640 = vtanh.pop %v5515
  %v5641 = vtanh.pop %v5516
  %v5642 = vtanh.pop %v5517
  %v5643 = vtanh.pop %v5518
  %v5644 = vtanh.pop %v5519
  %v5645 = vtanh.pop %v5520
  %v5646 = vtanh.pop %v5521
  %v5647 = vtanh.pop %v5522
  %v5648 = vtanh.pop %v5523
  %v5649 = vtanh.pop %v5524
  %v5650 = vtanh.pop %v5525
  %v5651 = vtanh.pop %v5526
  %v5652 = vtanh.pop %v5527
  %v5653 = vtanh.pop %v5528
  %v5654 = vtanh.pop %v5529
  %v5655 = vtanh.pop %v5530
  %v5656 = vtanh.pop %v5531
  %v5657 = vtanh.pop %v5532
  %v5658 = vtanh.pop %v5533
  %v5659 = vtanh.pop %v5534
  %v5660 = vtanh.pop %v5535
  %v5661 = vtanh.pop %v5536
  %v5662 = vtanh.pop %v5537
  %v5663 = vtanh.pop %v5538
  %v5664 = vtanh.pop %v5539
  %v5665 = vtanh.pop %v5540
  %v5666 = vtanh.pop %v5541
  %v5667 = vtanh.pop %v5542
  %v5668 = vtanh.pop %v5543
  %v5669 = vtanh.pop %v5544
  %v5670 = vtanh.pop %v5545
  %v5671 = vtanh.pop %v5546
  %v5672 = vtanh.pop %v5547
  %v5673 = vtanh.pop %v5548
  %v5674 = vtanh.pop %v5549
  %v5675 = vtanh.pop %v5550
  %v5676 = vtanh.pop %v5551
  %v5677 = vtanh.pop %v5552
  %v5678 = vtanh.pop %v5553
  %v5679 = vtanh.pop %v5554
  %v5680 = vtanh.pop %v5555
  %v5681 = vtanh.pop %v5556
  %v5682 = vtanh.pop %v5557
  %v5683 = vtanh.pop %v5558
  %v5684 = vtanh.pop %v5559
  %v5685 = vtanh.pop %v5560
  %v5686 = vtanh.pop %v5561
  %v5687 = vtanh.pop %v5562
  %v5688 = vtanh.pop %v5563
  %v5689 = vtanh.pop %v5564
  %v5690 = vtanh.pop %v5565
  %v5691 = vtanh.pop %v5566
  %v5692 = vtanh.pop %v5567
  %v5693 = vtanh.pop %v5568
  %v5694 = vtanh.pop %v5569
  %v5695 = vtanh.pop %v5570
  %v5696 = vtanh.pop %v5571
  %v5697 = vtanh.pop %v5572
  %v5698 = vtanh.pop %v5573
  %v5699 = vtanh.pop %v5574
  %v5700 = vtanh.pop %v5575
  %v5701 = vtanh.pop %v5576
  %v5702 = vtanh.pop %v5577
  %v5703 = vtanh.pop %v5578
  %v5704 = vtanh.pop %v5579
  %v5705 = vtanh.pop %v5580
  %v5706 = vtanh.pop %v5581
  %v5707 = vtanh.pop %v5582
  %v5708 = vtanh.pop %v5583
  %v5709 = vtanh.pop %v5584
  %v5710 = vtanh.pop %v5585
  %v5711 = vtanh.pop %v5586
  %v5712 = vtanh.pop %v5587
  %v5713 = vtanh.pop %v5588
  %v5714 = vtanh.pop %v5589
  %v5715 = vtanh.pop %v5590
  %v5716 = vtanh.pop %v5591
  %v5717 = vtanh.pop %v5592
  %v5718 = vtanh.pop %v5593
  %v5719 = vtanh.pop %v5594
  %v5720 = vtanh.pop %v5595
  %v5721 = vtanh.pop %v5596
  %v5722 = vtanh.pop %v5597
  %v5723 = vtanh.pop %v5598
  %v5724 = vtanh.pop %v5599
  %v5725 = vtanh.pop %v5600
  %v5726 = vtanh.pop %v5601
  %v5727 = vtanh.pop %v5602
  %v5728 = vtanh.pop %v5603
  %v5729 = vtanh.pop %v5604
  %v5730 = vtanh.pop %v5605
  %v5731 = vtanh.pop %v5606
  %v5732 = vtanh.pop %v5607
  %v5733 = vtanh.pop %v5608
  %v5734 = vtanh.pop %v5609
  %v5735 = vtanh.pop %v5610
  %v5736 = vtanh.pop %v5611
  %v5737 = vtanh.pop %v5612
  %v5738 = vtanh.pop %v5613
  %v5739 = vtanh.pop %v5614
  %v5740 = vtanh.pop %v5615
  %v5741 = vtanh.pop %v5616
  %v5742 = vtanh.pop %v5617
  %v5743 = vtanh.pop %v5618
  %v5744 = vtanh.pop %v5619
  %v5745 = vtanh.pop %v5620
  %v5746 = vtanh.pop %v5621
  %v5747 = vmul.f32 %v5622, 0.5
  %v5748 = vmul.f32 %v5623, 0.5
  %v5749 = vmul.f32 %v5624, 0.5
  %v5750 = vmul.f32 %v5625, 0.5
  %v5751 = vmul.f32 %v5626, 0.5
  %v5752 = vmul.f32 %v5627, 0.5
  %v5753 = vmul.f32 %v5628, 0.5
  %v5754 = vmul.f32 %v5629, 0.5
  %v5755 = vmul.f32 %v5630, 0.5
  %v5756 = vmul.f32 %v5631, 0.5
  %v5757 = vmul.f32 %v5632, 0.5
  %v5758 = vmul.f32 %v5633, 0.5
  %v5759 = vmul.f32 %v5634, 0.5
  %v5760 = vmul.f32 %v5635, 0.5
  %v5761 = vmul.f32 %v5636, 0.5
  %v5762 = vmul.f32 %v5637, 0.5
  %v5763 = vmul.f32 %v5638, 0.5
  %v5764 = vmul.f32 %v5639, 0.5
  %v5765 = vmul.f32 %v5640, 0.5
  %v5766 = vmul.f32 %v5641, 0.5
  %v5767 = vmul.f32 %v5642, 0.5
  %v5768 = vmul.f32 %v5643, 0.5
  %v5769 = vmul.f32 %v5644, 0.5
  %v5770 = vmul.f32 %v5645, 0.5
  %v5771 = vmul.f32 %v5646, 0.5
  %v5772 = vmul.f32 %v5647, 0.5
  %v5773 = vmul.f32 %v5648, 0.5
  %v5774 = vmul.f32 %v5649, 0.5
  %v5775 = vmul.f32 %v5650, 0.5
  %v5776 = vmul.f32 %v5651, 0.5
  %v5777 = vmul.f32 %v5652, 0.5
  %v5778 = vmul.f32 %v5653, 0.5
  %v5779 = vmul.f32 %v5654, 0.5
  %v5780 = vmul.f32 %v5655, 0.5
  %v5781 = vmul.f32 %v5656, 0.5
  %v5782 = vmul.f32 %v5657, 0.5
  %v5783 = vmul.f32 %v5658, 0.5
  %v5784 = vmul.f32 %v5659, 0.5
  %v5785 = vmul.f32 %v5660, 0.5
  %v5786 = vmul.f32 %v5661, 0.5
  %v5787 = vmul.f32 %v5662, 0.5
  %v5788 = vmul.f32 %v5663, 0.5
  %v5789 = vmul.f32 %v5664, 0.5
  %v5790 = vmul.f32 %v5665, 0.5
  %v5791 = vmul.f32 %v5666, 0.5
  %v5792 = vmul.f32 %v5667, 0.5
  %v5793 = vmul.f32 %v5668, 0.5
  %v5794 = vmul.f32 %v5669, 0.5
  %v5795 = vmul.f32 %v5670, 0.5
  %v5796 = vmul.f32 %v5671, 0.5
  %v5797 = vmul.f32 %v5672, 0.5
  %v5798 = vmul.f32 %v5673, 0.5
  %v5799 = vmul.f32 %v5674, 0.5
  %v5800 = vmul.f32 %v5675, 0.5
  %v5801 = vmul.f32 %v5676, 0.5
  %v5802 = vmul.f32 %v5677, 0.5
  %v5803 = vmul.f32 %v5678, 0.5
  %v5804 = vmul.f32 %v5679, 0.5
  %v5805 = vmul.f32 %v5680, 0.5
  %v5806 = vmul.f32 %v5681, 0.5
  %v5807 = vmul.f32 %v5682, 0.5
  %v5808 = vmul.f32 %v5683, 0.5
  %v5809 = vmul.f32 %v5684, 0.5
  %v5810 = vmul.f32 %v5685, 0.5
  %v5811 = vmul.f32 %v5686, 0.5
  %v5812 = vmul.f32 %v5687, 0.5
  %v5813 = vmul.f32 %v5688, 0.5
  %v5814 = vmul.f32 %v5689, 0.5
  %v5815 = vmul.f32 %v5690, 0.5
  %v5816 = vmul.f32 %v5691, 0.5
  %v5817 = vmul.f32 %v5692, 0.5
  %v5818 = vmul.f32 %v5693, 0.5
  %v5819 = vmul.f32 %v5694, 0.5
  %v5820 = vmul.f32 %v5695, 0.5
  %v5821 = vmul.f32 %v5696, 0.5
  %v5822 = vmul.f32 %v5697, 0.5
  %v5823 = vmul.f32 %v5698, 0.5
  %v5824 = vmul.f32 %v5699, 0.5
  %v5825 = vmul.f32 %v5700, 0.5
  %v5826 = vmul.f32 %v5701, 0.5
  %v5827 = vmul.f32 %v5702, 0.5
  %v5828 = vmul.f32 %v5703, 0.5
  %v5829 = vmul.f32 %v5704, 0.5
  %v5830 = vmul.f32 %v5705, 0.5
  %v5831 = vmul.f32 %v5706, 0.5
  %v5832 = vmul.f32 %v5707, 0.5
  %v5833 = vmul.f32 %v5708, 0.5
  %v5834 = vmul.f32 %v5709, 0.5
  %v5835 = vmul.f32 %v5710, 0.5
  %v5836 = vmul.f32 %v5711, 0.5
  %v5837 = vmul.f32 %v5712, 0.5
  %v5838 = vmul.f32 %v5713, 0.5
  %v5839 = vmul.f32 %v5714, 0.5
  %v5840 = vmul.f32 %v5715, 0.5
  %v5841 = vmul.f32 %v5716, 0.5
  %v5842 = vmul.f32 %v5717, 0.5
  %v5843 = vmul.f32 %v5718, 0.5
  %v5844 = vmul.f32 %v5719, 0.5
  %v5845 = vmul.f32 %v5720, 0.5
  %v5846 = vmul.f32 %v5721, 0.5
  %v5847 = vmul.f32 %v5722, 0.5
  %v5848 = vmul.f32 %v5723, 0.5
  %v5849 = vmul.f32 %v5724, 0.5
  %v5850 = vmul.f32 %v5725, 0.5
  %v5851 = vmul.f32 %v5726, 0.5
  %v5852 = vmul.f32 %v5727, 0.5
  %v5853 = vmul.f32 %v5728, 0.5
  %v5854 = vmul.f32 %v5729, 0.5
  %v5855 = vmul.f32 %v5730, 0.5
  %v5856 = vmul.f32 %v5731, 0.5
  %v5857 = vmul.f32 %v5732, 0.5
  %v5858 = vmul.f32 %v5733, 0.5
  %v5859 = vmul.f32 %v5734, 0.5
  %v5860 = vmul.f32 %v5735, 0.5
  %v5861 = vmul.f32 %v5736, 0.5
  %v5862 = vmul.f32 %v5737, 0.5
  %v5863 = vmul.f32 %v5738, 0.5
  %v5864 = vmul.f32 %v5739, 0.5
  %v5865 = vmul.f32 %v5740, 0.5
  %v5866 = vmul.f32 %v5741, 0.5
  %v5867 = vmul.f32 %v5742, 0.5
  %v5868 = vmul.f32 %v5743, 0.5
  %v5869 = vmul.f32 %v5744, 0.5
  %v5870 = vmul.f32 %v5745, 0.5
  %v5871 = vmul.f32 %v5746, 0.5
  %v5872 = vadd.f32 %v5747, 0.5
  %v5873 = vadd.f32 %v5748, 0.5
  %v5874 = vadd.f32 %v5749, 0.5
  %v5875 = vadd.f32 %v5750, 0.5
  %v5876 = vadd.f32 %v5751, 0.5
  %v5877 = vadd.f32 %v5752, 0.5
  %v5878 = vadd.f32 %v5753, 0.5
  %v5879 = vadd.f32 %v5754, 0.5
  %v5880 = vadd.f32 %v5755, 0.5
  %v5881 = vadd.f32 %v5756, 0.5
  %v5882 = vadd.f32 %v5757, 0.5
  %v5883 = vadd.f32 %v5758, 0.5
  %v5884 = vadd.f32 %v5759, 0.5
  %v5885 = vadd.f32 %v5760, 0.5
  %v5886 = vadd.f32 %v5761, 0.5
  %v5887 = vadd.f32 %v5762, 0.5
  %v5888 = vadd.f32 %v5763, 0.5
  %v5889 = vadd.f32 %v5764, 0.5
  %v5890 = vadd.f32 %v5765, 0.5
  %v5891 = vadd.f32 %v5766, 0.5
  %v5892 = vadd.f32 %v5767, 0.5
  %v5893 = vadd.f32 %v5768, 0.5
  %v5894 = vadd.f32 %v5769, 0.5
  %v5895 = vadd.f32 %v5770, 0.5
  %v5896 = vadd.f32 %v5771, 0.5
  %v5897 = vadd.f32 %v5772, 0.5
  %v5898 = vadd.f32 %v5773, 0.5
  %v5899 = vadd.f32 %v5774, 0.5
  %v5900 = vadd.f32 %v5775, 0.5
  %v5901 = vadd.f32 %v5776, 0.5
  %v5902 = vadd.f32 %v5777, 0.5
  %v5903 = vadd.f32 %v5778, 0.5
  %v5904 = vadd.f32 %v5779, 0.5
  %v5905 = vadd.f32 %v5780, 0.5
  %v5906 = vadd.f32 %v5781, 0.5
  %v5907 = vadd.f32 %v5782, 0.5
  %v5908 = vadd.f32 %v5783, 0.5
  %v5909 = vadd.f32 %v5784, 0.5
  %v5910 = vadd.f32 %v5785, 0.5
  %v5911 = vadd.f32 %v5786, 0.5
  %v5912 = vadd.f32 %v5787, 0.5
  %v5913 = vadd.f32 %v5788, 0.5
  %v5914 = vadd.f32 %v5789, 0.5
  %v5915 = vadd.f32 %v5790, 0.5
  %v5916 = vadd.f32 %v5791, 0.5
  %v5917 = vadd.f32 %v5792, 0.5
  %v5918 = vadd.f32 %v5793, 0.5
  %v5919 = vadd.f32 %v5794, 0.5
  %v5920 = vadd.f32 %v5795, 0.5
  %v5921 = vadd.f32 %v5796, 0.5
  %v5922 = vadd.f32 %v5797, 0.5
  %v5923 = vadd.f32 %v5798, 0.5
  %v5924 = vadd.f32 %v5799, 0.5
  %v5925 = vadd.f32 %v5800, 0.5
  %v5926 = vadd.f32 %v5801, 0.5
  %v5927 = vadd.f32 %v5802, 0.5
  %v5928 = vadd.f32 %v5803, 0.5
  %v5929 = vadd.f32 %v5804, 0.5
  %v5930 = vadd.f32 %v5805, 0.5
  %v5931 = vadd.f32 %v5806, 0.5
  %v5932 = vadd.f32 %v5807, 0.5
  %v5933 = vadd.f32 %v5808, 0.5
  %v5934 = vadd.f32 %v5809, 0.5
  %v5935 = vadd.f32 %v5810, 0.5
  %v5936 = vadd.f32 %v5811, 0.5
  %v5937 = vadd.f32 %v5812, 0.5
  %v5938 = vadd.f32 %v5813, 0.5
  %v5939 = vadd.f32 %v5814, 0.5
  %v5940 = vadd.f32 %v5815, 0.5
  %v5941 = vadd.f32 %v5816, 0.5
  %v5942 = vadd.f32 %v5817, 0.5
  %v5943 = vadd.f32 %v5818, 0.5
  %v5944 = vadd.f32 %v5819, 0.5
  %v5945 = vadd.f32 %v5820, 0.5
  %v5946 = vadd.f32 %v5821, 0.5
  %v5947 = vadd.f32 %v5822, 0.5
  %v5948 = vadd.f32 %v5823, 0.5
  %v5949 = vadd.f32 %v5824, 0.5
  %v5950 = vadd.f32 %v5825, 0.5
  %v5951 = vadd.f32 %v5826, 0.5
  %v5952 = vadd.f32 %v5827, 0.5
  %v5953 = vadd.f32 %v5828, 0.5
  %v5954 = vadd.f32 %v5829, 0.5
  %v5955 = vadd.f32 %v5830, 0.5
  %v5956 = vadd.f32 %v5831, 0.5
  %v5957 = vadd.f32 %v5832, 0.5
  %v5958 = vadd.f32 %v5833, 0.5
  %v5959 = vadd.f32 %v5834, 0.5
  %v5960 = vadd.f32 %v5835, 0.5
  %v5961 = vadd.f32 %v5836, 0.5
  %v5962 = vadd.f32 %v5837, 0.5
  %v5963 = vadd.f32 %v5838, 0.5
  %v5964 = vadd.f32 %v5839, 0.5
  %v5965 = vadd.f32 %v5840, 0.5
  %v5966 = vadd.f32 %v5841, 0.5
  %v5967 = vadd.f32 %v5842, 0.5
  %v5968 = vadd.f32 %v5843, 0.5
  %v5969 = vadd.f32 %v5844, 0.5
  %v5970 = vadd.f32 %v5845, 0.5
  %v5971 = vadd.f32 %v5846, 0.5
  %v5972 = vadd.f32 %v5847, 0.5
  %v5973 = vadd.f32 %v5848, 0.5
  %v5974 = vadd.f32 %v5849, 0.5
  %v5975 = vadd.f32 %v5850, 0.5
  %v5976 = vadd.f32 %v5851, 0.5
  %v5977 = vadd.f32 %v5852, 0.5
  %v5978 = vadd.f32 %v5853, 0.5
  %v5979 = vadd.f32 %v5854, 0.5
  %v5980 = vadd.f32 %v5855, 0.5
  %v5981 = vadd.f32 %v5856, 0.5
  %v5982 = vadd.f32 %v5857, 0.5
  %v5983 = vadd.f32 %v5858, 0.5
  %v5984 = vadd.f32 %v5859, 0.5
  %v5985 = vadd.f32 %v5860, 0.5
  %v5986 = vadd.f32 %v5861, 0.5
  %v5987 = vadd.f32 %v5862, 0.5
  %v5988 = vadd.f32 %v5863, 0.5
  %v5989 = vadd.f32 %v5864, 0.5
  %v5990 = vadd.f32 %v5865, 0.5
  %v5991 = vadd.f32 %v5866, 0.5
  %v5992 = vadd.f32 %v5867, 0.5
  %v5993 = vadd.f32 %v5868, 0.5
  %v5994 = vadd.f32 %v5869, 0.5
  %v5995 = vadd.f32 %v5870, 0.5
  %v5996 = vadd.f32 %v5871, 0.5
  %v5997 = vmul.f32 %v4874, %v5872
  %v5998 = vmul.f32 %v4879, %v5873
  %v5999 = vmul.f32 %v4884, %v5874
  %v6000 = vmul.f32 %v4889, %v5875
  %v6001 = vmul.f32 %v4894, %v5876
  %v6002 = vmul.f32 %v4899, %v5877
  %v6003 = vmul.f32 %v4904, %v5878
  %v6004 = vmul.f32 %v4909, %v5879
  %v6005 = vmul.f32 %v4914, %v5880
  %v6006 = vmul.f32 %v4919, %v5881
  %v6007 = vmul.f32 %v4924, %v5882
  %v6008 = vmul.f32 %v4929, %v5883
  %v6009 = vmul.f32 %v4934, %v5884
  %v6010 = vmul.f32 %v4939, %v5885
  %v6011 = vmul.f32 %v4944, %v5886
  %v6012 = vmul.f32 %v4949, %v5887
  %v6013 = vmul.f32 %v4954, %v5888
  %v6014 = vmul.f32 %v4959, %v5889
  %v6015 = vmul.f32 %v4964, %v5890
  %v6016 = vmul.f32 %v4969, %v5891
  %v6017 = vmul.f32 %v4974, %v5892
  %v6018 = vmul.f32 %v4979, %v5893
  %v6019 = vmul.f32 %v4984, %v5894
  %v6020 = vmul.f32 %v4989, %v5895
  %v6021 = vmul.f32 %v4994, %v5896
  %v6022 = vmul.f32 %v4999, %v5897
  %v6023 = vmul.f32 %v5004, %v5898
  %v6024 = vmul.f32 %v5009, %v5899
  %v6025 = vmul.f32 %v5014, %v5900
  %v6026 = vmul.f32 %v5019, %v5901
  %v6027 = vmul.f32 %v5024, %v5902
  %v6028 = vmul.f32 %v5029, %v5903
  %v6029 = vmul.f32 %v5034, %v5904
  %v6030 = vmul.f32 %v5039, %v5905
  %v6031 = vmul.f32 %v5044, %v5906
  %v6032 = vmul.f32 %v5049, %v5907
  %v6033 = vmul.f32 %v5054, %v5908
  %v6034 = vmul.f32 %v5059, %v5909
  %v6035 = vmul.f32 %v5064, %v5910
  %v6036 = vmul.f32 %v5069, %v5911
  %v6037 = vmul.f32 %v5074, %v5912
  %v6038 = vmul.f32 %v5079, %v5913
  %v6039 = vmul.f32 %v5084, %v5914
  %v6040 = vmul.f32 %v5089, %v5915
  %v6041 = vmul.f32 %v5094, %v5916
  %v6042 = vmul.f32 %v5099, %v5917
  %v6043 = vmul.f32 %v5104, %v5918
  %v6044 = vmul.f32 %v5109, %v5919
  %v6045 = vmul.f32 %v5114, %v5920
  %v6046 = vmul.f32 %v5119, %v5921
  %v6047 = vmul.f32 %v5124, %v5922
  %v6048 = vmul.f32 %v5129, %v5923
  %v6049 = vmul.f32 %v5134, %v5924
  %v6050 = vmul.f32 %v5139, %v5925
  %v6051 = vmul.f32 %v5144, %v5926
  %v6052 = vmul.f32 %v5149, %v5927
  %v6053 = vmul.f32 %v5154, %v5928
  %v6054 = vmul.f32 %v5159, %v5929
  %v6055 = vmul.f32 %v5164, %v5930
  %v6056 = vmul.f32 %v5169, %v5931
  %v6057 = vmul.f32 %v5174, %v5932
  %v6058 = vmul.f32 %v5179, %v5933
  %v6059 = vmul.f32 %v5184, %v5934
  %v6060 = vmul.f32 %v5189, %v5935
  %v6061 = vmul.f32 %v5194, %v5936
  %v6062 = vmul.f32 %v5199, %v5937
  %v6063 = vmul.f32 %v5204, %v5938
  %v6064 = vmul.f32 %v5209, %v5939
  %v6065 = vmul.f32 %v5214, %v5940
  %v6066 = vmul.f32 %v5219, %v5941
  %v6067 = vmul.f32 %v5224, %v5942
  %v6068 = vmul.f32 %v5229, %v5943
  %v6069 = vmul.f32 %v5234, %v5944
  %v6070 = vmul.f32 %v5239, %v5945
  %v6071 = vmul.f32 %v5244, %v5946
  %v6072 = vmul.f32 %v5249, %v5947
  %v6073 = vmul.f32 %v5254, %v5948
  %v6074 = vmul.f32 %v5259, %v5949
  %v6075 = vmul.f32 %v5264, %v5950
  %v6076 = vmul.f32 %v5269, %v5951
  %v6077 = vmul.f32 %v5274, %v5952
  %v6078 = vmul.f32 %v5279, %v5953
  %v6079 = vmul.f32 %v5284, %v5954
  %v6080 = vmul.f32 %v5289, %v5955
  %v6081 = vmul.f32 %v5294, %v5956
  %v6082 = vmul.f32 %v5299, %v5957
  %v6083 = vmul.f32 %v5304, %v5958
  %v6084 = vmul.f32 %v5309, %v5959
  %v6085 = vmul.f32 %v5314, %v5960
  %v6086 = vmul.f32 %v5319, %v5961
  %v6087 = vmul.f32 %v5324, %v5962
  %v6088 = vmul.f32 %v5329, %v5963
  %v6089 = vmul.f32 %v5334, %v5964
  %v6090 = vmul.f32 %v5339, %v5965
  %v6091 = vmul.f32 %v5344, %v5966
  %v6092 = vmul.f32 %v5349, %v5967
  %v6093 = vmul.f32 %v5354, %v5968
  %v6094 = vmul.f32 %v5359, %v5969
  %v6095 = vmul.f32 %v5364, %v5970
  %v6096 = vmul.f32 %v5369, %v5971
  %v6097 = vmul.f32 %v5374, %v5972
  %v6098 = vmul.f32 %v5379, %v5973
  %v6099 = vmul.f32 %v5384, %v5974
  %v6100 = vmul.f32 %v5389, %v5975
  %v6101 = vmul.f32 %v5394, %v5976
  %v6102 = vmul.f32 %v5399, %v5977
  %v6103 = vmul.f32 %v5404, %v5978
  %v6104 = vmul.f32 %v5409, %v5979
  %v6105 = vmul.f32 %v5414, %v5980
  %v6106 = vmul.f32 %v5419, %v5981
  %v6107 = vmul.f32 %v5424, %v5982
  %v6108 = vmul.f32 %v5429, %v5983
  %v6109 = vmul.f32 %v5434, %v5984
  %v6110 = vmul.f32 %v5439, %v5985
  %v6111 = vmul.f32 %v5444, %v5986
  %v6112 = vmul.f32 %v5449, %v5987
  %v6113 = vmul.f32 %v5454, %v5988
  %v6114 = vmul.f32 %v5459, %v5989
  %v6115 = vmul.f32 %v5464, %v5990
  %v6116 = vmul.f32 %v5469, %v5991
  %v6117 = vmul.f32 %v5474, %v5992
  %v6118 = vmul.f32 %v5479, %v5993
  %v6119 = vmul.f32 %v5484, %v5994
  %v6120 = vmul.f32 %v5489, %v5995
  %v6121 = vmul.f32 %v5494, %v5996
  %v6122 = vadd.f32 %v5997, %v4657
  %v6123 = vadd.f32 %v5998, %v4658
  %v6124 = vadd.f32 %v5999, %v4659
  %v6125 = vadd.f32 %v6000, %v4660
  %v6126 = vadd.f32 %v6001, %v4661
  %v6127 = vadd.f32 %v6002, %v4662
  %v6128 = vadd.f32 %v6003, %v4663
  %v6129 = vadd.f32 %v6004, %v4664
  %v6130 = vadd.f32 %v6005, %v4665
  %v6131 = vadd.f32 %v6006, %v4666
  %v6132 = vadd.f32 %v6007, %v4667
  %v6133 = vadd.f32 %v6008, %v4668
  %v6134 = vadd.f32 %v6009, %v4669
  %v6135 = vadd.f32 %v6010, %v4670
  %v6136 = vadd.f32 %v6011, %v4671
  %v6137 = vadd.f32 %v6012, %v4672
  %v6138 = vadd.f32 %v6013, %v4673
  %v6139 = vadd.f32 %v6014, %v4674
  %v6140 = vadd.f32 %v6015, %v4675
  %v6141 = vadd.f32 %v6016, %v4676
  %v6142 = vadd.f32 %v6017, %v4677
  %v6143 = vadd.f32 %v6018, %v4678
  %v6144 = vadd.f32 %v6019, %v4679
  %v6145 = vadd.f32 %v6020, %v4680
  %v6146 = vadd.f32 %v6021, %v4681
  %v6147 = vadd.f32 %v6022, %v4682
  %v6148 = vadd.f32 %v6023, %v4683
  %v6149 = vadd.f32 %v6024, %v4684
  %v6150 = vadd.f32 %v6025, %v4685
  %v6151 = vadd.f32 %v6026, %v4686
  %v6152 = vadd.f32 %v6027, %v4687
  %v6153 = vadd.f32 %v6028, %v4688
  %v6154 = vadd.f32 %v6029, %v4689
  %v6155 = vadd.f32 %v6030, %v4690
  %v6156 = vadd.f32 %v6031, %v4691
  %v6157 = vadd.f32 %v6032, %v4692
  %v6158 = vadd.f32 %v6033, %v4693
  %v6159 = vadd.f32 %v6034, %v4694
  %v6160 = vadd.f32 %v6035, %v4695
  %v6161 = vadd.f32 %v6036, %v4696
  %v6162 = vadd.f32 %v6037, %v4697
  %v6163 = vadd.f32 %v6038, %v4698
  %v6164 = vadd.f32 %v6039, %v4699
  %v6165 = vadd.f32 %v6040, %v4700
  %v6166 = vadd.f32 %v6041, %v4701
  %v6167 = vadd.f32 %v6042, %v4702
  %v6168 = vadd.f32 %v6043, %v4703
  %v6169 = vadd.f32 %v6044, %v4704
  %v6170 = vadd.f32 %v6045, %v4705
  %v6171 = vadd.f32 %v6046, %v4706
  %v6172 = vadd.f32 %v6047, %v4707
  %v6173 = vadd.f32 %v6048, %v4708
  %v6174 = vadd.f32 %v6049, %v4709
  %v6175 = vadd.f32 %v6050, %v4710
  %v6176 = vadd.f32 %v6051, %v4711
  %v6177 = vadd.f32 %v6052, %v4712
  %v6178 = vadd.f32 %v6053, %v4713
  %v6179 = vadd.f32 %v6054, %v4714
  %v6180 = vadd.f32 %v6055, %v4715
  %v6181 = vadd.f32 %v6056, %v4716
  %v6182 = vadd.f32 %v6057, %v4717
  %v6183 = vadd.f32 %v6058, %v4718
  %v6184 = vadd.f32 %v6059, %v4719
  %v6185 = vadd.f32 %v6060, %v4720
  %v6186 = vadd.f32 %v6061, %v4721
  %v6187 = vadd.f32 %v6062, %v4722
  %v6188 = vadd.f32 %v6063, %v4723
  %v6189 = vadd.f32 %v6064, %v4724
  %v6190 = vadd.f32 %v6065, %v4725
  %v6191 = vadd.f32 %v6066, %v4726
  %v6192 = vadd.f32 %v6067, %v4727
  %v6193 = vadd.f32 %v6068, %v4728
  %v6194 = vadd.f32 %v6069, %v4729
  %v6195 = vadd.f32 %v6070, %v4730
  %v6196 = vadd.f32 %v6071, %v4731
  %v6197 = vadd.f32 %v6072, %v4732
  %v6198 = vadd.f32 %v6073, %v4733
  %v6199 = vadd.f32 %v6074, %v4734
  %v6200 = vadd.f32 %v6075, %v4735
  %v6201 = vadd.f32 %v6076, %v4736
  %v6202 = vadd.f32 %v6077, %v4737
  %v6203 = vadd.f32 %v6078, %v4738
  %v6204 = vadd.f32 %v6079, %v4739
  %v6205 = vadd.f32 %v6080, %v4740
  %v6206 = vadd.f32 %v6081, %v4741
  %v6207 = vadd.f32 %v6082, %v4742
  %v6208 = vadd.f32 %v6083, %v4743
  %v6209 = vadd.f32 %v6084, %v4744
  %v6210 = vadd.f32 %v6085, %v4745
  %v6211 = vadd.f32 %v6086, %v4746
  %v6212 = vadd.f32 %v6087, %v4747
  %v6213 = vadd.f32 %v6088, %v4748
  %v6214 = vadd.f32 %v6089, %v4749
  %v6215 = vadd.f32 %v6090, %v4750
  %v6216 = vadd.f32 %v6091, %v4751
  %v6217 = vadd.f32 %v6092, %v4752
  %v6218 = vadd.f32 %v6093, %v4753
  %v6219 = vadd.f32 %v6094, %v4754
  %v6220 = vadd.f32 %v6095, %v4755
  %v6221 = vadd.f32 %v6096, %v4756
  %v6222 = vadd.f32 %v6097, %v4757
  %v6223 = vadd.f32 %v6098, %v4758
  %v6224 = vadd.f32 %v6099, %v4759
  %v6225 = vadd.f32 %v6100, %v4760
  %v6226 = vadd.f32 %v6101, %v4761
  %v6227 = vadd.f32 %v6102, %v4762
  %v6228 = vadd.f32 %v6103, %v4763
  %v6229 = vadd.f32 %v6104, %v4764
  %v6230 = vadd.f32 %v6105, %v4765
  %v6231 = vadd.f32 %v6106, %v4766
  %v6232 = vadd.f32 %v6107, %v4767
  %v6233 = vadd.f32 %v6108, %v4768
  %v6234 = vadd.f32 %v6109, %v4769
  %v6235 = vadd.f32 %v6110, %v4770
  %v6236 = vadd.f32 %v6111, %v4771
  %v6237 = vadd.f32 %v6112, %v4772
  %v6238 = vadd.f32 %v6113, %v4773
  %v6239 = vadd.f32 %v6114, %v4774
  %v6240 = vadd.f32 %v6115, %v4775
  %v6241 = vadd.f32 %v6116, %v4776
  %v6242 = vadd.f32 %v6117, %v4777
  %v6243 = vadd.f32 %v6118, %v4778
  %v6244 = vadd.f32 %v6119, %v4779
  %v6245 = vadd.f32 %v6120, %v4780
  %v6246 = vadd.f32 %v6121, %v4781
  %s6247 = scalar_lea.vmem %s3, 384
  %v6248 = vld [vmem:[%s6247] sm:$0xff]
  %v6249 = vld [vmem:[%s6247 + $0x8] sm:$0xff]
  %v6250 = vld [vmem:[%s6247 + $0x10] sm:$0xff]
  %v6251 = vld [vmem:[%s6247 + $0x18] sm:$0xff]
  %v6252 = vld [vmem:[%s6247 + $0x20] sm:$0xff]
  %v6253 = vld [vmem:[%s6247 + $0x28] sm:$0xff]
  %v6254 = vld [vmem:[%s6247 + $0x30] sm:$0xff]
  %v6255 = vld [vmem:[%s6247 + $0x38] sm:$0xff]
  %v6256 = vld [vmem:[%s6247 + $0x40] sm:$0xff]
  %v6257 = vld [vmem:[%s6247 + $0x48] sm:$0xff]
  %v6258 = vld [vmem:[%s6247 + $0x50] sm:$0xff]
  %v6259 = vld [vmem:[%s6247 + $0x58] sm:$0xff]
  %v6260 = vld [vmem:[%s6247 + $0x60] sm:$0xff]
  %v6261 = vld [vmem:[%s6247 + $0x68] sm:$0xff]
  %v6262 = vld [vmem:[%s6247 + $0x70] sm:$0xff]
  %v6263 = vld [vmem:[%s6247 + $0x78] sm:$0xff]
  %s6264 = scalar_lea.vmem %s4, 3
  %v6265 = vld [vmem:[%s6264] sm:$0x1]
  %v6267 = vlaneseq
  %v6268 = vshrl.u32 %v6267, 7
  %v6269 = vsub.s32 0, %v6268
  %v6270 = vrot.slane %v6265, %v6269
  %6272 = vmatprep.subr.mxu0 0.0
  %6273 = vmatpush1.msra.mxu0 %v6263
  %6274 = vmatprep.subr.mxu0 0.0
  %6275 = vmatpush1.msra.mxu0 %v6262
  %6276 = vmatprep.subr.mxu0 0.0
  %6277 = vmatpush1.msra.mxu0 %v6261
  %6278 = vmatprep.subr.mxu0 0.0
  %6279 = vmatpush1.msra.mxu0 %v6260
  %6280 = vmatprep.subr.mxu0 0.0
  %6281 = vmatpush1.msra.mxu0 %v6259
  %6282 = vmatprep.subr.mxu0 0.0
  %6283 = vmatpush1.msra.mxu0 %v6258
  %6284 = vmatprep.subr.mxu0 0.0
  %6285 = vmatpush1.msra.mxu0 %v6257
  %6286 = vmatprep.subr.mxu0 0.0
  %6287 = vmatpush1.msra.mxu0 %v6256
  %6288 = vmatprep.subr.mxu0 0.0
  %6289 = vmatpush1.msra.mxu0 %v6255
  %6290 = vmatprep.subr.mxu0 0.0
  %6291 = vmatpush1.msra.mxu0 %v6254
  %6292 = vmatprep.subr.mxu0 0.0
  %6293 = vmatpush1.msra.mxu0 %v6253
  %6294 = vmatprep.subr.mxu0 0.0
  %6295 = vmatpush1.msra.mxu0 %v6252
  %6296 = vmatprep.subr.mxu0 0.0
  %6297 = vmatpush1.msra.mxu0 %v6251
  %6298 = vmatprep.subr.mxu0 0.0
  %6299 = vmatpush1.msra.mxu0 %v6250
  %6300 = vmatprep.subr.mxu0 0.0
  %6301 = vmatpush1.msra.mxu0 %v6249
  %6302 = vmatprep.subr.mxu0 0.0
  %6303 = vmatpush1.msra.mxu0 %v6248
  %6304 = vmatprep.subr.mxu0 0.0
  %6305 = vmatpush2.msra.mxu0 0.0
  %6306 = vmatprep.subr.mxu0 0.0
  %6307 = vmatpush2.msra.mxu0 0.0
  %6308 = vmatprep.subr.mxu0 0.0
  %6309 = vmatpush2.msra.mxu0 0.0
  %6310 = vmatprep.subr.mxu0 0.0
  %6311 = vmatpush2.msra.mxu0 0.0
  %6312 = vmatprep.subr.mxu0 0.0
  %6313 = vmatpush2.msra.mxu0 0.0
  %6314 = vmatprep.subr.mxu0 0.0
  %6315 = vmatpush2.msra.mxu0 0.0
  %6316 = vmatprep.subr.mxu0 0.0
  %6317 = vmatpush2.msra.mxu0 0.0
  %6318 = vmatprep.subr.mxu0 0.0
  %6319 = vmatpush2.msra.mxu0 0.0
  %6320 = vmatprep.subr.mxu0 0.0
  %6321 = vmatpush2.msra.mxu0 0.0
  %6322 = vmatprep.subr.mxu0 0.0
  %6323 = vmatpush2.msra.mxu0 0.0
  %6324 = vmatprep.subr.mxu0 0.0
  %6325 = vmatpush2.msra.mxu0 0.0
  %6326 = vmatprep.subr.mxu0 0.0
  %6327 = vmatpush2.msra.mxu0 0.0
  %6328 = vmatprep.subr.mxu0 0.0
  %6329 = vmatpush2.msra.mxu0 0.0
  %6330 = vmatprep.subr.mxu0 0.0
  %6331 = vmatpush2.msra.mxu0 0.0
  %6332 = vmatprep.subr.mxu0 0.0
  %6333 = vmatpush2.msra.mxu0 0.0
  %6334 = vmatprep.subr.mxu0 0.0
  %6335 = vmatpush2.msra.mxu0 0.0
  %6336 = vmatprep.mubr.f32.mxu0 0.0
  %6337 = vmatmul.mubr.f32.gmra.mxu0 %v6122
  %v6338 = vpop.f32.mrf.mxu0
  %v6339 = vadd.f32 %v6270, %v6338
  %v6340 = vpop.f32.mrf.mxu0
  %6341 = vmatprep.mubr.f32.mxu0 0.0
  %6342 = vmatmul.mubr.f32.gmra.mxu0 %v6123
  %v6343 = vpop.f32.mrf.mxu0
  %v6344 = vadd.f32 %v6270, %v6343
  %v6345 = vpop.f32.mrf.mxu0
  %6346 = vmatprep.mubr.f32.mxu0 0.0
  %6347 = vmatmul.mubr.f32.gmra.mxu0 %v6124
  %v6348 = vpop.f32.mrf.mxu0
  %v6349 = vadd.f32 %v6270, %v6348
  %v6350 = vpop.f32.mrf.mxu0
  %6351 = vmatprep.mubr.f32.mxu0 0.0
  %6352 = vmatmul.mubr.f32.gmra.mxu0 %v6125
  %v6353 = vpop.f32.mrf.mxu0
  %v6354 = vadd.f32 %v6270, %v6353
  %v6355 = vpop.f32.mrf.mxu0
  %6356 = vmatprep.mubr.f32.mxu0 0.0
  %6357 = vmatmul.mubr.f32.gmra.mxu0 %v6126
  %v6358 = vpop.f32.mrf.mxu0
  %v6359 = vadd.f32 %v6270, %v6358
  %v6360 = vpop.f32.mrf.mxu0
  %6361 = vmatprep.mubr.f32.mxu0 0.0
  %6362 = vmatmul.mubr.f32.gmra.mxu0 %v6127
  %v6363 = vpop.f32.mrf.mxu0
  %v6364 = vadd.f32 %v6270, %v6363
  %v6365 = vpop.f32.mrf.mxu0
  %6366 = vmatprep.mubr.f32.mxu0 0.0
  %6367 = vmatmul.mubr.f32.gmra.mxu0 %v6128
  %v6368 = vpop.f32.mrf.mxu0
  %v6369 = vadd.f32 %v6270, %v6368
  %v6370 = vpop.f32.mrf.mxu0
  %6371 = vmatprep.mubr.f32.mxu0 0.0
  %6372 = vmatmul.mubr.f32.gmra.mxu0 %v6129
  %v6373 = vpop.f32.mrf.mxu0
  %v6374 = vadd.f32 %v6270, %v6373
  %v6375 = vpop.f32.mrf.mxu0
  %6376 = vmatprep.mubr.f32.mxu0 0.0
  %6377 = vmatmul.mubr.f32.gmra.mxu0 %v6130
  %v6378 = vpop.f32.mrf.mxu0
  %v6379 = vadd.f32 %v6270, %v6378
  %v6380 = vpop.f32.mrf.mxu0
  %6381 = vmatprep.mubr.f32.mxu0 0.0
  %6382 = vmatmul.mubr.f32.gmra.mxu0 %v6131
  %v6383 = vpop.f32.mrf.mxu0
  %v6384 = vadd.f32 %v6270, %v6383
  %v6385 = vpop.f32.mrf.mxu0
  %6386 = vmatprep.mubr.f32.mxu0 0.0
  %6387 = vmatmul.mubr.f32.gmra.mxu0 %v6132
  %v6388 = vpop.f32.mrf.mxu0
  %v6389 = vadd.f32 %v6270, %v6388
  %v6390 = vpop.f32.mrf.mxu0
  %6391 = vmatprep.mubr.f32.mxu0 0.0
  %6392 = vmatmul.mubr.f32.gmra.mxu0 %v6133
  %v6393 = vpop.f32.mrf.mxu0
  %v6394 = vadd.f32 %v6270, %v6393
  %v6395 = vpop.f32.mrf.mxu0
  %6396 = vmatprep.mubr.f32.mxu0 0.0
  %6397 = vmatmul.mubr.f32.gmra.mxu0 %v6134
  %v6398 = vpop.f32.mrf.mxu0
  %v6399 = vadd.f32 %v6270, %v6398
  %v6400 = vpop.f32.mrf.mxu0
  %6401 = vmatprep.mubr.f32.mxu0 0.0
  %6402 = vmatmul.mubr.f32.gmra.mxu0 %v6135
  %v6403 = vpop.f32.mrf.mxu0
  %v6404 = vadd.f32 %v6270, %v6403
  %v6405 = vpop.f32.mrf.mxu0
  %6406 = vmatprep.mubr.f32.mxu0 0.0
  %6407 = vmatmul.mubr.f32.gmra.mxu0 %v6136
  %v6408 = vpop.f32.mrf.mxu0
  %v6409 = vadd.f32 %v6270, %v6408
  %v6410 = vpop.f32.mrf.mxu0
  %6411 = vmatprep.mubr.f32.mxu0 0.0
  %6412 = vmatmul.mubr.f32.gmra.mxu0 %v6137
  %v6413 = vpop.f32.mrf.mxu0
  %v6414 = vadd.f32 %v6270, %v6413
  %v6415 = vpop.f32.mrf.mxu0
  %6416 = vmatprep.mubr.f32.mxu0 0.0
  %6417 = vmatmul.mubr.f32.gmra.mxu0 %v6138
  %v6418 = vpop.f32.mrf.mxu0
  %v6419 = vadd.f32 %v6270, %v6418
  %v6420 = vpop.f32.mrf.mxu0
  %6421 = vmatprep.mubr.f32.mxu0 0.0
  %6422 = vmatmul.mubr.f32.gmra.mxu0 %v6139
  %v6423 = vpop.f32.mrf.mxu0
  %v6424 = vadd.f32 %v6270, %v6423
  %v6425 = vpop.f32.mrf.mxu0
  %6426 = vmatprep.mubr.f32.mxu0 0.0
  %6427 = vmatmul.mubr.f32.gmra.mxu0 %v6140
  %v6428 = vpop.f32.mrf.mxu0
  %v6429 = vadd.f32 %v6270, %v6428
  %v6430 = vpop.f32.mrf.mxu0
  %6431 = vmatprep.mubr.f32.mxu0 0.0
  %6432 = vmatmul.mubr.f32.gmra.mxu0 %v6141
  %v6433 = vpop.f32.mrf.mxu0
  %v6434 = vadd.f32 %v6270, %v6433
  %v6435 = vpop.f32.mrf.mxu0
  %6436 = vmatprep.mubr.f32.mxu0 0.0
  %6437 = vmatmul.mubr.f32.gmra.mxu0 %v6142
  %v6438 = vpop.f32.mrf.mxu0
  %v6439 = vadd.f32 %v6270, %v6438
  %v6440 = vpop.f32.mrf.mxu0
  %6441 = vmatprep.mubr.f32.mxu0 0.0
  %6442 = vmatmul.mubr.f32.gmra.mxu0 %v6143
  %v6443 = vpop.f32.mrf.mxu0
  %v6444 = vadd.f32 %v6270, %v6443
  %v6445 = vpop.f32.mrf.mxu0
  %6446 = vmatprep.mubr.f32.mxu0 0.0
  %6447 = vmatmul.mubr.f32.gmra.mxu0 %v6144
  %v6448 = vpop.f32.mrf.mxu0
  %v6449 = vadd.f32 %v6270, %v6448
  %v6450 = vpop.f32.mrf.mxu0
  %6451 = vmatprep.mubr.f32.mxu0 0.0
  %6452 = vmatmul.mubr.f32.gmra.mxu0 %v6145
  %v6453 = vpop.f32.mrf.mxu0
  %v6454 = vadd.f32 %v6270, %v6453
  %v6455 = vpop.f32.mrf.mxu0
  %6456 = vmatprep.mubr.f32.mxu0 0.0
  %6457 = vmatmul.mubr.f32.gmra.mxu0 %v6146
  %v6458 = vpop.f32.mrf.mxu0
  %v6459 = vadd.f32 %v6270, %v6458
  %v6460 = vpop.f32.mrf.mxu0
  %6461 = vmatprep.mubr.f32.mxu0 0.0
  %6462 = vmatmul.mubr.f32.gmra.mxu0 %v6147
  %v6463 = vpop.f32.mrf.mxu0
  %v6464 = vadd.f32 %v6270, %v6463
  %v6465 = vpop.f32.mrf.mxu0
  %6466 = vmatprep.mubr.f32.mxu0 0.0
  %6467 = vmatmul.mubr.f32.gmra.mxu0 %v6148
  %v6468 = vpop.f32.mrf.mxu0
  %v6469 = vadd.f32 %v6270, %v6468
  %v6470 = vpop.f32.mrf.mxu0
  %6471 = vmatprep.mubr.f32.mxu0 0.0
  %6472 = vmatmul.mubr.f32.gmra.mxu0 %v6149
  %v6473 = vpop.f32.mrf.mxu0
  %v6474 = vadd.f32 %v6270, %v6473
  %v6475 = vpop.f32.mrf.mxu0
  %6476 = vmatprep.mubr.f32.mxu0 0.0
  %6477 = vmatmul.mubr.f32.gmra.mxu0 %v6150
  %v6478 = vpop.f32.mrf.mxu0
  %v6479 = vadd.f32 %v6270, %v6478
  %v6480 = vpop.f32.mrf.mxu0
  %6481 = vmatprep.mubr.f32.mxu0 0.0
  %6482 = vmatmul.mubr.f32.gmra.mxu0 %v6151
  %v6483 = vpop.f32.mrf.mxu0
  %v6484 = vadd.f32 %v6270, %v6483
  %v6485 = vpop.f32.mrf.mxu0
  %6486 = vmatprep.mubr.f32.mxu0 0.0
  %6487 = vmatmul.mubr.f32.gmra.mxu0 %v6152
  %v6488 = vpop.f32.mrf.mxu0
  %v6489 = vadd.f32 %v6270, %v6488
  %v6490 = vpop.f32.mrf.mxu0
  %6491 = vmatprep.mubr.f32.mxu0 0.0
  %6492 = vmatmul.mubr.f32.gmra.mxu0 %v6153
  %v6493 = vpop.f32.mrf.mxu0
  %v6494 = vadd.f32 %v6270, %v6493
  %v6495 = vpop.f32.mrf.mxu0
  %6496 = vmatprep.mubr.f32.mxu0 0.0
  %6497 = vmatmul.mubr.f32.gmra.mxu0 %v6154
  %v6498 = vpop.f32.mrf.mxu0
  %v6499 = vadd.f32 %v6270, %v6498
  %v6500 = vpop.f32.mrf.mxu0
  %6501 = vmatprep.mubr.f32.mxu0 0.0
  %6502 = vmatmul.mubr.f32.gmra.mxu0 %v6155
  %v6503 = vpop.f32.mrf.mxu0
  %v6504 = vadd.f32 %v6270, %v6503
  %v6505 = vpop.f32.mrf.mxu0
  %6506 = vmatprep.mubr.f32.mxu0 0.0
  %6507 = vmatmul.mubr.f32.gmra.mxu0 %v6156
  %v6508 = vpop.f32.mrf.mxu0
  %v6509 = vadd.f32 %v6270, %v6508
  %v6510 = vpop.f32.mrf.mxu0
  %6511 = vmatprep.mubr.f32.mxu0 0.0
  %6512 = vmatmul.mubr.f32.gmra.mxu0 %v6157
  %v6513 = vpop.f32.mrf.mxu0
  %v6514 = vadd.f32 %v6270, %v6513
  %v6515 = vpop.f32.mrf.mxu0
  %6516 = vmatprep.mubr.f32.mxu0 0.0
  %6517 = vmatmul.mubr.f32.gmra.mxu0 %v6158
  %v6518 = vpop.f32.mrf.mxu0
  %v6519 = vadd.f32 %v6270, %v6518
  %v6520 = vpop.f32.mrf.mxu0
  %6521 = vmatprep.mubr.f32.mxu0 0.0
  %6522 = vmatmul.mubr.f32.gmra.mxu0 %v6159
  %v6523 = vpop.f32.mrf.mxu0
  %v6524 = vadd.f32 %v6270, %v6523
  %v6525 = vpop.f32.mrf.mxu0
  %6526 = vmatprep.mubr.f32.mxu0 0.0
  %6527 = vmatmul.mubr.f32.gmra.mxu0 %v6160
  %v6528 = vpop.f32.mrf.mxu0
  %v6529 = vadd.f32 %v6270, %v6528
  %v6530 = vpop.f32.mrf.mxu0
  %6531 = vmatprep.mubr.f32.mxu0 0.0
  %6532 = vmatmul.mubr.f32.gmra.mxu0 %v6161
  %v6533 = vpop.f32.mrf.mxu0
  %v6534 = vadd.f32 %v6270, %v6533
  %v6535 = vpop.f32.mrf.mxu0
  %6536 = vmatprep.mubr.f32.mxu0 0.0
  %6537 = vmatmul.mubr.f32.gmra.mxu0 %v6162
  %v6538 = vpop.f32.mrf.mxu0
  %v6539 = vadd.f32 %v6270, %v6538
  %v6540 = vpop.f32.mrf.mxu0
  %6541 = vmatprep.mubr.f32.mxu0 0.0
  %6542 = vmatmul.mubr.f32.gmra.mxu0 %v6163
  %v6543 = vpop.f32.mrf.mxu0
  %v6544 = vadd.f32 %v6270, %v6543
  %v6545 = vpop.f32.mrf.mxu0
  %6546 = vmatprep.mubr.f32.mxu0 0.0
  %6547 = vmatmul.mubr.f32.gmra.mxu0 %v6164
  %v6548 = vpop.f32.mrf.mxu0
  %v6549 = vadd.f32 %v6270, %v6548
  %v6550 = vpop.f32.mrf.mxu0
  %6551 = vmatprep.mubr.f32.mxu0 0.0
  %6552 = vmatmul.mubr.f32.gmra.mxu0 %v6165
  %v6553 = vpop.f32.mrf.mxu0
  %v6554 = vadd.f32 %v6270, %v6553
  %v6555 = vpop.f32.mrf.mxu0
  %6556 = vmatprep.mubr.f32.mxu0 0.0
  %6557 = vmatmul.mubr.f32.gmra.mxu0 %v6166
  %v6558 = vpop.f32.mrf.mxu0
  %v6559 = vadd.f32 %v6270, %v6558
  %v6560 = vpop.f32.mrf.mxu0
  %6561 = vmatprep.mubr.f32.mxu0 0.0
  %6562 = vmatmul.mubr.f32.gmra.mxu0 %v6167
  %v6563 = vpop.f32.mrf.mxu0
  %v6564 = vadd.f32 %v6270, %v6563
  %v6565 = vpop.f32.mrf.mxu0
  %6566 = vmatprep.mubr.f32.mxu0 0.0
  %6567 = vmatmul.mubr.f32.gmra.mxu0 %v6168
  %v6568 = vpop.f32.mrf.mxu0
  %v6569 = vadd.f32 %v6270, %v6568
  %v6570 = vpop.f32.mrf.mxu0
  %6571 = vmatprep.mubr.f32.mxu0 0.0
  %6572 = vmatmul.mubr.f32.gmra.mxu0 %v6169
  %v6573 = vpop.f32.mrf.mxu0
  %v6574 = vadd.f32 %v6270, %v6573
  %v6575 = vpop.f32.mrf.mxu0
  %6576 = vmatprep.mubr.f32.mxu0 0.0
  %6577 = vmatmul.mubr.f32.gmra.mxu0 %v6170
  %v6578 = vpop.f32.mrf.mxu0
  %v6579 = vadd.f32 %v6270, %v6578
  %v6580 = vpop.f32.mrf.mxu0
  %6581 = vmatprep.mubr.f32.mxu0 0.0
  %6582 = vmatmul.mubr.f32.gmra.mxu0 %v6171
  %v6583 = vpop.f32.mrf.mxu0
  %v6584 = vadd.f32 %v6270, %v6583
  %v6585 = vpop.f32.mrf.mxu0
  %6586 = vmatprep.mubr.f32.mxu0 0.0
  %6587 = vmatmul.mubr.f32.gmra.mxu0 %v6172
  %v6588 = vpop.f32.mrf.mxu0
  %v6589 = vadd.f32 %v6270, %v6588
  %v6590 = vpop.f32.mrf.mxu0
  %6591 = vmatprep.mubr.f32.mxu0 0.0
  %6592 = vmatmul.mubr.f32.gmra.mxu0 %v6173
  %v6593 = vpop.f32.mrf.mxu0
  %v6594 = vadd.f32 %v6270, %v6593
  %v6595 = vpop.f32.mrf.mxu0
  %6596 = vmatprep.mubr.f32.mxu0 0.0
  %6597 = vmatmul.mubr.f32.gmra.mxu0 %v6174
  %v6598 = vpop.f32.mrf.mxu0
  %v6599 = vadd.f32 %v6270, %v6598
  %v6600 = vpop.f32.mrf.mxu0
  %6601 = vmatprep.mubr.f32.mxu0 0.0
  %6602 = vmatmul.mubr.f32.gmra.mxu0 %v6175
  %v6603 = vpop.f32.mrf.mxu0
  %v6604 = vadd.f32 %v6270, %v6603
  %v6605 = vpop.f32.mrf.mxu0
  %6606 = vmatprep.mubr.f32.mxu0 0.0
  %6607 = vmatmul.mubr.f32.gmra.mxu0 %v6176
  %v6608 = vpop.f32.mrf.mxu0
  %v6609 = vadd.f32 %v6270, %v6608
  %v6610 = vpop.f32.mrf.mxu0
  %6611 = vmatprep.mubr.f32.mxu0 0.0
  %6612 = vmatmul.mubr.f32.gmra.mxu0 %v6177
  %v6613 = vpop.f32.mrf.mxu0
  %v6614 = vadd.f32 %v6270, %v6613
  %v6615 = vpop.f32.mrf.mxu0
  %6616 = vmatprep.mubr.f32.mxu0 0.0
  %6617 = vmatmul.mubr.f32.gmra.mxu0 %v6178
  %v6618 = vpop.f32.mrf.mxu0
  %v6619 = vadd.f32 %v6270, %v6618
  %v6620 = vpop.f32.mrf.mxu0
  %6621 = vmatprep.mubr.f32.mxu0 0.0
  %6622 = vmatmul.mubr.f32.gmra.mxu0 %v6179
  %v6623 = vpop.f32.mrf.mxu0
  %v6624 = vadd.f32 %v6270, %v6623
  %v6625 = vpop.f32.mrf.mxu0
  %6626 = vmatprep.mubr.f32.mxu0 0.0
  %6627 = vmatmul.mubr.f32.gmra.mxu0 %v6180
  %v6628 = vpop.f32.mrf.mxu0
  %v6629 = vadd.f32 %v6270, %v6628
  %v6630 = vpop.f32.mrf.mxu0
  %6631 = vmatprep.mubr.f32.mxu0 0.0
  %6632 = vmatmul.mubr.f32.gmra.mxu0 %v6181
  %v6633 = vpop.f32.mrf.mxu0
  %v6634 = vadd.f32 %v6270, %v6633
  %v6635 = vpop.f32.mrf.mxu0
  %6636 = vmatprep.mubr.f32.mxu0 0.0
  %6637 = vmatmul.mubr.f32.gmra.mxu0 %v6182
  %v6638 = vpop.f32.mrf.mxu0
  %v6639 = vadd.f32 %v6270, %v6638
  %v6640 = vpop.f32.mrf.mxu0
  %6641 = vmatprep.mubr.f32.mxu0 0.0
  %6642 = vmatmul.mubr.f32.gmra.mxu0 %v6183
  %v6643 = vpop.f32.mrf.mxu0
  %v6644 = vadd.f32 %v6270, %v6643
  %v6645 = vpop.f32.mrf.mxu0
  %6646 = vmatprep.mubr.f32.mxu0 0.0
  %6647 = vmatmul.mubr.f32.gmra.mxu0 %v6184
  %v6648 = vpop.f32.mrf.mxu0
  %v6649 = vadd.f32 %v6270, %v6648
  %v6650 = vpop.f32.mrf.mxu0
  %6651 = vmatprep.mubr.f32.mxu0 0.0
  %6652 = vmatmul.mubr.f32.gmra.mxu0 %v6185
  %v6653 = vpop.f32.mrf.mxu0
  %v6654 = vadd.f32 %v6270, %v6653
  %v6655 = vpop.f32.mrf.mxu0
  %6656 = vmatprep.mubr.f32.mxu0 0.0
  %6657 = vmatmul.mubr.f32.gmra.mxu0 %v6186
  %v6658 = vpop.f32.mrf.mxu0
  %v6659 = vadd.f32 %v6270, %v6658
  %v6660 = vpop.f32.mrf.mxu0
  %6661 = vmatprep.mubr.f32.mxu0 0.0
  %6662 = vmatmul.mubr.f32.gmra.mxu0 %v6187
  %v6663 = vpop.f32.mrf.mxu0
  %v6664 = vadd.f32 %v6270, %v6663
  %v6665 = vpop.f32.mrf.mxu0
  %6666 = vmatprep.mubr.f32.mxu0 0.0
  %6667 = vmatmul.mubr.f32.gmra.mxu0 %v6188
  %v6668 = vpop.f32.mrf.mxu0
  %v6669 = vadd.f32 %v6270, %v6668
  %v6670 = vpop.f32.mrf.mxu0
  %6671 = vmatprep.mubr.f32.mxu0 0.0
  %6672 = vmatmul.mubr.f32.gmra.mxu0 %v6189
  %v6673 = vpop.f32.mrf.mxu0
  %v6674 = vadd.f32 %v6270, %v6673
  %v6675 = vpop.f32.mrf.mxu0
  %6676 = vmatprep.mubr.f32.mxu0 0.0
  %6677 = vmatmul.mubr.f32.gmra.mxu0 %v6190
  %v6678 = vpop.f32.mrf.mxu0
  %v6679 = vadd.f32 %v6270, %v6678
  %v6680 = vpop.f32.mrf.mxu0
  %6681 = vmatprep.mubr.f32.mxu0 0.0
  %6682 = vmatmul.mubr.f32.gmra.mxu0 %v6191
  %v6683 = vpop.f32.mrf.mxu0
  %v6684 = vadd.f32 %v6270, %v6683
  %v6685 = vpop.f32.mrf.mxu0
  %6686 = vmatprep.mubr.f32.mxu0 0.0
  %6687 = vmatmul.mubr.f32.gmra.mxu0 %v6192
  %v6688 = vpop.f32.mrf.mxu0
  %v6689 = vadd.f32 %v6270, %v6688
  %v6690 = vpop.f32.mrf.mxu0
  %6691 = vmatprep.mubr.f32.mxu0 0.0
  %6692 = vmatmul.mubr.f32.gmra.mxu0 %v6193
  %v6693 = vpop.f32.mrf.mxu0
  %v6694 = vadd.f32 %v6270, %v6693
  %v6695 = vpop.f32.mrf.mxu0
  %6696 = vmatprep.mubr.f32.mxu0 0.0
  %6697 = vmatmul.mubr.f32.gmra.mxu0 %v6194
  %v6698 = vpop.f32.mrf.mxu0
  %v6699 = vadd.f32 %v6270, %v6698
  %v6700 = vpop.f32.mrf.mxu0
  %6701 = vmatprep.mubr.f32.mxu0 0.0
  %6702 = vmatmul.mubr.f32.gmra.mxu0 %v6195
  %v6703 = vpop.f32.mrf.mxu0
  %v6704 = vadd.f32 %v6270, %v6703
  %v6705 = vpop.f32.mrf.mxu0
  %6706 = vmatprep.mubr.f32.mxu0 0.0
  %6707 = vmatmul.mubr.f32.gmra.mxu0 %v6196
  %v6708 = vpop.f32.mrf.mxu0
  %v6709 = vadd.f32 %v6270, %v6708
  %v6710 = vpop.f32.mrf.mxu0
  %6711 = vmatprep.mubr.f32.mxu0 0.0
  %6712 = vmatmul.mubr.f32.gmra.mxu0 %v6197
  %v6713 = vpop.f32.mrf.mxu0
  %v6714 = vadd.f32 %v6270, %v6713
  %v6715 = vpop.f32.mrf.mxu0
  %6716 = vmatprep.mubr.f32.mxu0 0.0
  %6717 = vmatmul.mubr.f32.gmra.mxu0 %v6198
  %v6718 = vpop.f32.mrf.mxu0
  %v6719 = vadd.f32 %v6270, %v6718
  %v6720 = vpop.f32.mrf.mxu0
  %6721 = vmatprep.mubr.f32.mxu0 0.0
  %6722 = vmatmul.mubr.f32.gmra.mxu0 %v6199
  %v6723 = vpop.f32.mrf.mxu0
  %v6724 = vadd.f32 %v6270, %v6723
  %v6725 = vpop.f32.mrf.mxu0
  %6726 = vmatprep.mubr.f32.mxu0 0.0
  %6727 = vmatmul.mubr.f32.gmra.mxu0 %v6200
  %v6728 = vpop.f32.mrf.mxu0
  %v6729 = vadd.f32 %v6270, %v6728
  %v6730 = vpop.f32.mrf.mxu0
  %6731 = vmatprep.mubr.f32.mxu0 0.0
  %6732 = vmatmul.mubr.f32.gmra.mxu0 %v6201
  %v6733 = vpop.f32.mrf.mxu0
  %v6734 = vadd.f32 %v6270, %v6733
  %v6735 = vpop.f32.mrf.mxu0
  %6736 = vmatprep.mubr.f32.mxu0 0.0
  %6737 = vmatmul.mubr.f32.gmra.mxu0 %v6202
  %v6738 = vpop.f32.mrf.mxu0
  %v6739 = vadd.f32 %v6270, %v6738
  %v6740 = vpop.f32.mrf.mxu0
  %6741 = vmatprep.mubr.f32.mxu0 0.0
  %6742 = vmatmul.mubr.f32.gmra.mxu0 %v6203
  %v6743 = vpop.f32.mrf.mxu0
  %v6744 = vadd.f32 %v6270, %v6743
  %v6745 = vpop.f32.mrf.mxu0
  %6746 = vmatprep.mubr.f32.mxu0 0.0
  %6747 = vmatmul.mubr.f32.gmra.mxu0 %v6204
  %v6748 = vpop.f32.mrf.mxu0
  %v6749 = vadd.f32 %v6270, %v6748
  %v6750 = vpop.f32.mrf.mxu0
  %6751 = vmatprep.mubr.f32.mxu0 0.0
  %6752 = vmatmul.mubr.f32.gmra.mxu0 %v6205
  %v6753 = vpop.f32.mrf.mxu0
  %v6754 = vadd.f32 %v6270, %v6753
  %v6755 = vpop.f32.mrf.mxu0
  %6756 = vmatprep.mubr.f32.mxu0 0.0
  %6757 = vmatmul.mubr.f32.gmra.mxu0 %v6206
  %v6758 = vpop.f32.mrf.mxu0
  %v6759 = vadd.f32 %v6270, %v6758
  %v6760 = vpop.f32.mrf.mxu0
  %6761 = vmatprep.mubr.f32.mxu0 0.0
  %6762 = vmatmul.mubr.f32.gmra.mxu0 %v6207
  %v6763 = vpop.f32.mrf.mxu0
  %v6764 = vadd.f32 %v6270, %v6763
  %v6765 = vpop.f32.mrf.mxu0
  %6766 = vmatprep.mubr.f32.mxu0 0.0
  %6767 = vmatmul.mubr.f32.gmra.mxu0 %v6208
  %v6768 = vpop.f32.mrf.mxu0
  %v6769 = vadd.f32 %v6270, %v6768
  %v6770 = vpop.f32.mrf.mxu0
  %6771 = vmatprep.mubr.f32.mxu0 0.0
  %6772 = vmatmul.mubr.f32.gmra.mxu0 %v6209
  %v6773 = vpop.f32.mrf.mxu0
  %v6774 = vadd.f32 %v6270, %v6773
  %v6775 = vpop.f32.mrf.mxu0
  %6776 = vmatprep.mubr.f32.mxu0 0.0
  %6777 = vmatmul.mubr.f32.gmra.mxu0 %v6210
  %v6778 = vpop.f32.mrf.mxu0
  %v6779 = vadd.f32 %v6270, %v6778
  %v6780 = vpop.f32.mrf.mxu0
  %6781 = vmatprep.mubr.f32.mxu0 0.0
  %6782 = vmatmul.mubr.f32.gmra.mxu0 %v6211
  %v6783 = vpop.f32.mrf.mxu0
  %v6784 = vadd.f32 %v6270, %v6783
  %v6785 = vpop.f32.mrf.mxu0
  %6786 = vmatprep.mubr.f32.mxu0 0.0
  %6787 = vmatmul.mubr.f32.gmra.mxu0 %v6212
  %v6788 = vpop.f32.mrf.mxu0
  %v6789 = vadd.f32 %v6270, %v6788
  %v6790 = vpop.f32.mrf.mxu0
  %6791 = vmatprep.mubr.f32.mxu0 0.0
  %6792 = vmatmul.mubr.f32.gmra.mxu0 %v6213
  %v6793 = vpop.f32.mrf.mxu0
  %v6794 = vadd.f32 %v6270, %v6793
  %v6795 = vpop.f32.mrf.mxu0
  %6796 = vmatprep.mubr.f32.mxu0 0.0
  %6797 = vmatmul.mubr.f32.gmra.mxu0 %v6214
  %v6798 = vpop.f32.mrf.mxu0
  %v6799 = vadd.f32 %v6270, %v6798
  %v6800 = vpop.f32.mrf.mxu0
  %6801 = vmatprep.mubr.f32.mxu0 0.0
  %6802 = vmatmul.mubr.f32.gmra.mxu0 %v6215
  %v6803 = vpop.f32.mrf.mxu0
  %v6804 = vadd.f32 %v6270, %v6803
  %v6805 = vpop.f32.mrf.mxu0
  %6806 = vmatprep.mubr.f32.mxu0 0.0
  %6807 = vmatmul.mubr.f32.gmra.mxu0 %v6216
  %v6808 = vpop.f32.mrf.mxu0
  %v6809 = vadd.f32 %v6270, %v6808
  %v6810 = vpop.f32.mrf.mxu0
  %6811 = vmatprep.mubr.f32.mxu0 0.0
  %6812 = vmatmul.mubr.f32.gmra.mxu0 %v6217
  %v6813 = vpop.f32.mrf.mxu0
  %v6814 = vadd.f32 %v6270, %v6813
  %v6815 = vpop.f32.mrf.mxu0
  %6816 = vmatprep.mubr.f32.mxu0 0.0
  %6817 = vmatmul.mubr.f32.gmra.mxu0 %v6218
  %v6818 = vpop.f32.mrf.mxu0
  %v6819 = vadd.f32 %v6270, %v6818
  %v6820 = vpop.f32.mrf.mxu0
  %6821 = vmatprep.mubr.f32.mxu0 0.0
  %6822 = vmatmul.mubr.f32.gmra.mxu0 %v6219
  %v6823 = vpop.f32.mrf.mxu0
  %v6824 = vadd.f32 %v6270, %v6823
  %v6825 = vpop.f32.mrf.mxu0
  %6826 = vmatprep.mubr.f32.mxu0 0.0
  %6827 = vmatmul.mubr.f32.gmra.mxu0 %v6220
  %v6828 = vpop.f32.mrf.mxu0
  %v6829 = vadd.f32 %v6270, %v6828
  %v6830 = vpop.f32.mrf.mxu0
  %6831 = vmatprep.mubr.f32.mxu0 0.0
  %6832 = vmatmul.mubr.f32.gmra.mxu0 %v6221
  %v6833 = vpop.f32.mrf.mxu0
  %v6834 = vadd.f32 %v6270, %v6833
  %v6835 = vpop.f32.mrf.mxu0
  %6836 = vmatprep.mubr.f32.mxu0 0.0
  %6837 = vmatmul.mubr.f32.gmra.mxu0 %v6222
  %v6838 = vpop.f32.mrf.mxu0
  %v6839 = vadd.f32 %v6270, %v6838
  %v6840 = vpop.f32.mrf.mxu0
  %6841 = vmatprep.mubr.f32.mxu0 0.0
  %6842 = vmatmul.mubr.f32.gmra.mxu0 %v6223
  %v6843 = vpop.f32.mrf.mxu0
  %v6844 = vadd.f32 %v6270, %v6843
  %v6845 = vpop.f32.mrf.mxu0
  %6846 = vmatprep.mubr.f32.mxu0 0.0
  %6847 = vmatmul.mubr.f32.gmra.mxu0 %v6224
  %v6848 = vpop.f32.mrf.mxu0
  %v6849 = vadd.f32 %v6270, %v6848
  %v6850 = vpop.f32.mrf.mxu0
  %6851 = vmatprep.mubr.f32.mxu0 0.0
  %6852 = vmatmul.mubr.f32.gmra.mxu0 %v6225
  %v6853 = vpop.f32.mrf.mxu0
  %v6854 = vadd.f32 %v6270, %v6853
  %v6855 = vpop.f32.mrf.mxu0
  %6856 = vmatprep.mubr.f32.mxu0 0.0
  %6857 = vmatmul.mubr.f32.gmra.mxu0 %v6226
  %v6858 = vpop.f32.mrf.mxu0
  %v6859 = vadd.f32 %v6270, %v6858
  %v6860 = vpop.f32.mrf.mxu0
  %6861 = vmatprep.mubr.f32.mxu0 0.0
  %6862 = vmatmul.mubr.f32.gmra.mxu0 %v6227
  %v6863 = vpop.f32.mrf.mxu0
  %v6864 = vadd.f32 %v6270, %v6863
  %v6865 = vpop.f32.mrf.mxu0
  %6866 = vmatprep.mubr.f32.mxu0 0.0
  %6867 = vmatmul.mubr.f32.gmra.mxu0 %v6228
  %v6868 = vpop.f32.mrf.mxu0
  %v6869 = vadd.f32 %v6270, %v6868
  %v6870 = vpop.f32.mrf.mxu0
  %6871 = vmatprep.mubr.f32.mxu0 0.0
  %6872 = vmatmul.mubr.f32.gmra.mxu0 %v6229
  %v6873 = vpop.f32.mrf.mxu0
  %v6874 = vadd.f32 %v6270, %v6873
  %v6875 = vpop.f32.mrf.mxu0
  %6876 = vmatprep.mubr.f32.mxu0 0.0
  %6877 = vmatmul.mubr.f32.gmra.mxu0 %v6230
  %v6878 = vpop.f32.mrf.mxu0
  %v6879 = vadd.f32 %v6270, %v6878
  %v6880 = vpop.f32.mrf.mxu0
  %6881 = vmatprep.mubr.f32.mxu0 0.0
  %6882 = vmatmul.mubr.f32.gmra.mxu0 %v6231
  %v6883 = vpop.f32.mrf.mxu0
  %v6884 = vadd.f32 %v6270, %v6883
  %v6885 = vpop.f32.mrf.mxu0
  %6886 = vmatprep.mubr.f32.mxu0 0.0
  %6887 = vmatmul.mubr.f32.gmra.mxu0 %v6232
  %v6888 = vpop.f32.mrf.mxu0
  %v6889 = vadd.f32 %v6270, %v6888
  %v6890 = vpop.f32.mrf.mxu0
  %6891 = vmatprep.mubr.f32.mxu0 0.0
  %6892 = vmatmul.mubr.f32.gmra.mxu0 %v6233
  %v6893 = vpop.f32.mrf.mxu0
  %v6894 = vadd.f32 %v6270, %v6893
  %v6895 = vpop.f32.mrf.mxu0
  %6896 = vmatprep.mubr.f32.mxu0 0.0
  %6897 = vmatmul.mubr.f32.gmra.mxu0 %v6234
  %v6898 = vpop.f32.mrf.mxu0
  %v6899 = vadd.f32 %v6270, %v6898
  %v6900 = vpop.f32.mrf.mxu0
  %6901 = vmatprep.mubr.f32.mxu0 0.0
  %6902 = vmatmul.mubr.f32.gmra.mxu0 %v6235
  %v6903 = vpop.f32.mrf.mxu0
  %v6904 = vadd.f32 %v6270, %v6903
  %v6905 = vpop.f32.mrf.mxu0
  %6906 = vmatprep.mubr.f32.mxu0 0.0
  %6907 = vmatmul.mubr.f32.gmra.mxu0 %v6236
  %v6908 = vpop.f32.mrf.mxu0
  %v6909 = vadd.f32 %v6270, %v6908
  %v6910 = vpop.f32.mrf.mxu0
  %6911 = vmatprep.mubr.f32.mxu0 0.0
  %6912 = vmatmul.mubr.f32.gmra.mxu0 %v6237
  %v6913 = vpop.f32.mrf.mxu0
  %v6914 = vadd.f32 %v6270, %v6913
  %v6915 = vpop.f32.mrf.mxu0
  %6916 = vmatprep.mubr.f32.mxu0 0.0
  %6917 = vmatmul.mubr.f32.gmra.mxu0 %v6238
  %v6918 = vpop.f32.mrf.mxu0
  %v6919 = vadd.f32 %v6270, %v6918
  %v6920 = vpop.f32.mrf.mxu0
  %6921 = vmatprep.mubr.f32.mxu0 0.0
  %6922 = vmatmul.mubr.f32.gmra.mxu0 %v6239
  %v6923 = vpop.f32.mrf.mxu0
  %v6924 = vadd.f32 %v6270, %v6923
  %v6925 = vpop.f32.mrf.mxu0
  %6926 = vmatprep.mubr.f32.mxu0 0.0
  %6927 = vmatmul.mubr.f32.gmra.mxu0 %v6240
  %v6928 = vpop.f32.mrf.mxu0
  %v6929 = vadd.f32 %v6270, %v6928
  %v6930 = vpop.f32.mrf.mxu0
  %6931 = vmatprep.mubr.f32.mxu0 0.0
  %6932 = vmatmul.mubr.f32.gmra.mxu0 %v6241
  %v6933 = vpop.f32.mrf.mxu0
  %v6934 = vadd.f32 %v6270, %v6933
  %v6935 = vpop.f32.mrf.mxu0
  %6936 = vmatprep.mubr.f32.mxu0 0.0
  %6937 = vmatmul.mubr.f32.gmra.mxu0 %v6242
  %v6938 = vpop.f32.mrf.mxu0
  %v6939 = vadd.f32 %v6270, %v6938
  %v6940 = vpop.f32.mrf.mxu0
  %6941 = vmatprep.mubr.f32.mxu0 0.0
  %6942 = vmatmul.mubr.f32.gmra.mxu0 %v6243
  %v6943 = vpop.f32.mrf.mxu0
  %v6944 = vadd.f32 %v6270, %v6943
  %v6945 = vpop.f32.mrf.mxu0
  %6946 = vmatprep.mubr.f32.mxu0 0.0
  %6947 = vmatmul.mubr.f32.gmra.mxu0 %v6244
  %v6948 = vpop.f32.mrf.mxu0
  %v6949 = vadd.f32 %v6270, %v6948
  %v6950 = vpop.f32.mrf.mxu0
  %6951 = vmatprep.mubr.f32.mxu0 0.0
  %6952 = vmatmul.mubr.f32.gmra.mxu0 %v6245
  %v6953 = vpop.f32.mrf.mxu0
  %v6954 = vadd.f32 %v6270, %v6953
  %v6955 = vpop.f32.mrf.mxu0
  %6956 = vmatprep.mubr.f32.mxu0 0.0
  %6957 = vmatmul.mubr.f32.gmra.mxu0 %v6246
  %v6958 = vpop.f32.mrf.mxu0
  %v6959 = vadd.f32 %v6270, %v6958
  %v6960 = vpop.f32.mrf.mxu0
  %6961 = vdwg.mxu0
  %v6962 = vmul.f32 %v6339, 0.5
  %v6963 = vmul.f32 %v6344, 0.5
  %v6964 = vmul.f32 %v6349, 0.5
  %v6965 = vmul.f32 %v6354, 0.5
  %v6966 = vmul.f32 %v6359, 0.5
  %v6967 = vmul.f32 %v6364, 0.5
  %v6968 = vmul.f32 %v6369, 0.5
  %v6969 = vmul.f32 %v6374, 0.5
  %v6970 = vmul.f32 %v6379, 0.5
  %v6971 = vmul.f32 %v6384, 0.5
  %v6972 = vmul.f32 %v6389, 0.5
  %v6973 = vmul.f32 %v6394, 0.5
  %v6974 = vmul.f32 %v6399, 0.5
  %v6975 = vmul.f32 %v6404, 0.5
  %v6976 = vmul.f32 %v6409, 0.5
  %v6977 = vmul.f32 %v6414, 0.5
  %v6978 = vmul.f32 %v6419, 0.5
  %v6979 = vmul.f32 %v6424, 0.5
  %v6980 = vmul.f32 %v6429, 0.5
  %v6981 = vmul.f32 %v6434, 0.5
  %v6982 = vmul.f32 %v6439, 0.5
  %v6983 = vmul.f32 %v6444, 0.5
  %v6984 = vmul.f32 %v6449, 0.5
  %v6985 = vmul.f32 %v6454, 0.5
  %v6986 = vmul.f32 %v6459, 0.5
  %v6987 = vmul.f32 %v6464, 0.5
  %v6988 = vmul.f32 %v6469, 0.5
  %v6989 = vmul.f32 %v6474, 0.5
  %v6990 = vmul.f32 %v6479, 0.5
  %v6991 = vmul.f32 %v6484, 0.5
  %v6992 = vmul.f32 %v6489, 0.5
  %v6993 = vmul.f32 %v6494, 0.5
  %v6994 = vmul.f32 %v6499, 0.5
  %v6995 = vmul.f32 %v6504, 0.5
  %v6996 = vmul.f32 %v6509, 0.5
  %v6997 = vmul.f32 %v6514, 0.5
  %v6998 = vmul.f32 %v6519, 0.5
  %v6999 = vmul.f32 %v6524, 0.5
  %v7000 = vmul.f32 %v6529, 0.5
  %v7001 = vmul.f32 %v6534, 0.5
  %v7002 = vmul.f32 %v6539, 0.5
  %v7003 = vmul.f32 %v6544, 0.5
  %v7004 = vmul.f32 %v6549, 0.5
  %v7005 = vmul.f32 %v6554, 0.5
  %v7006 = vmul.f32 %v6559, 0.5
  %v7007 = vmul.f32 %v6564, 0.5
  %v7008 = vmul.f32 %v6569, 0.5
  %v7009 = vmul.f32 %v6574, 0.5
  %v7010 = vmul.f32 %v6579, 0.5
  %v7011 = vmul.f32 %v6584, 0.5
  %v7012 = vmul.f32 %v6589, 0.5
  %v7013 = vmul.f32 %v6594, 0.5
  %v7014 = vmul.f32 %v6599, 0.5
  %v7015 = vmul.f32 %v6604, 0.5
  %v7016 = vmul.f32 %v6609, 0.5
  %v7017 = vmul.f32 %v6614, 0.5
  %v7018 = vmul.f32 %v6619, 0.5
  %v7019 = vmul.f32 %v6624, 0.5
  %v7020 = vmul.f32 %v6629, 0.5
  %v7021 = vmul.f32 %v6634, 0.5
  %v7022 = vmul.f32 %v6639, 0.5
  %v7023 = vmul.f32 %v6644, 0.5
  %v7024 = vmul.f32 %v6649, 0.5
  %v7025 = vmul.f32 %v6654, 0.5
  %v7026 = vmul.f32 %v6659, 0.5
  %v7027 = vmul.f32 %v6664, 0.5
  %v7028 = vmul.f32 %v6669, 0.5
  %v7029 = vmul.f32 %v6674, 0.5
  %v7030 = vmul.f32 %v6679, 0.5
  %v7031 = vmul.f32 %v6684, 0.5
  %v7032 = vmul.f32 %v6689, 0.5
  %v7033 = vmul.f32 %v6694, 0.5
  %v7034 = vmul.f32 %v6699, 0.5
  %v7035 = vmul.f32 %v6704, 0.5
  %v7036 = vmul.f32 %v6709, 0.5
  %v7037 = vmul.f32 %v6714, 0.5
  %v7038 = vmul.f32 %v6719, 0.5
  %v7039 = vmul.f32 %v6724, 0.5
  %v7040 = vmul.f32 %v6729, 0.5
  %v7041 = vmul.f32 %v6734, 0.5
  %v7042 = vmul.f32 %v6739, 0.5
  %v7043 = vmul.f32 %v6744, 0.5
  %v7044 = vmul.f32 %v6749, 0.5
  %v7045 = vmul.f32 %v6754, 0.5
  %v7046 = vmul.f32 %v6759, 0.5
  %v7047 = vmul.f32 %v6764, 0.5
  %v7048 = vmul.f32 %v6769, 0.5
  %v7049 = vmul.f32 %v6774, 0.5
  %v7050 = vmul.f32 %v6779, 0.5
  %v7051 = vmul.f32 %v6784, 0.5
  %v7052 = vmul.f32 %v6789, 0.5
  %v7053 = vmul.f32 %v6794, 0.5
  %v7054 = vmul.f32 %v6799, 0.5
  %v7055 = vmul.f32 %v6804, 0.5
  %v7056 = vmul.f32 %v6809, 0.5
  %v7057 = vmul.f32 %v6814, 0.5
  %v7058 = vmul.f32 %v6819, 0.5
  %v7059 = vmul.f32 %v6824, 0.5
  %v7060 = vmul.f32 %v6829, 0.5
  %v7061 = vmul.f32 %v6834, 0.5
  %v7062 = vmul.f32 %v6839, 0.5
  %v7063 = vmul.f32 %v6844, 0.5
  %v7064 = vmul.f32 %v6849, 0.5
  %v7065 = vmul.f32 %v6854, 0.5
  %v7066 = vmul.f32 %v6859, 0.5
  %v7067 = vmul.f32 %v6864, 0.5
  %v7068 = vmul.f32 %v6869, 0.5
  %v7069 = vmul.f32 %v6874, 0.5
  %v7070 = vmul.f32 %v6879, 0.5
  %v7071 = vmul.f32 %v6884, 0.5
  %v7072 = vmul.f32 %v6889, 0.5
  %v7073 = vmul.f32 %v6894, 0.5
  %v7074 = vmul.f32 %v6899, 0.5
  %v7075 = vmul.f32 %v6904, 0.5
  %v7076 = vmul.f32 %v6909, 0.5
  %v7077 = vmul.f32 %v6914, 0.5
  %v7078 = vmul.f32 %v6919, 0.5
  %v7079 = vmul.f32 %v6924, 0.5
  %v7080 = vmul.f32 %v6929, 0.5
  %v7081 = vmul.f32 %v6934, 0.5
  %v7082 = vmul.f32 %v6939, 0.5
  %v7083 = vmul.f32 %v6944, 0.5
  %v7084 = vmul.f32 %v6949, 0.5
  %v7085 = vmul.f32 %v6954, 0.5
  %v7086 = vmul.f32 %v6959, 0.5
  %v7087 = vtanh.pop %v6962
  %v7088 = vtanh.pop %v6963
  %v7089 = vtanh.pop %v6964
  %v7090 = vtanh.pop %v6965
  %v7091 = vtanh.pop %v6966
  %v7092 = vtanh.pop %v6967
  %v7093 = vtanh.pop %v6968
  %v7094 = vtanh.pop %v6969
  %v7095 = vtanh.pop %v6970
  %v7096 = vtanh.pop %v6971
  %v7097 = vtanh.pop %v6972
  %v7098 = vtanh.pop %v6973
  %v7099 = vtanh.pop %v6974
  %v7100 = vtanh.pop %v6975
  %v7101 = vtanh.pop %v6976
  %v7102 = vtanh.pop %v6977
  %v7103 = vtanh.pop %v6978
  %v7104 = vtanh.pop %v6979
  %v7105 = vtanh.pop %v6980
  %v7106 = vtanh.pop %v6981
  %v7107 = vtanh.pop %v6982
  %v7108 = vtanh.pop %v6983
  %v7109 = vtanh.pop %v6984
  %v7110 = vtanh.pop %v6985
  %v7111 = vtanh.pop %v6986
  %v7112 = vtanh.pop %v6987
  %v7113 = vtanh.pop %v6988
  %v7114 = vtanh.pop %v6989
  %v7115 = vtanh.pop %v6990
  %v7116 = vtanh.pop %v6991
  %v7117 = vtanh.pop %v6992
  %v7118 = vtanh.pop %v6993
  %v7119 = vtanh.pop %v6994
  %v7120 = vtanh.pop %v6995
  %v7121 = vtanh.pop %v6996
  %v7122 = vtanh.pop %v6997
  %v7123 = vtanh.pop %v6998
  %v7124 = vtanh.pop %v6999
  %v7125 = vtanh.pop %v7000
  %v7126 = vtanh.pop %v7001
  %v7127 = vtanh.pop %v7002
  %v7128 = vtanh.pop %v7003
  %v7129 = vtanh.pop %v7004
  %v7130 = vtanh.pop %v7005
  %v7131 = vtanh.pop %v7006
  %v7132 = vtanh.pop %v7007
  %v7133 = vtanh.pop %v7008
  %v7134 = vtanh.pop %v7009
  %v7135 = vtanh.pop %v7010
  %v7136 = vtanh.pop %v7011
  %v7137 = vtanh.pop %v7012
  %v7138 = vtanh.pop %v7013
  %v7139 = vtanh.pop %v7014
  %v7140 = vtanh.pop %v7015
  %v7141 = vtanh.pop %v7016
  %v7142 = vtanh.pop %v7017
  %v7143 = vtanh.pop %v7018
  %v7144 = vtanh.pop %v7019
  %v7145 = vtanh.pop %v7020
  %v7146 = vtanh.pop %v7021
  %v7147 = vtanh.pop %v7022
  %v7148 = vtanh.pop %v7023
  %v7149 = vtanh.pop %v7024
  %v7150 = vtanh.pop %v7025
  %v7151 = vtanh.pop %v7026
  %v7152 = vtanh.pop %v7027
  %v7153 = vtanh.pop %v7028
  %v7154 = vtanh.pop %v7029
  %v7155 = vtanh.pop %v7030
  %v7156 = vtanh.pop %v7031
  %v7157 = vtanh.pop %v7032
  %v7158 = vtanh.pop %v7033
  %v7159 = vtanh.pop %v7034
  %v7160 = vtanh.pop %v7035
  %v7161 = vtanh.pop %v7036
  %v7162 = vtanh.pop %v7037
  %v7163 = vtanh.pop %v7038
  %v7164 = vtanh.pop %v7039
  %v7165 = vtanh.pop %v7040
  %v7166 = vtanh.pop %v7041
  %v7167 = vtanh.pop %v7042
  %v7168 = vtanh.pop %v7043
  %v7169 = vtanh.pop %v7044
  %v7170 = vtanh.pop %v7045
  %v7171 = vtanh.pop %v7046
  %v7172 = vtanh.pop %v7047
  %v7173 = vtanh.pop %v7048
  %v7174 = vtanh.pop %v7049
  %v7175 = vtanh.pop %v7050
  %v7176 = vtanh.pop %v7051
  %v7177 = vtanh.pop %v7052
  %v7178 = vtanh.pop %v7053
  %v7179 = vtanh.pop %v7054
  %v7180 = vtanh.pop %v7055
  %v7181 = vtanh.pop %v7056
  %v7182 = vtanh.pop %v7057
  %v7183 = vtanh.pop %v7058
  %v7184 = vtanh.pop %v7059
  %v7185 = vtanh.pop %v7060
  %v7186 = vtanh.pop %v7061
  %v7187 = vtanh.pop %v7062
  %v7188 = vtanh.pop %v7063
  %v7189 = vtanh.pop %v7064
  %v7190 = vtanh.pop %v7065
  %v7191 = vtanh.pop %v7066
  %v7192 = vtanh.pop %v7067
  %v7193 = vtanh.pop %v7068
  %v7194 = vtanh.pop %v7069
  %v7195 = vtanh.pop %v7070
  %v7196 = vtanh.pop %v7071
  %v7197 = vtanh.pop %v7072
  %v7198 = vtanh.pop %v7073
  %v7199 = vtanh.pop %v7074
  %v7200 = vtanh.pop %v7075
  %v7201 = vtanh.pop %v7076
  %v7202 = vtanh.pop %v7077
  %v7203 = vtanh.pop %v7078
  %v7204 = vtanh.pop %v7079
  %v7205 = vtanh.pop %v7080
  %v7206 = vtanh.pop %v7081
  %v7207 = vtanh.pop %v7082
  %v7208 = vtanh.pop %v7083
  %v7209 = vtanh.pop %v7084
  %v7210 = vtanh.pop %v7085
  %v7211 = vtanh.pop %v7086
  %v7212 = vmul.f32 %v7087, 0.5
  %v7213 = vmul.f32 %v7088, 0.5
  %v7214 = vmul.f32 %v7089, 0.5
  %v7215 = vmul.f32 %v7090, 0.5
  %v7216 = vmul.f32 %v7091, 0.5
  %v7217 = vmul.f32 %v7092, 0.5
  %v7218 = vmul.f32 %v7093, 0.5
  %v7219 = vmul.f32 %v7094, 0.5
  %v7220 = vmul.f32 %v7095, 0.5
  %v7221 = vmul.f32 %v7096, 0.5
  %v7222 = vmul.f32 %v7097, 0.5
  %v7223 = vmul.f32 %v7098, 0.5
  %v7224 = vmul.f32 %v7099, 0.5
  %v7225 = vmul.f32 %v7100, 0.5
  %v7226 = vmul.f32 %v7101, 0.5
  %v7227 = vmul.f32 %v7102, 0.5
  %v7228 = vmul.f32 %v7103, 0.5
  %v7229 = vmul.f32 %v7104, 0.5
  %v7230 = vmul.f32 %v7105, 0.5
  %v7231 = vmul.f32 %v7106, 0.5
  %v7232 = vmul.f32 %v7107, 0.5
  %v7233 = vmul.f32 %v7108, 0.5
  %v7234 = vmul.f32 %v7109, 0.5
  %v7235 = vmul.f32 %v7110, 0.5
  %v7236 = vmul.f32 %v7111, 0.5
  %v7237 = vmul.f32 %v7112, 0.5
  %v7238 = vmul.f32 %v7113, 0.5
  %v7239 = vmul.f32 %v7114, 0.5
  %v7240 = vmul.f32 %v7115, 0.5
  %v7241 = vmul.f32 %v7116, 0.5
  %v7242 = vmul.f32 %v7117, 0.5
  %v7243 = vmul.f32 %v7118, 0.5
  %v7244 = vmul.f32 %v7119, 0.5
  %v7245 = vmul.f32 %v7120, 0.5
  %v7246 = vmul.f32 %v7121, 0.5
  %v7247 = vmul.f32 %v7122, 0.5
  %v7248 = vmul.f32 %v7123, 0.5
  %v7249 = vmul.f32 %v7124, 0.5
  %v7250 = vmul.f32 %v7125, 0.5
  %v7251 = vmul.f32 %v7126, 0.5
  %v7252 = vmul.f32 %v7127, 0.5
  %v7253 = vmul.f32 %v7128, 0.5
  %v7254 = vmul.f32 %v7129, 0.5
  %v7255 = vmul.f32 %v7130, 0.5
  %v7256 = vmul.f32 %v7131, 0.5
  %v7257 = vmul.f32 %v7132, 0.5
  %v7258 = vmul.f32 %v7133, 0.5
  %v7259 = vmul.f32 %v7134, 0.5
  %v7260 = vmul.f32 %v7135, 0.5
  %v7261 = vmul.f32 %v7136, 0.5
  %v7262 = vmul.f32 %v7137, 0.5
  %v7263 = vmul.f32 %v7138, 0.5
  %v7264 = vmul.f32 %v7139, 0.5
  %v7265 = vmul.f32 %v7140, 0.5
  %v7266 = vmul.f32 %v7141, 0.5
  %v7267 = vmul.f32 %v7142, 0.5
  %v7268 = vmul.f32 %v7143, 0.5
  %v7269 = vmul.f32 %v7144, 0.5
  %v7270 = vmul.f32 %v7145, 0.5
  %v7271 = vmul.f32 %v7146, 0.5
  %v7272 = vmul.f32 %v7147, 0.5
  %v7273 = vmul.f32 %v7148, 0.5
  %v7274 = vmul.f32 %v7149, 0.5
  %v7275 = vmul.f32 %v7150, 0.5
  %v7276 = vmul.f32 %v7151, 0.5
  %v7277 = vmul.f32 %v7152, 0.5
  %v7278 = vmul.f32 %v7153, 0.5
  %v7279 = vmul.f32 %v7154, 0.5
  %v7280 = vmul.f32 %v7155, 0.5
  %v7281 = vmul.f32 %v7156, 0.5
  %v7282 = vmul.f32 %v7157, 0.5
  %v7283 = vmul.f32 %v7158, 0.5
  %v7284 = vmul.f32 %v7159, 0.5
  %v7285 = vmul.f32 %v7160, 0.5
  %v7286 = vmul.f32 %v7161, 0.5
  %v7287 = vmul.f32 %v7162, 0.5
  %v7288 = vmul.f32 %v7163, 0.5
  %v7289 = vmul.f32 %v7164, 0.5
  %v7290 = vmul.f32 %v7165, 0.5
  %v7291 = vmul.f32 %v7166, 0.5
  %v7292 = vmul.f32 %v7167, 0.5
  %v7293 = vmul.f32 %v7168, 0.5
  %v7294 = vmul.f32 %v7169, 0.5
  %v7295 = vmul.f32 %v7170, 0.5
  %v7296 = vmul.f32 %v7171, 0.5
  %v7297 = vmul.f32 %v7172, 0.5
  %v7298 = vmul.f32 %v7173, 0.5
  %v7299 = vmul.f32 %v7174, 0.5
  %v7300 = vmul.f32 %v7175, 0.5
  %v7301 = vmul.f32 %v7176, 0.5
  %v7302 = vmul.f32 %v7177, 0.5
  %v7303 = vmul.f32 %v7178, 0.5
  %v7304 = vmul.f32 %v7179, 0.5
  %v7305 = vmul.f32 %v7180, 0.5
  %v7306 = vmul.f32 %v7181, 0.5
  %v7307 = vmul.f32 %v7182, 0.5
  %v7308 = vmul.f32 %v7183, 0.5
  %v7309 = vmul.f32 %v7184, 0.5
  %v7310 = vmul.f32 %v7185, 0.5
  %v7311 = vmul.f32 %v7186, 0.5
  %v7312 = vmul.f32 %v7187, 0.5
  %v7313 = vmul.f32 %v7188, 0.5
  %v7314 = vmul.f32 %v7189, 0.5
  %v7315 = vmul.f32 %v7190, 0.5
  %v7316 = vmul.f32 %v7191, 0.5
  %v7317 = vmul.f32 %v7192, 0.5
  %v7318 = vmul.f32 %v7193, 0.5
  %v7319 = vmul.f32 %v7194, 0.5
  %v7320 = vmul.f32 %v7195, 0.5
  %v7321 = vmul.f32 %v7196, 0.5
  %v7322 = vmul.f32 %v7197, 0.5
  %v7323 = vmul.f32 %v7198, 0.5
  %v7324 = vmul.f32 %v7199, 0.5
  %v7325 = vmul.f32 %v7200, 0.5
  %v7326 = vmul.f32 %v7201, 0.5
  %v7327 = vmul.f32 %v7202, 0.5
  %v7328 = vmul.f32 %v7203, 0.5
  %v7329 = vmul.f32 %v7204, 0.5
  %v7330 = vmul.f32 %v7205, 0.5
  %v7331 = vmul.f32 %v7206, 0.5
  %v7332 = vmul.f32 %v7207, 0.5
  %v7333 = vmul.f32 %v7208, 0.5
  %v7334 = vmul.f32 %v7209, 0.5
  %v7335 = vmul.f32 %v7210, 0.5
  %v7336 = vmul.f32 %v7211, 0.5
  %v7337 = vadd.f32 %v7212, 0.5
  %v7338 = vadd.f32 %v7213, 0.5
  %v7339 = vadd.f32 %v7214, 0.5
  %v7340 = vadd.f32 %v7215, 0.5
  %v7341 = vadd.f32 %v7216, 0.5
  %v7342 = vadd.f32 %v7217, 0.5
  %v7343 = vadd.f32 %v7218, 0.5
  %v7344 = vadd.f32 %v7219, 0.5
  %v7345 = vadd.f32 %v7220, 0.5
  %v7346 = vadd.f32 %v7221, 0.5
  %v7347 = vadd.f32 %v7222, 0.5
  %v7348 = vadd.f32 %v7223, 0.5
  %v7349 = vadd.f32 %v7224, 0.5
  %v7350 = vadd.f32 %v7225, 0.5
  %v7351 = vadd.f32 %v7226, 0.5
  %v7352 = vadd.f32 %v7227, 0.5
  %v7353 = vadd.f32 %v7228, 0.5
  %v7354 = vadd.f32 %v7229, 0.5
  %v7355 = vadd.f32 %v7230, 0.5
  %v7356 = vadd.f32 %v7231, 0.5
  %v7357 = vadd.f32 %v7232, 0.5
  %v7358 = vadd.f32 %v7233, 0.5
  %v7359 = vadd.f32 %v7234, 0.5
  %v7360 = vadd.f32 %v7235, 0.5
  %v7361 = vadd.f32 %v7236, 0.5
  %v7362 = vadd.f32 %v7237, 0.5
  %v7363 = vadd.f32 %v7238, 0.5
  %v7364 = vadd.f32 %v7239, 0.5
  %v7365 = vadd.f32 %v7240, 0.5
  %v7366 = vadd.f32 %v7241, 0.5
  %v7367 = vadd.f32 %v7242, 0.5
  %v7368 = vadd.f32 %v7243, 0.5
  %v7369 = vadd.f32 %v7244, 0.5
  %v7370 = vadd.f32 %v7245, 0.5
  %v7371 = vadd.f32 %v7246, 0.5
  %v7372 = vadd.f32 %v7247, 0.5
  %v7373 = vadd.f32 %v7248, 0.5
  %v7374 = vadd.f32 %v7249, 0.5
  %v7375 = vadd.f32 %v7250, 0.5
  %v7376 = vadd.f32 %v7251, 0.5
  %v7377 = vadd.f32 %v7252, 0.5
  %v7378 = vadd.f32 %v7253, 0.5
  %v7379 = vadd.f32 %v7254, 0.5
  %v7380 = vadd.f32 %v7255, 0.5
  %v7381 = vadd.f32 %v7256, 0.5
  %v7382 = vadd.f32 %v7257, 0.5
  %v7383 = vadd.f32 %v7258, 0.5
  %v7384 = vadd.f32 %v7259, 0.5
  %v7385 = vadd.f32 %v7260, 0.5
  %v7386 = vadd.f32 %v7261, 0.5
  %v7387 = vadd.f32 %v7262, 0.5
  %v7388 = vadd.f32 %v7263, 0.5
  %v7389 = vadd.f32 %v7264, 0.5
  %v7390 = vadd.f32 %v7265, 0.5
  %v7391 = vadd.f32 %v7266, 0.5
  %v7392 = vadd.f32 %v7267, 0.5
  %v7393 = vadd.f32 %v7268, 0.5
  %v7394 = vadd.f32 %v7269, 0.5
  %v7395 = vadd.f32 %v7270, 0.5
  %v7396 = vadd.f32 %v7271, 0.5
  %v7397 = vadd.f32 %v7272, 0.5
  %v7398 = vadd.f32 %v7273, 0.5
  %v7399 = vadd.f32 %v7274, 0.5
  %v7400 = vadd.f32 %v7275, 0.5
  %v7401 = vadd.f32 %v7276, 0.5
  %v7402 = vadd.f32 %v7277, 0.5
  %v7403 = vadd.f32 %v7278, 0.5
  %v7404 = vadd.f32 %v7279, 0.5
  %v7405 = vadd.f32 %v7280, 0.5
  %v7406 = vadd.f32 %v7281, 0.5
  %v7407 = vadd.f32 %v7282, 0.5
  %v7408 = vadd.f32 %v7283, 0.5
  %v7409 = vadd.f32 %v7284, 0.5
  %v7410 = vadd.f32 %v7285, 0.5
  %v7411 = vadd.f32 %v7286, 0.5
  %v7412 = vadd.f32 %v7287, 0.5
  %v7413 = vadd.f32 %v7288, 0.5
  %v7414 = vadd.f32 %v7289, 0.5
  %v7415 = vadd.f32 %v7290, 0.5
  %v7416 = vadd.f32 %v7291, 0.5
  %v7417 = vadd.f32 %v7292, 0.5
  %v7418 = vadd.f32 %v7293, 0.5
  %v7419 = vadd.f32 %v7294, 0.5
  %v7420 = vadd.f32 %v7295, 0.5
  %v7421 = vadd.f32 %v7296, 0.5
  %v7422 = vadd.f32 %v7297, 0.5
  %v7423 = vadd.f32 %v7298, 0.5
  %v7424 = vadd.f32 %v7299, 0.5
  %v7425 = vadd.f32 %v7300, 0.5
  %v7426 = vadd.f32 %v7301, 0.5
  %v7427 = vadd.f32 %v7302, 0.5
  %v7428 = vadd.f32 %v7303, 0.5
  %v7429 = vadd.f32 %v7304, 0.5
  %v7430 = vadd.f32 %v7305, 0.5
  %v7431 = vadd.f32 %v7306, 0.5
  %v7432 = vadd.f32 %v7307, 0.5
  %v7433 = vadd.f32 %v7308, 0.5
  %v7434 = vadd.f32 %v7309, 0.5
  %v7435 = vadd.f32 %v7310, 0.5
  %v7436 = vadd.f32 %v7311, 0.5
  %v7437 = vadd.f32 %v7312, 0.5
  %v7438 = vadd.f32 %v7313, 0.5
  %v7439 = vadd.f32 %v7314, 0.5
  %v7440 = vadd.f32 %v7315, 0.5
  %v7441 = vadd.f32 %v7316, 0.5
  %v7442 = vadd.f32 %v7317, 0.5
  %v7443 = vadd.f32 %v7318, 0.5
  %v7444 = vadd.f32 %v7319, 0.5
  %v7445 = vadd.f32 %v7320, 0.5
  %v7446 = vadd.f32 %v7321, 0.5
  %v7447 = vadd.f32 %v7322, 0.5
  %v7448 = vadd.f32 %v7323, 0.5
  %v7449 = vadd.f32 %v7324, 0.5
  %v7450 = vadd.f32 %v7325, 0.5
  %v7451 = vadd.f32 %v7326, 0.5
  %v7452 = vadd.f32 %v7327, 0.5
  %v7453 = vadd.f32 %v7328, 0.5
  %v7454 = vadd.f32 %v7329, 0.5
  %v7455 = vadd.f32 %v7330, 0.5
  %v7456 = vadd.f32 %v7331, 0.5
  %v7457 = vadd.f32 %v7332, 0.5
  %v7458 = vadd.f32 %v7333, 0.5
  %v7459 = vadd.f32 %v7334, 0.5
  %v7460 = vadd.f32 %v7335, 0.5
  %v7461 = vadd.f32 %v7336, 0.5
  %v7462 = vmul.f32 %v6339, %v7337
  %v7463 = vmul.f32 %v6344, %v7338
  %v7464 = vmul.f32 %v6349, %v7339
  %v7465 = vmul.f32 %v6354, %v7340
  %v7466 = vmul.f32 %v6359, %v7341
  %v7467 = vmul.f32 %v6364, %v7342
  %v7468 = vmul.f32 %v6369, %v7343
  %v7469 = vmul.f32 %v6374, %v7344
  %v7470 = vmul.f32 %v6379, %v7345
  %v7471 = vmul.f32 %v6384, %v7346
  %v7472 = vmul.f32 %v6389, %v7347
  %v7473 = vmul.f32 %v6394, %v7348
  %v7474 = vmul.f32 %v6399, %v7349
  %v7475 = vmul.f32 %v6404, %v7350
  %v7476 = vmul.f32 %v6409, %v7351
  %v7477 = vmul.f32 %v6414, %v7352
  %v7478 = vmul.f32 %v6419, %v7353
  %v7479 = vmul.f32 %v6424, %v7354
  %v7480 = vmul.f32 %v6429, %v7355
  %v7481 = vmul.f32 %v6434, %v7356
  %v7482 = vmul.f32 %v6439, %v7357
  %v7483 = vmul.f32 %v6444, %v7358
  %v7484 = vmul.f32 %v6449, %v7359
  %v7485 = vmul.f32 %v6454, %v7360
  %v7486 = vmul.f32 %v6459, %v7361
  %v7487 = vmul.f32 %v6464, %v7362
  %v7488 = vmul.f32 %v6469, %v7363
  %v7489 = vmul.f32 %v6474, %v7364
  %v7490 = vmul.f32 %v6479, %v7365
  %v7491 = vmul.f32 %v6484, %v7366
  %v7492 = vmul.f32 %v6489, %v7367
  %v7493 = vmul.f32 %v6494, %v7368
  %v7494 = vmul.f32 %v6499, %v7369
  %v7495 = vmul.f32 %v6504, %v7370
  %v7496 = vmul.f32 %v6509, %v7371
  %v7497 = vmul.f32 %v6514, %v7372
  %v7498 = vmul.f32 %v6519, %v7373
  %v7499 = vmul.f32 %v6524, %v7374
  %v7500 = vmul.f32 %v6529, %v7375
  %v7501 = vmul.f32 %v6534, %v7376
  %v7502 = vmul.f32 %v6539, %v7377
  %v7503 = vmul.f32 %v6544, %v7378
  %v7504 = vmul.f32 %v6549, %v7379
  %v7505 = vmul.f32 %v6554, %v7380
  %v7506 = vmul.f32 %v6559, %v7381
  %v7507 = vmul.f32 %v6564, %v7382
  %v7508 = vmul.f32 %v6569, %v7383
  %v7509 = vmul.f32 %v6574, %v7384
  %v7510 = vmul.f32 %v6579, %v7385
  %v7511 = vmul.f32 %v6584, %v7386
  %v7512 = vmul.f32 %v6589, %v7387
  %v7513 = vmul.f32 %v6594, %v7388
  %v7514 = vmul.f32 %v6599, %v7389
  %v7515 = vmul.f32 %v6604, %v7390
  %v7516 = vmul.f32 %v6609, %v7391
  %v7517 = vmul.f32 %v6614, %v7392
  %v7518 = vmul.f32 %v6619, %v7393
  %v7519 = vmul.f32 %v6624, %v7394
  %v7520 = vmul.f32 %v6629, %v7395
  %v7521 = vmul.f32 %v6634, %v7396
  %v7522 = vmul.f32 %v6639, %v7397
  %v7523 = vmul.f32 %v6644, %v7398
  %v7524 = vmul.f32 %v6649, %v7399
  %v7525 = vmul.f32 %v6654, %v7400
  %v7526 = vmul.f32 %v6659, %v7401
  %v7527 = vmul.f32 %v6664, %v7402
  %v7528 = vmul.f32 %v6669, %v7403
  %v7529 = vmul.f32 %v6674, %v7404
  %v7530 = vmul.f32 %v6679, %v7405
  %v7531 = vmul.f32 %v6684, %v7406
  %v7532 = vmul.f32 %v6689, %v7407
  %v7533 = vmul.f32 %v6694, %v7408
  %v7534 = vmul.f32 %v6699, %v7409
  %v7535 = vmul.f32 %v6704, %v7410
  %v7536 = vmul.f32 %v6709, %v7411
  %v7537 = vmul.f32 %v6714, %v7412
  %v7538 = vmul.f32 %v6719, %v7413
  %v7539 = vmul.f32 %v6724, %v7414
  %v7540 = vmul.f32 %v6729, %v7415
  %v7541 = vmul.f32 %v6734, %v7416
  %v7542 = vmul.f32 %v6739, %v7417
  %v7543 = vmul.f32 %v6744, %v7418
  %v7544 = vmul.f32 %v6749, %v7419
  %v7545 = vmul.f32 %v6754, %v7420
  %v7546 = vmul.f32 %v6759, %v7421
  %v7547 = vmul.f32 %v6764, %v7422
  %v7548 = vmul.f32 %v6769, %v7423
  %v7549 = vmul.f32 %v6774, %v7424
  %v7550 = vmul.f32 %v6779, %v7425
  %v7551 = vmul.f32 %v6784, %v7426
  %v7552 = vmul.f32 %v6789, %v7427
  %v7553 = vmul.f32 %v6794, %v7428
  %v7554 = vmul.f32 %v6799, %v7429
  %v7555 = vmul.f32 %v6804, %v7430
  %v7556 = vmul.f32 %v6809, %v7431
  %v7557 = vmul.f32 %v6814, %v7432
  %v7558 = vmul.f32 %v6819, %v7433
  %v7559 = vmul.f32 %v6824, %v7434
  %v7560 = vmul.f32 %v6829, %v7435
  %v7561 = vmul.f32 %v6834, %v7436
  %v7562 = vmul.f32 %v6839, %v7437
  %v7563 = vmul.f32 %v6844, %v7438
  %v7564 = vmul.f32 %v6849, %v7439
  %v7565 = vmul.f32 %v6854, %v7440
  %v7566 = vmul.f32 %v6859, %v7441
  %v7567 = vmul.f32 %v6864, %v7442
  %v7568 = vmul.f32 %v6869, %v7443
  %v7569 = vmul.f32 %v6874, %v7444
  %v7570 = vmul.f32 %v6879, %v7445
  %v7571 = vmul.f32 %v6884, %v7446
  %v7572 = vmul.f32 %v6889, %v7447
  %v7573 = vmul.f32 %v6894, %v7448
  %v7574 = vmul.f32 %v6899, %v7449
  %v7575 = vmul.f32 %v6904, %v7450
  %v7576 = vmul.f32 %v6909, %v7451
  %v7577 = vmul.f32 %v6914, %v7452
  %v7578 = vmul.f32 %v6919, %v7453
  %v7579 = vmul.f32 %v6924, %v7454
  %v7580 = vmul.f32 %v6929, %v7455
  %v7581 = vmul.f32 %v6934, %v7456
  %v7582 = vmul.f32 %v6939, %v7457
  %v7583 = vmul.f32 %v6944, %v7458
  %v7584 = vmul.f32 %v6949, %v7459
  %v7585 = vmul.f32 %v6954, %v7460
  %v7586 = vmul.f32 %v6959, %v7461
  %v7587 = vadd.f32 %v7462, %v6122
  %v7588 = vadd.f32 %v7463, %v6123
  %v7589 = vadd.f32 %v7464, %v6124
  %v7590 = vadd.f32 %v7465, %v6125
  %v7591 = vadd.f32 %v7466, %v6126
  %v7592 = vadd.f32 %v7467, %v6127
  %v7593 = vadd.f32 %v7468, %v6128
  %v7594 = vadd.f32 %v7469, %v6129
  %v7595 = vadd.f32 %v7470, %v6130
  %v7596 = vadd.f32 %v7471, %v6131
  %v7597 = vadd.f32 %v7472, %v6132
  %v7598 = vadd.f32 %v7473, %v6133
  %v7599 = vadd.f32 %v7474, %v6134
  %v7600 = vadd.f32 %v7475, %v6135
  %v7601 = vadd.f32 %v7476, %v6136
  %v7602 = vadd.f32 %v7477, %v6137
  %v7603 = vadd.f32 %v7478, %v6138
  %v7604 = vadd.f32 %v7479, %v6139
  %v7605 = vadd.f32 %v7480, %v6140
  %v7606 = vadd.f32 %v7481, %v6141
  %v7607 = vadd.f32 %v7482, %v6142
  %v7608 = vadd.f32 %v7483, %v6143
  %v7609 = vadd.f32 %v7484, %v6144
  %v7610 = vadd.f32 %v7485, %v6145
  %v7611 = vadd.f32 %v7486, %v6146
  %v7612 = vadd.f32 %v7487, %v6147
  %v7613 = vadd.f32 %v7488, %v6148
  %v7614 = vadd.f32 %v7489, %v6149
  %v7615 = vadd.f32 %v7490, %v6150
  %v7616 = vadd.f32 %v7491, %v6151
  %v7617 = vadd.f32 %v7492, %v6152
  %v7618 = vadd.f32 %v7493, %v6153
  %v7619 = vadd.f32 %v7494, %v6154
  %v7620 = vadd.f32 %v7495, %v6155
  %v7621 = vadd.f32 %v7496, %v6156
  %v7622 = vadd.f32 %v7497, %v6157
  %v7623 = vadd.f32 %v7498, %v6158
  %v7624 = vadd.f32 %v7499, %v6159
  %v7625 = vadd.f32 %v7500, %v6160
  %v7626 = vadd.f32 %v7501, %v6161
  %v7627 = vadd.f32 %v7502, %v6162
  %v7628 = vadd.f32 %v7503, %v6163
  %v7629 = vadd.f32 %v7504, %v6164
  %v7630 = vadd.f32 %v7505, %v6165
  %v7631 = vadd.f32 %v7506, %v6166
  %v7632 = vadd.f32 %v7507, %v6167
  %v7633 = vadd.f32 %v7508, %v6168
  %v7634 = vadd.f32 %v7509, %v6169
  %v7635 = vadd.f32 %v7510, %v6170
  %v7636 = vadd.f32 %v7511, %v6171
  %v7637 = vadd.f32 %v7512, %v6172
  %v7638 = vadd.f32 %v7513, %v6173
  %v7639 = vadd.f32 %v7514, %v6174
  %v7640 = vadd.f32 %v7515, %v6175
  %v7641 = vadd.f32 %v7516, %v6176
  %v7642 = vadd.f32 %v7517, %v6177
  %v7643 = vadd.f32 %v7518, %v6178
  %v7644 = vadd.f32 %v7519, %v6179
  %v7645 = vadd.f32 %v7520, %v6180
  %v7646 = vadd.f32 %v7521, %v6181
  %v7647 = vadd.f32 %v7522, %v6182
  %v7648 = vadd.f32 %v7523, %v6183
  %v7649 = vadd.f32 %v7524, %v6184
  %v7650 = vadd.f32 %v7525, %v6185
  %v7651 = vadd.f32 %v7526, %v6186
  %v7652 = vadd.f32 %v7527, %v6187
  %v7653 = vadd.f32 %v7528, %v6188
  %v7654 = vadd.f32 %v7529, %v6189
  %v7655 = vadd.f32 %v7530, %v6190
  %v7656 = vadd.f32 %v7531, %v6191
  %v7657 = vadd.f32 %v7532, %v6192
  %v7658 = vadd.f32 %v7533, %v6193
  %v7659 = vadd.f32 %v7534, %v6194
  %v7660 = vadd.f32 %v7535, %v6195
  %v7661 = vadd.f32 %v7536, %v6196
  %v7662 = vadd.f32 %v7537, %v6197
  %v7663 = vadd.f32 %v7538, %v6198
  %v7664 = vadd.f32 %v7539, %v6199
  %v7665 = vadd.f32 %v7540, %v6200
  %v7666 = vadd.f32 %v7541, %v6201
  %v7667 = vadd.f32 %v7542, %v6202
  %v7668 = vadd.f32 %v7543, %v6203
  %v7669 = vadd.f32 %v7544, %v6204
  %v7670 = vadd.f32 %v7545, %v6205
  %v7671 = vadd.f32 %v7546, %v6206
  %v7672 = vadd.f32 %v7547, %v6207
  %v7673 = vadd.f32 %v7548, %v6208
  %v7674 = vadd.f32 %v7549, %v6209
  %v7675 = vadd.f32 %v7550, %v6210
  %v7676 = vadd.f32 %v7551, %v6211
  %v7677 = vadd.f32 %v7552, %v6212
  %v7678 = vadd.f32 %v7553, %v6213
  %v7679 = vadd.f32 %v7554, %v6214
  %v7680 = vadd.f32 %v7555, %v6215
  %v7681 = vadd.f32 %v7556, %v6216
  %v7682 = vadd.f32 %v7557, %v6217
  %v7683 = vadd.f32 %v7558, %v6218
  %v7684 = vadd.f32 %v7559, %v6219
  %v7685 = vadd.f32 %v7560, %v6220
  %v7686 = vadd.f32 %v7561, %v6221
  %v7687 = vadd.f32 %v7562, %v6222
  %v7688 = vadd.f32 %v7563, %v6223
  %v7689 = vadd.f32 %v7564, %v6224
  %v7690 = vadd.f32 %v7565, %v6225
  %v7691 = vadd.f32 %v7566, %v6226
  %v7692 = vadd.f32 %v7567, %v6227
  %v7693 = vadd.f32 %v7568, %v6228
  %v7694 = vadd.f32 %v7569, %v6229
  %v7695 = vadd.f32 %v7570, %v6230
  %v7696 = vadd.f32 %v7571, %v6231
  %v7697 = vadd.f32 %v7572, %v6232
  %v7698 = vadd.f32 %v7573, %v6233
  %v7699 = vadd.f32 %v7574, %v6234
  %v7700 = vadd.f32 %v7575, %v6235
  %v7701 = vadd.f32 %v7576, %v6236
  %v7702 = vadd.f32 %v7577, %v6237
  %v7703 = vadd.f32 %v7578, %v6238
  %v7704 = vadd.f32 %v7579, %v6239
  %v7705 = vadd.f32 %v7580, %v6240
  %v7706 = vadd.f32 %v7581, %v6241
  %v7707 = vadd.f32 %v7582, %v6242
  %v7708 = vadd.f32 %v7583, %v6243
  %v7709 = vadd.f32 %v7584, %v6244
  %v7710 = vadd.f32 %v7585, %v6245
  %v7711 = vadd.f32 %v7586, %v6246
  %v7712 = vld [vmem:[%s5] sm:$0xff]
  %v7713 = vld [vmem:[%s5 + $0x8] sm:$0xff]
  %v7714 = vld [vmem:[%s5 + $0x10] sm:$0xff]
  %v7715 = vld [vmem:[%s5 + $0x18] sm:$0xff]
  %v7716 = vld [vmem:[%s5 + $0x20] sm:$0xff]
  %v7717 = vld [vmem:[%s5 + $0x28] sm:$0xff]
  %v7718 = vld [vmem:[%s5 + $0x30] sm:$0xff]
  %v7719 = vld [vmem:[%s5 + $0x38] sm:$0xff]
  %v7720 = vld [vmem:[%s5 + $0x40] sm:$0xff]
  %v7721 = vld [vmem:[%s5 + $0x48] sm:$0xff]
  %v7722 = vld [vmem:[%s5 + $0x50] sm:$0xff]
  %v7723 = vld [vmem:[%s5 + $0x58] sm:$0xff]
  %v7724 = vld [vmem:[%s5 + $0x60] sm:$0xff]
  %v7725 = vld [vmem:[%s5 + $0x68] sm:$0xff]
  %v7726 = vld [vmem:[%s5 + $0x70] sm:$0xff]
  %v7727 = vld [vmem:[%s5 + $0x78] sm:$0xff]
  %v7728 = vld [vmem:[%s6] sm:$0x1]
  %v7730 = vlaneseq
  %v7731 = vshrl.u32 %v7730, 7
  %v7732 = vsub.s32 0, %v7731
  %v7733 = vrot.slane %v7728, %v7732
  %7735 = vmatprep.subr.mxu0 0.0
  %7736 = vmatpush1.msra.mxu0 %v7727
  %7737 = vmatprep.subr.mxu0 0.0
  %7738 = vmatpush1.msra.mxu0 %v7726
  %7739 = vmatprep.subr.mxu0 0.0
  %7740 = vmatpush1.msra.mxu0 %v7725
  %7741 = vmatprep.subr.mxu0 0.0
  %7742 = vmatpush1.msra.mxu0 %v7724
  %7743 = vmatprep.subr.mxu0 0.0
  %7744 = vmatpush1.msra.mxu0 %v7723
  %7745 = vmatprep.subr.mxu0 0.0
  %7746 = vmatpush1.msra.mxu0 %v7722
  %7747 = vmatprep.subr.mxu0 0.0
  %7748 = vmatpush1.msra.mxu0 %v7721
  %7749 = vmatprep.subr.mxu0 0.0
  %7750 = vmatpush1.msra.mxu0 %v7720
  %7751 = vmatprep.subr.mxu0 0.0
  %7752 = vmatpush1.msra.mxu0 %v7719
  %7753 = vmatprep.subr.mxu0 0.0
  %7754 = vmatpush1.msra.mxu0 %v7718
  %7755 = vmatprep.subr.mxu0 0.0
  %7756 = vmatpush1.msra.mxu0 %v7717
  %7757 = vmatprep.subr.mxu0 0.0
  %7758 = vmatpush1.msra.mxu0 %v7716
  %7759 = vmatprep.subr.mxu0 0.0
  %7760 = vmatpush1.msra.mxu0 %v7715
  %7761 = vmatprep.subr.mxu0 0.0
  %7762 = vmatpush1.msra.mxu0 %v7714
  %7763 = vmatprep.subr.mxu0 0.0
  %7764 = vmatpush1.msra.mxu0 %v7713
  %7765 = vmatprep.subr.mxu0 0.0
  %7766 = vmatpush1.msra.mxu0 %v7712
  %7767 = vmatprep.subr.mxu0 0.0
  %7768 = vmatpush2.msra.mxu0 0.0
  %7769 = vmatprep.subr.mxu0 0.0
  %7770 = vmatpush2.msra.mxu0 0.0
  %7771 = vmatprep.subr.mxu0 0.0
  %7772 = vmatpush2.msra.mxu0 0.0
  %7773 = vmatprep.subr.mxu0 0.0
  %7774 = vmatpush2.msra.mxu0 0.0
  %7775 = vmatprep.subr.mxu0 0.0
  %7776 = vmatpush2.msra.mxu0 0.0
  %7777 = vmatprep.subr.mxu0 0.0
  %7778 = vmatpush2.msra.mxu0 0.0
  %7779 = vmatprep.subr.mxu0 0.0
  %7780 = vmatpush2.msra.mxu0 0.0
  %7781 = vmatprep.subr.mxu0 0.0
  %7782 = vmatpush2.msra.mxu0 0.0
  %7783 = vmatprep.subr.mxu0 0.0
  %7784 = vmatpush2.msra.mxu0 0.0
  %7785 = vmatprep.subr.mxu0 0.0
  %7786 = vmatpush2.msra.mxu0 0.0
  %7787 = vmatprep.subr.mxu0 0.0
  %7788 = vmatpush2.msra.mxu0 0.0
  %7789 = vmatprep.subr.mxu0 0.0
  %7790 = vmatpush2.msra.mxu0 0.0
  %7791 = vmatprep.subr.mxu0 0.0
  %7792 = vmatpush2.msra.mxu0 0.0
  %7793 = vmatprep.subr.mxu0 0.0
  %7794 = vmatpush2.msra.mxu0 0.0
  %7795 = vmatprep.subr.mxu0 0.0
  %7796 = vmatpush2.msra.mxu0 0.0
  %7797 = vmatprep.subr.mxu0 0.0
  %7798 = vmatpush2.msra.mxu0 0.0
  %7799 = vmatprep.mubr.f32.mxu0 0.0
  %7800 = vmatmul.mubr.f32.gmra.mxu0 %v7587
  %v7801 = vpop.f32.mrf.mxu0
  %v7802 = vadd.f32 %v7733, %v7801
  %v7803 = vpop.f32.mrf.mxu0
  %7804 = vmatprep.mubr.f32.mxu0 0.0
  %7805 = vmatmul.mubr.f32.gmra.mxu0 %v7588
  %v7806 = vpop.f32.mrf.mxu0
  %v7807 = vadd.f32 %v7733, %v7806
  %v7808 = vpop.f32.mrf.mxu0
  %7809 = vmatprep.mubr.f32.mxu0 0.0
  %7810 = vmatmul.mubr.f32.gmra.mxu0 %v7589
  %v7811 = vpop.f32.mrf.mxu0
  %v7812 = vadd.f32 %v7733, %v7811
  %v7813 = vpop.f32.mrf.mxu0
  %7814 = vmatprep.mubr.f32.mxu0 0.0
  %7815 = vmatmul.mubr.f32.gmra.mxu0 %v7590
  %v7816 = vpop.f32.mrf.mxu0
  %v7817 = vadd.f32 %v7733, %v7816
  %v7818 = vpop.f32.mrf.mxu0
  %7819 = vmatprep.mubr.f32.mxu0 0.0
  %7820 = vmatmul.mubr.f32.gmra.mxu0 %v7591
  %v7821 = vpop.f32.mrf.mxu0
  %v7822 = vadd.f32 %v7733, %v7821
  %v7823 = vpop.f32.mrf.mxu0
  %7824 = vmatprep.mubr.f32.mxu0 0.0
  %7825 = vmatmul.mubr.f32.gmra.mxu0 %v7592
  %v7826 = vpop.f32.mrf.mxu0
  %v7827 = vadd.f32 %v7733, %v7826
  %v7828 = vpop.f32.mrf.mxu0
  %7829 = vmatprep.mubr.f32.mxu0 0.0
  %7830 = vmatmul.mubr.f32.gmra.mxu0 %v7593
  %v7831 = vpop.f32.mrf.mxu0
  %v7832 = vadd.f32 %v7733, %v7831
  %v7833 = vpop.f32.mrf.mxu0
  %7834 = vmatprep.mubr.f32.mxu0 0.0
  %7835 = vmatmul.mubr.f32.gmra.mxu0 %v7594
  %v7836 = vpop.f32.mrf.mxu0
  %v7837 = vadd.f32 %v7733, %v7836
  %v7838 = vpop.f32.mrf.mxu0
  %7839 = vmatprep.mubr.f32.mxu0 0.0
  %7840 = vmatmul.mubr.f32.gmra.mxu0 %v7595
  %v7841 = vpop.f32.mrf.mxu0
  %v7842 = vadd.f32 %v7733, %v7841
  %v7843 = vpop.f32.mrf.mxu0
  %7844 = vmatprep.mubr.f32.mxu0 0.0
  %7845 = vmatmul.mubr.f32.gmra.mxu0 %v7596
  %v7846 = vpop.f32.mrf.mxu0
  %v7847 = vadd.f32 %v7733, %v7846
  %v7848 = vpop.f32.mrf.mxu0
  %7849 = vmatprep.mubr.f32.mxu0 0.0
  %7850 = vmatmul.mubr.f32.gmra.mxu0 %v7597
  %v7851 = vpop.f32.mrf.mxu0
  %v7852 = vadd.f32 %v7733, %v7851
  %v7853 = vpop.f32.mrf.mxu0
  %7854 = vmatprep.mubr.f32.mxu0 0.0
  %7855 = vmatmul.mubr.f32.gmra.mxu0 %v7598
  %v7856 = vpop.f32.mrf.mxu0
  %v7857 = vadd.f32 %v7733, %v7856
  %v7858 = vpop.f32.mrf.mxu0
  %7859 = vmatprep.mubr.f32.mxu0 0.0
  %7860 = vmatmul.mubr.f32.gmra.mxu0 %v7599
  %v7861 = vpop.f32.mrf.mxu0
  %v7862 = vadd.f32 %v7733, %v7861
  %v7863 = vpop.f32.mrf.mxu0
  %7864 = vmatprep.mubr.f32.mxu0 0.0
  %7865 = vmatmul.mubr.f32.gmra.mxu0 %v7600
  %v7866 = vpop.f32.mrf.mxu0
  %v7867 = vadd.f32 %v7733, %v7866
  %v7868 = vpop.f32.mrf.mxu0
  %7869 = vmatprep.mubr.f32.mxu0 0.0
  %7870 = vmatmul.mubr.f32.gmra.mxu0 %v7601
  %v7871 = vpop.f32.mrf.mxu0
  %v7872 = vadd.f32 %v7733, %v7871
  %v7873 = vpop.f32.mrf.mxu0
  %7874 = vmatprep.mubr.f32.mxu0 0.0
  %7875 = vmatmul.mubr.f32.gmra.mxu0 %v7602
  %v7876 = vpop.f32.mrf.mxu0
  %v7877 = vadd.f32 %v7733, %v7876
  %v7878 = vpop.f32.mrf.mxu0
  %7879 = vmatprep.mubr.f32.mxu0 0.0
  %7880 = vmatmul.mubr.f32.gmra.mxu0 %v7603
  %v7881 = vpop.f32.mrf.mxu0
  %v7882 = vadd.f32 %v7733, %v7881
  %v7883 = vpop.f32.mrf.mxu0
  %7884 = vmatprep.mubr.f32.mxu0 0.0
  %7885 = vmatmul.mubr.f32.gmra.mxu0 %v7604
  %v7886 = vpop.f32.mrf.mxu0
  %v7887 = vadd.f32 %v7733, %v7886
  %v7888 = vpop.f32.mrf.mxu0
  %7889 = vmatprep.mubr.f32.mxu0 0.0
  %7890 = vmatmul.mubr.f32.gmra.mxu0 %v7605
  %v7891 = vpop.f32.mrf.mxu0
  %v7892 = vadd.f32 %v7733, %v7891
  %v7893 = vpop.f32.mrf.mxu0
  %7894 = vmatprep.mubr.f32.mxu0 0.0
  %7895 = vmatmul.mubr.f32.gmra.mxu0 %v7606
  %v7896 = vpop.f32.mrf.mxu0
  %v7897 = vadd.f32 %v7733, %v7896
  %v7898 = vpop.f32.mrf.mxu0
  %7899 = vmatprep.mubr.f32.mxu0 0.0
  %7900 = vmatmul.mubr.f32.gmra.mxu0 %v7607
  %v7901 = vpop.f32.mrf.mxu0
  %v7902 = vadd.f32 %v7733, %v7901
  %v7903 = vpop.f32.mrf.mxu0
  %7904 = vmatprep.mubr.f32.mxu0 0.0
  %7905 = vmatmul.mubr.f32.gmra.mxu0 %v7608
  %v7906 = vpop.f32.mrf.mxu0
  %v7907 = vadd.f32 %v7733, %v7906
  %v7908 = vpop.f32.mrf.mxu0
  %7909 = vmatprep.mubr.f32.mxu0 0.0
  %7910 = vmatmul.mubr.f32.gmra.mxu0 %v7609
  %v7911 = vpop.f32.mrf.mxu0
  %v7912 = vadd.f32 %v7733, %v7911
  %v7913 = vpop.f32.mrf.mxu0
  %7914 = vmatprep.mubr.f32.mxu0 0.0
  %7915 = vmatmul.mubr.f32.gmra.mxu0 %v7610
  %v7916 = vpop.f32.mrf.mxu0
  %v7917 = vadd.f32 %v7733, %v7916
  %v7918 = vpop.f32.mrf.mxu0
  %7919 = vmatprep.mubr.f32.mxu0 0.0
  %7920 = vmatmul.mubr.f32.gmra.mxu0 %v7611
  %v7921 = vpop.f32.mrf.mxu0
  %v7922 = vadd.f32 %v7733, %v7921
  %v7923 = vpop.f32.mrf.mxu0
  %7924 = vmatprep.mubr.f32.mxu0 0.0
  %7925 = vmatmul.mubr.f32.gmra.mxu0 %v7612
  %v7926 = vpop.f32.mrf.mxu0
  %v7927 = vadd.f32 %v7733, %v7926
  %v7928 = vpop.f32.mrf.mxu0
  %7929 = vmatprep.mubr.f32.mxu0 0.0
  %7930 = vmatmul.mubr.f32.gmra.mxu0 %v7613
  %v7931 = vpop.f32.mrf.mxu0
  %v7932 = vadd.f32 %v7733, %v7931
  %v7933 = vpop.f32.mrf.mxu0
  %7934 = vmatprep.mubr.f32.mxu0 0.0
  %7935 = vmatmul.mubr.f32.gmra.mxu0 %v7614
  %v7936 = vpop.f32.mrf.mxu0
  %v7937 = vadd.f32 %v7733, %v7936
  %v7938 = vpop.f32.mrf.mxu0
  %7939 = vmatprep.mubr.f32.mxu0 0.0
  %7940 = vmatmul.mubr.f32.gmra.mxu0 %v7615
  %v7941 = vpop.f32.mrf.mxu0
  %v7942 = vadd.f32 %v7733, %v7941
  %v7943 = vpop.f32.mrf.mxu0
  %7944 = vmatprep.mubr.f32.mxu0 0.0
  %7945 = vmatmul.mubr.f32.gmra.mxu0 %v7616
  %v7946 = vpop.f32.mrf.mxu0
  %v7947 = vadd.f32 %v7733, %v7946
  %v7948 = vpop.f32.mrf.mxu0
  %7949 = vmatprep.mubr.f32.mxu0 0.0
  %7950 = vmatmul.mubr.f32.gmra.mxu0 %v7617
  %v7951 = vpop.f32.mrf.mxu0
  %v7952 = vadd.f32 %v7733, %v7951
  %v7953 = vpop.f32.mrf.mxu0
  %7954 = vmatprep.mubr.f32.mxu0 0.0
  %7955 = vmatmul.mubr.f32.gmra.mxu0 %v7618
  %v7956 = vpop.f32.mrf.mxu0
  %v7957 = vadd.f32 %v7733, %v7956
  %v7958 = vpop.f32.mrf.mxu0
  %7959 = vmatprep.mubr.f32.mxu0 0.0
  %7960 = vmatmul.mubr.f32.gmra.mxu0 %v7619
  %v7961 = vpop.f32.mrf.mxu0
  %v7962 = vadd.f32 %v7733, %v7961
  %v7963 = vpop.f32.mrf.mxu0
  %7964 = vmatprep.mubr.f32.mxu0 0.0
  %7965 = vmatmul.mubr.f32.gmra.mxu0 %v7620
  %v7966 = vpop.f32.mrf.mxu0
  %v7967 = vadd.f32 %v7733, %v7966
  %v7968 = vpop.f32.mrf.mxu0
  %7969 = vmatprep.mubr.f32.mxu0 0.0
  %7970 = vmatmul.mubr.f32.gmra.mxu0 %v7621
  %v7971 = vpop.f32.mrf.mxu0
  %v7972 = vadd.f32 %v7733, %v7971
  %v7973 = vpop.f32.mrf.mxu0
  %7974 = vmatprep.mubr.f32.mxu0 0.0
  %7975 = vmatmul.mubr.f32.gmra.mxu0 %v7622
  %v7976 = vpop.f32.mrf.mxu0
  %v7977 = vadd.f32 %v7733, %v7976
  %v7978 = vpop.f32.mrf.mxu0
  %7979 = vmatprep.mubr.f32.mxu0 0.0
  %7980 = vmatmul.mubr.f32.gmra.mxu0 %v7623
  %v7981 = vpop.f32.mrf.mxu0
  %v7982 = vadd.f32 %v7733, %v7981
  %v7983 = vpop.f32.mrf.mxu0
  %7984 = vmatprep.mubr.f32.mxu0 0.0
  %7985 = vmatmul.mubr.f32.gmra.mxu0 %v7624
  %v7986 = vpop.f32.mrf.mxu0
  %v7987 = vadd.f32 %v7733, %v7986
  %v7988 = vpop.f32.mrf.mxu0
  %7989 = vmatprep.mubr.f32.mxu0 0.0
  %7990 = vmatmul.mubr.f32.gmra.mxu0 %v7625
  %v7991 = vpop.f32.mrf.mxu0
  %v7992 = vadd.f32 %v7733, %v7991
  %v7993 = vpop.f32.mrf.mxu0
  %7994 = vmatprep.mubr.f32.mxu0 0.0
  %7995 = vmatmul.mubr.f32.gmra.mxu0 %v7626
  %v7996 = vpop.f32.mrf.mxu0
  %v7997 = vadd.f32 %v7733, %v7996
  %v7998 = vpop.f32.mrf.mxu0
  %7999 = vmatprep.mubr.f32.mxu0 0.0
  %8000 = vmatmul.mubr.f32.gmra.mxu0 %v7627
  %v8001 = vpop.f32.mrf.mxu0
  %v8002 = vadd.f32 %v7733, %v8001
  %v8003 = vpop.f32.mrf.mxu0
  %8004 = vmatprep.mubr.f32.mxu0 0.0
  %8005 = vmatmul.mubr.f32.gmra.mxu0 %v7628
  %v8006 = vpop.f32.mrf.mxu0
  %v8007 = vadd.f32 %v7733, %v8006
  %v8008 = vpop.f32.mrf.mxu0
  %8009 = vmatprep.mubr.f32.mxu0 0.0
  %8010 = vmatmul.mubr.f32.gmra.mxu0 %v7629
  %v8011 = vpop.f32.mrf.mxu0
  %v8012 = vadd.f32 %v7733, %v8011
  %v8013 = vpop.f32.mrf.mxu0
  %8014 = vmatprep.mubr.f32.mxu0 0.0
  %8015 = vmatmul.mubr.f32.gmra.mxu0 %v7630
  %v8016 = vpop.f32.mrf.mxu0
  %v8017 = vadd.f32 %v7733, %v8016
  %v8018 = vpop.f32.mrf.mxu0
  %8019 = vmatprep.mubr.f32.mxu0 0.0
  %8020 = vmatmul.mubr.f32.gmra.mxu0 %v7631
  %v8021 = vpop.f32.mrf.mxu0
  %v8022 = vadd.f32 %v7733, %v8021
  %v8023 = vpop.f32.mrf.mxu0
  %8024 = vmatprep.mubr.f32.mxu0 0.0
  %8025 = vmatmul.mubr.f32.gmra.mxu0 %v7632
  %v8026 = vpop.f32.mrf.mxu0
  %v8027 = vadd.f32 %v7733, %v8026
  %v8028 = vpop.f32.mrf.mxu0
  %8029 = vmatprep.mubr.f32.mxu0 0.0
  %8030 = vmatmul.mubr.f32.gmra.mxu0 %v7633
  %v8031 = vpop.f32.mrf.mxu0
  %v8032 = vadd.f32 %v7733, %v8031
  %v8033 = vpop.f32.mrf.mxu0
  %8034 = vmatprep.mubr.f32.mxu0 0.0
  %8035 = vmatmul.mubr.f32.gmra.mxu0 %v7634
  %v8036 = vpop.f32.mrf.mxu0
  %v8037 = vadd.f32 %v7733, %v8036
  %v8038 = vpop.f32.mrf.mxu0
  %8039 = vmatprep.mubr.f32.mxu0 0.0
  %8040 = vmatmul.mubr.f32.gmra.mxu0 %v7635
  %v8041 = vpop.f32.mrf.mxu0
  %v8042 = vadd.f32 %v7733, %v8041
  %v8043 = vpop.f32.mrf.mxu0
  %8044 = vmatprep.mubr.f32.mxu0 0.0
  %8045 = vmatmul.mubr.f32.gmra.mxu0 %v7636
  %v8046 = vpop.f32.mrf.mxu0
  %v8047 = vadd.f32 %v7733, %v8046
  %v8048 = vpop.f32.mrf.mxu0
  %8049 = vmatprep.mubr.f32.mxu0 0.0
  %8050 = vmatmul.mubr.f32.gmra.mxu0 %v7637
  %v8051 = vpop.f32.mrf.mxu0
  %v8052 = vadd.f32 %v7733, %v8051
  %v8053 = vpop.f32.mrf.mxu0
  %8054 = vmatprep.mubr.f32.mxu0 0.0
  %8055 = vmatmul.mubr.f32.gmra.mxu0 %v7638
  %v8056 = vpop.f32.mrf.mxu0
  %v8057 = vadd.f32 %v7733, %v8056
  %v8058 = vpop.f32.mrf.mxu0
  %8059 = vmatprep.mubr.f32.mxu0 0.0
  %8060 = vmatmul.mubr.f32.gmra.mxu0 %v7639
  %v8061 = vpop.f32.mrf.mxu0
  %v8062 = vadd.f32 %v7733, %v8061
  %v8063 = vpop.f32.mrf.mxu0
  %8064 = vmatprep.mubr.f32.mxu0 0.0
  %8065 = vmatmul.mubr.f32.gmra.mxu0 %v7640
  %v8066 = vpop.f32.mrf.mxu0
  %v8067 = vadd.f32 %v7733, %v8066
  %v8068 = vpop.f32.mrf.mxu0
  %8069 = vmatprep.mubr.f32.mxu0 0.0
  %8070 = vmatmul.mubr.f32.gmra.mxu0 %v7641
  %v8071 = vpop.f32.mrf.mxu0
  %v8072 = vadd.f32 %v7733, %v8071
  %v8073 = vpop.f32.mrf.mxu0
  %8074 = vmatprep.mubr.f32.mxu0 0.0
  %8075 = vmatmul.mubr.f32.gmra.mxu0 %v7642
  %v8076 = vpop.f32.mrf.mxu0
  %v8077 = vadd.f32 %v7733, %v8076
  %v8078 = vpop.f32.mrf.mxu0
  %8079 = vmatprep.mubr.f32.mxu0 0.0
  %8080 = vmatmul.mubr.f32.gmra.mxu0 %v7643
  %v8081 = vpop.f32.mrf.mxu0
  %v8082 = vadd.f32 %v7733, %v8081
  %v8083 = vpop.f32.mrf.mxu0
  %8084 = vmatprep.mubr.f32.mxu0 0.0
  %8085 = vmatmul.mubr.f32.gmra.mxu0 %v7644
  %v8086 = vpop.f32.mrf.mxu0
  %v8087 = vadd.f32 %v7733, %v8086
  %v8088 = vpop.f32.mrf.mxu0
  %8089 = vmatprep.mubr.f32.mxu0 0.0
  %8090 = vmatmul.mubr.f32.gmra.mxu0 %v7645
  %v8091 = vpop.f32.mrf.mxu0
  %v8092 = vadd.f32 %v7733, %v8091
  %v8093 = vpop.f32.mrf.mxu0
  %8094 = vmatprep.mubr.f32.mxu0 0.0
  %8095 = vmatmul.mubr.f32.gmra.mxu0 %v7646
  %v8096 = vpop.f32.mrf.mxu0
  %v8097 = vadd.f32 %v7733, %v8096
  %v8098 = vpop.f32.mrf.mxu0
  %8099 = vmatprep.mubr.f32.mxu0 0.0
  %8100 = vmatmul.mubr.f32.gmra.mxu0 %v7647
  %v8101 = vpop.f32.mrf.mxu0
  %v8102 = vadd.f32 %v7733, %v8101
  %v8103 = vpop.f32.mrf.mxu0
  %8104 = vmatprep.mubr.f32.mxu0 0.0
  %8105 = vmatmul.mubr.f32.gmra.mxu0 %v7648
  %v8106 = vpop.f32.mrf.mxu0
  %v8107 = vadd.f32 %v7733, %v8106
  %v8108 = vpop.f32.mrf.mxu0
  %8109 = vmatprep.mubr.f32.mxu0 0.0
  %8110 = vmatmul.mubr.f32.gmra.mxu0 %v7649
  %v8111 = vpop.f32.mrf.mxu0
  %v8112 = vadd.f32 %v7733, %v8111
  %v8113 = vpop.f32.mrf.mxu0
  %8114 = vmatprep.mubr.f32.mxu0 0.0
  %8115 = vmatmul.mubr.f32.gmra.mxu0 %v7650
  %v8116 = vpop.f32.mrf.mxu0
  %v8117 = vadd.f32 %v7733, %v8116
  %v8118 = vpop.f32.mrf.mxu0
  %8119 = vmatprep.mubr.f32.mxu0 0.0
  %8120 = vmatmul.mubr.f32.gmra.mxu0 %v7651
  %v8121 = vpop.f32.mrf.mxu0
  %v8122 = vadd.f32 %v7733, %v8121
  %v8123 = vpop.f32.mrf.mxu0
  %8124 = vmatprep.mubr.f32.mxu0 0.0
  %8125 = vmatmul.mubr.f32.gmra.mxu0 %v7652
  %v8126 = vpop.f32.mrf.mxu0
  %v8127 = vadd.f32 %v7733, %v8126
  %v8128 = vpop.f32.mrf.mxu0
  %8129 = vmatprep.mubr.f32.mxu0 0.0
  %8130 = vmatmul.mubr.f32.gmra.mxu0 %v7653
  %v8131 = vpop.f32.mrf.mxu0
  %v8132 = vadd.f32 %v7733, %v8131
  %v8133 = vpop.f32.mrf.mxu0
  %8134 = vmatprep.mubr.f32.mxu0 0.0
  %8135 = vmatmul.mubr.f32.gmra.mxu0 %v7654
  %v8136 = vpop.f32.mrf.mxu0
  %v8137 = vadd.f32 %v7733, %v8136
  %v8138 = vpop.f32.mrf.mxu0
  %8139 = vmatprep.mubr.f32.mxu0 0.0
  %8140 = vmatmul.mubr.f32.gmra.mxu0 %v7655
  %v8141 = vpop.f32.mrf.mxu0
  %v8142 = vadd.f32 %v7733, %v8141
  %v8143 = vpop.f32.mrf.mxu0
  %8144 = vmatprep.mubr.f32.mxu0 0.0
  %8145 = vmatmul.mubr.f32.gmra.mxu0 %v7656
  %v8146 = vpop.f32.mrf.mxu0
  %v8147 = vadd.f32 %v7733, %v8146
  %v8148 = vpop.f32.mrf.mxu0
  %8149 = vmatprep.mubr.f32.mxu0 0.0
  %8150 = vmatmul.mubr.f32.gmra.mxu0 %v7657
  %v8151 = vpop.f32.mrf.mxu0
  %v8152 = vadd.f32 %v7733, %v8151
  %v8153 = vpop.f32.mrf.mxu0
  %8154 = vmatprep.mubr.f32.mxu0 0.0
  %8155 = vmatmul.mubr.f32.gmra.mxu0 %v7658
  %v8156 = vpop.f32.mrf.mxu0
  %v8157 = vadd.f32 %v7733, %v8156
  %v8158 = vpop.f32.mrf.mxu0
  %8159 = vmatprep.mubr.f32.mxu0 0.0
  %8160 = vmatmul.mubr.f32.gmra.mxu0 %v7659
  %v8161 = vpop.f32.mrf.mxu0
  %v8162 = vadd.f32 %v7733, %v8161
  %v8163 = vpop.f32.mrf.mxu0
  %8164 = vmatprep.mubr.f32.mxu0 0.0
  %8165 = vmatmul.mubr.f32.gmra.mxu0 %v7660
  %v8166 = vpop.f32.mrf.mxu0
  %v8167 = vadd.f32 %v7733, %v8166
  %v8168 = vpop.f32.mrf.mxu0
  %8169 = vmatprep.mubr.f32.mxu0 0.0
  %8170 = vmatmul.mubr.f32.gmra.mxu0 %v7661
  %v8171 = vpop.f32.mrf.mxu0
  %v8172 = vadd.f32 %v7733, %v8171
  %v8173 = vpop.f32.mrf.mxu0
  %8174 = vmatprep.mubr.f32.mxu0 0.0
  %8175 = vmatmul.mubr.f32.gmra.mxu0 %v7662
  %v8176 = vpop.f32.mrf.mxu0
  %v8177 = vadd.f32 %v7733, %v8176
  %v8178 = vpop.f32.mrf.mxu0
  %8179 = vmatprep.mubr.f32.mxu0 0.0
  %8180 = vmatmul.mubr.f32.gmra.mxu0 %v7663
  %v8181 = vpop.f32.mrf.mxu0
  %v8182 = vadd.f32 %v7733, %v8181
  %v8183 = vpop.f32.mrf.mxu0
  %8184 = vmatprep.mubr.f32.mxu0 0.0
  %8185 = vmatmul.mubr.f32.gmra.mxu0 %v7664
  %v8186 = vpop.f32.mrf.mxu0
  %v8187 = vadd.f32 %v7733, %v8186
  %v8188 = vpop.f32.mrf.mxu0
  %8189 = vmatprep.mubr.f32.mxu0 0.0
  %8190 = vmatmul.mubr.f32.gmra.mxu0 %v7665
  %v8191 = vpop.f32.mrf.mxu0
  %v8192 = vadd.f32 %v7733, %v8191
  %v8193 = vpop.f32.mrf.mxu0
  %8194 = vmatprep.mubr.f32.mxu0 0.0
  %8195 = vmatmul.mubr.f32.gmra.mxu0 %v7666
  %v8196 = vpop.f32.mrf.mxu0
  %v8197 = vadd.f32 %v7733, %v8196
  %v8198 = vpop.f32.mrf.mxu0
  %8199 = vmatprep.mubr.f32.mxu0 0.0
  %8200 = vmatmul.mubr.f32.gmra.mxu0 %v7667
  %v8201 = vpop.f32.mrf.mxu0
  %v8202 = vadd.f32 %v7733, %v8201
  %v8203 = vpop.f32.mrf.mxu0
  %8204 = vmatprep.mubr.f32.mxu0 0.0
  %8205 = vmatmul.mubr.f32.gmra.mxu0 %v7668
  %v8206 = vpop.f32.mrf.mxu0
  %v8207 = vadd.f32 %v7733, %v8206
  %v8208 = vpop.f32.mrf.mxu0
  %8209 = vmatprep.mubr.f32.mxu0 0.0
  %8210 = vmatmul.mubr.f32.gmra.mxu0 %v7669
  %v8211 = vpop.f32.mrf.mxu0
  %v8212 = vadd.f32 %v7733, %v8211
  %v8213 = vpop.f32.mrf.mxu0
  %8214 = vmatprep.mubr.f32.mxu0 0.0
  %8215 = vmatmul.mubr.f32.gmra.mxu0 %v7670
  %v8216 = vpop.f32.mrf.mxu0
  %v8217 = vadd.f32 %v7733, %v8216
  %v8218 = vpop.f32.mrf.mxu0
  %8219 = vmatprep.mubr.f32.mxu0 0.0
  %8220 = vmatmul.mubr.f32.gmra.mxu0 %v7671
  %v8221 = vpop.f32.mrf.mxu0
  %v8222 = vadd.f32 %v7733, %v8221
  %v8223 = vpop.f32.mrf.mxu0
  %8224 = vmatprep.mubr.f32.mxu0 0.0
  %8225 = vmatmul.mubr.f32.gmra.mxu0 %v7672
  %v8226 = vpop.f32.mrf.mxu0
  %v8227 = vadd.f32 %v7733, %v8226
  %v8228 = vpop.f32.mrf.mxu0
  %8229 = vmatprep.mubr.f32.mxu0 0.0
  %8230 = vmatmul.mubr.f32.gmra.mxu0 %v7673
  %v8231 = vpop.f32.mrf.mxu0
  %v8232 = vadd.f32 %v7733, %v8231
  %v8233 = vpop.f32.mrf.mxu0
  %8234 = vmatprep.mubr.f32.mxu0 0.0
  %8235 = vmatmul.mubr.f32.gmra.mxu0 %v7674
  %v8236 = vpop.f32.mrf.mxu0
  %v8237 = vadd.f32 %v7733, %v8236
  %v8238 = vpop.f32.mrf.mxu0
  %8239 = vmatprep.mubr.f32.mxu0 0.0
  %8240 = vmatmul.mubr.f32.gmra.mxu0 %v7675
  %v8241 = vpop.f32.mrf.mxu0
  %v8242 = vadd.f32 %v7733, %v8241
  %v8243 = vpop.f32.mrf.mxu0
  %8244 = vmatprep.mubr.f32.mxu0 0.0
  %8245 = vmatmul.mubr.f32.gmra.mxu0 %v7676
  %v8246 = vpop.f32.mrf.mxu0
  %v8247 = vadd.f32 %v7733, %v8246
  %v8248 = vpop.f32.mrf.mxu0
  %8249 = vmatprep.mubr.f32.mxu0 0.0
  %8250 = vmatmul.mubr.f32.gmra.mxu0 %v7677
  %v8251 = vpop.f32.mrf.mxu0
  %v8252 = vadd.f32 %v7733, %v8251
  %v8253 = vpop.f32.mrf.mxu0
  %8254 = vmatprep.mubr.f32.mxu0 0.0
  %8255 = vmatmul.mubr.f32.gmra.mxu0 %v7678
  %v8256 = vpop.f32.mrf.mxu0
  %v8257 = vadd.f32 %v7733, %v8256
  %v8258 = vpop.f32.mrf.mxu0
  %8259 = vmatprep.mubr.f32.mxu0 0.0
  %8260 = vmatmul.mubr.f32.gmra.mxu0 %v7679
  %v8261 = vpop.f32.mrf.mxu0
  %v8262 = vadd.f32 %v7733, %v8261
  %v8263 = vpop.f32.mrf.mxu0
  %8264 = vmatprep.mubr.f32.mxu0 0.0
  %8265 = vmatmul.mubr.f32.gmra.mxu0 %v7680
  %v8266 = vpop.f32.mrf.mxu0
  %v8267 = vadd.f32 %v7733, %v8266
  %v8268 = vpop.f32.mrf.mxu0
  %8269 = vmatprep.mubr.f32.mxu0 0.0
  %8270 = vmatmul.mubr.f32.gmra.mxu0 %v7681
  %v8271 = vpop.f32.mrf.mxu0
  %v8272 = vadd.f32 %v7733, %v8271
  %v8273 = vpop.f32.mrf.mxu0
  %8274 = vmatprep.mubr.f32.mxu0 0.0
  %8275 = vmatmul.mubr.f32.gmra.mxu0 %v7682
  %v8276 = vpop.f32.mrf.mxu0
  %v8277 = vadd.f32 %v7733, %v8276
  %v8278 = vpop.f32.mrf.mxu0
  %8279 = vmatprep.mubr.f32.mxu0 0.0
  %8280 = vmatmul.mubr.f32.gmra.mxu0 %v7683
  %v8281 = vpop.f32.mrf.mxu0
  %v8282 = vadd.f32 %v7733, %v8281
  %v8283 = vpop.f32.mrf.mxu0
  %8284 = vmatprep.mubr.f32.mxu0 0.0
  %8285 = vmatmul.mubr.f32.gmra.mxu0 %v7684
  %v8286 = vpop.f32.mrf.mxu0
  %v8287 = vadd.f32 %v7733, %v8286
  %v8288 = vpop.f32.mrf.mxu0
  %8289 = vmatprep.mubr.f32.mxu0 0.0
  %8290 = vmatmul.mubr.f32.gmra.mxu0 %v7685
  %v8291 = vpop.f32.mrf.mxu0
  %v8292 = vadd.f32 %v7733, %v8291
  %v8293 = vpop.f32.mrf.mxu0
  %8294 = vmatprep.mubr.f32.mxu0 0.0
  %8295 = vmatmul.mubr.f32.gmra.mxu0 %v7686
  %v8296 = vpop.f32.mrf.mxu0
  %v8297 = vadd.f32 %v7733, %v8296
  %v8298 = vpop.f32.mrf.mxu0
  %8299 = vmatprep.mubr.f32.mxu0 0.0
  %8300 = vmatmul.mubr.f32.gmra.mxu0 %v7687
  %v8301 = vpop.f32.mrf.mxu0
  %v8302 = vadd.f32 %v7733, %v8301
  %v8303 = vpop.f32.mrf.mxu0
  %8304 = vmatprep.mubr.f32.mxu0 0.0
  %8305 = vmatmul.mubr.f32.gmra.mxu0 %v7688
  %v8306 = vpop.f32.mrf.mxu0
  %v8307 = vadd.f32 %v7733, %v8306
  %v8308 = vpop.f32.mrf.mxu0
  %8309 = vmatprep.mubr.f32.mxu0 0.0
  %8310 = vmatmul.mubr.f32.gmra.mxu0 %v7689
  %v8311 = vpop.f32.mrf.mxu0
  %v8312 = vadd.f32 %v7733, %v8311
  %v8313 = vpop.f32.mrf.mxu0
  %8314 = vmatprep.mubr.f32.mxu0 0.0
  %8315 = vmatmul.mubr.f32.gmra.mxu0 %v7690
  %v8316 = vpop.f32.mrf.mxu0
  %v8317 = vadd.f32 %v7733, %v8316
  %v8318 = vpop.f32.mrf.mxu0
  %8319 = vmatprep.mubr.f32.mxu0 0.0
  %8320 = vmatmul.mubr.f32.gmra.mxu0 %v7691
  %v8321 = vpop.f32.mrf.mxu0
  %v8322 = vadd.f32 %v7733, %v8321
  %v8323 = vpop.f32.mrf.mxu0
  %8324 = vmatprep.mubr.f32.mxu0 0.0
  %8325 = vmatmul.mubr.f32.gmra.mxu0 %v7692
  %v8326 = vpop.f32.mrf.mxu0
  %v8327 = vadd.f32 %v7733, %v8326
  %v8328 = vpop.f32.mrf.mxu0
  %8329 = vmatprep.mubr.f32.mxu0 0.0
  %8330 = vmatmul.mubr.f32.gmra.mxu0 %v7693
  %v8331 = vpop.f32.mrf.mxu0
  %v8332 = vadd.f32 %v7733, %v8331
  %v8333 = vpop.f32.mrf.mxu0
  %8334 = vmatprep.mubr.f32.mxu0 0.0
  %8335 = vmatmul.mubr.f32.gmra.mxu0 %v7694
  %v8336 = vpop.f32.mrf.mxu0
  %v8337 = vadd.f32 %v7733, %v8336
  %v8338 = vpop.f32.mrf.mxu0
  %8339 = vmatprep.mubr.f32.mxu0 0.0
  %8340 = vmatmul.mubr.f32.gmra.mxu0 %v7695
  %v8341 = vpop.f32.mrf.mxu0
  %v8342 = vadd.f32 %v7733, %v8341
  %v8343 = vpop.f32.mrf.mxu0
  %8344 = vmatprep.mubr.f32.mxu0 0.0
  %8345 = vmatmul.mubr.f32.gmra.mxu0 %v7696
  %v8346 = vpop.f32.mrf.mxu0
  %v8347 = vadd.f32 %v7733, %v8346
  %v8348 = vpop.f32.mrf.mxu0
  %8349 = vmatprep.mubr.f32.mxu0 0.0
  %8350 = vmatmul.mubr.f32.gmra.mxu0 %v7697
  %v8351 = vpop.f32.mrf.mxu0
  %v8352 = vadd.f32 %v7733, %v8351
  %v8353 = vpop.f32.mrf.mxu0
  %8354 = vmatprep.mubr.f32.mxu0 0.0
  %8355 = vmatmul.mubr.f32.gmra.mxu0 %v7698
  %v8356 = vpop.f32.mrf.mxu0
  %v8357 = vadd.f32 %v7733, %v8356
  %v8358 = vpop.f32.mrf.mxu0
  %8359 = vmatprep.mubr.f32.mxu0 0.0
  %8360 = vmatmul.mubr.f32.gmra.mxu0 %v7699
  %v8361 = vpop.f32.mrf.mxu0
  %v8362 = vadd.f32 %v7733, %v8361
  %v8363 = vpop.f32.mrf.mxu0
  %8364 = vmatprep.mubr.f32.mxu0 0.0
  %8365 = vmatmul.mubr.f32.gmra.mxu0 %v7700
  %v8366 = vpop.f32.mrf.mxu0
  %v8367 = vadd.f32 %v7733, %v8366
  %v8368 = vpop.f32.mrf.mxu0
  %8369 = vmatprep.mubr.f32.mxu0 0.0
  %8370 = vmatmul.mubr.f32.gmra.mxu0 %v7701
  %v8371 = vpop.f32.mrf.mxu0
  %v8372 = vadd.f32 %v7733, %v8371
  %v8373 = vpop.f32.mrf.mxu0
  %8374 = vmatprep.mubr.f32.mxu0 0.0
  %8375 = vmatmul.mubr.f32.gmra.mxu0 %v7702
  %v8376 = vpop.f32.mrf.mxu0
  %v8377 = vadd.f32 %v7733, %v8376
  %v8378 = vpop.f32.mrf.mxu0
  %8379 = vmatprep.mubr.f32.mxu0 0.0
  %8380 = vmatmul.mubr.f32.gmra.mxu0 %v7703
  %v8381 = vpop.f32.mrf.mxu0
  %v8382 = vadd.f32 %v7733, %v8381
  %v8383 = vpop.f32.mrf.mxu0
  %8384 = vmatprep.mubr.f32.mxu0 0.0
  %8385 = vmatmul.mubr.f32.gmra.mxu0 %v7704
  %v8386 = vpop.f32.mrf.mxu0
  %v8387 = vadd.f32 %v7733, %v8386
  %v8388 = vpop.f32.mrf.mxu0
  %8389 = vmatprep.mubr.f32.mxu0 0.0
  %8390 = vmatmul.mubr.f32.gmra.mxu0 %v7705
  %v8391 = vpop.f32.mrf.mxu0
  %v8392 = vadd.f32 %v7733, %v8391
  %v8393 = vpop.f32.mrf.mxu0
  %8394 = vmatprep.mubr.f32.mxu0 0.0
  %8395 = vmatmul.mubr.f32.gmra.mxu0 %v7706
  %v8396 = vpop.f32.mrf.mxu0
  %v8397 = vadd.f32 %v7733, %v8396
  %v8398 = vpop.f32.mrf.mxu0
  %8399 = vmatprep.mubr.f32.mxu0 0.0
  %8400 = vmatmul.mubr.f32.gmra.mxu0 %v7707
  %v8401 = vpop.f32.mrf.mxu0
  %v8402 = vadd.f32 %v7733, %v8401
  %v8403 = vpop.f32.mrf.mxu0
  %8404 = vmatprep.mubr.f32.mxu0 0.0
  %8405 = vmatmul.mubr.f32.gmra.mxu0 %v7708
  %v8406 = vpop.f32.mrf.mxu0
  %v8407 = vadd.f32 %v7733, %v8406
  %v8408 = vpop.f32.mrf.mxu0
  %8409 = vmatprep.mubr.f32.mxu0 0.0
  %8410 = vmatmul.mubr.f32.gmra.mxu0 %v7709
  %v8411 = vpop.f32.mrf.mxu0
  %v8412 = vadd.f32 %v7733, %v8411
  %v8413 = vpop.f32.mrf.mxu0
  %8414 = vmatprep.mubr.f32.mxu0 0.0
  %8415 = vmatmul.mubr.f32.gmra.mxu0 %v7710
  %v8416 = vpop.f32.mrf.mxu0
  %v8417 = vadd.f32 %v7733, %v8416
  %v8418 = vpop.f32.mrf.mxu0
  %8419 = vmatprep.mubr.f32.mxu0 0.0
  %8420 = vmatmul.mubr.f32.gmra.mxu0 %v7711
  %v8421 = vpop.f32.mrf.mxu0
  %v8422 = vadd.f32 %v7733, %v8421
  %v8423 = vpop.f32.mrf.mxu0
  %8424 = vdwg.mxu0
  %vm8425 = vcmask 64512
  %8426 = vst.msk [vmem:[%s7] sm:$0xff] %vm8425, %v7802
  %8427 = vst.msk [vmem:[%s7 + $0x8] sm:$0xff] %vm8425, %v7807
  %8428 = vst.msk [vmem:[%s7 + $0x10] sm:$0xff] %vm8425, %v7812
  %8429 = vst.msk [vmem:[%s7 + $0x18] sm:$0xff] %vm8425, %v7817
  %8430 = vst.msk [vmem:[%s7 + $0x20] sm:$0xff] %vm8425, %v7822
  %8431 = vst.msk [vmem:[%s7 + $0x28] sm:$0xff] %vm8425, %v7827
  %8432 = vst.msk [vmem:[%s7 + $0x30] sm:$0xff] %vm8425, %v7832
  %8433 = vst.msk [vmem:[%s7 + $0x38] sm:$0xff] %vm8425, %v7837
  %8434 = vst.msk [vmem:[%s7 + $0x40] sm:$0xff] %vm8425, %v7842
  %8435 = vst.msk [vmem:[%s7 + $0x48] sm:$0xff] %vm8425, %v7847
  %8436 = vst.msk [vmem:[%s7 + $0x50] sm:$0xff] %vm8425, %v7852
  %8437 = vst.msk [vmem:[%s7 + $0x58] sm:$0xff] %vm8425, %v7857
  %8438 = vst.msk [vmem:[%s7 + $0x60] sm:$0xff] %vm8425, %v7862
  %8439 = vst.msk [vmem:[%s7 + $0x68] sm:$0xff] %vm8425, %v7867
  %8440 = vst.msk [vmem:[%s7 + $0x70] sm:$0xff] %vm8425, %v7872
  %8441 = vst.msk [vmem:[%s7 + $0x78] sm:$0xff] %vm8425, %v7877
  %8442 = vst.msk [vmem:[%s7 + $0x80] sm:$0xff] %vm8425, %v7882
  %8443 = vst.msk [vmem:[%s7 + $0x88] sm:$0xff] %vm8425, %v7887
  %8444 = vst.msk [vmem:[%s7 + $0x90] sm:$0xff] %vm8425, %v7892
  %8445 = vst.msk [vmem:[%s7 + $0x98] sm:$0xff] %vm8425, %v7897
  %8446 = vst.msk [vmem:[%s7 + $0xa0] sm:$0xff] %vm8425, %v7902
  %8447 = vst.msk [vmem:[%s7 + $0xa8] sm:$0xff] %vm8425, %v7907
  %8448 = vst.msk [vmem:[%s7 + $0xb0] sm:$0xff] %vm8425, %v7912
  %8449 = vst.msk [vmem:[%s7 + $0xb8] sm:$0xff] %vm8425, %v7917
  %8450 = vst.msk [vmem:[%s7 + $0xc0] sm:$0xff] %vm8425, %v7922
  %8451 = vst.msk [vmem:[%s7 + $0xc8] sm:$0xff] %vm8425, %v7927
  %8452 = vst.msk [vmem:[%s7 + $0xd0] sm:$0xff] %vm8425, %v7932
  %8453 = vst.msk [vmem:[%s7 + $0xd8] sm:$0xff] %vm8425, %v7937
  %8454 = vst.msk [vmem:[%s7 + $0xe0] sm:$0xff] %vm8425, %v7942
  %8455 = vst.msk [vmem:[%s7 + $0xe8] sm:$0xff] %vm8425, %v7947
  %8456 = vst.msk [vmem:[%s7 + $0xf0] sm:$0xff] %vm8425, %v7952
  %8457 = vst.msk [vmem:[%s7 + $0xf8] sm:$0xff] %vm8425, %v7957
  %8458 = vst.msk [vmem:[%s7 + $0x100] sm:$0xff] %vm8425, %v7962
  %8459 = vst.msk [vmem:[%s7 + $0x108] sm:$0xff] %vm8425, %v7967
  %8460 = vst.msk [vmem:[%s7 + $0x110] sm:$0xff] %vm8425, %v7972
  %8461 = vst.msk [vmem:[%s7 + $0x118] sm:$0xff] %vm8425, %v7977
  %8462 = vst.msk [vmem:[%s7 + $0x120] sm:$0xff] %vm8425, %v7982
  %8463 = vst.msk [vmem:[%s7 + $0x128] sm:$0xff] %vm8425, %v7987
  %8464 = vst.msk [vmem:[%s7 + $0x130] sm:$0xff] %vm8425, %v7992
  %8465 = vst.msk [vmem:[%s7 + $0x138] sm:$0xff] %vm8425, %v7997
  %8466 = vst.msk [vmem:[%s7 + $0x140] sm:$0xff] %vm8425, %v8002
  %8467 = vst.msk [vmem:[%s7 + $0x148] sm:$0xff] %vm8425, %v8007
  %8468 = vst.msk [vmem:[%s7 + $0x150] sm:$0xff] %vm8425, %v8012
  %8469 = vst.msk [vmem:[%s7 + $0x158] sm:$0xff] %vm8425, %v8017
  %8470 = vst.msk [vmem:[%s7 + $0x160] sm:$0xff] %vm8425, %v8022
  %8471 = vst.msk [vmem:[%s7 + $0x168] sm:$0xff] %vm8425, %v8027
  %8472 = vst.msk [vmem:[%s7 + $0x170] sm:$0xff] %vm8425, %v8032
  %8473 = vst.msk [vmem:[%s7 + $0x178] sm:$0xff] %vm8425, %v8037
  %8474 = vst.msk [vmem:[%s7 + $0x180] sm:$0xff] %vm8425, %v8042
  %8475 = vst.msk [vmem:[%s7 + $0x188] sm:$0xff] %vm8425, %v8047
  %8476 = vst.msk [vmem:[%s7 + $0x190] sm:$0xff] %vm8425, %v8052
  %8477 = vst.msk [vmem:[%s7 + $0x198] sm:$0xff] %vm8425, %v8057
  %8478 = vst.msk [vmem:[%s7 + $0x1a0] sm:$0xff] %vm8425, %v8062
  %8479 = vst.msk [vmem:[%s7 + $0x1a8] sm:$0xff] %vm8425, %v8067
  %8480 = vst.msk [vmem:[%s7 + $0x1b0] sm:$0xff] %vm8425, %v8072
  %8481 = vst.msk [vmem:[%s7 + $0x1b8] sm:$0xff] %vm8425, %v8077
  %8482 = vst.msk [vmem:[%s7 + $0x1c0] sm:$0xff] %vm8425, %v8082
  %8483 = vst.msk [vmem:[%s7 + $0x1c8] sm:$0xff] %vm8425, %v8087
  %8484 = vst.msk [vmem:[%s7 + $0x1d0] sm:$0xff] %vm8425, %v8092
  %8485 = vst.msk [vmem:[%s7 + $0x1d8] sm:$0xff] %vm8425, %v8097
  %8486 = vst.msk [vmem:[%s7 + $0x1e0] sm:$0xff] %vm8425, %v8102
  %8487 = vst.msk [vmem:[%s7 + $0x1e8] sm:$0xff] %vm8425, %v8107
  %8488 = vst.msk [vmem:[%s7 + $0x1f0] sm:$0xff] %vm8425, %v8112
  %8489 = vst.msk [vmem:[%s7 + $0x1f8] sm:$0xff] %vm8425, %v8117
  %8490 = vst.msk [vmem:[%s7 + $0x200] sm:$0xff] %vm8425, %v8122
  %8491 = vst.msk [vmem:[%s7 + $0x208] sm:$0xff] %vm8425, %v8127
  %8492 = vst.msk [vmem:[%s7 + $0x210] sm:$0xff] %vm8425, %v8132
  %8493 = vst.msk [vmem:[%s7 + $0x218] sm:$0xff] %vm8425, %v8137
  %8494 = vst.msk [vmem:[%s7 + $0x220] sm:$0xff] %vm8425, %v8142
  %8495 = vst.msk [vmem:[%s7 + $0x228] sm:$0xff] %vm8425, %v8147
  %8496 = vst.msk [vmem:[%s7 + $0x230] sm:$0xff] %vm8425, %v8152
  %8497 = vst.msk [vmem:[%s7 + $0x238] sm:$0xff] %vm8425, %v8157
  %8498 = vst.msk [vmem:[%s7 + $0x240] sm:$0xff] %vm8425, %v8162
  %8499 = vst.msk [vmem:[%s7 + $0x248] sm:$0xff] %vm8425, %v8167
  %8500 = vst.msk [vmem:[%s7 + $0x250] sm:$0xff] %vm8425, %v8172
  %8501 = vst.msk [vmem:[%s7 + $0x258] sm:$0xff] %vm8425, %v8177
  %8502 = vst.msk [vmem:[%s7 + $0x260] sm:$0xff] %vm8425, %v8182
  %8503 = vst.msk [vmem:[%s7 + $0x268] sm:$0xff] %vm8425, %v8187
  %8504 = vst.msk [vmem:[%s7 + $0x270] sm:$0xff] %vm8425, %v8192
  %8505 = vst.msk [vmem:[%s7 + $0x278] sm:$0xff] %vm8425, %v8197
  %8506 = vst.msk [vmem:[%s7 + $0x280] sm:$0xff] %vm8425, %v8202
  %8507 = vst.msk [vmem:[%s7 + $0x288] sm:$0xff] %vm8425, %v8207
  %8508 = vst.msk [vmem:[%s7 + $0x290] sm:$0xff] %vm8425, %v8212
  %8509 = vst.msk [vmem:[%s7 + $0x298] sm:$0xff] %vm8425, %v8217
  %8510 = vst.msk [vmem:[%s7 + $0x2a0] sm:$0xff] %vm8425, %v8222
  %8511 = vst.msk [vmem:[%s7 + $0x2a8] sm:$0xff] %vm8425, %v8227
  %8512 = vst.msk [vmem:[%s7 + $0x2b0] sm:$0xff] %vm8425, %v8232
  %8513 = vst.msk [vmem:[%s7 + $0x2b8] sm:$0xff] %vm8425, %v8237
  %8514 = vst.msk [vmem:[%s7 + $0x2c0] sm:$0xff] %vm8425, %v8242
  %8515 = vst.msk [vmem:[%s7 + $0x2c8] sm:$0xff] %vm8425, %v8247
  %8516 = vst.msk [vmem:[%s7 + $0x2d0] sm:$0xff] %vm8425, %v8252
  %8517 = vst.msk [vmem:[%s7 + $0x2d8] sm:$0xff] %vm8425, %v8257
  %8518 = vst.msk [vmem:[%s7 + $0x2e0] sm:$0xff] %vm8425, %v8262
  %8519 = vst.msk [vmem:[%s7 + $0x2e8] sm:$0xff] %vm8425, %v8267
  %8520 = vst.msk [vmem:[%s7 + $0x2f0] sm:$0xff] %vm8425, %v8272
  %8521 = vst.msk [vmem:[%s7 + $0x2f8] sm:$0xff] %vm8425, %v8277
  %8522 = vst.msk [vmem:[%s7 + $0x300] sm:$0xff] %vm8425, %v8282
  %8523 = vst.msk [vmem:[%s7 + $0x308] sm:$0xff] %vm8425, %v8287
  %8524 = vst.msk [vmem:[%s7 + $0x310] sm:$0xff] %vm8425, %v8292
  %8525 = vst.msk [vmem:[%s7 + $0x318] sm:$0xff] %vm8425, %v8297
  %8526 = vst.msk [vmem:[%s7 + $0x320] sm:$0xff] %vm8425, %v8302
  %8527 = vst.msk [vmem:[%s7 + $0x328] sm:$0xff] %vm8425, %v8307
  %8528 = vst.msk [vmem:[%s7 + $0x330] sm:$0xff] %vm8425, %v8312
  %8529 = vst.msk [vmem:[%s7 + $0x338] sm:$0xff] %vm8425, %v8317
  %8530 = vst.msk [vmem:[%s7 + $0x340] sm:$0xff] %vm8425, %v8322
  %8531 = vst.msk [vmem:[%s7 + $0x348] sm:$0xff] %vm8425, %v8327
  %8532 = vst.msk [vmem:[%s7 + $0x350] sm:$0xff] %vm8425, %v8332
  %8533 = vst.msk [vmem:[%s7 + $0x358] sm:$0xff] %vm8425, %v8337
  %8534 = vst.msk [vmem:[%s7 + $0x360] sm:$0xff] %vm8425, %v8342
  %8535 = vst.msk [vmem:[%s7 + $0x368] sm:$0xff] %vm8425, %v8347
  %8536 = vst.msk [vmem:[%s7 + $0x370] sm:$0xff] %vm8425, %v8352
  %8537 = vst.msk [vmem:[%s7 + $0x378] sm:$0xff] %vm8425, %v8357
  %8538 = vst.msk [vmem:[%s7 + $0x380] sm:$0xff] %vm8425, %v8362
  %8539 = vst.msk [vmem:[%s7 + $0x388] sm:$0xff] %vm8425, %v8367
  %8540 = vst.msk [vmem:[%s7 + $0x390] sm:$0xff] %vm8425, %v8372
  %8541 = vst.msk [vmem:[%s7 + $0x398] sm:$0xff] %vm8425, %v8377
  %8542 = vst.msk [vmem:[%s7 + $0x3a0] sm:$0xff] %vm8425, %v8382
  %8543 = vst.msk [vmem:[%s7 + $0x3a8] sm:$0xff] %vm8425, %v8387
  %8544 = vst.msk [vmem:[%s7 + $0x3b0] sm:$0xff] %vm8425, %v8392
  %8545 = vst.msk [vmem:[%s7 + $0x3b8] sm:$0xff] %vm8425, %v8397
  %8546 = vst.msk [vmem:[%s7 + $0x3c0] sm:$0xff] %vm8425, %v8402
  %8547 = vst.msk [vmem:[%s7 + $0x3c8] sm:$0xff] %vm8425, %v8407
  %8548 = vst.msk [vmem:[%s7 + $0x3d0] sm:$0xff] %vm8425, %v8412
  %8549 = vst.msk [vmem:[%s7 + $0x3d8] sm:$0xff] %vm8425, %v8417
  %8550 = vst.msk [vmem:[%s7 + $0x3e0] sm:$0xff] %vm8425, %v8422
  // Predicated region
  $region30: #{tpu_custom_call.1} parent=0 // pred_check
    _
  $region31: #{tpu_custom_call.1} parent=0 // pred_check_branch
    %8552 = sbr.rel (0) target = $region33
  $region32: #{tpu_custom_call.1} parent=0 // pred_region
    _
  $region33: #{tpu_custom_call.1} parent=0 // pred_fallthru
    _
  // Predicated region
  $region34: #{tpu_custom_call.1} parent=0 // pred_check
    _
  $region35: #{tpu_custom_call.1} parent=0 // pred_check_branch
    %8554 = sbr.rel (0) target = $region37
  $region36: #{tpu_custom_call.1} parent=0 // pred_region
    _
  $region37: #{tpu_custom_call.1} parent=0 // pred_fallthru
    _

</llo_original>
